<compile_context>
chip_gen: v5e
topology: v5e:2x2
jax: 0.10.0
libtpu: 0.0.40
codegen_flags: <defaults>
</compile_context>

<pallas_src>
import functools
import math

import jax
import jax.numpy as jnp
from jax import lax
from jax.experimental import pallas as pl
from jax.experimental.pallas import tpu as pltpu

_HIGH = jax.lax.Precision.HIGHEST
_NEG = -1e9


def attn_pool_kernel(x_ref, mask_ref, q_all_ref, msel_ref, sbias_ref,
                     wkv_ref, wo_ref, small_ref, bdiag_ref, colexp_ref,
                     fold_ref, out_ref):
    """One grid step = P pooling problems, fully vectorized (no inner loops).

    x_ref     : (P*S, E)     per-step x rows (advances with the grid)
    mask_ref  : (P*R, S)     per-step additive mask, pre-tiled over heads
    q_all_ref : (P*R, E)     resident: LN'd, projected, scaled, lane-masked q
    msel_ref  : (P*R, E)     resident: head-lane selector
    sbias_ref : (P*R, 1)     resident: score of the learned bias_kv key
    wkv_ref   : (E, 2E)      resident: [key|value] projection, LN affines folded
    wo_ref    : (E, E)       resident: output projection
    small_ref : (8, E)       resident rows: [bk_fold, bv_fold, bias_v, g2, b2, 0,0,0]
    bdiag_ref : (P*R, P*S)   resident: 0 on own-problem blocks, -1e9 elsewhere
    colexp_ref: (S, P*S)     resident: tiles the (., S) mask across column blocks
    fold_ref  : (P*bs, P*R)  resident: 0/1 head-fold selector
    out_ref   : (P*bs, E)    per-step output block
    """
    f32 = jnp.float32
    E = x_ref.shape[1]

    # Un-affined LayerNorm of all P*S key/value tokens at once (affines are
    # folded into wkv); the same normalized rows feed the key AND value path.
    x = x_ref[...]
    mu = jnp.mean(x, axis=-1, keepdims=True)
    var = jnp.mean((x - mu) ** 2, axis=-1, keepdims=True)
    hat = (x - mu) * lax.rsqrt(var + 1e-5)                      # (P*S, E)

    # Fused K/V projection: one MXU pass with M = P*S rows.
    proj = jnp.dot(hat, wkv_ref[...], preferred_element_type=f32)   # (P*S, 2E)
    sm = small_ref[...]
    k_all = proj[:, :E] + sm[0:1]                               # (P*S, E)
    v_all = proj[:, E:] + sm[1:2]                               # (P*S, E)

    # Scores for every (problem, head, batch) row against every (problem, key)
    # column in one matmul.  Cross-problem blocks are killed by the resident
    # block-diagonal additive mask; the per-problem mask is broadcast to all
    # column blocks by a tiny selector matmul (off-diagonal copies land on
    # -1e9 anyway, so only the own-problem block matters).
    q_all = q_all_ref[...]                                      # (P*R, E)
    scores = jnp.dot(q_all, k_all.T, preferred_element_type=f32)    # (P*R, P*S)
    scores = scores + bdiag_ref[...]
    scores = scores + jnp.dot(mask_ref[...], colexp_ref[...],
                              preferred_element_type=f32)

    # Softmax over the S real keys of the own problem plus the learned bias_kv
    # key (rank-1 term: score precomputed per row, value added below).
    s_bias = sbias_ref[...]                                     # (P*R, 1)
    mx = jnp.maximum(jnp.max(scores, axis=-1, keepdims=True), s_bias)
    p = jnp.exp(scores - mx)                                    # off-problem -> exactly 0
    p_b = jnp.exp(s_bias - mx)                                  # (P*R, 1)
    inv = pl.reciprocal(jnp.sum(p, axis=-1, keepdims=True) + p_b, approx=False)

    ctx = (jnp.dot(p, v_all, preferred_element_type=f32)
           + p_b * sm[2:3]) * msel_ref[...] * inv               # (P*R, E)

    # Head fold: pooled[p*bs + b] = sum_h ctx[p*R + h*bs + b], done as a single
    # matmul with the resident 0/1 selector (free MXU slot, no sublane loops).
    pooled = jnp.dot(fold_ref[...], ctx, preferred_element_type=f32)   # (P*bs, E)

    # Output projection + norm2.  dropout_sa has p=0.0 -> identity.
    # TODO(synk): dropout (p=0.0) and add_zero_attn=False are identities, omitted.
    o = jnp.dot(pooled, wo_ref[...], preferred_element_type=f32)       # (P*bs, E)
    mu2 = jnp.mean(o, axis=-1, keepdims=True)
    var2 = jnp.mean((o - mu2) ** 2, axis=-1, keepdims=True)
    out_ref[...] = (o - mu2) * lax.rsqrt(var2 + 1e-5) * sm[3:4] + sm[4:5]


def attn_pool_batched(x, attn_mask, query_token, params, num_heads,
                      problems_per_step=16, interpret=False):
    """Batched AttnPool.

    x          : (NP, S, E)  float32 — NP independent pooling problems
    attn_mask  : (NP, bs, S) additive float mask per problem
    query_token: (1, E)
    Returns (NP, bs, E).
    """
    f32 = jnp.float32
    x = x.astype(f32)
    attn_mask = attn_mask.astype(f32)
    NP, S, E = x.shape
    bs = attn_mask.shape[1]
    H = num_heads
    hd = E // H
    R = H * bs
    inv_s = 1.0 / math.sqrt(hd)

    g_q, b_q = params["g_q"].astype(f32), params["b_q"].astype(f32)
    g_v, b_v = params["g_v"].astype(f32), params["b_v"].astype(f32)
    g_k, b_k = params["g_k"].astype(f32), params["b_k"].astype(f32)
    wq_t, wk_t = params["wq"].T.astype(f32), params["wk"].T.astype(f32)
    wv_t, wo_t = params["wv"].T.astype(f32), params["wo"].T.astype(f32)
    bias_k = params["bias_k"].astype(f32)
    bias_v = params["bias_v"].astype(f32)

    # ---------- trace-time parameter folding (done once per call) -----------
    # LN affines folded into the K/V projections.  The module feeds norm_v(x)
    # as the KEY and norm_k(x) as the VALUE.
    w_kv = jnp.concatenate([g_v.reshape(E, 1) * wk_t,
                            g_k.reshape(E, 1) * wv_t], axis=1)          # (E, 2E)

    # Query path depends only on parameters (query_token is identical for all
    # batch rows and problems) -> LN + projection + 1/sqrt(hd) hoisted here.
    qt = query_token.astype(f32)
    mu = jnp.mean(qt, axis=-1, keepdims=True)
    var = jnp.mean((qt - mu) ** 2, axis=-1, keepdims=True)
    q_ln = (qt - mu) * lax.rsqrt(var + 1e-5) * g_q + b_q
    q_row = jnp.dot(q_ln, wq_t, precision=_HIGH) * inv_s                # (1, E)

    # Head selector: m_sel[r, e] = 1 iff lane e belongs to head r // bs.
    m_sel = ((jnp.arange(E)[None, :] // hd)
             == (jnp.arange(R)[:, None] // bs)).astype(f32)             # (R, E)
    q_sel = q_row * m_sel                                               # (R, E)
    s_bias = jnp.dot(q_sel, bias_k.T, precision=_HIGH)                  # (R, 1)

    small = jnp.concatenate([
        jnp.dot(b_v, wk_t, precision=_HIGH),     # folded key-path LN bias
        jnp.dot(b_k, wv_t, precision=_HIGH),     # folded value-path LN bias
        bias_v,                                  # learned extra value token
        params["g_2"].astype(f32),               # norm2 gamma
        params["b_2"].astype(f32),               # norm2 beta
        jnp.zeros((3, E), f32),                  # pad to 8 sublanes
    ], axis=0)                                                           # (8, E)

    # ---------- batching / padding ------------------------------------------
    P = max(1, min(problems_per_step, NP))
    np_pad = ((NP + P - 1) // P) * P
    if np_pad != NP:
        x = jnp.concatenate([x, jnp.zeros((np_pad - NP, S, E), f32)], axis=0)
        attn_mask = jnp.concatenate(
            [attn_mask, jnp.zeros((np_pad - NP, bs, S), f32)], axis=0)
    nsteps = np_pad // P
    if (P * S) % 8 or (P * R) % 8 or (P * bs) % 8:
        raise ValueError("P*S, P*R and P*bs must be multiples of 8 for TPU tiling")

    x_flat = x.reshape(np_pad * S, E)                          # row n*S + s
    # Tile the per-problem (bs, S) mask over heads: row n*R + h*bs + b.
    mask_flat = jnp.tile(attn_mask, (1, H, 1)).reshape(np_pad * R, S)

    # Resident constants (constant block index -> DMA'd once, stay in VMEM).
    q_all = jnp.tile(q_sel, (P, 1))                            # (P*R, E)
    msel_all = jnp.tile(m_sel, (P, 1))                         # (P*R, E)
    sbias_all = jnp.tile(s_bias, (P, 1))                       # (P*R, 1)
    bdiag = (1.0 - jnp.kron(jnp.eye(P, dtype=f32),
                            jnp.ones((R, S), f32))) * _NEG     # (P*R, P*S)
    colexp = jnp.tile(jnp.eye(S, dtype=f32), (1, P))           # (S, P*S)
    fold = jnp.kron(jnp.eye(P, dtype=f32),
                    jnp.tile(jnp.eye(bs, dtype=f32), (1, H)))  # (P*bs, P*R)

    def const_spec(shape):
        return pl.BlockSpec(shape, lambda g: (0, 0))

    grid_spec = pltpu.PrefetchScalarGridSpec(
        num_scalar_prefetch=0,
        grid=(nsteps,),
        in_specs=[
            pl.BlockSpec((P * S, E), lambda g: (g, 0)),   # x rows     (advance)
            pl.BlockSpec((P * R, S), lambda g: (g, 0)),   # mask rows  (advance)
            const_spec((P * R, E)),                       # q_all      (resident)
            const_spec((P * R, E)),                       # msel_all   (resident)
            const_spec((P * R, 1)),                       # sbias_all  (resident)
            const_spec((E, 2 * E)),                       # w_kv       (resident)
            const_spec((E, E)),                           # w_o        (resident)
            const_spec((8, E)),                           # small rows (resident)
            const_spec((P * R, P * S)),                   # block-diag (resident)
            const_spec((S, P * S)),                       # col expander (resident)
            const_spec((P * bs, P * R)),                  # head fold  (resident)
        ],
        out_specs=pl.BlockSpec((P * bs, E), lambda g: (g, 0)),
    )

    out_flat = pl.pallas_call(
        attn_pool_kernel,
        out_shape=jax.ShapeDtypeStruct((np_pad * bs, E), f32),
        grid_spec=grid_spec,
        compiler_params=pltpu.CompilerParams(
            dimension_semantics=("parallel",)),   # shard problems over v7x's 2 TCs
        interpret=interpret,
    )(x_flat, mask_flat, q_all, msel_all, sbias_all, w_kv, wo_t, small,
      bdiag, colexp, fold)

    return out_flat.reshape(np_pad, bs, E)[:NP]


# ------------------------------- reference ----------------------------------
def _layernorm(v, gamma, beta, eps=1e-5):
    mu = jnp.mean(v, axis=-1, keepdims=True)
    var = jnp.mean((v - mu) ** 2, axis=-1, keepdims=True)
    return (v - mu) * lax.rsqrt(var + eps) * gamma + beta


def attn_pool_reference(x, attn_mask, query_token, params, num_heads):
    """Pure-JAX reference mirroring F.multi_head_attention_forward (1 problem)."""
    bs = attn_mask.shape[0]
    S, E = x.shape
    hd = E // num_heads

    q_in = _layernorm(jnp.broadcast_to(query_token, (bs, E)),
                      params["g_q"], params["b_q"])
    key_in = _layernorm(x, params["g_v"], params["b_v"])
    val_in = _layernorm(x, params["g_k"], params["b_k"])

    q = jnp.dot(q_in, params["wq"].T, precision=_HIGH)
    k = jnp.concatenate([jnp.dot(key_in, params["wk"].T, precision=_HIGH),
                         params["bias_k"]], axis=0)                    # (S+1, E)
    v = jnp.concatenate([jnp.dot(val_in, params["wv"].T, precision=_HIGH),
                         params["bias_v"]], axis=0)                    # (S+1, E)
    mask = jnp.pad(attn_mask, ((0, 0), (0, 1)))                        # bias-kv col = 0

    qh = q.reshape(bs, num_heads, hd)
    kh = k.reshape(S + 1, num_heads, hd)
    vh = v.reshape(S + 1, num_heads, hd)
    s = jnp.einsum("bhd,shd->hbs", qh, kh, precision=_HIGH) / math.sqrt(hd) + mask[None]
    a = jax.nn.softmax(s, axis=-1)
    ctx = jnp.einsum("hbs,shd->bhd", a, vh, precision=_HIGH).reshape(bs, E)
    out = jnp.dot(ctx, params["wo"].T, precision=_HIGH)
    return _layernorm(out, params["g_2"], params["b_2"])


def make_params(key, embed_dim):
    ks = jax.random.split(key, 6)
    E = embed_dim
    in_proj = 0.05 * jax.random.normal(ks[0], (3 * E, E), jnp.float32)
    params = {
        "query_token": 0.02 * jax.random.normal(ks[1], (1, E), jnp.float32),
        "wq": in_proj[:E], "wk": in_proj[E:2 * E], "wv": in_proj[2 * E:],
        "wo": 0.05 * jax.random.normal(ks[2], (E, E), jnp.float32),
        "bias_k": 0.05 * jax.random.normal(ks[3], (1, E), jnp.float32),
        "bias_v": 0.05 * jax.random.normal(ks[4], (1, E), jnp.float32),
    }
    # LayerNorm params (PyTorch default init: gamma=1, beta=0), shaped (1, E).
    for name in ("q", "v", "k", "2"):
        params[f"g_{name}"] = jnp.ones((1, E), jnp.float32)
        params[f"b_{name}"] = jnp.zeros((1, E), jnp.float32)
    return params


if __name__ == "__main__":
    embed_dim, num_heads = 32, 4
    S, bs = 16, 8                 # S tokens ("cells") pooled into bs outputs
    num_problems = 64             # many pooling problems batched under one grid
    problems_per_step = 16        # -> 256 projection rows / 512 score rows per step

    root = jax.random.PRNGKey(0)
    k_params, k_x = jax.random.split(root)
    params = make_params(k_params, embed_dim)

    x = jax.random.normal(k_x, (num_problems, S, embed_dim), jnp.float32)
    # Per-problem boolean pooling masks (True = not attendable) -> additive float.
    shifts = jnp.arange(num_problems)[:, None, None]
    tok = jnp.arange(S)[None, None, :]
    row = jnp.arange(bs)[None, :, None]
    mask_bool = ((tok + shifts) % bs) != row
    attn_mask = jnp.where(mask_bool, -1e9, 0.0).astype(jnp.float32)    # (NP, bs, S)

    fn = jax.jit(functools.partial(attn_pool_batched, num_heads=num_heads,
                                   problems_per_step=problems_per_step))
    out = fn(x, attn_mask, params["query_token"], params)
    out = jax.block_until_ready(out)

    ref = jax.vmap(lambda xi, mi: attn_pool_reference(
        xi, mi, params["query_token"], params, num_heads))(x, attn_mask)

    assert out.shape == (num_problems, bs, embed_dim)
    err = float(jnp.max(jnp.abs(out - ref)))
    assert err < 1e-4, f"Pallas kernel disagrees with JAX reference (max abs err {err})"
    print("KERNEL_OK")
</pallas_src>

<mosaic_0001>
module attributes {stable_mosaic.version = 11 : i64} {
  func.func @attn_pool_kernel(%arg0: i32, %arg1: memref<256x32xf32, #tpu.memory_space<vmem>>, %arg2: memref<512x16xf32, #tpu.memory_space<vmem>>, %arg3: memref<512x32xf32, #tpu.memory_space<vmem>>, %arg4: memref<512x32xf32, #tpu.memory_space<vmem>>, %arg5: memref<512x1xf32, #tpu.memory_space<vmem>>, %arg6: memref<32x64xf32, #tpu.memory_space<vmem>>, %arg7: memref<32x32xf32, #tpu.memory_space<vmem>>, %arg8: memref<8x32xf32, #tpu.memory_space<vmem>>, %arg9: memref<512x256xf32, #tpu.memory_space<vmem>>, %arg10: memref<16x256xf32, #tpu.memory_space<vmem>>, %arg11: memref<128x512xf32, #tpu.memory_space<vmem>>, %arg12: memref<128x32xf32, #tpu.memory_space<vmem>>) attributes {dimension_semantics = [#tpu.dimension_semantics<parallel>], iteration_bounds = array<i64: 4>, scalar_prefetch = 0 : i64, scratch_operands = 0 : i64, tpu.core_type = #tpu.core_type<tc>, window_params = [{transform_indices = @transform_0, window_bounds = array<i64: 256, 32>}, {transform_indices = @transform_1, window_bounds = array<i64: 512, 16>}, {pipeline_mode = #tpu.pipeline_mode<synchronous>, transform_indices = @transform_2, window_bounds = array<i64: 512, 32>}, {pipeline_mode = #tpu.pipeline_mode<synchronous>, transform_indices = @transform_3, window_bounds = array<i64: 512, 32>}, {pipeline_mode = #tpu.pipeline_mode<synchronous>, transform_indices = @transform_4, window_bounds = array<i64: 512, 1>}, {pipeline_mode = #tpu.pipeline_mode<synchronous>, transform_indices = @transform_5, window_bounds = array<i64: 32, 64>}, {pipeline_mode = #tpu.pipeline_mode<synchronous>, transform_indices = @transform_6, window_bounds = array<i64: 32, 32>}, {pipeline_mode = #tpu.pipeline_mode<synchronous>, transform_indices = @transform_7, window_bounds = array<i64: 8, 32>}, {pipeline_mode = #tpu.pipeline_mode<synchronous>, transform_indices = @transform_8, window_bounds = array<i64: 512, 256>}, {pipeline_mode = #tpu.pipeline_mode<synchronous>, transform_indices = @transform_9, window_bounds = array<i64: 16, 256>}, {pipeline_mode = #tpu.pipeline_mode<synchronous>, transform_indices = @transform_10, window_bounds = array<i64: 128, 512>}, {transform_indices = @transform_11, window_bounds = array<i64: 128, 32>}]} {
    %c0 = arith.constant 0 : index
    %c0_0 = arith.constant 0 : index
    %0 = vector.load %arg1[%c0, %c0_0] : memref<256x32xf32, #tpu.memory_space<vmem>>, vector<256x32xf32>
    %cst = arith.constant dense<0.000000e+00> : vector<256xf32>
    %1 = vector.multi_reduction <add>, %0, %cst [1] : vector<256x32xf32> to vector<256xf32>
    %2 = vector.shape_cast %1 : vector<256xf32> to vector<256x1xf32>
    %cst_1 = arith.constant 3.200000e+01 : f32
    %3 = vector.broadcast %cst_1 : f32 to vector<256x1xf32>
    %4 = arith.divf %2, %3 : vector<256x1xf32>
    %5 = vector.broadcast %4 : vector<256x1xf32> to vector<256x32xf32>
    %6 = arith.subf %0, %5 : vector<256x32xf32>
    %7 = arith.mulf %6, %6 : vector<256x32xf32>
    %cst_2 = arith.constant dense<0.000000e+00> : vector<256xf32>
    %8 = vector.multi_reduction <add>, %7, %cst_2 [1] : vector<256x32xf32> to vector<256xf32>
    %9 = vector.shape_cast %8 : vector<256xf32> to vector<256x1xf32>
    %cst_3 = arith.constant 3.200000e+01 : f32
    %10 = vector.broadcast %cst_3 : f32 to vector<256x1xf32>
    %11 = arith.divf %9, %10 : vector<256x1xf32>
    %12 = vector.broadcast %4 : vector<256x1xf32> to vector<256x32xf32>
    %13 = arith.subf %0, %12 : vector<256x32xf32>
    %cst_4 = arith.constant 9.99999974E-6 : f32
    %14 = vector.broadcast %cst_4 : f32 to vector<256x1xf32>
    %15 = arith.addf %11, %14 : vector<256x1xf32>
    %16 = math.rsqrt %15 : vector<256x1xf32>
    %17 = vector.broadcast %16 : vector<256x1xf32> to vector<256x32xf32>
    %18 = arith.mulf %13, %17 : vector<256x32xf32>
    %c0_5 = arith.constant 0 : index
    %c0_6 = arith.constant 0 : index
    %19 = vector.load %arg6[%c0_5, %c0_6] : memref<32x64xf32, #tpu.memory_space<vmem>>, vector<32x64xf32>
    %cst_7 = arith.constant dense<0.000000e+00> : vector<256x64xf32>
    %20 = tpu.matmul %18, %19, %cst_7 {dimension_numbers = #tpu.dot_dimension_numbers<[1], [0], [0], [1], [0, 0, 1, 1], [], []>} : vector<256x32xf32>, vector<32x64xf32>, vector<256x64xf32> -> vector<256x64xf32>
    %c0_8 = arith.constant 0 : index
    %c0_9 = arith.constant 0 : index
    %21 = vector.load %arg8[%c0_8, %c0_9] : memref<8x32xf32, #tpu.memory_space<vmem>>, vector<8x32xf32>
    %22 = vector.extract_strided_slice %20 {offsets = [0, 0], sizes = [256, 32], strides = [1, 1]} : vector<256x64xf32> to vector<256x32xf32>
    %23 = vector.extract_strided_slice %21 {offsets = [0, 0], sizes = [1, 32], strides = [1, 1]} : vector<8x32xf32> to vector<1x32xf32>
    %24 = vector.broadcast %23 : vector<1x32xf32> to vector<256x32xf32>
    %25 = arith.addf %22, %24 : vector<256x32xf32>
    %26 = vector.extract_strided_slice %20 {offsets = [0, 32], sizes = [256, 32], strides = [1, 1]} : vector<256x64xf32> to vector<256x32xf32>
    %27 = vector.extract_strided_slice %21 {offsets = [1, 0], sizes = [1, 32], strides = [1, 1]} : vector<8x32xf32> to vector<1x32xf32>
    %28 = vector.broadcast %27 : vector<1x32xf32> to vector<256x32xf32>
    %29 = arith.addf %26, %28 : vector<256x32xf32>
    %c0_10 = arith.constant 0 : index
    %c0_11 = arith.constant 0 : index
    %30 = vector.load %arg3[%c0_10, %c0_11] : memref<512x32xf32, #tpu.memory_space<vmem>>, vector<512x32xf32>
    %31 = tpu.transpose %25, [1, 0] : vector<256x32xf32> -> vector<32x256xf32>
    %cst_12 = arith.constant dense<0.000000e+00> : vector<512x256xf32>
    %32 = tpu.matmul %30, %31, %cst_12 {dimension_numbers = #tpu.dot_dimension_numbers<[1], [0], [0], [1], [0, 0, 1, 1], [], []>} : vector<512x32xf32>, vector<32x256xf32>, vector<512x256xf32> -> vector<512x256xf32>
    %c0_13 = arith.constant 0 : index
    %c0_14 = arith.constant 0 : index
    %33 = vector.load %arg9[%c0_13, %c0_14] : memref<512x256xf32, #tpu.memory_space<vmem>>, vector<512x256xf32>
    %34 = arith.addf %32, %33 : vector<512x256xf32>
    %c0_15 = arith.constant 0 : index
    %c0_16 = arith.constant 0 : index
    %35 = vector.load %arg2[%c0_15, %c0_16] : memref<512x16xf32, #tpu.memory_space<vmem>>, vector<512x16xf32>
    %c0_17 = arith.constant 0 : index
    %c0_18 = arith.constant 0 : index
    %36 = vector.load %arg10[%c0_17, %c0_18] : memref<16x256xf32, #tpu.memory_space<vmem>>, vector<16x256xf32>
    %cst_19 = arith.constant dense<0.000000e+00> : vector<512x256xf32>
    %37 = tpu.matmul %35, %36, %cst_19 {dimension_numbers = #tpu.dot_dimension_numbers<[1], [0], [0], [1], [0, 0, 1, 1], [], []>} : vector<512x16xf32>, vector<16x256xf32>, vector<512x256xf32> -> vector<512x256xf32>
    %38 = arith.addf %34, %37 : vector<512x256xf32>
    %c0_20 = arith.constant 0 : index
    %c0_21 = arith.constant 0 : index
    %39 = vector.load %arg5[%c0_20, %c0_21] : memref<512x1xf32, #tpu.memory_space<vmem>>, vector<512x1xf32>
    %cst_22 = arith.constant dense<0xFF800000> : vector<512xf32>
    %40 = vector.multi_reduction <maximumf>, %38, %cst_22 [1] : vector<512x256xf32> to vector<512xf32>
    %41 = vector.shape_cast %40 : vector<512xf32> to vector<512x1xf32>
    %42 = arith.maximumf %41, %39 : vector<512x1xf32>
    %43 = vector.broadcast %42 : vector<512x1xf32> to vector<512x256xf32>
    %44 = arith.subf %38, %43 : vector<512x256xf32>
    %45 = math.exp %44 : vector<512x256xf32>
    %46 = arith.subf %39, %42 : vector<512x1xf32>
    %47 = math.exp %46 : vector<512x1xf32>
    %cst_23 = arith.constant dense<0.000000e+00> : vector<512xf32>
    %48 = vector.multi_reduction <add>, %45, %cst_23 [1] : vector<512x256xf32> to vector<512xf32>
    %49 = vector.shape_cast %48 : vector<512xf32> to vector<512x1xf32>
    %50 = arith.addf %49, %47 : vector<512x1xf32>
    %51 = tpu.reciprocal %50 : vector<512x1xf32> -> vector<512x1xf32>
    %cst_24 = arith.constant dense<0.000000e+00> : vector<512x32xf32>
    %52 = tpu.matmul %45, %29, %cst_24 {dimension_numbers = #tpu.dot_dimension_numbers<[1], [0], [0], [1], [0, 0, 1, 1], [], []>} : vector<512x256xf32>, vector<256x32xf32>, vector<512x32xf32> -> vector<512x32xf32>
    %53 = vector.extract_strided_slice %21 {offsets = [2, 0], sizes = [1, 32], strides = [1, 1]} : vector<8x32xf32> to vector<1x32xf32>
    %54 = vector.broadcast %47 : vector<512x1xf32> to vector<512x32xf32>
    %55 = vector.broadcast %53 : vector<1x32xf32> to vector<512x32xf32>
    %56 = arith.mulf %54, %55 : vector<512x32xf32>
    %57 = arith.addf %52, %56 : vector<512x32xf32>
    %c0_25 = arith.constant 0 : index
    %c0_26 = arith.constant 0 : index
    %58 = vector.load %arg4[%c0_25, %c0_26] : memref<512x32xf32, #tpu.memory_space<vmem>>, vector<512x32xf32>
    %59 = arith.mulf %57, %58 : vector<512x32xf32>
    %60 = vector.broadcast %51 : vector<512x1xf32> to vector<512x32xf32>
    %61 = arith.mulf %59, %60 : vector<512x32xf32>
    %c0_27 = arith.constant 0 : index
    %c0_28 = arith.constant 0 : index
    %62 = vector.load %arg11[%c0_27, %c0_28] : memref<128x512xf32, #tpu.memory_space<vmem>>, vector<128x512xf32>
    %cst_29 = arith.constant dense<0.000000e+00> : vector<128x32xf32>
    %63 = tpu.matmul %62, %61, %cst_29 {dimension_numbers = #tpu.dot_dimension_numbers<[1], [0], [0], [1], [0, 0, 1, 1], [], []>} : vector<128x512xf32>, vector<512x32xf32>, vector<128x32xf32> -> vector<128x32xf32>
    %c0_30 = arith.constant 0 : index
    %c0_31 = arith.constant 0 : index
    %64 = vector.load %arg7[%c0_30, %c0_31] : memref<32x32xf32, #tpu.memory_space<vmem>>, vector<32x32xf32>
    %cst_32 = arith.constant dense<0.000000e+00> : vector<128x32xf32>
    %65 = tpu.matmul %63, %64, %cst_32 {dimension_numbers = #tpu.dot_dimension_numbers<[1], [0], [0], [1], [0, 0, 1, 1], [], []>} : vector<128x32xf32>, vector<32x32xf32>, vector<128x32xf32> -> vector<128x32xf32>
    %cst_33 = arith.constant dense<0.000000e+00> : vector<128xf32>
    %66 = vector.multi_reduction <add>, %65, %cst_33 [1] : vector<128x32xf32> to vector<128xf32>
    %67 = vector.shape_cast %66 : vector<128xf32> to vector<128x1xf32>
    %cst_34 = arith.constant 3.200000e+01 : f32
    %68 = vector.broadcast %cst_34 : f32 to vector<128x1xf32>
    %69 = arith.divf %67, %68 : vector<128x1xf32>
    %70 = vector.broadcast %69 : vector<128x1xf32> to vector<128x32xf32>
    %71 = arith.subf %65, %70 : vector<128x32xf32>
    %72 = arith.mulf %71, %71 : vector<128x32xf32>
    %cst_35 = arith.constant dense<0.000000e+00> : vector<128xf32>
    %73 = vector.multi_reduction <add>, %72, %cst_35 [1] : vector<128x32xf32> to vector<128xf32>
    %74 = vector.shape_cast %73 : vector<128xf32> to vector<128x1xf32>
    %cst_36 = arith.constant 3.200000e+01 : f32
    %75 = vector.broadcast %cst_36 : f32 to vector<128x1xf32>
    %76 = arith.divf %74, %75 : vector<128x1xf32>
    %77 = vector.broadcast %69 : vector<128x1xf32> to vector<128x32xf32>
    %78 = arith.subf %65, %77 : vector<128x32xf32>
    %cst_37 = arith.constant 9.99999974E-6 : f32
    %79 = vector.broadcast %cst_37 : f32 to vector<128x1xf32>
    %80 = arith.addf %76, %79 : vector<128x1xf32>
    %81 = math.rsqrt %80 : vector<128x1xf32>
    %82 = vector.broadcast %81 : vector<128x1xf32> to vector<128x32xf32>
    %83 = arith.mulf %78, %82 : vector<128x32xf32>
    %84 = vector.extract_strided_slice %21 {offsets = [3, 0], sizes = [1, 32], strides = [1, 1]} : vector<8x32xf32> to vector<1x32xf32>
    %85 = vector.broadcast %84 : vector<1x32xf32> to vector<128x32xf32>
    %86 = arith.mulf %83, %85 : vector<128x32xf32>
    %87 = vector.extract_strided_slice %21 {offsets = [4, 0], sizes = [1, 32], strides = [1, 1]} : vector<8x32xf32> to vector<1x32xf32>
    %88 = vector.broadcast %87 : vector<1x32xf32> to vector<128x32xf32>
    %89 = arith.addf %86, %88 : vector<128x32xf32>
    %c0_38 = arith.constant 0 : index
    %c0_39 = arith.constant 0 : index
    %90 = vector.load %arg12[%c0_38, %c0_39] : memref<128x32xf32, #tpu.memory_space<vmem>>, vector<128x32xf32>
    tpu.vector_store %arg12[%c0_38, %c0_39], %89 {strides = array<i32>} : memref<128x32xf32, #tpu.memory_space<vmem>>, vector<128x32xf32>,
    return
  }
  func.func @transform_0(%arg0: i32) -> (i32, i32) {
    %c0_i32 = arith.constant 0 : i32
    %c0_i32_0 = arith.constant 0 : i32
    return %arg0, %c0_i32 : i32, i32
  }
  func.func @transform_1(%arg0: i32) -> (i32, i32) {
    %c0_i32 = arith.constant 0 : i32
    %c0_i32_0 = arith.constant 0 : i32
    return %arg0, %c0_i32 : i32, i32
  }
  func.func @transform_2(%arg0: i32) -> (i32, i32) {
    %c0_i32 = arith.constant 0 : i32
    %c0_i32_0 = arith.constant 0 : i32
    %c0_i32_1 = arith.constant 0 : i32
    return %c0_i32, %c0_i32_0 : i32, i32
  }
  func.func @transform_3(%arg0: i32) -> (i32, i32) {
    %c0_i32 = arith.constant 0 : i32
    %c0_i32_0 = arith.constant 0 : i32
    %c0_i32_1 = arith.constant 0 : i32
    return %c0_i32, %c0_i32_0 : i32, i32
  }
  func.func @transform_4(%arg0: i32) -> (i32, i32) {
    %c0_i32 = arith.constant 0 : i32
    %c0_i32_0 = arith.constant 0 : i32
    %c0_i32_1 = arith.constant 0 : i32
    return %c0_i32, %c0_i32_0 : i32, i32
  }
  func.func @transform_5(%arg0: i32) -> (i32, i32) {
    %c0_i32 = arith.constant 0 : i32
    %c0_i32_0 = arith.constant 0 : i32
    %c0_i32_1 = arith.constant 0 : i32
    return %c0_i32, %c0_i32_0 : i32, i32
  }
  func.func @transform_6(%arg0: i32) -> (i32, i32) {
    %c0_i32 = arith.constant 0 : i32
    %c0_i32_0 = arith.constant 0 : i32
    %c0_i32_1 = arith.constant 0 : i32
    return %c0_i32, %c0_i32_0 : i32, i32
  }
  func.func @transform_7(%arg0: i32) -> (i32, i32) {
    %c0_i32 = arith.constant 0 : i32
    %c0_i32_0 = arith.constant 0 : i32
    %c0_i32_1 = arith.constant 0 : i32
    return %c0_i32, %c0_i32_0 : i32, i32
  }
  func.func @transform_8(%arg0: i32) -> (i32, i32) {
    %c0_i32 = arith.constant 0 : i32
    %c0_i32_0 = arith.constant 0 : i32
    %c0_i32_1 = arith.constant 0 : i32
    return %c0_i32, %c0_i32_0 : i32, i32
  }
  func.func @transform_9(%arg0: i32) -> (i32, i32) {
    %c0_i32 = arith.constant 0 : i32
    %c0_i32_0 = arith.constant 0 : i32
    %c0_i32_1 = arith.constant 0 : i32
    return %c0_i32, %c0_i32_0 : i32, i32
  }
  func.func @transform_10(%arg0: i32) -> (i32, i32) {
    %c0_i32 = arith.constant 0 : i32
    %c0_i32_0 = arith.constant 0 : i32
    %c0_i32_1 = arith.constant 0 : i32
    return %c0_i32, %c0_i32_0 : i32, i32
  }
  func.func @transform_11(%arg0: i32) -> (i32, i32) {
    %c0_i32 = arith.constant 0 : i32
    %c0_i32_0 = arith.constant 0 : i32
    return %arg0, %c0_i32 : i32, i32
  }
}

</mosaic_0001>

<llo_original>
// kernel: tile.54
$region0: #{tile.54}
  %s0 = inlined_call_operand.vmem [shape: f32[16,16,16], index: 0, kind: input, shape index: {}]
  %s1 = inlined_call_operand.vmem [shape: f32[16,256], index: 1, kind: output, shape index: {}]
  %v2 = vld [vmem:[%s0] ss:$8 sm:$0xf]
  %v3 = vld [vmem:[%s0] ss:$8 sm:$0xf0]
  %vm4 = vcmask 1047556
  %v5 = vsel %vm4, %v3, %v2
  %vm6 = vcmask 130048
  %7 = vst.msk [vmem:[%s1] ss:$8 sm:$0x3] %vm6, %v5
  %s8 = scalar_lea.vmem %s1, 4294967281
  %9 = vst.msk [vmem:[%s8] ss:$8 sm:$0xc] %vm6, %v5
  %s10 = scalar_lea.vmem %s1, 4294967266
  %11 = vst.msk [vmem:[%s10] ss:$8 sm:$0x30] %vm6, %v5
  %s12 = scalar_lea.vmem %s1, 4294967251
  %13 = vst.msk [vmem:[%s12] ss:$8 sm:$0xc0] %vm6, %v5
  %s14 = scalar_lea.vmem %s0, 64
  %v15 = vld [vmem:[%s14] ss:$8 sm:$0xf]
  %s16 = scalar_lea.vmem %s0, 64
  %v17 = vld [vmem:[%s16] ss:$8 sm:$0xf0]
  %vm18 = vcmask 1047556
  %v19 = vsel %vm18, %v17, %v15
  %vm20 = vcmask 130048
  %s21 = scalar_lea.vmem %s1, 4
  %22 = vst.msk [vmem:[%s21] ss:$8 sm:$0x3] %vm20, %v19
  %s23 = scalar_lea.vmem %s1, 4294967285
  %24 = vst.msk [vmem:[%s23] ss:$8 sm:$0xc] %vm20, %v19
  %s25 = scalar_lea.vmem %s1, 4294967270
  %26 = vst.msk [vmem:[%s25] ss:$8 sm:$0x30] %vm20, %v19
  %s27 = scalar_lea.vmem %s1, 4294967255
  %28 = vst.msk [vmem:[%s27] ss:$8 sm:$0xc0] %vm20, %v19
  %s29 = scalar_lea.vmem %s0, 128
  %v30 = vld [vmem:[%s29] ss:$8 sm:$0xf]
  %s31 = scalar_lea.vmem %s0, 128
  %v32 = vld [vmem:[%s31] ss:$8 sm:$0xf0]
  %vm33 = vcmask 1047556
  %v34 = vsel %vm33, %v32, %v30
  %vm35 = vcmask 130048
  %s36 = scalar_lea.vmem %s1, 16
  %37 = vst.msk [vmem:[%s36] ss:$8 sm:$0x3] %vm35, %v34
  %s38 = scalar_lea.vmem %s1, 1
  %39 = vst.msk [vmem:[%s38] ss:$8 sm:$0xc] %vm35, %v34
  %s40 = scalar_lea.vmem %s1, 4294967282
  %41 = vst.msk [vmem:[%s40] ss:$8 sm:$0x30] %vm35, %v34
  %s42 = scalar_lea.vmem %s1, 4294967267
  %43 = vst.msk [vmem:[%s42] ss:$8 sm:$0xc0] %vm35, %v34
  %s44 = scalar_lea.vmem %s0, 192
  %v45 = vld [vmem:[%s44] ss:$8 sm:$0xf]
  %s46 = scalar_lea.vmem %s0, 192
  %v47 = vld [vmem:[%s46] ss:$8 sm:$0xf0]
  %vm48 = vcmask 1047556
  %v49 = vsel %vm48, %v47, %v45
  %vm50 = vcmask 130048
  %s51 = scalar_lea.vmem %s1, 20
  %52 = vst.msk [vmem:[%s51] ss:$8 sm:$0x3] %vm50, %v49
  %s53 = scalar_lea.vmem %s1, 5
  %54 = vst.msk [vmem:[%s53] ss:$8 sm:$0xc] %vm50, %v49
  %s55 = scalar_lea.vmem %s1, 4294967286
  %56 = vst.msk [vmem:[%s55] ss:$8 sm:$0x30] %vm50, %v49
  %s57 = scalar_lea.vmem %s1, 4294967271
  %58 = vst.msk [vmem:[%s57] ss:$8 sm:$0xc0] %vm50, %v49
  %s59 = scalar_lea.vmem %s0, 7
  %s60 = smov 3
  %v61 = vld [vmem:[%s59] ss:$16 sm:%s60]
  %s62 = scalar_lea.vmem %s0, 7
  %s63 = smov 12
  %v64 = vld [vmem:[%s62] ss:$16 sm:%s63]
  %vm65 = vcmask 1043458
  %v66 = vsel %vm65, %v64, %v61
  %s67 = scalar_lea.vmem %s0, 7
  %s68 = smov 48
  %v69 = vld [vmem:[%s67] ss:$16 sm:%s68]
  %vm70 = vcmask 1045508
  %v71 = vsel %vm70, %v69, %v66
  %s72 = scalar_lea.vmem %s0, 7
  %s73 = smov 192
  %v74 = vld [vmem:[%s72] ss:$16 sm:%s73]
  %vm75 = vcmask 1047558
  %v76 = vsel %vm75, %v74, %v71
  %77 = vrot.lane.b32.xlu0 %v76, 112
  %v78 = vpop.permute.xlu0 %77
  %vm79 = vcmask 1048448
  %80 = vst.msk [vmem:[%s1] sm:$0xff] %vm79, %v78
  %s81 = scalar_lea.vmem %s0, 15
  %s82 = smov 3
  %v83 = vld [vmem:[%s81] ss:$16 sm:%s82]
  %s84 = scalar_lea.vmem %s0, 15
  %s85 = smov 12
  %v86 = vld [vmem:[%s84] ss:$16 sm:%s85]
  %vm87 = vcmask 1043458
  %v88 = vsel %vm87, %v86, %v83
  %s89 = scalar_lea.vmem %s0, 15
  %s90 = smov 48
  %v91 = vld [vmem:[%s89] ss:$16 sm:%s90]
  %vm92 = vcmask 1045508
  %v93 = vsel %vm92, %v91, %v88
  %s94 = scalar_lea.vmem %s0, 15
  %s95 = smov 192
  %v96 = vld [vmem:[%s94] ss:$16 sm:%s95]
  %vm97 = vcmask 1047558
  %v98 = vsel %vm97, %v96, %v93
  %99 = vrot.lane.b32.xlu0 %v98, 112
  %v100 = vpop.permute.xlu0 %99
  %vm101 = vcmask 1048448
  %s102 = scalar_lea.vmem %s1, 8
  %103 = vst.msk [vmem:[%s102] sm:$0xff] %vm101, %v100
  %s104 = scalar_lea.vmem %s0, 135
  %s105 = smov 3
  %v106 = vld [vmem:[%s104] ss:$16 sm:%s105]
  %s107 = scalar_lea.vmem %s0, 135
  %s108 = smov 12
  %v109 = vld [vmem:[%s107] ss:$16 sm:%s108]
  %vm110 = vcmask 1043458
  %v111 = vsel %vm110, %v109, %v106
  %s112 = scalar_lea.vmem %s0, 135
  %s113 = smov 48
  %v114 = vld [vmem:[%s112] ss:$16 sm:%s113]
  %vm115 = vcmask 1045508
  %v116 = vsel %vm115, %v114, %v111
  %s117 = scalar_lea.vmem %s0, 135
  %s118 = smov 192
  %v119 = vld [vmem:[%s117] ss:$16 sm:%s118]
  %vm120 = vcmask 1047558
  %v121 = vsel %vm120, %v119, %v116
  %122 = vrot.lane.b32.xlu0 %v121, 112
  %v123 = vpop.permute.xlu0 %122
  %vm124 = vcmask 1048448
  %s125 = scalar_lea.vmem %s1, 16
  %126 = vst.msk [vmem:[%s125] sm:$0xff] %vm124, %v123
  %s127 = scalar_lea.vmem %s0, 143
  %s128 = smov 3
  %v129 = vld [vmem:[%s127] ss:$16 sm:%s128]
  %s130 = scalar_lea.vmem %s0, 143
  %s131 = smov 12
  %v132 = vld [vmem:[%s130] ss:$16 sm:%s131]
  %vm133 = vcmask 1043458
  %v134 = vsel %vm133, %v132, %v129
  %s135 = scalar_lea.vmem %s0, 143
  %s136 = smov 48
  %v137 = vld [vmem:[%s135] ss:$16 sm:%s136]
  %vm138 = vcmask 1045508
  %v139 = vsel %vm138, %v137, %v134
  %s140 = scalar_lea.vmem %s0, 143
  %s141 = smov 192
  %v142 = vld [vmem:[%s140] ss:$16 sm:%s141]
  %vm143 = vcmask 1047558
  %v144 = vsel %vm143, %v142, %v139
  %145 = vrot.lane.b32.xlu0 %v144, 112
  %v146 = vpop.permute.xlu0 %145
  %vm147 = vcmask 1048448
  %s148 = scalar_lea.vmem %s1, 24
  %149 = vst.msk [vmem:[%s148] sm:$0xff] %vm147, %v146
  %s150 = scalar_lea.vmem %s0, 6
  %s151 = smov 3
  %v152 = vld [vmem:[%s150] ss:$16 sm:%s151]
  %s153 = scalar_lea.vmem %s0, 6
  %s154 = smov 12
  %v155 = vld [vmem:[%s153] ss:$16 sm:%s154]
  %vm156 = vcmask 1043458
  %v157 = vsel %vm156, %v155, %v152
  %s158 = scalar_lea.vmem %s0, 6
  %s159 = smov 48
  %v160 = vld [vmem:[%s158] ss:$16 sm:%s159]
  %vm161 = vcmask 1045508
  %v162 = vsel %vm161, %v160, %v157
  %s163 = scalar_lea.vmem %s0, 6
  %s164 = smov 192
  %v165 = vld [vmem:[%s163] ss:$16 sm:%s164]
  %vm166 = vcmask 1047558
  %v167 = vsel %vm166, %v165, %v162
  %168 = vrot.lane.b32.xlu0 %v167, 96
  %v169 = vpop.permute.xlu0 %168
  %vm170 = vcmask 917248
  %171 = vst.msk [vmem:[%s1] sm:$0xff] %vm170, %v169
  %s172 = scalar_lea.vmem %s0, 14
  %s173 = smov 3
  %v174 = vld [vmem:[%s172] ss:$16 sm:%s173]
  %s175 = scalar_lea.vmem %s0, 14
  %s176 = smov 12
  %v177 = vld [vmem:[%s175] ss:$16 sm:%s176]
  %vm178 = vcmask 1043458
  %v179 = vsel %vm178, %v177, %v174
  %s180 = scalar_lea.vmem %s0, 14
  %s181 = smov 48
  %v182 = vld [vmem:[%s180] ss:$16 sm:%s181]
  %vm183 = vcmask 1045508
  %v184 = vsel %vm183, %v182, %v179
  %s185 = scalar_lea.vmem %s0, 14
  %s186 = smov 192
  %v187 = vld [vmem:[%s185] ss:$16 sm:%s186]
  %vm188 = vcmask 1047558
  %v189 = vsel %vm188, %v187, %v184
  %190 = vrot.lane.b32.xlu0 %v189, 96
  %v191 = vpop.permute.xlu0 %190
  %vm192 = vcmask 917248
  %s193 = scalar_lea.vmem %s1, 8
  %194 = vst.msk [vmem:[%s193] sm:$0xff] %vm192, %v191
  %s195 = scalar_lea.vmem %s0, 134
  %s196 = smov 3
  %v197 = vld [vmem:[%s195] ss:$16 sm:%s196]
  %s198 = scalar_lea.vmem %s0, 134
  %s199 = smov 12
  %v200 = vld [vmem:[%s198] ss:$16 sm:%s199]
  %vm201 = vcmask 1043458
  %v202 = vsel %vm201, %v200, %v197
  %s203 = scalar_lea.vmem %s0, 134
  %s204 = smov 48
  %v205 = vld [vmem:[%s203] ss:$16 sm:%s204]
  %vm206 = vcmask 1045508
  %v207 = vsel %vm206, %v205, %v202
  %s208 = scalar_lea.vmem %s0, 134
  %s209 = smov 192
  %v210 = vld [vmem:[%s208] ss:$16 sm:%s209]
  %vm211 = vcmask 1047558
  %v212 = vsel %vm211, %v210, %v207
  %213 = vrot.lane.b32.xlu0 %v212, 96
  %v214 = vpop.permute.xlu0 %213
  %vm215 = vcmask 917248
  %s216 = scalar_lea.vmem %s1, 16
  %217 = vst.msk [vmem:[%s216] sm:$0xff] %vm215, %v214
  %s218 = scalar_lea.vmem %s0, 142
  %s219 = smov 3
  %v220 = vld [vmem:[%s218] ss:$16 sm:%s219]
  %s221 = scalar_lea.vmem %s0, 142
  %s222 = smov 12
  %v223 = vld [vmem:[%s221] ss:$16 sm:%s222]
  %vm224 = vcmask 1043458
  %v225 = vsel %vm224, %v223, %v220
  %s226 = scalar_lea.vmem %s0, 142
  %s227 = smov 48
  %v228 = vld [vmem:[%s226] ss:$16 sm:%s227]
  %vm229 = vcmask 1045508
  %v230 = vsel %vm229, %v228, %v225
  %s231 = scalar_lea.vmem %s0, 142
  %s232 = smov 192
  %v233 = vld [vmem:[%s231] ss:$16 sm:%s232]
  %vm234 = vcmask 1047558
  %v235 = vsel %vm234, %v233, %v230
  %236 = vrot.lane.b32.xlu0 %v235, 96
  %v237 = vpop.permute.xlu0 %236
  %vm238 = vcmask 917248
  %s239 = scalar_lea.vmem %s1, 24
  %240 = vst.msk [vmem:[%s239] sm:$0xff] %vm238, %v237
  %s241 = scalar_lea.vmem %s0, 5
  %s242 = smov 3
  %v243 = vld [vmem:[%s241] ss:$16 sm:%s242]
  %s244 = scalar_lea.vmem %s0, 5
  %s245 = smov 12
  %v246 = vld [vmem:[%s244] ss:$16 sm:%s245]
  %vm247 = vcmask 1043458
  %v248 = vsel %vm247, %v246, %v243
  %s249 = scalar_lea.vmem %s0, 5
  %s250 = smov 48
  %v251 = vld [vmem:[%s249] ss:$16 sm:%s250]
  %vm252 = vcmask 1045508
  %v253 = vsel %vm252, %v251, %v248
  %s254 = scalar_lea.vmem %s0, 5
  %s255 = smov 192
  %v256 = vld [vmem:[%s254] ss:$16 sm:%s255]
  %vm257 = vcmask 1047558
  %v258 = vsel %vm257, %v256, %v253
  %259 = vrot.lane.b32.xlu0 %v258, 80
  %v260 = vpop.permute.xlu0 %259
  %vm261 = vcmask 786048
  %262 = vst.msk [vmem:[%s1] sm:$0xff] %vm261, %v260
  %s263 = scalar_lea.vmem %s0, 13
  %s264 = smov 3
  %v265 = vld [vmem:[%s263] ss:$16 sm:%s264]
  %s266 = scalar_lea.vmem %s0, 13
  %s267 = smov 12
  %v268 = vld [vmem:[%s266] ss:$16 sm:%s267]
  %vm269 = vcmask 1043458
  %v270 = vsel %vm269, %v268, %v265
  %s271 = scalar_lea.vmem %s0, 13
  %s272 = smov 48
  %v273 = vld [vmem:[%s271] ss:$16 sm:%s272]
  %vm274 = vcmask 1045508
  %v275 = vsel %vm274, %v273, %v270
  %s276 = scalar_lea.vmem %s0, 13
  %s277 = smov 192
  %v278 = vld [vmem:[%s276] ss:$16 sm:%s277]
  %vm279 = vcmask 1047558
  %v280 = vsel %vm279, %v278, %v275
  %281 = vrot.lane.b32.xlu0 %v280, 80
  %v282 = vpop.permute.xlu0 %281
  %vm283 = vcmask 786048
  %s284 = scalar_lea.vmem %s1, 8
  %285 = vst.msk [vmem:[%s284] sm:$0xff] %vm283, %v282
  %s286 = scalar_lea.vmem %s0, 133
  %s287 = smov 3
  %v288 = vld [vmem:[%s286] ss:$16 sm:%s287]
  %s289 = scalar_lea.vmem %s0, 133
  %s290 = smov 12
  %v291 = vld [vmem:[%s289] ss:$16 sm:%s290]
  %vm292 = vcmask 1043458
  %v293 = vsel %vm292, %v291, %v288
  %s294 = scalar_lea.vmem %s0, 133
  %s295 = smov 48
  %v296 = vld [vmem:[%s294] ss:$16 sm:%s295]
  %vm297 = vcmask 1045508
  %v298 = vsel %vm297, %v296, %v293
  %s299 = scalar_lea.vmem %s0, 133
  %s300 = smov 192
  %v301 = vld [vmem:[%s299] ss:$16 sm:%s300]
  %vm302 = vcmask 1047558
  %v303 = vsel %vm302, %v301, %v298
  %304 = vrot.lane.b32.xlu0 %v303, 80
  %v305 = vpop.permute.xlu0 %304
  %vm306 = vcmask 786048
  %s307 = scalar_lea.vmem %s1, 16
  %308 = vst.msk [vmem:[%s307] sm:$0xff] %vm306, %v305
  %s309 = scalar_lea.vmem %s0, 141
  %s310 = smov 3
  %v311 = vld [vmem:[%s309] ss:$16 sm:%s310]
  %s312 = scalar_lea.vmem %s0, 141
  %s313 = smov 12
  %v314 = vld [vmem:[%s312] ss:$16 sm:%s313]
  %vm315 = vcmask 1043458
  %v316 = vsel %vm315, %v314, %v311
  %s317 = scalar_lea.vmem %s0, 141
  %s318 = smov 48
  %v319 = vld [vmem:[%s317] ss:$16 sm:%s318]
  %vm320 = vcmask 1045508
  %v321 = vsel %vm320, %v319, %v316
  %s322 = scalar_lea.vmem %s0, 141
  %s323 = smov 192
  %v324 = vld [vmem:[%s322] ss:$16 sm:%s323]
  %vm325 = vcmask 1047558
  %v326 = vsel %vm325, %v324, %v321
  %327 = vrot.lane.b32.xlu0 %v326, 80
  %v328 = vpop.permute.xlu0 %327
  %vm329 = vcmask 786048
  %s330 = scalar_lea.vmem %s1, 24
  %331 = vst.msk [vmem:[%s330] sm:$0xff] %vm329, %v328
  %s332 = scalar_lea.vmem %s0, 4
  %s333 = smov 3
  %v334 = vld [vmem:[%s332] ss:$16 sm:%s333]
  %s335 = scalar_lea.vmem %s0, 4
  %s336 = smov 12
  %v337 = vld [vmem:[%s335] ss:$16 sm:%s336]
  %vm338 = vcmask 1043458
  %v339 = vsel %vm338, %v337, %v334
  %s340 = scalar_lea.vmem %s0, 4
  %s341 = smov 48
  %v342 = vld [vmem:[%s340] ss:$16 sm:%s341]
  %vm343 = vcmask 1045508
  %v344 = vsel %vm343, %v342, %v339
  %s345 = scalar_lea.vmem %s0, 4
  %s346 = smov 192
  %v347 = vld [vmem:[%s345] ss:$16 sm:%s346]
  %vm348 = vcmask 1047558
  %v349 = vsel %vm348, %v347, %v344
  %350 = vrot.lane.b32.xlu0 %v349, 64
  %v351 = vpop.permute.xlu0 %350
  %vm352 = vcmask 654848
  %353 = vst.msk [vmem:[%s1] sm:$0xff] %vm352, %v351
  %s354 = scalar_lea.vmem %s0, 12
  %s355 = smov 3
  %v356 = vld [vmem:[%s354] ss:$16 sm:%s355]
  %s357 = scalar_lea.vmem %s0, 12
  %s358 = smov 12
  %v359 = vld [vmem:[%s357] ss:$16 sm:%s358]
  %vm360 = vcmask 1043458
  %v361 = vsel %vm360, %v359, %v356
  %s362 = scalar_lea.vmem %s0, 12
  %s363 = smov 48
  %v364 = vld [vmem:[%s362] ss:$16 sm:%s363]
  %vm365 = vcmask 1045508
  %v366 = vsel %vm365, %v364, %v361
  %s367 = scalar_lea.vmem %s0, 12
  %s368 = smov 192
  %v369 = vld [vmem:[%s367] ss:$16 sm:%s368]
  %vm370 = vcmask 1047558
  %v371 = vsel %vm370, %v369, %v366
  %372 = vrot.lane.b32.xlu0 %v371, 64
  %v373 = vpop.permute.xlu0 %372
  %vm374 = vcmask 654848
  %s375 = scalar_lea.vmem %s1, 8
  %376 = vst.msk [vmem:[%s375] sm:$0xff] %vm374, %v373
  %s377 = scalar_lea.vmem %s0, 132
  %s378 = smov 3
  %v379 = vld [vmem:[%s377] ss:$16 sm:%s378]
  %s380 = scalar_lea.vmem %s0, 132
  %s381 = smov 12
  %v382 = vld [vmem:[%s380] ss:$16 sm:%s381]
  %vm383 = vcmask 1043458
  %v384 = vsel %vm383, %v382, %v379
  %s385 = scalar_lea.vmem %s0, 132
  %s386 = smov 48
  %v387 = vld [vmem:[%s385] ss:$16 sm:%s386]
  %vm388 = vcmask 1045508
  %v389 = vsel %vm388, %v387, %v384
  %s390 = scalar_lea.vmem %s0, 132
  %s391 = smov 192
  %v392 = vld [vmem:[%s390] ss:$16 sm:%s391]
  %vm393 = vcmask 1047558
  %v394 = vsel %vm393, %v392, %v389
  %395 = vrot.lane.b32.xlu0 %v394, 64
  %v396 = vpop.permute.xlu0 %395
  %vm397 = vcmask 654848
  %s398 = scalar_lea.vmem %s1, 16
  %399 = vst.msk [vmem:[%s398] sm:$0xff] %vm397, %v396
  %s400 = scalar_lea.vmem %s0, 140
  %s401 = smov 3
  %v402 = vld [vmem:[%s400] ss:$16 sm:%s401]
  %s403 = scalar_lea.vmem %s0, 140
  %s404 = smov 12
  %v405 = vld [vmem:[%s403] ss:$16 sm:%s404]
  %vm406 = vcmask 1043458
  %v407 = vsel %vm406, %v405, %v402
  %s408 = scalar_lea.vmem %s0, 140
  %s409 = smov 48
  %v410 = vld [vmem:[%s408] ss:$16 sm:%s409]
  %vm411 = vcmask 1045508
  %v412 = vsel %vm411, %v410, %v407
  %s413 = scalar_lea.vmem %s0, 140
  %s414 = smov 192
  %v415 = vld [vmem:[%s413] ss:$16 sm:%s414]
  %vm416 = vcmask 1047558
  %v417 = vsel %vm416, %v415, %v412
  %418 = vrot.lane.b32.xlu0 %v417, 64
  %v419 = vpop.permute.xlu0 %418
  %vm420 = vcmask 654848
  %s421 = scalar_lea.vmem %s1, 24
  %422 = vst.msk [vmem:[%s421] sm:$0xff] %vm420, %v419
  %s423 = scalar_lea.vmem %s0, 3
  %s424 = smov 3
  %v425 = vld [vmem:[%s423] ss:$16 sm:%s424]
  %s426 = scalar_lea.vmem %s0, 3
  %s427 = smov 12
  %v428 = vld [vmem:[%s426] ss:$16 sm:%s427]
  %vm429 = vcmask 1043458
  %v430 = vsel %vm429, %v428, %v425
  %s431 = scalar_lea.vmem %s0, 3
  %s432 = smov 48
  %v433 = vld [vmem:[%s431] ss:$16 sm:%s432]
  %vm434 = vcmask 1045508
  %v435 = vsel %vm434, %v433, %v430
  %s436 = scalar_lea.vmem %s0, 3
  %s437 = smov 192
  %v438 = vld [vmem:[%s436] ss:$16 sm:%s437]
  %vm439 = vcmask 1047558
  %v440 = vsel %vm439, %v438, %v435
  %441 = vrot.lane.b32.xlu0 %v440, 48
  %v442 = vpop.permute.xlu0 %441
  %vm443 = vcmask 523648
  %444 = vst.msk [vmem:[%s1] sm:$0xff] %vm443, %v442
  %s445 = scalar_lea.vmem %s0, 11
  %s446 = smov 3
  %v447 = vld [vmem:[%s445] ss:$16 sm:%s446]
  %s448 = scalar_lea.vmem %s0, 11
  %s449 = smov 12
  %v450 = vld [vmem:[%s448] ss:$16 sm:%s449]
  %vm451 = vcmask 1043458
  %v452 = vsel %vm451, %v450, %v447
  %s453 = scalar_lea.vmem %s0, 11
  %s454 = smov 48
  %v455 = vld [vmem:[%s453] ss:$16 sm:%s454]
  %vm456 = vcmask 1045508
  %v457 = vsel %vm456, %v455, %v452
  %s458 = scalar_lea.vmem %s0, 11
  %s459 = smov 192
  %v460 = vld [vmem:[%s458] ss:$16 sm:%s459]
  %vm461 = vcmask 1047558
  %v462 = vsel %vm461, %v460, %v457
  %463 = vrot.lane.b32.xlu0 %v462, 48
  %v464 = vpop.permute.xlu0 %463
  %vm465 = vcmask 523648
  %s466 = scalar_lea.vmem %s1, 8
  %467 = vst.msk [vmem:[%s466] sm:$0xff] %vm465, %v464
  %s468 = scalar_lea.vmem %s0, 131
  %s469 = smov 3
  %v470 = vld [vmem:[%s468] ss:$16 sm:%s469]
  %s471 = scalar_lea.vmem %s0, 131
  %s472 = smov 12
  %v473 = vld [vmem:[%s471] ss:$16 sm:%s472]
  %vm474 = vcmask 1043458
  %v475 = vsel %vm474, %v473, %v470
  %s476 = scalar_lea.vmem %s0, 131
  %s477 = smov 48
  %v478 = vld [vmem:[%s476] ss:$16 sm:%s477]
  %vm479 = vcmask 1045508
  %v480 = vsel %vm479, %v478, %v475
  %s481 = scalar_lea.vmem %s0, 131
  %s482 = smov 192
  %v483 = vld [vmem:[%s481] ss:$16 sm:%s482]
  %vm484 = vcmask 1047558
  %v485 = vsel %vm484, %v483, %v480
  %486 = vrot.lane.b32.xlu0 %v485, 48
  %v487 = vpop.permute.xlu0 %486
  %vm488 = vcmask 523648
  %s489 = scalar_lea.vmem %s1, 16
  %490 = vst.msk [vmem:[%s489] sm:$0xff] %vm488, %v487
  %s491 = scalar_lea.vmem %s0, 139
  %s492 = smov 3
  %v493 = vld [vmem:[%s491] ss:$16 sm:%s492]
  %s494 = scalar_lea.vmem %s0, 139
  %s495 = smov 12
  %v496 = vld [vmem:[%s494] ss:$16 sm:%s495]
  %vm497 = vcmask 1043458
  %v498 = vsel %vm497, %v496, %v493
  %s499 = scalar_lea.vmem %s0, 139
  %s500 = smov 48
  %v501 = vld [vmem:[%s499] ss:$16 sm:%s500]
  %vm502 = vcmask 1045508
  %v503 = vsel %vm502, %v501, %v498
  %s504 = scalar_lea.vmem %s0, 139
  %s505 = smov 192
  %v506 = vld [vmem:[%s504] ss:$16 sm:%s505]
  %vm507 = vcmask 1047558
  %v508 = vsel %vm507, %v506, %v503
  %509 = vrot.lane.b32.xlu0 %v508, 48
  %v510 = vpop.permute.xlu0 %509
  %vm511 = vcmask 523648
  %s512 = scalar_lea.vmem %s1, 24
  %513 = vst.msk [vmem:[%s512] sm:$0xff] %vm511, %v510
  %s514 = scalar_lea.vmem %s0, 2
  %s515 = smov 3
  %v516 = vld [vmem:[%s514] ss:$16 sm:%s515]
  %s517 = scalar_lea.vmem %s0, 2
  %s518 = smov 12
  %v519 = vld [vmem:[%s517] ss:$16 sm:%s518]
  %vm520 = vcmask 1043458
  %v521 = vsel %vm520, %v519, %v516
  %s522 = scalar_lea.vmem %s0, 2
  %s523 = smov 48
  %v524 = vld [vmem:[%s522] ss:$16 sm:%s523]
  %vm525 = vcmask 1045508
  %v526 = vsel %vm525, %v524, %v521
  %s527 = scalar_lea.vmem %s0, 2
  %s528 = smov 192
  %v529 = vld [vmem:[%s527] ss:$16 sm:%s528]
  %vm530 = vcmask 1047558
  %v531 = vsel %vm530, %v529, %v526
  %532 = vrot.lane.b32.xlu0 %v531, 32
  %v533 = vpop.permute.xlu0 %532
  %vm534 = vcmask 392448
  %535 = vst.msk [vmem:[%s1] sm:$0xff] %vm534, %v533
  %s536 = scalar_lea.vmem %s0, 10
  %s537 = smov 3
  %v538 = vld [vmem:[%s536] ss:$16 sm:%s537]
  %s539 = scalar_lea.vmem %s0, 10
  %s540 = smov 12
  %v541 = vld [vmem:[%s539] ss:$16 sm:%s540]
  %vm542 = vcmask 1043458
  %v543 = vsel %vm542, %v541, %v538
  %s544 = scalar_lea.vmem %s0, 10
  %s545 = smov 48
  %v546 = vld [vmem:[%s544] ss:$16 sm:%s545]
  %vm547 = vcmask 1045508
  %v548 = vsel %vm547, %v546, %v543
  %s549 = scalar_lea.vmem %s0, 10
  %s550 = smov 192
  %v551 = vld [vmem:[%s549] ss:$16 sm:%s550]
  %vm552 = vcmask 1047558
  %v553 = vsel %vm552, %v551, %v548
  %554 = vrot.lane.b32.xlu0 %v553, 32
  %v555 = vpop.permute.xlu0 %554
  %vm556 = vcmask 392448
  %s557 = scalar_lea.vmem %s1, 8
  %558 = vst.msk [vmem:[%s557] sm:$0xff] %vm556, %v555
  %s559 = scalar_lea.vmem %s0, 130
  %s560 = smov 3
  %v561 = vld [vmem:[%s559] ss:$16 sm:%s560]
  %s562 = scalar_lea.vmem %s0, 130
  %s563 = smov 12
  %v564 = vld [vmem:[%s562] ss:$16 sm:%s563]
  %vm565 = vcmask 1043458
  %v566 = vsel %vm565, %v564, %v561
  %s567 = scalar_lea.vmem %s0, 130
  %s568 = smov 48
  %v569 = vld [vmem:[%s567] ss:$16 sm:%s568]
  %vm570 = vcmask 1045508
  %v571 = vsel %vm570, %v569, %v566
  %s572 = scalar_lea.vmem %s0, 130
  %s573 = smov 192
  %v574 = vld [vmem:[%s572] ss:$16 sm:%s573]
  %vm575 = vcmask 1047558
  %v576 = vsel %vm575, %v574, %v571
  %577 = vrot.lane.b32.xlu0 %v576, 32
  %v578 = vpop.permute.xlu0 %577
  %vm579 = vcmask 392448
  %s580 = scalar_lea.vmem %s1, 16
  %581 = vst.msk [vmem:[%s580] sm:$0xff] %vm579, %v578
  %s582 = scalar_lea.vmem %s0, 138
  %s583 = smov 3
  %v584 = vld [vmem:[%s582] ss:$16 sm:%s583]
  %s585 = scalar_lea.vmem %s0, 138
  %s586 = smov 12
  %v587 = vld [vmem:[%s585] ss:$16 sm:%s586]
  %vm588 = vcmask 1043458
  %v589 = vsel %vm588, %v587, %v584
  %s590 = scalar_lea.vmem %s0, 138
  %s591 = smov 48
  %v592 = vld [vmem:[%s590] ss:$16 sm:%s591]
  %vm593 = vcmask 1045508
  %v594 = vsel %vm593, %v592, %v589
  %s595 = scalar_lea.vmem %s0, 138
  %s596 = smov 192
  %v597 = vld [vmem:[%s595] ss:$16 sm:%s596]
  %vm598 = vcmask 1047558
  %v599 = vsel %vm598, %v597, %v594
  %600 = vrot.lane.b32.xlu0 %v599, 32
  %v601 = vpop.permute.xlu0 %600
  %vm602 = vcmask 392448
  %s603 = scalar_lea.vmem %s1, 24
  %604 = vst.msk [vmem:[%s603] sm:$0xff] %vm602, %v601
  %s605 = scalar_lea.vmem %s0, 1
  %s606 = smov 3
  %v607 = vld [vmem:[%s605] ss:$16 sm:%s606]
  %s608 = scalar_lea.vmem %s0, 1
  %s609 = smov 12
  %v610 = vld [vmem:[%s608] ss:$16 sm:%s609]
  %vm611 = vcmask 1043458
  %v612 = vsel %vm611, %v610, %v607
  %s613 = scalar_lea.vmem %s0, 1
  %s614 = smov 48
  %v615 = vld [vmem:[%s613] ss:$16 sm:%s614]
  %vm616 = vcmask 1045508
  %v617 = vsel %vm616, %v615, %v612
  %s618 = scalar_lea.vmem %s0, 1
  %s619 = smov 192
  %v620 = vld [vmem:[%s618] ss:$16 sm:%s619]
  %vm621 = vcmask 1047558
  %v622 = vsel %vm621, %v620, %v617
  %623 = vrot.lane.b32.xlu0 %v622, 16
  %v624 = vpop.permute.xlu0 %623
  %vm625 = vcmask 261248
  %626 = vst.msk [vmem:[%s1] sm:$0xff] %vm625, %v624
  %s627 = scalar_lea.vmem %s0, 9
  %s628 = smov 3
  %v629 = vld [vmem:[%s627] ss:$16 sm:%s628]
  %s630 = scalar_lea.vmem %s0, 9
  %s631 = smov 12
  %v632 = vld [vmem:[%s630] ss:$16 sm:%s631]
  %vm633 = vcmask 1043458
  %v634 = vsel %vm633, %v632, %v629
  %s635 = scalar_lea.vmem %s0, 9
  %s636 = smov 48
  %v637 = vld [vmem:[%s635] ss:$16 sm:%s636]
  %vm638 = vcmask 1045508
  %v639 = vsel %vm638, %v637, %v634
  %s640 = scalar_lea.vmem %s0, 9
  %s641 = smov 192
  %v642 = vld [vmem:[%s640] ss:$16 sm:%s641]
  %vm643 = vcmask 1047558
  %v644 = vsel %vm643, %v642, %v639
  %645 = vrot.lane.b32.xlu0 %v644, 16
  %v646 = vpop.permute.xlu0 %645
  %vm647 = vcmask 261248
  %s648 = scalar_lea.vmem %s1, 8
  %649 = vst.msk [vmem:[%s648] sm:$0xff] %vm647, %v646
  %s650 = scalar_lea.vmem %s0, 129
  %s651 = smov 3
  %v652 = vld [vmem:[%s650] ss:$16 sm:%s651]
  %s653 = scalar_lea.vmem %s0, 129
  %s654 = smov 12
  %v655 = vld [vmem:[%s653] ss:$16 sm:%s654]
  %vm656 = vcmask 1043458
  %v657 = vsel %vm656, %v655, %v652
  %s658 = scalar_lea.vmem %s0, 129
  %s659 = smov 48
  %v660 = vld [vmem:[%s658] ss:$16 sm:%s659]
  %vm661 = vcmask 1045508
  %v662 = vsel %vm661, %v660, %v657
  %s663 = scalar_lea.vmem %s0, 129
  %s664 = smov 192
  %v665 = vld [vmem:[%s663] ss:$16 sm:%s664]
  %vm666 = vcmask 1047558
  %v667 = vsel %vm666, %v665, %v662
  %668 = vrot.lane.b32.xlu0 %v667, 16
  %v669 = vpop.permute.xlu0 %668
  %vm670 = vcmask 261248
  %s671 = scalar_lea.vmem %s1, 16
  %672 = vst.msk [vmem:[%s671] sm:$0xff] %vm670, %v669
  %s673 = scalar_lea.vmem %s0, 137
  %s674 = smov 3
  %v675 = vld [vmem:[%s673] ss:$16 sm:%s674]
  %s676 = scalar_lea.vmem %s0, 137
  %s677 = smov 12
  %v678 = vld [vmem:[%s676] ss:$16 sm:%s677]
  %vm679 = vcmask 1043458
  %v680 = vsel %vm679, %v678, %v675
  %s681 = scalar_lea.vmem %s0, 137
  %s682 = smov 48
  %v683 = vld [vmem:[%s681] ss:$16 sm:%s682]
  %vm684 = vcmask 1045508
  %v685 = vsel %vm684, %v683, %v680
  %s686 = scalar_lea.vmem %s0, 137
  %s687 = smov 192
  %v688 = vld [vmem:[%s686] ss:$16 sm:%s687]
  %vm689 = vcmask 1047558
  %v690 = vsel %vm689, %v688, %v685
  %691 = vrot.lane.b32.xlu0 %v690, 16
  %v692 = vpop.permute.xlu0 %691
  %vm693 = vcmask 261248
  %s694 = scalar_lea.vmem %s1, 24
  %695 = vst.msk [vmem:[%s694] sm:$0xff] %vm693, %v692

// kernel: attn_pool_batched.1
$region0: #{attn_pool_batched.1}
  #allocation0 [shape = 'u32[]', space=smem, size = 0x4, offset = 0x4, fixed_abs, tag = 'smem constant byte address 0x4 - core index']
  #allocation1 [shape = 'u32[72,128]{1,0:T(1,128)}', space=vmem, size = 0x9000, scoped, tag = 'internal scratch']
  %s0 = inlined_call_operand.vmem [shape: f32[1024,32], index: 0, kind: input, shape index: {}]
  %s1 = inlined_call_operand.vmem [shape: f32[2048,16], index: 1, kind: input, shape index: {}]
  %s2 = inlined_call_operand.vmem [shape: f32[512,32], index: 2, kind: input, shape index: {}]
  %s3 = inlined_call_operand.vmem [shape: f32[512,32], index: 3, kind: input, shape index: {}]
  %s4 = inlined_call_operand.vmem [shape: f32[512,1], index: 4, kind: input, shape index: {}]
  %s5 = inlined_call_operand.vmem [shape: f32[32,64], index: 5, kind: input, shape index: {}]
  %s6 = inlined_call_operand.vmem [shape: f32[32,32], index: 6, kind: input, shape index: {}]
  %s7 = inlined_call_operand.vmem [shape: f32[8,32], index: 7, kind: input, shape index: {}]
  %s8 = inlined_call_operand.vmem [shape: f32[512,256], index: 8, kind: input, shape index: {}]
  %s9 = inlined_call_operand.vmem [shape: f32[16,256], index: 9, kind: input, shape index: {}]
  %s10 = inlined_call_operand.vmem [shape: f32[128,512], index: 10, kind: input, shape index: {}]
  %s11 = inlined_call_operand.vmem [shape: f32[512,32], index: 11, kind: output, shape index: {}]
  %s12 = sld [smem:[#allocation0]]
  $region77: #{attn_pool_batched.1} parent=0
    _
  %s14 = ssub.s32 1, %s12
  %s15 = scalar_select 0, %s14, %s12
  loop: start=0, step=1, limit=6
  $region2: #{attn_pool_batched.1} parent=0 // loop_pre_header
    _
  $region3: #{attn_pool_batched.1} parent=0 // loop_header
    %s17 = sphi 0, %s21
    %p18 = scmp.ge.s32.totalorder %s17, 6
    %s27 = sphi 0, %s29
    %s30 = sphi 0, %s27
    %s31 = sphi 0, %s30
    %s47 = sphi 0, %s31
    %s53 = sphi 0, %s55
    %s56 = sphi 0, %s53
    %s57 = sphi 0, %s56
    %s73 = sphi 0, %s57
    %s77 = sphi 0, %s77
    %s79 = sphi 0, %s77
    %s80 = sphi 0, %s79
    %s94 = sphi 0, %s80
    %s98 = sphi 0, %s98
    %s100 = sphi 0, %s98
    %s101 = sphi 0, %s100
    %s115 = sphi 0, %s101
    %s119 = sphi 0, %s119
    %s121 = sphi 0, %s119
    %s122 = sphi 0, %s121
    %s136 = sphi 0, %s122
    %s140 = sphi 0, %s140
    %s142 = sphi 0, %s140
    %s143 = sphi 0, %s142
    %s157 = sphi 0, %s143
    %s161 = sphi 0, %s161
    %s163 = sphi 0, %s161
    %s164 = sphi 0, %s163
    %s178 = sphi 0, %s164
    %s182 = sphi 0, %s182
    %s184 = sphi 0, %s182
    %s185 = sphi 0, %s184
    %s199 = sphi 0, %s185
    %s203 = sphi 0, %s203
    %s205 = sphi 0, %s203
    %s206 = sphi 0, %s205
    %s220 = sphi 0, %s206
    %s224 = sphi 0, %s224
    %s226 = sphi 0, %s224
    %s227 = sphi 0, %s226
    %s241 = sphi 0, %s227
    %s245 = sphi 0, %s245
    %s247 = sphi 0, %s245
    %s248 = sphi 0, %s247
    %s262 = sphi 0, %s248
    %s268 = sphi 0, %s270
    %s271 = sphi 0, %s268
    %s272 = sphi 0, %s271
    %s288 = sphi 0, %s272
  $region4: #{attn_pool_batched.1} parent=0 // loop_header_branch
    %20 = sbr.rel (%p18) target = $region8
  $region5: #{attn_pool_batched.1} parent=0 // loop_body
    %s22 = ssub.s32 %s17, 1
    %s23 = ssub.s32 %s17, 2
    %s24 = sadd.s32 %s17, 1
    %s25 = ssub.s32 %s17, %s24
    %p26 = scmp.eq.s32.totalorder %s25, 0
    %s28 = sadd.s32 %s27, 1
    %s29 = scalar_select %p26, %s27, %s28
    %p32 = pneg %p26
    %p33 = scmp.eq.s32.totalorder %s17, 3
    %p34 = por %p32, %p33
    %p35 = scmp.ne.s32.totalorder %s27, %s30
    %p36 = scmp.eq.s32.totalorder %s17, 0
    %p37 = por %p35, %p36
    %p38 = scmp.ne.s32.totalorder %s27, %s30
    %p39 = scmp.eq.s32.totalorder %s22, 3
    %p40 = por %p38, %p39
    %p41 = scmp.ne.s32.totalorder %s30, %s31
    %p42 = scmp.eq.s32.totalorder %s22, 0
    %p43 = por %p41, %p42
    %p44 = scmp.ne.s32.totalorder %s30, %s31
    %p45 = scmp.eq.s32.totalorder %s23, 3
    %p46 = por %p44, %p45
    %p48 = scmp.ne.s32.totalorder %s31, %s47
    %p49 = scmp.eq.s32.totalorder %s23, 0
    %p50 = por %p48, %p49
    %s51 = ssub.s32 %s17, %s24
    %p52 = scmp.eq.s32.totalorder %s51, 0
    %s54 = sadd.s32 %s53, 1
    %s55 = scalar_select %p52, %s53, %s54
    %p58 = pneg %p52
    %p59 = scmp.eq.s32.totalorder %s17, 3
    %p60 = por %p58, %p59
    %p61 = scmp.ne.s32.totalorder %s53, %s56
    %p62 = scmp.eq.s32.totalorder %s17, 0
    %p63 = por %p61, %p62
    %p64 = scmp.ne.s32.totalorder %s53, %s56
    %p65 = scmp.eq.s32.totalorder %s22, 3
    %p66 = por %p64, %p65
    %p67 = scmp.ne.s32.totalorder %s56, %s57
    %p68 = scmp.eq.s32.totalorder %s22, 0
    %p69 = por %p67, %p68
    %p70 = scmp.ne.s32.totalorder %s56, %s57
    %p71 = scmp.eq.s32.totalorder %s23, 3
    %p72 = por %p70, %p71
    %p74 = scmp.ne.s32.totalorder %s57, %s73
    %p75 = scmp.eq.s32.totalorder %s23, 0
    %p76 = por %p74, %p75
    %s78 = sadd.s32 %s77, 1
    %p81 = scmp.eq.s32.totalorder %s17, 3
    %p82 = scmp.ne.s32.totalorder %s77, %s79
    %p83 = scmp.eq.s32.totalorder %s17, 0
    %p84 = por %p82, %p83
    %p85 = scmp.ne.s32.totalorder %s77, %s79
    %p86 = scmp.eq.s32.totalorder %s22, 3
    %p87 = por %p85, %p86
    %p88 = scmp.ne.s32.totalorder %s79, %s80
    %p89 = scmp.eq.s32.totalorder %s22, 0
    %p90 = por %p88, %p89
    %p91 = scmp.ne.s32.totalorder %s79, %s80
    %p92 = scmp.eq.s32.totalorder %s23, 3
    %p93 = por %p91, %p92
    %p95 = scmp.ne.s32.totalorder %s80, %s94
    %p96 = scmp.eq.s32.totalorder %s23, 0
    %p97 = por %p95, %p96
    %s99 = sadd.s32 %s98, 1
    %p102 = scmp.eq.s32.totalorder %s17, 3
    %p103 = scmp.ne.s32.totalorder %s98, %s100
    %p104 = scmp.eq.s32.totalorder %s17, 0
    %p105 = por %p103, %p104
    %p106 = scmp.ne.s32.totalorder %s98, %s100
    %p107 = scmp.eq.s32.totalorder %s22, 3
    %p108 = por %p106, %p107
    %p109 = scmp.ne.s32.totalorder %s100, %s101
    %p110 = scmp.eq.s32.totalorder %s22, 0
    %p111 = por %p109, %p110
    %p112 = scmp.ne.s32.totalorder %s100, %s101
    %p113 = scmp.eq.s32.totalorder %s23, 3
    %p114 = por %p112, %p113
    %p116 = scmp.ne.s32.totalorder %s101, %s115
    %p117 = scmp.eq.s32.totalorder %s23, 0
    %p118 = por %p116, %p117
    %s120 = sadd.s32 %s119, 1
    %p123 = scmp.eq.s32.totalorder %s17, 3
    %p124 = scmp.ne.s32.totalorder %s119, %s121
    %p125 = scmp.eq.s32.totalorder %s17, 0
    %p126 = por %p124, %p125
    %p127 = scmp.ne.s32.totalorder %s119, %s121
    %p128 = scmp.eq.s32.totalorder %s22, 3
    %p129 = por %p127, %p128
    %p130 = scmp.ne.s32.totalorder %s121, %s122
    %p131 = scmp.eq.s32.totalorder %s22, 0
    %p132 = por %p130, %p131
    %p133 = scmp.ne.s32.totalorder %s121, %s122
    %p134 = scmp.eq.s32.totalorder %s23, 3
    %p135 = por %p133, %p134
    %p137 = scmp.ne.s32.totalorder %s122, %s136
    %p138 = scmp.eq.s32.totalorder %s23, 0
    %p139 = por %p137, %p138
    %s141 = sadd.s32 %s140, 1
    %p144 = scmp.eq.s32.totalorder %s17, 3
    %p145 = scmp.ne.s32.totalorder %s140, %s142
    %p146 = scmp.eq.s32.totalorder %s17, 0
    %p147 = por %p145, %p146
    %p148 = scmp.ne.s32.totalorder %s140, %s142
    %p149 = scmp.eq.s32.totalorder %s22, 3
    %p150 = por %p148, %p149
    %p151 = scmp.ne.s32.totalorder %s142, %s143
    %p152 = scmp.eq.s32.totalorder %s22, 0
    %p153 = por %p151, %p152
    %p154 = scmp.ne.s32.totalorder %s142, %s143
    %p155 = scmp.eq.s32.totalorder %s23, 3
    %p156 = por %p154, %p155
    %p158 = scmp.ne.s32.totalorder %s143, %s157
    %p159 = scmp.eq.s32.totalorder %s23, 0
    %p160 = por %p158, %p159
    %s162 = sadd.s32 %s161, 1
    %p165 = scmp.eq.s32.totalorder %s17, 3
    %p166 = scmp.ne.s32.totalorder %s161, %s163
    %p167 = scmp.eq.s32.totalorder %s17, 0
    %p168 = por %p166, %p167
    %p169 = scmp.ne.s32.totalorder %s161, %s163
    %p170 = scmp.eq.s32.totalorder %s22, 3
    %p171 = por %p169, %p170
    %p172 = scmp.ne.s32.totalorder %s163, %s164
    %p173 = scmp.eq.s32.totalorder %s22, 0
    %p174 = por %p172, %p173
    %p175 = scmp.ne.s32.totalorder %s163, %s164
    %p176 = scmp.eq.s32.totalorder %s23, 3
    %p177 = por %p175, %p176
    %p179 = scmp.ne.s32.totalorder %s164, %s178
    %p180 = scmp.eq.s32.totalorder %s23, 0
    %p181 = por %p179, %p180
    %s183 = sadd.s32 %s182, 1
    %p186 = scmp.eq.s32.totalorder %s17, 3
    %p187 = scmp.ne.s32.totalorder %s182, %s184
    %p188 = scmp.eq.s32.totalorder %s17, 0
    %p189 = por %p187, %p188
    %p190 = scmp.ne.s32.totalorder %s182, %s184
    %p191 = scmp.eq.s32.totalorder %s22, 3
    %p192 = por %p190, %p191
    %p193 = scmp.ne.s32.totalorder %s184, %s185
    %p194 = scmp.eq.s32.totalorder %s22, 0
    %p195 = por %p193, %p194
    %p196 = scmp.ne.s32.totalorder %s184, %s185
    %p197 = scmp.eq.s32.totalorder %s23, 3
    %p198 = por %p196, %p197
    %p200 = scmp.ne.s32.totalorder %s185, %s199
    %p201 = scmp.eq.s32.totalorder %s23, 0
    %p202 = por %p200, %p201
    %s204 = sadd.s32 %s203, 1
    %p207 = scmp.eq.s32.totalorder %s17, 3
    %p208 = scmp.ne.s32.totalorder %s203, %s205
    %p209 = scmp.eq.s32.totalorder %s17, 0
    %p210 = por %p208, %p209
    %p211 = scmp.ne.s32.totalorder %s203, %s205
    %p212 = scmp.eq.s32.totalorder %s22, 3
    %p213 = por %p211, %p212
    %p214 = scmp.ne.s32.totalorder %s205, %s206
    %p215 = scmp.eq.s32.totalorder %s22, 0
    %p216 = por %p214, %p215
    %p217 = scmp.ne.s32.totalorder %s205, %s206
    %p218 = scmp.eq.s32.totalorder %s23, 3
    %p219 = por %p217, %p218
    %p221 = scmp.ne.s32.totalorder %s206, %s220
    %p222 = scmp.eq.s32.totalorder %s23, 0
    %p223 = por %p221, %p222
    %s225 = sadd.s32 %s224, 1
    %p228 = scmp.eq.s32.totalorder %s17, 3
    %p229 = scmp.ne.s32.totalorder %s224, %s226
    %p230 = scmp.eq.s32.totalorder %s17, 0
    %p231 = por %p229, %p230
    %p232 = scmp.ne.s32.totalorder %s224, %s226
    %p233 = scmp.eq.s32.totalorder %s22, 3
    %p234 = por %p232, %p233
    %p235 = scmp.ne.s32.totalorder %s226, %s227
    %p236 = scmp.eq.s32.totalorder %s22, 0
    %p237 = por %p235, %p236
    %p238 = scmp.ne.s32.totalorder %s226, %s227
    %p239 = scmp.eq.s32.totalorder %s23, 3
    %p240 = por %p238, %p239
    %p242 = scmp.ne.s32.totalorder %s227, %s241
    %p243 = scmp.eq.s32.totalorder %s23, 0
    %p244 = por %p242, %p243
    %s246 = sadd.s32 %s245, 1
    %p249 = scmp.eq.s32.totalorder %s17, 3
    %p250 = scmp.ne.s32.totalorder %s245, %s247
    %p251 = scmp.eq.s32.totalorder %s17, 0
    %p252 = por %p250, %p251
    %p253 = scmp.ne.s32.totalorder %s245, %s247
    %p254 = scmp.eq.s32.totalorder %s22, 3
    %p255 = por %p253, %p254
    %p256 = scmp.ne.s32.totalorder %s247, %s248
    %p257 = scmp.eq.s32.totalorder %s22, 0
    %p258 = por %p256, %p257
    %p259 = scmp.ne.s32.totalorder %s247, %s248
    %p260 = scmp.eq.s32.totalorder %s23, 3
    %p261 = por %p259, %p260
    %p263 = scmp.ne.s32.totalorder %s248, %s262
    %p264 = scmp.eq.s32.totalorder %s23, 0
    %p265 = por %p263, %p264
    %s266 = ssub.s32 %s17, %s24
    %p267 = scmp.eq.s32.totalorder %s266, 0
    %s269 = sadd.s32 %s268, 1
    %s270 = scalar_select %p267, %s268, %s269
    %p273 = pneg %p267
    %p274 = scmp.eq.s32.totalorder %s17, 3
    %p275 = por %p273, %p274
    %p276 = scmp.ne.s32.totalorder %s268, %s271
    %p277 = scmp.eq.s32.totalorder %s17, 0
    %p278 = por %p276, %p277
    %p279 = scmp.ne.s32.totalorder %s268, %s271
    %p280 = scmp.eq.s32.totalorder %s22, 3
    %p281 = por %p279, %p280
    %p282 = scmp.ne.s32.totalorder %s271, %s272
    %p283 = scmp.eq.s32.totalorder %s22, 0
    %p284 = por %p282, %p283
    %p285 = scmp.ne.s32.totalorder %s271, %s272
    %p286 = scmp.eq.s32.totalorder %s23, 3
    %p287 = por %p285, %p286
    %p289 = scmp.ne.s32.totalorder %s272, %s288
    %p290 = scmp.eq.s32.totalorder %s23, 0
    %p291 = por %p289, %p290
    %p292 = scmp.le.s32.totalorder 1, %s17
    %p293 = scmp.lt.s32.totalorder %s17, 5
    %p294 = pnand %p292, %p293
    %p295 = pneg %p294
    // Predicated region
    $region9: #{attn_pool_batched.1} parent=5 // pred_check
      _
    $region10: #{attn_pool_batched.1} parent=5 // pred_check_branch
      %297 = sbr.rel (%p294) target = $region12
    $region11: #{attn_pool_batched.1} parent=5 // pred_region
      %s298 = ssub.s32 %s17, 1
      // Predicated region
      $region13: #{attn_pool_batched.1} parent=11 // pred_check
        %p299 = pneg %p90
      $region14: #{attn_pool_batched.1} parent=11 // pred_check_branch
        %301 = sbr.rel (%p299) target = $region16
      $region15: #{attn_pool_batched.1} parent=11 // pred_region
        _
      $region16: #{attn_pool_batched.1} parent=11 // pred_fallthru
        _
      // Predicated region
      $region17: #{attn_pool_batched.1} parent=11 // pred_check
        %p302 = pneg %p111
      $region18: #{attn_pool_batched.1} parent=11 // pred_check_branch
        %304 = sbr.rel (%p302) target = $region20
      $region19: #{attn_pool_batched.1} parent=11 // pred_region
        _
      $region20: #{attn_pool_batched.1} parent=11 // pred_fallthru
        _
      // Predicated region
      $region21: #{attn_pool_batched.1} parent=11 // pred_check
        %p305 = pneg %p132
      $region22: #{attn_pool_batched.1} parent=11 // pred_check_branch
        %307 = sbr.rel (%p305) target = $region24
      $region23: #{attn_pool_batched.1} parent=11 // pred_region
        _
      $region24: #{attn_pool_batched.1} parent=11 // pred_fallthru
        _
      // Predicated region
      $region25: #{attn_pool_batched.1} parent=11 // pred_check
        %p308 = pneg %p153
      $region26: #{attn_pool_batched.1} parent=11 // pred_check_branch
        %310 = sbr.rel (%p308) target = $region28
      $region27: #{attn_pool_batched.1} parent=11 // pred_region
        _
      $region28: #{attn_pool_batched.1} parent=11 // pred_fallthru
        _
      // Predicated region
      $region29: #{attn_pool_batched.1} parent=11 // pred_check
        %p311 = pneg %p174
      $region30: #{attn_pool_batched.1} parent=11 // pred_check_branch
        %313 = sbr.rel (%p311) target = $region32
      $region31: #{attn_pool_batched.1} parent=11 // pred_region
        _
      $region32: #{attn_pool_batched.1} parent=11 // pred_fallthru
        _
      // Predicated region
      $region33: #{attn_pool_batched.1} parent=11 // pred_check
        %p314 = pneg %p195
      $region34: #{attn_pool_batched.1} parent=11 // pred_check_branch
        %316 = sbr.rel (%p314) target = $region36
      $region35: #{attn_pool_batched.1} parent=11 // pred_region
        _
      $region36: #{attn_pool_batched.1} parent=11 // pred_fallthru
        _
      // Predicated region
      $region37: #{attn_pool_batched.1} parent=11 // pred_check
        %p317 = pneg %p216
      $region38: #{attn_pool_batched.1} parent=11 // pred_check_branch
        %319 = sbr.rel (%p317) target = $region40
      $region39: #{attn_pool_batched.1} parent=11 // pred_region
        _
      $region40: #{attn_pool_batched.1} parent=11 // pred_fallthru
        _
      // Predicated region
      $region41: #{attn_pool_batched.1} parent=11 // pred_check
        %p320 = pneg %p237
      $region42: #{attn_pool_batched.1} parent=11 // pred_check_branch
        %322 = sbr.rel (%p320) target = $region44
      $region43: #{attn_pool_batched.1} parent=11 // pred_region
        _
      $region44: #{attn_pool_batched.1} parent=11 // pred_fallthru
        _
      // Predicated region
      $region45: #{attn_pool_batched.1} parent=11 // pred_check
        %p323 = pneg %p258
      $region46: #{attn_pool_batched.1} parent=11 // pred_check_branch
        %325 = sbr.rel (%p323) target = $region48
      $region47: #{attn_pool_batched.1} parent=11 // pred_region
        _
      $region48: #{attn_pool_batched.1} parent=11 // pred_fallthru
        _
    $region12: #{attn_pool_batched.1} parent=5 // pred_fallthru
      _
    %p326 = scmp.lt.s32.totalorder %s17, 4
    // Predicated region
    $region49: #{attn_pool_batched.1} parent=5 // pred_check
      %p327 = pneg %p326
    $region50: #{attn_pool_batched.1} parent=5 // pred_check_branch
      %329 = sbr.rel (%p327) target = $region52
    $region51: #{attn_pool_batched.1} parent=5 // pred_region
      // Predicated region
      $region53: #{attn_pool_batched.1} parent=51 // pred_check
        %p330 = pneg %p37
      $region54: #{attn_pool_batched.1} parent=51 // pred_check_branch
        %332 = sbr.rel (%p330) target = $region56
      $region55: #{attn_pool_batched.1} parent=51 // pred_region
        %s333 = smul.u32 32, %s17
        %p334 = scmp.lt.s32.totalorder %s333, 127
        %s335 = scalar_select %p334, %s333, 127
        %s336 = smul.addr %s335, 8
        %s337 = scalar_lea.vmem %s0, %s336
        %s338 = smul.u32 32, %s17
      $region56: #{attn_pool_batched.1} parent=51 // pred_fallthru
        _
      // Predicated region
      $region57: #{attn_pool_batched.1} parent=51 // pred_check
        %p339 = pneg %p63
      $region58: #{attn_pool_batched.1} parent=51 // pred_check_branch
        %341 = sbr.rel (%p339) target = $region60
      $region59: #{attn_pool_batched.1} parent=51 // pred_region
        %s342 = smul.u32 64, %s17
        %p343 = scmp.lt.s32.totalorder %s342, 255
        %s344 = scalar_select %p343, %s342, 255
        %s345 = smul.addr %s344, 8
        %s346 = scalar_lea.vmem %s1, %s345
        %s347 = smul.u32 64, %s17
      $region60: #{attn_pool_batched.1} parent=51 // pred_fallthru
        _
    $region52: #{attn_pool_batched.1} parent=5 // pred_fallthru
      _
    %p348 = scmp.le.s32.totalorder 1, %s17
    %p349 = scmp.lt.s32.totalorder %s17, 5
    %p350 = pnand %p348, %p349
    %p351 = pneg %p350
    // Predicated region
    $region61: #{attn_pool_batched.1} parent=5 // pred_check
      _
    $region62: #{attn_pool_batched.1} parent=5 // pred_check_branch
      %353 = sbr.rel (%p350) target = $region64
    $region63: #{attn_pool_batched.1} parent=5 // pred_region
      %s354 = ssub.s32 %s17, 1
      %s355 = smul.u32 32, %s22
      %p356 = scmp.lt.s32.totalorder %s355, 127
      %s357 = scalar_select %p356, %s355, 127
      %s358 = smul.addr %s357, 8
      %s359 = scalar_lea.vmem %s0, %s358
      %p360 = pneg %p43
      %p361 = pneg %p40
      %s362 = smul.u32 64, %s22
      %p363 = scmp.lt.s32.totalorder %s362, 255
      %s364 = scalar_select %p363, %s362, 255
      %s365 = smul.addr %s364, 8
      %s366 = scalar_lea.vmem %s1, %s365
      %p367 = pneg %p69
      %p368 = pneg %p66
      %p369 = pneg %p90
      %p370 = pneg %p87
      %p371 = pneg %p111
      %p372 = pneg %p108
      %p373 = pneg %p132
      %p374 = pneg %p129
      %p375 = pneg %p153
      %p376 = pneg %p150
      %p377 = pneg %p174
      %p378 = pneg %p171
      %p379 = pneg %p195
      %p380 = pneg %p192
      %p381 = pneg %p216
      %p382 = pneg %p213
      %p383 = pneg %p237
      %p384 = pneg %p234
      %p385 = pneg %p258
      %p386 = pneg %p255
      %p387 = pneg %p284
      %p388 = pneg %p281
      %s389 = smul.u32 16, %s22
      %p390 = scmp.lt.s32.totalorder %s389, 63
      %s391 = scalar_select %p390, %s389, 63
      %s392 = smul.addr %s391, 8
      %s393 = scalar_lea.vmem %s11, %s392
      %s394 = smul.u32 32, %s22
      %p395 = scmp.lt.s32.totalorder %s394, 127
      %s396 = scalar_select %p395, %s394, 127
      %s397 = smul.addr %s396, 8
      %s398 = scalar_lea.vmem %s0, %s397
      %s399 = smul.u32 32, %s22
      %s400 = smul.u32 64, %s22
      %p401 = scmp.lt.s32.totalorder %s400, 255
      %s402 = scalar_select %p401, %s400, 255
      %s403 = smul.addr %s402, 8
      %s404 = scalar_lea.vmem %s1, %s403
      %s405 = smul.u32 64, %s22
      %s406 = smul.u32 16, %s22
      %p407 = scmp.lt.s32.totalorder %s406, 63
      %s408 = scalar_select %p407, %s406, 63
      %s409 = smul.addr %s408, 8
      %s410 = scalar_lea.vmem %s11, %s409
      %s411 = smul.u32 16, %s22
      %v412 = vld [vmem:[%s398] sm:$0xff]
      %v413 = vld [vmem:[%s398 + $0x8] sm:$0xff]
      %v414 = vld [vmem:[%s398 + $0x10] sm:$0xff]
      %v415 = vld [vmem:[%s398 + $0x18] sm:$0xff]
      %v416 = vld [vmem:[%s398 + $0x20] sm:$0xff]
      %v417 = vld [vmem:[%s398 + $0x28] sm:$0xff]
      %v418 = vld [vmem:[%s398 + $0x30] sm:$0xff]
      %v419 = vld [vmem:[%s398 + $0x38] sm:$0xff]
      %v420 = vld [vmem:[%s398 + $0x40] sm:$0xff]
      %v421 = vld [vmem:[%s398 + $0x48] sm:$0xff]
      %v422 = vld [vmem:[%s398 + $0x50] sm:$0xff]
      %v423 = vld [vmem:[%s398 + $0x58] sm:$0xff]
      %v424 = vld [vmem:[%s398 + $0x60] sm:$0xff]
      %v425 = vld [vmem:[%s398 + $0x68] sm:$0xff]
      %v426 = vld [vmem:[%s398 + $0x70] sm:$0xff]
      %v427 = vld [vmem:[%s398 + $0x78] sm:$0xff]
      %v428 = vld [vmem:[%s398 + $0x80] sm:$0xff]
      %v429 = vld [vmem:[%s398 + $0x88] sm:$0xff]
      %v430 = vld [vmem:[%s398 + $0x90] sm:$0xff]
      %v431 = vld [vmem:[%s398 + $0x98] sm:$0xff]
      %v432 = vld [vmem:[%s398 + $0xa0] sm:$0xff]
      %v433 = vld [vmem:[%s398 + $0xa8] sm:$0xff]
      %v434 = vld [vmem:[%s398 + $0xb0] sm:$0xff]
      %v435 = vld [vmem:[%s398 + $0xb8] sm:$0xff]
      %v436 = vld [vmem:[%s398 + $0xc0] sm:$0xff]
      %v437 = vld [vmem:[%s398 + $0xc8] sm:$0xff]
      %v438 = vld [vmem:[%s398 + $0xd0] sm:$0xff]
      %v439 = vld [vmem:[%s398 + $0xd8] sm:$0xff]
      %v440 = vld [vmem:[%s398 + $0xe0] sm:$0xff]
      %v441 = vld [vmem:[%s398 + $0xe8] sm:$0xff]
      %v442 = vld [vmem:[%s398 + $0xf0] sm:$0xff]
      %v443 = vld [vmem:[%s398 + $0xf8] sm:$0xff]
      %vm444 = vcmask 261120
      %v445 = vsel %vm444, %v412, 0.0
      %446 = vadd.xlane.f32.xlu0 %v445
      %v447 = vpop.xlane.xlu0 %446
      %v448 = vsel %vm444, %v413, 0.0
      %449 = vadd.xlane.f32.xlu0 %v448
      %v450 = vpop.xlane.xlu0 %449
      %v451 = vsel %vm444, %v414, 0.0
      %452 = vadd.xlane.f32.xlu0 %v451
      %v453 = vpop.xlane.xlu0 %452
      %v454 = vsel %vm444, %v415, 0.0
      %455 = vadd.xlane.f32.xlu0 %v454
      %v456 = vpop.xlane.xlu0 %455
      %v457 = vsel %vm444, %v416, 0.0
      %458 = vadd.xlane.f32.xlu0 %v457
      %v459 = vpop.xlane.xlu0 %458
      %v460 = vsel %vm444, %v417, 0.0
      %461 = vadd.xlane.f32.xlu0 %v460
      %v462 = vpop.xlane.xlu0 %461
      %v463 = vsel %vm444, %v418, 0.0
      %464 = vadd.xlane.f32.xlu0 %v463
      %v465 = vpop.xlane.xlu0 %464
      %v466 = vsel %vm444, %v419, 0.0
      %467 = vadd.xlane.f32.xlu0 %v466
      %v468 = vpop.xlane.xlu0 %467
      %v469 = vsel %vm444, %v420, 0.0
      %470 = vadd.xlane.f32.xlu0 %v469
      %v471 = vpop.xlane.xlu0 %470
      %v472 = vsel %vm444, %v421, 0.0
      %473 = vadd.xlane.f32.xlu0 %v472
      %v474 = vpop.xlane.xlu0 %473
      %v475 = vsel %vm444, %v422, 0.0
      %476 = vadd.xlane.f32.xlu0 %v475
      %v477 = vpop.xlane.xlu0 %476
      %v478 = vsel %vm444, %v423, 0.0
      %479 = vadd.xlane.f32.xlu0 %v478
      %v480 = vpop.xlane.xlu0 %479
      %v481 = vsel %vm444, %v424, 0.0
      %482 = vadd.xlane.f32.xlu0 %v481
      %v483 = vpop.xlane.xlu0 %482
      %v484 = vsel %vm444, %v425, 0.0
      %485 = vadd.xlane.f32.xlu0 %v484
      %v486 = vpop.xlane.xlu0 %485
      %v487 = vsel %vm444, %v426, 0.0
      %488 = vadd.xlane.f32.xlu0 %v487
      %v489 = vpop.xlane.xlu0 %488
      %v490 = vsel %vm444, %v427, 0.0
      %491 = vadd.xlane.f32.xlu0 %v490
      %v492 = vpop.xlane.xlu0 %491
      %v493 = vsel %vm444, %v428, 0.0
      %494 = vadd.xlane.f32.xlu0 %v493
      %v495 = vpop.xlane.xlu0 %494
      %v496 = vsel %vm444, %v429, 0.0
      %497 = vadd.xlane.f32.xlu0 %v496
      %v498 = vpop.xlane.xlu0 %497
      %v499 = vsel %vm444, %v430, 0.0
      %500 = vadd.xlane.f32.xlu0 %v499
      %v501 = vpop.xlane.xlu0 %500
      %v502 = vsel %vm444, %v431, 0.0
      %503 = vadd.xlane.f32.xlu0 %v502
      %v504 = vpop.xlane.xlu0 %503
      %v505 = vsel %vm444, %v432, 0.0
      %506 = vadd.xlane.f32.xlu0 %v505
      %v507 = vpop.xlane.xlu0 %506
      %v508 = vsel %vm444, %v433, 0.0
      %509 = vadd.xlane.f32.xlu0 %v508
      %v510 = vpop.xlane.xlu0 %509
      %v511 = vsel %vm444, %v434, 0.0
      %512 = vadd.xlane.f32.xlu0 %v511
      %v513 = vpop.xlane.xlu0 %512
      %v514 = vsel %vm444, %v435, 0.0
      %515 = vadd.xlane.f32.xlu0 %v514
      %v516 = vpop.xlane.xlu0 %515
      %v517 = vsel %vm444, %v436, 0.0
      %518 = vadd.xlane.f32.xlu0 %v517
      %v519 = vpop.xlane.xlu0 %518
      %v520 = vsel %vm444, %v437, 0.0
      %521 = vadd.xlane.f32.xlu0 %v520
      %v522 = vpop.xlane.xlu0 %521
      %v523 = vsel %vm444, %v438, 0.0
      %524 = vadd.xlane.f32.xlu0 %v523
      %v525 = vpop.xlane.xlu0 %524
      %v526 = vsel %vm444, %v439, 0.0
      %527 = vadd.xlane.f32.xlu0 %v526
      %v528 = vpop.xlane.xlu0 %527
      %v529 = vsel %vm444, %v440, 0.0
      %530 = vadd.xlane.f32.xlu0 %v529
      %v531 = vpop.xlane.xlu0 %530
      %v532 = vsel %vm444, %v441, 0.0
      %533 = vadd.xlane.f32.xlu0 %v532
      %v534 = vpop.xlane.xlu0 %533
      %v535 = vsel %vm444, %v442, 0.0
      %536 = vadd.xlane.f32.xlu0 %v535
      %v537 = vpop.xlane.xlu0 %536
      %v538 = vsel %vm444, %v443, 0.0
      %539 = vadd.xlane.f32.xlu0 %v538
      %v540 = vpop.xlane.xlu0 %539
      %v541 = vrcp.pop 32.0
      %v542 = vmul.f32 32.0, %v541
      %v543 = vsub.f32 1.0, %v542
      %v544 = vmul.f32 %v541, %v543
      %v545 = vadd.f32 %v541, %v544
      %vm546 = vweird.f32 %v541
      %v547 = vsel %vm546, %v541, %v545
      %v548 = vmul.f32 %v447, %v547
      %v549 = vmul.f32 %v450, %v547
      %v550 = vmul.f32 %v453, %v547
      %v551 = vmul.f32 %v456, %v547
      %v552 = vmul.f32 %v459, %v547
      %v553 = vmul.f32 %v462, %v547
      %v554 = vmul.f32 %v465, %v547
      %v555 = vmul.f32 %v468, %v547
      %v556 = vmul.f32 %v471, %v547
      %v557 = vmul.f32 %v474, %v547
      %v558 = vmul.f32 %v477, %v547
      %v559 = vmul.f32 %v480, %v547
      %v560 = vmul.f32 %v483, %v547
      %v561 = vmul.f32 %v486, %v547
      %v562 = vmul.f32 %v489, %v547
      %v563 = vmul.f32 %v492, %v547
      %v564 = vmul.f32 %v495, %v547
      %v565 = vmul.f32 %v498, %v547
      %v566 = vmul.f32 %v501, %v547
      %v567 = vmul.f32 %v504, %v547
      %v568 = vmul.f32 %v507, %v547
      %v569 = vmul.f32 %v510, %v547
      %v570 = vmul.f32 %v513, %v547
      %v571 = vmul.f32 %v516, %v547
      %v572 = vmul.f32 %v519, %v547
      %v573 = vmul.f32 %v522, %v547
      %v574 = vmul.f32 %v525, %v547
      %v575 = vmul.f32 %v528, %v547
      %v576 = vmul.f32 %v531, %v547
      %v577 = vmul.f32 %v534, %v547
      %v578 = vmul.f32 %v537, %v547
      %v579 = vmul.f32 %v540, %v547
      %v580 = vsub.f32 %v412, %v548
      %v581 = vsub.f32 %v413, %v549
      %v582 = vsub.f32 %v414, %v550
      %v583 = vsub.f32 %v415, %v551
      %v584 = vsub.f32 %v416, %v552
      %v585 = vsub.f32 %v417, %v553
      %v586 = vsub.f32 %v418, %v554
      %v587 = vsub.f32 %v419, %v555
      %v588 = vsub.f32 %v420, %v556
      %v589 = vsub.f32 %v421, %v557
      %v590 = vsub.f32 %v422, %v558
      %v591 = vsub.f32 %v423, %v559
      %v592 = vsub.f32 %v424, %v560
      %v593 = vsub.f32 %v425, %v561
      %v594 = vsub.f32 %v426, %v562
      %v595 = vsub.f32 %v427, %v563
      %v596 = vsub.f32 %v428, %v564
      %v597 = vsub.f32 %v429, %v565
      %v598 = vsub.f32 %v430, %v566
      %v599 = vsub.f32 %v431, %v567
      %v600 = vsub.f32 %v432, %v568
      %v601 = vsub.f32 %v433, %v569
      %v602 = vsub.f32 %v434, %v570
      %v603 = vsub.f32 %v435, %v571
      %v604 = vsub.f32 %v436, %v572
      %v605 = vsub.f32 %v437, %v573
      %v606 = vsub.f32 %v438, %v574
      %v607 = vsub.f32 %v439, %v575
      %v608 = vsub.f32 %v440, %v576
      %v609 = vsub.f32 %v441, %v577
      %v610 = vsub.f32 %v442, %v578
      %v611 = vsub.f32 %v443, %v579
      %v612 = vmul.f32 %v580, %v580
      %v613 = vmul.f32 %v581, %v581
      %v614 = vmul.f32 %v582, %v582
      %v615 = vmul.f32 %v583, %v583
      %v616 = vmul.f32 %v584, %v584
      %v617 = vmul.f32 %v585, %v585
      %v618 = vmul.f32 %v586, %v586
      %v619 = vmul.f32 %v587, %v587
      %v620 = vmul.f32 %v588, %v588
      %v621 = vmul.f32 %v589, %v589
      %v622 = vmul.f32 %v590, %v590
      %v623 = vmul.f32 %v591, %v591
      %v624 = vmul.f32 %v592, %v592
      %v625 = vmul.f32 %v593, %v593
      %v626 = vmul.f32 %v594, %v594
      %v627 = vmul.f32 %v595, %v595
      %v628 = vmul.f32 %v596, %v596
      %v629 = vmul.f32 %v597, %v597
      %v630 = vmul.f32 %v598, %v598
      %v631 = vmul.f32 %v599, %v599
      %v632 = vmul.f32 %v600, %v600
      %v633 = vmul.f32 %v601, %v601
      %v634 = vmul.f32 %v602, %v602
      %v635 = vmul.f32 %v603, %v603
      %v636 = vmul.f32 %v604, %v604
      %v637 = vmul.f32 %v605, %v605
      %v638 = vmul.f32 %v606, %v606
      %v639 = vmul.f32 %v607, %v607
      %v640 = vmul.f32 %v608, %v608
      %v641 = vmul.f32 %v609, %v609
      %v642 = vmul.f32 %v610, %v610
      %v643 = vmul.f32 %v611, %v611
      %v644 = vsel %vm444, %v612, 0.0
      %645 = vadd.xlane.f32.xlu0 %v644
      %v646 = vpop.xlane.xlu0 %645
      %v647 = vsel %vm444, %v613, 0.0
      %648 = vadd.xlane.f32.xlu0 %v647
      %v649 = vpop.xlane.xlu0 %648
      %v650 = vsel %vm444, %v614, 0.0
      %651 = vadd.xlane.f32.xlu0 %v650
      %v652 = vpop.xlane.xlu0 %651
      %v653 = vsel %vm444, %v615, 0.0
      %654 = vadd.xlane.f32.xlu0 %v653
      %v655 = vpop.xlane.xlu0 %654
      %v656 = vsel %vm444, %v616, 0.0
      %657 = vadd.xlane.f32.xlu0 %v656
      %v658 = vpop.xlane.xlu0 %657
      %v659 = vsel %vm444, %v617, 0.0
      %660 = vadd.xlane.f32.xlu0 %v659
      %v661 = vpop.xlane.xlu0 %660
      %v662 = vsel %vm444, %v618, 0.0
      %663 = vadd.xlane.f32.xlu0 %v662
      %v664 = vpop.xlane.xlu0 %663
      %v665 = vsel %vm444, %v619, 0.0
      %666 = vadd.xlane.f32.xlu0 %v665
      %v667 = vpop.xlane.xlu0 %666
      %v668 = vsel %vm444, %v620, 0.0
      %669 = vadd.xlane.f32.xlu0 %v668
      %v670 = vpop.xlane.xlu0 %669
      %v671 = vsel %vm444, %v621, 0.0
      %672 = vadd.xlane.f32.xlu0 %v671
      %v673 = vpop.xlane.xlu0 %672
      %v674 = vsel %vm444, %v622, 0.0
      %675 = vadd.xlane.f32.xlu0 %v674
      %v676 = vpop.xlane.xlu0 %675
      %v677 = vsel %vm444, %v623, 0.0
      %678 = vadd.xlane.f32.xlu0 %v677
      %v679 = vpop.xlane.xlu0 %678
      %v680 = vsel %vm444, %v624, 0.0
      %681 = vadd.xlane.f32.xlu0 %v680
      %v682 = vpop.xlane.xlu0 %681
      %v683 = vsel %vm444, %v625, 0.0
      %684 = vadd.xlane.f32.xlu0 %v683
      %v685 = vpop.xlane.xlu0 %684
      %v686 = vsel %vm444, %v626, 0.0
      %687 = vadd.xlane.f32.xlu0 %v686
      %v688 = vpop.xlane.xlu0 %687
      %v689 = vsel %vm444, %v627, 0.0
      %690 = vadd.xlane.f32.xlu0 %v689
      %v691 = vpop.xlane.xlu0 %690
      %v692 = vsel %vm444, %v628, 0.0
      %693 = vadd.xlane.f32.xlu0 %v692
      %v694 = vpop.xlane.xlu0 %693
      %v695 = vsel %vm444, %v629, 0.0
      %696 = vadd.xlane.f32.xlu0 %v695
      %v697 = vpop.xlane.xlu0 %696
      %v698 = vsel %vm444, %v630, 0.0
      %699 = vadd.xlane.f32.xlu0 %v698
      %v700 = vpop.xlane.xlu0 %699
      %v701 = vsel %vm444, %v631, 0.0
      %702 = vadd.xlane.f32.xlu0 %v701
      %v703 = vpop.xlane.xlu0 %702
      %v704 = vsel %vm444, %v632, 0.0
      %705 = vadd.xlane.f32.xlu0 %v704
      %v706 = vpop.xlane.xlu0 %705
      %v707 = vsel %vm444, %v633, 0.0
      %708 = vadd.xlane.f32.xlu0 %v707
      %v709 = vpop.xlane.xlu0 %708
      %v710 = vsel %vm444, %v634, 0.0
      %711 = vadd.xlane.f32.xlu0 %v710
      %v712 = vpop.xlane.xlu0 %711
      %v713 = vsel %vm444, %v635, 0.0
      %714 = vadd.xlane.f32.xlu0 %v713
      %v715 = vpop.xlane.xlu0 %714
      %v716 = vsel %vm444, %v636, 0.0
      %717 = vadd.xlane.f32.xlu0 %v716
      %v718 = vpop.xlane.xlu0 %717
      %v719 = vsel %vm444, %v637, 0.0
      %720 = vadd.xlane.f32.xlu0 %v719
      %v721 = vpop.xlane.xlu0 %720
      %v722 = vsel %vm444, %v638, 0.0
      %723 = vadd.xlane.f32.xlu0 %v722
      %v724 = vpop.xlane.xlu0 %723
      %v725 = vsel %vm444, %v639, 0.0
      %726 = vadd.xlane.f32.xlu0 %v725
      %v727 = vpop.xlane.xlu0 %726
      %v728 = vsel %vm444, %v640, 0.0
      %729 = vadd.xlane.f32.xlu0 %v728
      %v730 = vpop.xlane.xlu0 %729
      %v731 = vsel %vm444, %v641, 0.0
      %732 = vadd.xlane.f32.xlu0 %v731
      %v733 = vpop.xlane.xlu0 %732
      %v734 = vsel %vm444, %v642, 0.0
      %735 = vadd.xlane.f32.xlu0 %v734
      %v736 = vpop.xlane.xlu0 %735
      %v737 = vsel %vm444, %v643, 0.0
      %738 = vadd.xlane.f32.xlu0 %v737
      %v739 = vpop.xlane.xlu0 %738
      %v740 = vmul.f32 %v646, %v547
      %v741 = vmul.f32 %v649, %v547
      %v742 = vmul.f32 %v652, %v547
      %v743 = vmul.f32 %v655, %v547
      %v744 = vmul.f32 %v658, %v547
      %v745 = vmul.f32 %v661, %v547
      %v746 = vmul.f32 %v664, %v547
      %v747 = vmul.f32 %v667, %v547
      %v748 = vmul.f32 %v670, %v547
      %v749 = vmul.f32 %v673, %v547
      %v750 = vmul.f32 %v676, %v547
      %v751 = vmul.f32 %v679, %v547
      %v752 = vmul.f32 %v682, %v547
      %v753 = vmul.f32 %v685, %v547
      %v754 = vmul.f32 %v688, %v547
      %v755 = vmul.f32 %v691, %v547
      %v756 = vmul.f32 %v694, %v547
      %v757 = vmul.f32 %v697, %v547
      %v758 = vmul.f32 %v700, %v547
      %v759 = vmul.f32 %v703, %v547
      %v760 = vmul.f32 %v706, %v547
      %v761 = vmul.f32 %v709, %v547
      %v762 = vmul.f32 %v712, %v547
      %v763 = vmul.f32 %v715, %v547
      %v764 = vmul.f32 %v718, %v547
      %v765 = vmul.f32 %v721, %v547
      %v766 = vmul.f32 %v724, %v547
      %v767 = vmul.f32 %v727, %v547
      %v768 = vmul.f32 %v730, %v547
      %v769 = vmul.f32 %v733, %v547
      %v770 = vmul.f32 %v736, %v547
      %v771 = vmul.f32 %v739, %v547
      %v772 = vadd.f32 %v740, 1e-05
      %v773 = vadd.f32 %v741, 1e-05
      %v774 = vadd.f32 %v742, 1e-05
      %v775 = vadd.f32 %v743, 1e-05
      %v776 = vadd.f32 %v744, 1e-05
      %v777 = vadd.f32 %v745, 1e-05
      %v778 = vadd.f32 %v746, 1e-05
      %v779 = vadd.f32 %v747, 1e-05
      %v780 = vadd.f32 %v748, 1e-05
      %v781 = vadd.f32 %v749, 1e-05
      %v782 = vadd.f32 %v750, 1e-05
      %v783 = vadd.f32 %v751, 1e-05
      %v784 = vadd.f32 %v752, 1e-05
      %v785 = vadd.f32 %v753, 1e-05
      %v786 = vadd.f32 %v754, 1e-05
      %v787 = vadd.f32 %v755, 1e-05
      %v788 = vadd.f32 %v756, 1e-05
      %v789 = vadd.f32 %v757, 1e-05
      %v790 = vadd.f32 %v758, 1e-05
      %v791 = vadd.f32 %v759, 1e-05
      %v792 = vadd.f32 %v760, 1e-05
      %v793 = vadd.f32 %v761, 1e-05
      %v794 = vadd.f32 %v762, 1e-05
      %v795 = vadd.f32 %v763, 1e-05
      %v796 = vadd.f32 %v764, 1e-05
      %v797 = vadd.f32 %v765, 1e-05
      %v798 = vadd.f32 %v766, 1e-05
      %v799 = vadd.f32 %v767, 1e-05
      %v800 = vadd.f32 %v768, 1e-05
      %v801 = vadd.f32 %v769, 1e-05
      %v802 = vadd.f32 %v770, 1e-05
      %v803 = vadd.f32 %v771, 1e-05
      %v804 = vrsqrt.pop %v772
      %v805 = vmul.f32 %v804, %v772
      %v806 = vmul.f32 %v805, %v804
      %v807 = vmul.f32 0.5, %v806
      %v808 = vsub.f32 1.5, %v807
      %v809 = vmul.f32 %v804, %v808
      %vm810 = vweird.f32 %v772
      %vm811 = vweird.f32 %v804
      %vm812 = vmor %vm810, %vm811
      %v813 = vsel %vm812, %v804, %v809
      %v814 = vrsqrt.pop %v773
      %v815 = vmul.f32 %v814, %v773
      %v816 = vmul.f32 %v815, %v814
      %v817 = vmul.f32 0.5, %v816
      %v818 = vsub.f32 1.5, %v817
      %v819 = vmul.f32 %v814, %v818
      %vm820 = vweird.f32 %v773
      %vm821 = vweird.f32 %v814
      %vm822 = vmor %vm820, %vm821
      %v823 = vsel %vm822, %v814, %v819
      %v824 = vrsqrt.pop %v774
      %v825 = vmul.f32 %v824, %v774
      %v826 = vmul.f32 %v825, %v824
      %v827 = vmul.f32 0.5, %v826
      %v828 = vsub.f32 1.5, %v827
      %v829 = vmul.f32 %v824, %v828
      %vm830 = vweird.f32 %v774
      %vm831 = vweird.f32 %v824
      %vm832 = vmor %vm830, %vm831
      %v833 = vsel %vm832, %v824, %v829
      %v834 = vrsqrt.pop %v775
      %v835 = vmul.f32 %v834, %v775
      %v836 = vmul.f32 %v835, %v834
      %v837 = vmul.f32 0.5, %v836
      %v838 = vsub.f32 1.5, %v837
      %v839 = vmul.f32 %v834, %v838
      %vm840 = vweird.f32 %v775
      %vm841 = vweird.f32 %v834
      %vm842 = vmor %vm840, %vm841
      %v843 = vsel %vm842, %v834, %v839
      %v844 = vrsqrt.pop %v776
      %v845 = vmul.f32 %v844, %v776
      %v846 = vmul.f32 %v845, %v844
      %v847 = vmul.f32 0.5, %v846
      %v848 = vsub.f32 1.5, %v847
      %v849 = vmul.f32 %v844, %v848
      %vm850 = vweird.f32 %v776
      %vm851 = vweird.f32 %v844
      %vm852 = vmor %vm850, %vm851
      %v853 = vsel %vm852, %v844, %v849
      %v854 = vrsqrt.pop %v777
      %v855 = vmul.f32 %v854, %v777
      %v856 = vmul.f32 %v855, %v854
      %v857 = vmul.f32 0.5, %v856
      %v858 = vsub.f32 1.5, %v857
      %v859 = vmul.f32 %v854, %v858
      %vm860 = vweird.f32 %v777
      %vm861 = vweird.f32 %v854
      %vm862 = vmor %vm860, %vm861
      %v863 = vsel %vm862, %v854, %v859
      %v864 = vrsqrt.pop %v778
      %v865 = vmul.f32 %v864, %v778
      %v866 = vmul.f32 %v865, %v864
      %v867 = vmul.f32 0.5, %v866
      %v868 = vsub.f32 1.5, %v867
      %v869 = vmul.f32 %v864, %v868
      %vm870 = vweird.f32 %v778
      %vm871 = vweird.f32 %v864
      %vm872 = vmor %vm870, %vm871
      %v873 = vsel %vm872, %v864, %v869
      %v874 = vrsqrt.pop %v779
      %v875 = vmul.f32 %v874, %v779
      %v876 = vmul.f32 %v875, %v874
      %v877 = vmul.f32 0.5, %v876
      %v878 = vsub.f32 1.5, %v877
      %v879 = vmul.f32 %v874, %v878
      %vm880 = vweird.f32 %v779
      %vm881 = vweird.f32 %v874
      %vm882 = vmor %vm880, %vm881
      %v883 = vsel %vm882, %v874, %v879
      %v884 = vrsqrt.pop %v780
      %v885 = vmul.f32 %v884, %v780
      %v886 = vmul.f32 %v885, %v884
      %v887 = vmul.f32 0.5, %v886
      %v888 = vsub.f32 1.5, %v887
      %v889 = vmul.f32 %v884, %v888
      %vm890 = vweird.f32 %v780
      %vm891 = vweird.f32 %v884
      %vm892 = vmor %vm890, %vm891
      %v893 = vsel %vm892, %v884, %v889
      %v894 = vrsqrt.pop %v781
      %v895 = vmul.f32 %v894, %v781
      %v896 = vmul.f32 %v895, %v894
      %v897 = vmul.f32 0.5, %v896
      %v898 = vsub.f32 1.5, %v897
      %v899 = vmul.f32 %v894, %v898
      %vm900 = vweird.f32 %v781
      %vm901 = vweird.f32 %v894
      %vm902 = vmor %vm900, %vm901
      %v903 = vsel %vm902, %v894, %v899
      %v904 = vrsqrt.pop %v782
      %v905 = vmul.f32 %v904, %v782
      %v906 = vmul.f32 %v905, %v904
      %v907 = vmul.f32 0.5, %v906
      %v908 = vsub.f32 1.5, %v907
      %v909 = vmul.f32 %v904, %v908
      %vm910 = vweird.f32 %v782
      %vm911 = vweird.f32 %v904
      %vm912 = vmor %vm910, %vm911
      %v913 = vsel %vm912, %v904, %v909
      %v914 = vrsqrt.pop %v783
      %v915 = vmul.f32 %v914, %v783
      %v916 = vmul.f32 %v915, %v914
      %v917 = vmul.f32 0.5, %v916
      %v918 = vsub.f32 1.5, %v917
      %v919 = vmul.f32 %v914, %v918
      %vm920 = vweird.f32 %v783
      %vm921 = vweird.f32 %v914
      %vm922 = vmor %vm920, %vm921
      %v923 = vsel %vm922, %v914, %v919
      %v924 = vrsqrt.pop %v784
      %v925 = vmul.f32 %v924, %v784
      %v926 = vmul.f32 %v925, %v924
      %v927 = vmul.f32 0.5, %v926
      %v928 = vsub.f32 1.5, %v927
      %v929 = vmul.f32 %v924, %v928
      %vm930 = vweird.f32 %v784
      %vm931 = vweird.f32 %v924
      %vm932 = vmor %vm930, %vm931
      %v933 = vsel %vm932, %v924, %v929
      %v934 = vrsqrt.pop %v785
      %v935 = vmul.f32 %v934, %v785
      %v936 = vmul.f32 %v935, %v934
      %v937 = vmul.f32 0.5, %v936
      %v938 = vsub.f32 1.5, %v937
      %v939 = vmul.f32 %v934, %v938
      %vm940 = vweird.f32 %v785
      %vm941 = vweird.f32 %v934
      %vm942 = vmor %vm940, %vm941
      %v943 = vsel %vm942, %v934, %v939
      %v944 = vrsqrt.pop %v786
      %v945 = vmul.f32 %v944, %v786
      %v946 = vmul.f32 %v945, %v944
      %v947 = vmul.f32 0.5, %v946
      %v948 = vsub.f32 1.5, %v947
      %v949 = vmul.f32 %v944, %v948
      %vm950 = vweird.f32 %v786
      %vm951 = vweird.f32 %v944
      %vm952 = vmor %vm950, %vm951
      %v953 = vsel %vm952, %v944, %v949
      %v954 = vrsqrt.pop %v787
      %v955 = vmul.f32 %v954, %v787
      %v956 = vmul.f32 %v955, %v954
      %v957 = vmul.f32 0.5, %v956
      %v958 = vsub.f32 1.5, %v957
      %v959 = vmul.f32 %v954, %v958
      %vm960 = vweird.f32 %v787
      %vm961 = vweird.f32 %v954
      %vm962 = vmor %vm960, %vm961
      %v963 = vsel %vm962, %v954, %v959
      %v964 = vrsqrt.pop %v788
      %v965 = vmul.f32 %v964, %v788
      %v966 = vmul.f32 %v965, %v964
      %v967 = vmul.f32 0.5, %v966
      %v968 = vsub.f32 1.5, %v967
      %v969 = vmul.f32 %v964, %v968
      %vm970 = vweird.f32 %v788
      %vm971 = vweird.f32 %v964
      %vm972 = vmor %vm970, %vm971
      %v973 = vsel %vm972, %v964, %v969
      %v974 = vrsqrt.pop %v789
      %v975 = vmul.f32 %v974, %v789
      %v976 = vmul.f32 %v975, %v974
      %v977 = vmul.f32 0.5, %v976
      %v978 = vsub.f32 1.5, %v977
      %v979 = vmul.f32 %v974, %v978
      %vm980 = vweird.f32 %v789
      %vm981 = vweird.f32 %v974
      %vm982 = vmor %vm980, %vm981
      %v983 = vsel %vm982, %v974, %v979
      %v984 = vrsqrt.pop %v790
      %v985 = vmul.f32 %v984, %v790
      %v986 = vmul.f32 %v985, %v984
      %v987 = vmul.f32 0.5, %v986
      %v988 = vsub.f32 1.5, %v987
      %v989 = vmul.f32 %v984, %v988
      %vm990 = vweird.f32 %v790
      %vm991 = vweird.f32 %v984
      %vm992 = vmor %vm990, %vm991
      %v993 = vsel %vm992, %v984, %v989
      %v994 = vrsqrt.pop %v791
      %v995 = vmul.f32 %v994, %v791
      %v996 = vmul.f32 %v995, %v994
      %v997 = vmul.f32 0.5, %v996
      %v998 = vsub.f32 1.5, %v997
      %v999 = vmul.f32 %v994, %v998
      %vm1000 = vweird.f32 %v791
      %vm1001 = vweird.f32 %v994
      %vm1002 = vmor %vm1000, %vm1001
      %v1003 = vsel %vm1002, %v994, %v999
      %v1004 = vrsqrt.pop %v792
      %v1005 = vmul.f32 %v1004, %v792
      %v1006 = vmul.f32 %v1005, %v1004
      %v1007 = vmul.f32 0.5, %v1006
      %v1008 = vsub.f32 1.5, %v1007
      %v1009 = vmul.f32 %v1004, %v1008
      %vm1010 = vweird.f32 %v792
      %vm1011 = vweird.f32 %v1004
      %vm1012 = vmor %vm1010, %vm1011
      %v1013 = vsel %vm1012, %v1004, %v1009
      %v1014 = vrsqrt.pop %v793
      %v1015 = vmul.f32 %v1014, %v793
      %v1016 = vmul.f32 %v1015, %v1014
      %v1017 = vmul.f32 0.5, %v1016
      %v1018 = vsub.f32 1.5, %v1017
      %v1019 = vmul.f32 %v1014, %v1018
      %vm1020 = vweird.f32 %v793
      %vm1021 = vweird.f32 %v1014
      %vm1022 = vmor %vm1020, %vm1021
      %v1023 = vsel %vm1022, %v1014, %v1019
      %v1024 = vrsqrt.pop %v794
      %v1025 = vmul.f32 %v1024, %v794
      %v1026 = vmul.f32 %v1025, %v1024
      %v1027 = vmul.f32 0.5, %v1026
      %v1028 = vsub.f32 1.5, %v1027
      %v1029 = vmul.f32 %v1024, %v1028
      %vm1030 = vweird.f32 %v794
      %vm1031 = vweird.f32 %v1024
      %vm1032 = vmor %vm1030, %vm1031
      %v1033 = vsel %vm1032, %v1024, %v1029
      %v1034 = vrsqrt.pop %v795
      %v1035 = vmul.f32 %v1034, %v795
      %v1036 = vmul.f32 %v1035, %v1034
      %v1037 = vmul.f32 0.5, %v1036
      %v1038 = vsub.f32 1.5, %v1037
      %v1039 = vmul.f32 %v1034, %v1038
      %vm1040 = vweird.f32 %v795
      %vm1041 = vweird.f32 %v1034
      %vm1042 = vmor %vm1040, %vm1041
      %v1043 = vsel %vm1042, %v1034, %v1039
      %v1044 = vrsqrt.pop %v796
      %v1045 = vmul.f32 %v1044, %v796
      %v1046 = vmul.f32 %v1045, %v1044
      %v1047 = vmul.f32 0.5, %v1046
      %v1048 = vsub.f32 1.5, %v1047
      %v1049 = vmul.f32 %v1044, %v1048
      %vm1050 = vweird.f32 %v796
      %vm1051 = vweird.f32 %v1044
      %vm1052 = vmor %vm1050, %vm1051
      %v1053 = vsel %vm1052, %v1044, %v1049
      %v1054 = vrsqrt.pop %v797
      %v1055 = vmul.f32 %v1054, %v797
      %v1056 = vmul.f32 %v1055, %v1054
      %v1057 = vmul.f32 0.5, %v1056
      %v1058 = vsub.f32 1.5, %v1057
      %v1059 = vmul.f32 %v1054, %v1058
      %vm1060 = vweird.f32 %v797
      %vm1061 = vweird.f32 %v1054
      %vm1062 = vmor %vm1060, %vm1061
      %v1063 = vsel %vm1062, %v1054, %v1059
      %v1064 = vrsqrt.pop %v798
      %v1065 = vmul.f32 %v1064, %v798
      %v1066 = vmul.f32 %v1065, %v1064
      %v1067 = vmul.f32 0.5, %v1066
      %v1068 = vsub.f32 1.5, %v1067
      %v1069 = vmul.f32 %v1064, %v1068
      %vm1070 = vweird.f32 %v798
      %vm1071 = vweird.f32 %v1064
      %vm1072 = vmor %vm1070, %vm1071
      %v1073 = vsel %vm1072, %v1064, %v1069
      %v1074 = vrsqrt.pop %v799
      %v1075 = vmul.f32 %v1074, %v799
      %v1076 = vmul.f32 %v1075, %v1074
      %v1077 = vmul.f32 0.5, %v1076
      %v1078 = vsub.f32 1.5, %v1077
      %v1079 = vmul.f32 %v1074, %v1078
      %vm1080 = vweird.f32 %v799
      %vm1081 = vweird.f32 %v1074
      %vm1082 = vmor %vm1080, %vm1081
      %v1083 = vsel %vm1082, %v1074, %v1079
      %v1084 = vrsqrt.pop %v800
      %v1085 = vmul.f32 %v1084, %v800
      %v1086 = vmul.f32 %v1085, %v1084
      %v1087 = vmul.f32 0.5, %v1086
      %v1088 = vsub.f32 1.5, %v1087
      %v1089 = vmul.f32 %v1084, %v1088
      %vm1090 = vweird.f32 %v800
      %vm1091 = vweird.f32 %v1084
      %vm1092 = vmor %vm1090, %vm1091
      %v1093 = vsel %vm1092, %v1084, %v1089
      %v1094 = vrsqrt.pop %v801
      %v1095 = vmul.f32 %v1094, %v801
      %v1096 = vmul.f32 %v1095, %v1094
      %v1097 = vmul.f32 0.5, %v1096
      %v1098 = vsub.f32 1.5, %v1097
      %v1099 = vmul.f32 %v1094, %v1098
      %vm1100 = vweird.f32 %v801
      %vm1101 = vweird.f32 %v1094
      %vm1102 = vmor %vm1100, %vm1101
      %v1103 = vsel %vm1102, %v1094, %v1099
      %v1104 = vrsqrt.pop %v802
      %v1105 = vmul.f32 %v1104, %v802
      %v1106 = vmul.f32 %v1105, %v1104
      %v1107 = vmul.f32 0.5, %v1106
      %v1108 = vsub.f32 1.5, %v1107
      %v1109 = vmul.f32 %v1104, %v1108
      %vm1110 = vweird.f32 %v802
      %vm1111 = vweird.f32 %v1104
      %vm1112 = vmor %vm1110, %vm1111
      %v1113 = vsel %vm1112, %v1104, %v1109
      %v1114 = vrsqrt.pop %v803
      %v1115 = vmul.f32 %v1114, %v803
      %v1116 = vmul.f32 %v1115, %v1114
      %v1117 = vmul.f32 0.5, %v1116
      %v1118 = vsub.f32 1.5, %v1117
      %v1119 = vmul.f32 %v1114, %v1118
      %vm1120 = vweird.f32 %v803
      %vm1121 = vweird.f32 %v1114
      %vm1122 = vmor %vm1120, %vm1121
      %v1123 = vsel %vm1122, %v1114, %v1119
      %v1124 = vmul.f32 %v580, %v813
      %v1125 = vmul.f32 %v581, %v823
      %v1126 = vmul.f32 %v582, %v833
      %v1127 = vmul.f32 %v583, %v843
      %v1128 = vmul.f32 %v584, %v853
      %v1129 = vmul.f32 %v585, %v863
      %v1130 = vmul.f32 %v586, %v873
      %v1131 = vmul.f32 %v587, %v883
      %v1132 = vmul.f32 %v588, %v893
      %v1133 = vmul.f32 %v589, %v903
      %v1134 = vmul.f32 %v590, %v913
      %v1135 = vmul.f32 %v591, %v923
      %v1136 = vmul.f32 %v592, %v933
      %v1137 = vmul.f32 %v593, %v943
      %v1138 = vmul.f32 %v594, %v953
      %v1139 = vmul.f32 %v595, %v963
      %v1140 = vmul.f32 %v596, %v973
      %v1141 = vmul.f32 %v597, %v983
      %v1142 = vmul.f32 %v598, %v993
      %v1143 = vmul.f32 %v599, %v1003
      %v1144 = vmul.f32 %v600, %v1013
      %v1145 = vmul.f32 %v601, %v1023
      %v1146 = vmul.f32 %v602, %v1033
      %v1147 = vmul.f32 %v603, %v1043
      %v1148 = vmul.f32 %v604, %v1053
      %v1149 = vmul.f32 %v605, %v1063
      %v1150 = vmul.f32 %v606, %v1073
      %v1151 = vmul.f32 %v607, %v1083
      %v1152 = vmul.f32 %v608, %v1093
      %v1153 = vmul.f32 %v609, %v1103
      %v1154 = vmul.f32 %v610, %v1113
      %v1155 = vmul.f32 %v611, %v1123
      %v1156 = vld [vmem:[%s5] sm:$0xff]
      %v1157 = vld [vmem:[%s5 + $0x8] sm:$0xff]
      %v1158 = vld [vmem:[%s5 + $0x10] sm:$0xff]
      %v1159 = vld [vmem:[%s5 + $0x18] sm:$0xff]
      %v1161 = vsel %vm444, %v1124, 0
      %v1164 = vsel %vm444, %v1125, 0
      %v1167 = vsel %vm444, %v1126, 0
      %v1170 = vsel %vm444, %v1127, 0
      %v1173 = vsel %vm444, %v1128, 0
      %v1176 = vsel %vm444, %v1129, 0
      %v1179 = vsel %vm444, %v1130, 0
      %v1182 = vsel %vm444, %v1131, 0
      %v1185 = vsel %vm444, %v1132, 0
      %v1188 = vsel %vm444, %v1133, 0
      %v1191 = vsel %vm444, %v1134, 0
      %v1194 = vsel %vm444, %v1135, 0
      %v1197 = vsel %vm444, %v1136, 0
      %v1200 = vsel %vm444, %v1137, 0
      %v1203 = vsel %vm444, %v1138, 0
      %v1206 = vsel %vm444, %v1139, 0
      %v1209 = vsel %vm444, %v1140, 0
      %v1212 = vsel %vm444, %v1141, 0
      %v1215 = vsel %vm444, %v1142, 0
      %v1218 = vsel %vm444, %v1143, 0
      %v1221 = vsel %vm444, %v1144, 0
      %v1224 = vsel %vm444, %v1145, 0
      %v1227 = vsel %vm444, %v1146, 0
      %v1230 = vsel %vm444, %v1147, 0
      %v1233 = vsel %vm444, %v1148, 0
      %v1236 = vsel %vm444, %v1149, 0
      %v1239 = vsel %vm444, %v1150, 0
      %v1242 = vsel %vm444, %v1151, 0
      %v1245 = vsel %vm444, %v1152, 0
      %v1248 = vsel %vm444, %v1153, 0
      %v1251 = vsel %vm444, %v1154, 0
      %v1254 = vsel %vm444, %v1155, 0
      %1256 = vmatpush.msra.mxu0 0.0
      %1257 = vmatpush.msra.mxu0 0.0
      %1258 = vmatpush.msra.mxu0 0.0
      %1259 = vmatpush.msra.mxu0 0.0
      %1260 = vmatpush.msra.mxu0 0.0
      %1261 = vmatpush.msra.mxu0 0.0
      %1262 = vmatpush.msra.mxu0 0.0
      %1263 = vmatpush.msra.mxu0 0.0
      %1264 = vmatpush.msra.mxu0 0.0
      %1265 = vmatpush.msra.mxu0 0.0
      %1266 = vmatpush.msra.mxu0 0.0
      %1267 = vmatpush.msra.mxu0 0.0
      %1268 = vmatpush.msra.mxu0 %v1159
      %1269 = vmatpush.msra.mxu0 %v1158
      %1270 = vmatpush.msra.mxu0 %v1157
      %1271 = vmatpush.msra.mxu0 %v1156
      %1272 = vmatmul.f32.gmra.mxu0 %v1161
      %v1273 = vpop.f32.mrf.mxu0
      %v1274 = vadd.f32 0.0, %v1273
      %1275 = vmatmul.f32.gmra.mxu0 %v1164
      %v1276 = vpop.f32.mrf.mxu0
      %v1277 = vadd.f32 0.0, %v1276
      %1278 = vmatmul.f32.gmra.mxu0 %v1167
      %v1279 = vpop.f32.mrf.mxu0
      %v1280 = vadd.f32 0.0, %v1279
      %1281 = vmatmul.f32.gmra.mxu0 %v1170
      %v1282 = vpop.f32.mrf.mxu0
      %v1283 = vadd.f32 0.0, %v1282
      %1284 = vmatmul.f32.gmra.mxu0 %v1173
      %v1285 = vpop.f32.mrf.mxu0
      %v1286 = vadd.f32 0.0, %v1285
      %1287 = vmatmul.f32.gmra.mxu0 %v1176
      %v1288 = vpop.f32.mrf.mxu0
      %v1289 = vadd.f32 0.0, %v1288
      %1290 = vmatmul.f32.gmra.mxu0 %v1179
      %v1291 = vpop.f32.mrf.mxu0
      %v1292 = vadd.f32 0.0, %v1291
      %1293 = vmatmul.f32.gmra.mxu0 %v1182
      %v1294 = vpop.f32.mrf.mxu0
      %v1295 = vadd.f32 0.0, %v1294
      %1296 = vmatmul.f32.gmra.mxu0 %v1185
      %v1297 = vpop.f32.mrf.mxu0
      %v1298 = vadd.f32 0.0, %v1297
      %1299 = vmatmul.f32.gmra.mxu0 %v1188
      %v1300 = vpop.f32.mrf.mxu0
      %v1301 = vadd.f32 0.0, %v1300
      %1302 = vmatmul.f32.gmra.mxu0 %v1191
      %v1303 = vpop.f32.mrf.mxu0
      %v1304 = vadd.f32 0.0, %v1303
      %1305 = vmatmul.f32.gmra.mxu0 %v1194
      %v1306 = vpop.f32.mrf.mxu0
      %v1307 = vadd.f32 0.0, %v1306
      %1308 = vmatmul.f32.gmra.mxu0 %v1197
      %v1309 = vpop.f32.mrf.mxu0
      %v1310 = vadd.f32 0.0, %v1309
      %1311 = vmatmul.f32.gmra.mxu0 %v1200
      %v1312 = vpop.f32.mrf.mxu0
      %v1313 = vadd.f32 0.0, %v1312
      %1314 = vmatmul.f32.gmra.mxu0 %v1203
      %v1315 = vpop.f32.mrf.mxu0
      %v1316 = vadd.f32 0.0, %v1315
      %1317 = vmatmul.f32.gmra.mxu0 %v1206
      %v1318 = vpop.f32.mrf.mxu0
      %v1319 = vadd.f32 0.0, %v1318
      %1320 = vmatmul.f32.gmra.mxu0 %v1209
      %v1321 = vpop.f32.mrf.mxu0
      %v1322 = vadd.f32 0.0, %v1321
      %1323 = vmatmul.f32.gmra.mxu0 %v1212
      %v1324 = vpop.f32.mrf.mxu0
      %v1325 = vadd.f32 0.0, %v1324
      %1326 = vmatmul.f32.gmra.mxu0 %v1215
      %v1327 = vpop.f32.mrf.mxu0
      %v1328 = vadd.f32 0.0, %v1327
      %1329 = vmatmul.f32.gmra.mxu0 %v1218
      %v1330 = vpop.f32.mrf.mxu0
      %v1331 = vadd.f32 0.0, %v1330
      %1332 = vmatmul.f32.gmra.mxu0 %v1221
      %v1333 = vpop.f32.mrf.mxu0
      %v1334 = vadd.f32 0.0, %v1333
      %1335 = vmatmul.f32.gmra.mxu0 %v1224
      %v1336 = vpop.f32.mrf.mxu0
      %v1337 = vadd.f32 0.0, %v1336
      %1338 = vmatmul.f32.gmra.mxu0 %v1227
      %v1339 = vpop.f32.mrf.mxu0
      %v1340 = vadd.f32 0.0, %v1339
      %1341 = vmatmul.f32.gmra.mxu0 %v1230
      %v1342 = vpop.f32.mrf.mxu0
      %v1343 = vadd.f32 0.0, %v1342
      %1344 = vmatmul.f32.gmra.mxu0 %v1233
      %v1345 = vpop.f32.mrf.mxu0
      %v1346 = vadd.f32 0.0, %v1345
      %1347 = vmatmul.f32.gmra.mxu0 %v1236
      %v1348 = vpop.f32.mrf.mxu0
      %v1349 = vadd.f32 0.0, %v1348
      %1350 = vmatmul.f32.gmra.mxu0 %v1239
      %v1351 = vpop.f32.mrf.mxu0
      %v1352 = vadd.f32 0.0, %v1351
      %1353 = vmatmul.f32.gmra.mxu0 %v1242
      %v1354 = vpop.f32.mrf.mxu0
      %v1355 = vadd.f32 0.0, %v1354
      %1356 = vmatmul.f32.gmra.mxu0 %v1245
      %v1357 = vpop.f32.mrf.mxu0
      %v1358 = vadd.f32 0.0, %v1357
      %1359 = vmatmul.f32.gmra.mxu0 %v1248
      %v1360 = vpop.f32.mrf.mxu0
      %v1361 = vadd.f32 0.0, %v1360
      %1362 = vmatmul.f32.gmra.mxu0 %v1251
      %v1363 = vpop.f32.mrf.mxu0
      %v1364 = vadd.f32 0.0, %v1363
      %1365 = vmatmul.f32.gmra.mxu0 %v1254
      %v1366 = vpop.f32.mrf.mxu0
      %v1367 = vadd.f32 0.0, %v1366
      %1368 = vdwg.mxu0
      %v1369 = vld [vmem:[%s7] sm:$0xff]
      %v1370 = vperm.slane %v1369, 0
      %v1371 = vadd.f32 %v1274, %v1370
      %v1372 = vadd.f32 %v1277, %v1370
      %v1373 = vadd.f32 %v1280, %v1370
      %v1374 = vadd.f32 %v1283, %v1370
      %v1375 = vadd.f32 %v1286, %v1370
      %v1376 = vadd.f32 %v1289, %v1370
      %v1377 = vadd.f32 %v1292, %v1370
      %v1378 = vadd.f32 %v1295, %v1370
      %v1379 = vadd.f32 %v1298, %v1370
      %v1380 = vadd.f32 %v1301, %v1370
      %v1381 = vadd.f32 %v1304, %v1370
      %v1382 = vadd.f32 %v1307, %v1370
      %v1383 = vadd.f32 %v1310, %v1370
      %v1384 = vadd.f32 %v1313, %v1370
      %v1385 = vadd.f32 %v1316, %v1370
      %v1386 = vadd.f32 %v1319, %v1370
      %v1387 = vadd.f32 %v1322, %v1370
      %v1388 = vadd.f32 %v1325, %v1370
      %v1389 = vadd.f32 %v1328, %v1370
      %v1390 = vadd.f32 %v1331, %v1370
      %v1391 = vadd.f32 %v1334, %v1370
      %v1392 = vadd.f32 %v1337, %v1370
      %v1393 = vadd.f32 %v1340, %v1370
      %v1394 = vadd.f32 %v1343, %v1370
      %v1395 = vadd.f32 %v1346, %v1370
      %v1396 = vadd.f32 %v1349, %v1370
      %v1397 = vadd.f32 %v1352, %v1370
      %v1398 = vadd.f32 %v1355, %v1370
      %v1399 = vadd.f32 %v1358, %v1370
      %v1400 = vadd.f32 %v1361, %v1370
      %v1401 = vadd.f32 %v1364, %v1370
      %v1402 = vadd.f32 %v1367, %v1370
      %v1403 = vperm.slane %v1369, 1
      %1405 = vrot.lane.b32.xlu0 %v1403, 32
      %v1406 = vpop.permute.xlu0 %1405
      %v1408 = vadd.f32 %v1274, %v1406
      %v1409 = vadd.f32 %v1277, %v1406
      %v1410 = vadd.f32 %v1280, %v1406
      %v1411 = vadd.f32 %v1283, %v1406
      %v1412 = vadd.f32 %v1286, %v1406
      %v1413 = vadd.f32 %v1289, %v1406
      %v1414 = vadd.f32 %v1292, %v1406
      %v1415 = vadd.f32 %v1295, %v1406
      %v1416 = vadd.f32 %v1298, %v1406
      %v1417 = vadd.f32 %v1301, %v1406
      %v1418 = vadd.f32 %v1304, %v1406
      %v1419 = vadd.f32 %v1307, %v1406
      %v1420 = vadd.f32 %v1310, %v1406
      %v1421 = vadd.f32 %v1313, %v1406
      %v1422 = vadd.f32 %v1316, %v1406
      %v1423 = vadd.f32 %v1319, %v1406
      %v1424 = vadd.f32 %v1322, %v1406
      %v1425 = vadd.f32 %v1325, %v1406
      %v1426 = vadd.f32 %v1328, %v1406
      %v1427 = vadd.f32 %v1331, %v1406
      %v1428 = vadd.f32 %v1334, %v1406
      %v1429 = vadd.f32 %v1337, %v1406
      %v1430 = vadd.f32 %v1340, %v1406
      %v1431 = vadd.f32 %v1343, %v1406
      %v1432 = vadd.f32 %v1346, %v1406
      %v1433 = vadd.f32 %v1349, %v1406
      %v1434 = vadd.f32 %v1352, %v1406
      %v1435 = vadd.f32 %v1355, %v1406
      %v1436 = vadd.f32 %v1358, %v1406
      %v1437 = vadd.f32 %v1361, %v1406
      %v1438 = vadd.f32 %v1364, %v1406
      %v1439 = vadd.f32 %v1367, %v1406
      %v1440 = vld [vmem:[%s2] sm:$0xff]
      %v1441 = vld [vmem:[%s2 + $0x8] sm:$0xff]
      %v1442 = vld [vmem:[%s2 + $0x10] sm:$0xff]
      %v1443 = vld [vmem:[%s2 + $0x18] sm:$0xff]
      %v1444 = vld [vmem:[%s2 + $0x20] sm:$0xff]
      %v1445 = vld [vmem:[%s2 + $0x28] sm:$0xff]
      %v1446 = vld [vmem:[%s2 + $0x30] sm:$0xff]
      %v1447 = vld [vmem:[%s2 + $0x38] sm:$0xff]
      %v1448 = vld [vmem:[%s2 + $0x40] sm:$0xff]
      %v1449 = vld [vmem:[%s2 + $0x48] sm:$0xff]
      %v1450 = vld [vmem:[%s2 + $0x50] sm:$0xff]
      %v1451 = vld [vmem:[%s2 + $0x58] sm:$0xff]
      %v1452 = vld [vmem:[%s2 + $0x60] sm:$0xff]
      %v1453 = vld [vmem:[%s2 + $0x68] sm:$0xff]
      %v1454 = vld [vmem:[%s2 + $0x70] sm:$0xff]
      %v1455 = vld [vmem:[%s2 + $0x78] sm:$0xff]
      %v1456 = vld [vmem:[%s2 + $0x80] sm:$0xff]
      %v1457 = vld [vmem:[%s2 + $0x88] sm:$0xff]
      %v1458 = vld [vmem:[%s2 + $0x90] sm:$0xff]
      %v1459 = vld [vmem:[%s2 + $0x98] sm:$0xff]
      %v1460 = vld [vmem:[%s2 + $0xa0] sm:$0xff]
      %v1461 = vld [vmem:[%s2 + $0xa8] sm:$0xff]
      %v1462 = vld [vmem:[%s2 + $0xb0] sm:$0xff]
      %v1463 = vld [vmem:[%s2 + $0xb8] sm:$0xff]
      %v1464 = vld [vmem:[%s2 + $0xc0] sm:$0xff]
      %v1465 = vld [vmem:[%s2 + $0xc8] sm:$0xff]
      %v1466 = vld [vmem:[%s2 + $0xd0] sm:$0xff]
      %v1467 = vld [vmem:[%s2 + $0xd8] sm:$0xff]
      %v1468 = vld [vmem:[%s2 + $0xe0] sm:$0xff]
      %v1469 = vld [vmem:[%s2 + $0xe8] sm:$0xff]
      %v1470 = vld [vmem:[%s2 + $0xf0] sm:$0xff]
      %v1471 = vld [vmem:[%s2 + $0xf8] sm:$0xff]
      %v1472 = vld [vmem:[%s2 + $0x100] sm:$0xff]
      %v1473 = vld [vmem:[%s2 + $0x108] sm:$0xff]
      %v1474 = vld [vmem:[%s2 + $0x110] sm:$0xff]
      %v1475 = vld [vmem:[%s2 + $0x118] sm:$0xff]
      %v1476 = vld [vmem:[%s2 + $0x120] sm:$0xff]
      %v1477 = vld [vmem:[%s2 + $0x128] sm:$0xff]
      %v1478 = vld [vmem:[%s2 + $0x130] sm:$0xff]
      %v1479 = vld [vmem:[%s2 + $0x138] sm:$0xff]
      %v1480 = vld [vmem:[%s2 + $0x140] sm:$0xff]
      %v1481 = vld [vmem:[%s2 + $0x148] sm:$0xff]
      %v1482 = vld [vmem:[%s2 + $0x150] sm:$0xff]
      %v1483 = vld [vmem:[%s2 + $0x158] sm:$0xff]
      %v1484 = vld [vmem:[%s2 + $0x160] sm:$0xff]
      %v1485 = vld [vmem:[%s2 + $0x168] sm:$0xff]
      %v1486 = vld [vmem:[%s2 + $0x170] sm:$0xff]
      %v1487 = vld [vmem:[%s2 + $0x178] sm:$0xff]
      %v1488 = vld [vmem:[%s2 + $0x180] sm:$0xff]
      %v1489 = vld [vmem:[%s2 + $0x188] sm:$0xff]
      %v1490 = vld [vmem:[%s2 + $0x190] sm:$0xff]
      %v1491 = vld [vmem:[%s2 + $0x198] sm:$0xff]
      %v1492 = vld [vmem:[%s2 + $0x1a0] sm:$0xff]
      %v1493 = vld [vmem:[%s2 + $0x1a8] sm:$0xff]
      %v1494 = vld [vmem:[%s2 + $0x1b0] sm:$0xff]
      %v1495 = vld [vmem:[%s2 + $0x1b8] sm:$0xff]
      %v1496 = vld [vmem:[%s2 + $0x1c0] sm:$0xff]
      %v1497 = vld [vmem:[%s2 + $0x1c8] sm:$0xff]
      %v1498 = vld [vmem:[%s2 + $0x1d0] sm:$0xff]
      %v1499 = vld [vmem:[%s2 + $0x1d8] sm:$0xff]
      %v1500 = vld [vmem:[%s2 + $0x1e0] sm:$0xff]
      %v1501 = vld [vmem:[%s2 + $0x1e8] sm:$0xff]
      %v1502 = vld [vmem:[%s2 + $0x1f0] sm:$0xff]
      %v1503 = vld [vmem:[%s2 + $0x1f8] sm:$0xff]
      %v1504 = vld [vmem:[%s8] sm:$0xff]
      %v1505 = vld [vmem:[%s8 + $0x8] sm:$0xff]
      %v1506 = vld [vmem:[%s8 + $0x10] sm:$0xff]
      %v1507 = vld [vmem:[%s8 + $0x18] sm:$0xff]
      %v1508 = vld [vmem:[%s8 + $0x20] sm:$0xff]
      %v1509 = vld [vmem:[%s8 + $0x28] sm:$0xff]
      %v1510 = vld [vmem:[%s8 + $0x30] sm:$0xff]
      %v1511 = vld [vmem:[%s8 + $0x38] sm:$0xff]
      %v1512 = vld [vmem:[%s8 + $0x40] sm:$0xff]
      %v1513 = vld [vmem:[%s8 + $0x48] sm:$0xff]
      %v1514 = vld [vmem:[%s8 + $0x50] sm:$0xff]
      %v1515 = vld [vmem:[%s8 + $0x58] sm:$0xff]
      %v1516 = vld [vmem:[%s8 + $0x60] sm:$0xff]
      %v1517 = vld [vmem:[%s8 + $0x68] sm:$0xff]
      %v1518 = vld [vmem:[%s8 + $0x70] sm:$0xff]
      %v1519 = vld [vmem:[%s8 + $0x78] sm:$0xff]
      %v1520 = vld [vmem:[%s8 + $0x80] sm:$0xff]
      %v1521 = vld [vmem:[%s8 + $0x88] sm:$0xff]
      %v1522 = vld [vmem:[%s8 + $0x90] sm:$0xff]
      %v1523 = vld [vmem:[%s8 + $0x98] sm:$0xff]
      %v1524 = vld [vmem:[%s8 + $0xa0] sm:$0xff]
      %v1525 = vld [vmem:[%s8 + $0xa8] sm:$0xff]
      %v1526 = vld [vmem:[%s8 + $0xb0] sm:$0xff]
      %v1527 = vld [vmem:[%s8 + $0xb8] sm:$0xff]
      %v1528 = vld [vmem:[%s8 + $0xc0] sm:$0xff]
      %v1529 = vld [vmem:[%s8 + $0xc8] sm:$0xff]
      %v1530 = vld [vmem:[%s8 + $0xd0] sm:$0xff]
      %v1531 = vld [vmem:[%s8 + $0xd8] sm:$0xff]
      %v1532 = vld [vmem:[%s8 + $0xe0] sm:$0xff]
      %v1533 = vld [vmem:[%s8 + $0xe8] sm:$0xff]
      %v1534 = vld [vmem:[%s8 + $0xf0] sm:$0xff]
      %v1535 = vld [vmem:[%s8 + $0xf8] sm:$0xff]
      %v1536 = vld [vmem:[%s8 + $0x100] sm:$0xff]
      %v1537 = vld [vmem:[%s8 + $0x108] sm:$0xff]
      %v1538 = vld [vmem:[%s8 + $0x110] sm:$0xff]
      %v1539 = vld [vmem:[%s8 + $0x118] sm:$0xff]
      %v1540 = vld [vmem:[%s8 + $0x120] sm:$0xff]
      %v1541 = vld [vmem:[%s8 + $0x128] sm:$0xff]
      %v1542 = vld [vmem:[%s8 + $0x130] sm:$0xff]
      %v1543 = vld [vmem:[%s8 + $0x138] sm:$0xff]
      %v1544 = vld [vmem:[%s8 + $0x140] sm:$0xff]
      %v1545 = vld [vmem:[%s8 + $0x148] sm:$0xff]
      %v1546 = vld [vmem:[%s8 + $0x150] sm:$0xff]
      %v1547 = vld [vmem:[%s8 + $0x158] sm:$0xff]
      %v1548 = vld [vmem:[%s8 + $0x160] sm:$0xff]
      %v1549 = vld [vmem:[%s8 + $0x168] sm:$0xff]
      %v1550 = vld [vmem:[%s8 + $0x170] sm:$0xff]
      %v1551 = vld [vmem:[%s8 + $0x178] sm:$0xff]
      %v1552 = vld [vmem:[%s8 + $0x180] sm:$0xff]
      %v1553 = vld [vmem:[%s8 + $0x188] sm:$0xff]
      %v1554 = vld [vmem:[%s8 + $0x190] sm:$0xff]
      %v1555 = vld [vmem:[%s8 + $0x198] sm:$0xff]
      %v1556 = vld [vmem:[%s8 + $0x1a0] sm:$0xff]
      %v1557 = vld [vmem:[%s8 + $0x1a8] sm:$0xff]
      %v1558 = vld [vmem:[%s8 + $0x1b0] sm:$0xff]
      %v1559 = vld [vmem:[%s8 + $0x1b8] sm:$0xff]
      %v1560 = vld [vmem:[%s8 + $0x1c0] sm:$0xff]
      %v1561 = vld [vmem:[%s8 + $0x1c8] sm:$0xff]
      %v1562 = vld [vmem:[%s8 + $0x1d0] sm:$0xff]
      %v1563 = vld [vmem:[%s8 + $0x1d8] sm:$0xff]
      %v1564 = vld [vmem:[%s8 + $0x1e0] sm:$0xff]
      %v1565 = vld [vmem:[%s8 + $0x1e8] sm:$0xff]
      %v1566 = vld [vmem:[%s8 + $0x1f0] sm:$0xff]
      %v1567 = vld [vmem:[%s8 + $0x1f8] sm:$0xff]
      %v1568 = vld [vmem:[%s8 + $0x200] sm:$0xff]
      %v1569 = vld [vmem:[%s8 + $0x208] sm:$0xff]
      %v1570 = vld [vmem:[%s8 + $0x210] sm:$0xff]
      %v1571 = vld [vmem:[%s8 + $0x218] sm:$0xff]
      %v1572 = vld [vmem:[%s8 + $0x220] sm:$0xff]
      %v1573 = vld [vmem:[%s8 + $0x228] sm:$0xff]
      %v1574 = vld [vmem:[%s8 + $0x230] sm:$0xff]
      %v1575 = vld [vmem:[%s8 + $0x238] sm:$0xff]
      %v1576 = vld [vmem:[%s8 + $0x240] sm:$0xff]
      %v1577 = vld [vmem:[%s8 + $0x248] sm:$0xff]
      %v1578 = vld [vmem:[%s8 + $0x250] sm:$0xff]
      %v1579 = vld [vmem:[%s8 + $0x258] sm:$0xff]
      %v1580 = vld [vmem:[%s8 + $0x260] sm:$0xff]
      %v1581 = vld [vmem:[%s8 + $0x268] sm:$0xff]
      %v1582 = vld [vmem:[%s8 + $0x270] sm:$0xff]
      %v1583 = vld [vmem:[%s8 + $0x278] sm:$0xff]
      %v1584 = vld [vmem:[%s8 + $0x280] sm:$0xff]
      %v1585 = vld [vmem:[%s8 + $0x288] sm:$0xff]
      %v1586 = vld [vmem:[%s8 + $0x290] sm:$0xff]
      %v1587 = vld [vmem:[%s8 + $0x298] sm:$0xff]
      %v1588 = vld [vmem:[%s8 + $0x2a0] sm:$0xff]
      %v1589 = vld [vmem:[%s8 + $0x2a8] sm:$0xff]
      %v1590 = vld [vmem:[%s8 + $0x2b0] sm:$0xff]
      %v1591 = vld [vmem:[%s8 + $0x2b8] sm:$0xff]
      %v1592 = vld [vmem:[%s8 + $0x2c0] sm:$0xff]
      %v1593 = vld [vmem:[%s8 + $0x2c8] sm:$0xff]
      %v1594 = vld [vmem:[%s8 + $0x2d0] sm:$0xff]
      %v1595 = vld [vmem:[%s8 + $0x2d8] sm:$0xff]
      %v1596 = vld [vmem:[%s8 + $0x2e0] sm:$0xff]
      %v1597 = vld [vmem:[%s8 + $0x2e8] sm:$0xff]
      %v1598 = vld [vmem:[%s8 + $0x2f0] sm:$0xff]
      %v1599 = vld [vmem:[%s8 + $0x2f8] sm:$0xff]
      %v1600 = vld [vmem:[%s8 + $0x300] sm:$0xff]
      %v1601 = vld [vmem:[%s8 + $0x308] sm:$0xff]
      %v1602 = vld [vmem:[%s8 + $0x310] sm:$0xff]
      %v1603 = vld [vmem:[%s8 + $0x318] sm:$0xff]
      %v1604 = vld [vmem:[%s8 + $0x320] sm:$0xff]
      %v1605 = vld [vmem:[%s8 + $0x328] sm:$0xff]
      %v1606 = vld [vmem:[%s8 + $0x330] sm:$0xff]
      %v1607 = vld [vmem:[%s8 + $0x338] sm:$0xff]
      %v1608 = vld [vmem:[%s8 + $0x340] sm:$0xff]
      %v1609 = vld [vmem:[%s8 + $0x348] sm:$0xff]
      %v1610 = vld [vmem:[%s8 + $0x350] sm:$0xff]
      %v1611 = vld [vmem:[%s8 + $0x358] sm:$0xff]
      %v1612 = vld [vmem:[%s8 + $0x360] sm:$0xff]
      %v1613 = vld [vmem:[%s8 + $0x368] sm:$0xff]
      %v1614 = vld [vmem:[%s8 + $0x370] sm:$0xff]
      %v1615 = vld [vmem:[%s8 + $0x378] sm:$0xff]
      %v1616 = vld [vmem:[%s8 + $0x380] sm:$0xff]
      %v1617 = vld [vmem:[%s8 + $0x388] sm:$0xff]
      %v1618 = vld [vmem:[%s8 + $0x390] sm:$0xff]
      %v1619 = vld [vmem:[%s8 + $0x398] sm:$0xff]
      %v1620 = vld [vmem:[%s8 + $0x3a0] sm:$0xff]
      %v1621 = vld [vmem:[%s8 + $0x3a8] sm:$0xff]
      %v1622 = vld [vmem:[%s8 + $0x3b0] sm:$0xff]
      %v1623 = vld [vmem:[%s8 + $0x3b8] sm:$0xff]
      %v1624 = vld [vmem:[%s8 + $0x3c0] sm:$0xff]
      %v1625 = vld [vmem:[%s8 + $0x3c8] sm:$0xff]
      %v1626 = vld [vmem:[%s8 + $0x3d0] sm:$0xff]
      %v1627 = vld [vmem:[%s8 + $0x3d8] sm:$0xff]
      %v1628 = vld [vmem:[%s8 + $0x3e0] sm:$0xff]
      %v1629 = vld [vmem:[%s8 + $0x3e8] sm:$0xff]
      %v1630 = vld [vmem:[%s8 + $0x3f0] sm:$0xff]
      %v1631 = vld [vmem:[%s8 + $0x3f8] sm:$0xff]
      %v1633 = vsel %vm444, %v1440, 0
      %v1636 = vsel %vm444, %v1441, 0
      %v1639 = vsel %vm444, %v1442, 0
      %v1642 = vsel %vm444, %v1443, 0
      %v1645 = vsel %vm444, %v1444, 0
      %v1648 = vsel %vm444, %v1445, 0
      %v1651 = vsel %vm444, %v1446, 0
      %v1654 = vsel %vm444, %v1447, 0
      %v1657 = vsel %vm444, %v1448, 0
      %v1660 = vsel %vm444, %v1449, 0
      %v1663 = vsel %vm444, %v1450, 0
      %v1666 = vsel %vm444, %v1451, 0
      %v1669 = vsel %vm444, %v1452, 0
      %v1672 = vsel %vm444, %v1453, 0
      %v1675 = vsel %vm444, %v1454, 0
      %v1678 = vsel %vm444, %v1455, 0
      %v1681 = vsel %vm444, %v1456, 0
      %v1684 = vsel %vm444, %v1457, 0
      %v1687 = vsel %vm444, %v1458, 0
      %v1690 = vsel %vm444, %v1459, 0
      %v1693 = vsel %vm444, %v1460, 0
      %v1696 = vsel %vm444, %v1461, 0
      %v1699 = vsel %vm444, %v1462, 0
      %v1702 = vsel %vm444, %v1463, 0
      %v1705 = vsel %vm444, %v1464, 0
      %v1708 = vsel %vm444, %v1465, 0
      %v1711 = vsel %vm444, %v1466, 0
      %v1714 = vsel %vm444, %v1467, 0
      %v1717 = vsel %vm444, %v1468, 0
      %v1720 = vsel %vm444, %v1469, 0
      %v1723 = vsel %vm444, %v1470, 0
      %v1726 = vsel %vm444, %v1471, 0
      %v1729 = vsel %vm444, %v1472, 0
      %v1732 = vsel %vm444, %v1473, 0
      %v1735 = vsel %vm444, %v1474, 0
      %v1738 = vsel %vm444, %v1475, 0
      %v1741 = vsel %vm444, %v1476, 0
      %v1744 = vsel %vm444, %v1477, 0
      %v1747 = vsel %vm444, %v1478, 0
      %v1750 = vsel %vm444, %v1479, 0
      %v1753 = vsel %vm444, %v1480, 0
      %v1756 = vsel %vm444, %v1481, 0
      %v1759 = vsel %vm444, %v1482, 0
      %v1762 = vsel %vm444, %v1483, 0
      %v1765 = vsel %vm444, %v1484, 0
      %v1768 = vsel %vm444, %v1485, 0
      %v1771 = vsel %vm444, %v1486, 0
      %v1774 = vsel %vm444, %v1487, 0
      %v1777 = vsel %vm444, %v1488, 0
      %v1780 = vsel %vm444, %v1489, 0
      %v1783 = vsel %vm444, %v1490, 0
      %v1786 = vsel %vm444, %v1491, 0
      %v1789 = vsel %vm444, %v1492, 0
      %v1792 = vsel %vm444, %v1493, 0
      %v1795 = vsel %vm444, %v1494, 0
      %v1798 = vsel %vm444, %v1495, 0
      %v1801 = vsel %vm444, %v1496, 0
      %v1804 = vsel %vm444, %v1497, 0
      %v1807 = vsel %vm444, %v1498, 0
      %v1810 = vsel %vm444, %v1499, 0
      %v1813 = vsel %vm444, %v1500, 0
      %v1816 = vsel %vm444, %v1501, 0
      %v1819 = vsel %vm444, %v1502, 0
      %v1822 = vsel %vm444, %v1503, 0
      %v1825 = vsel %vm444, %v1371, 0
      %v1828 = vsel %vm444, %v1372, 0
      %v1831 = vsel %vm444, %v1373, 0
      %v1834 = vsel %vm444, %v1374, 0
      %v1837 = vsel %vm444, %v1375, 0
      %v1840 = vsel %vm444, %v1376, 0
      %v1843 = vsel %vm444, %v1377, 0
      %v1846 = vsel %vm444, %v1378, 0
      %v1849 = vsel %vm444, %v1379, 0
      %v1852 = vsel %vm444, %v1380, 0
      %v1855 = vsel %vm444, %v1381, 0
      %v1858 = vsel %vm444, %v1382, 0
      %v1861 = vsel %vm444, %v1383, 0
      %v1864 = vsel %vm444, %v1384, 0
      %v1867 = vsel %vm444, %v1385, 0
      %v1870 = vsel %vm444, %v1386, 0
      %v1873 = vsel %vm444, %v1387, 0
      %v1876 = vsel %vm444, %v1388, 0
      %v1879 = vsel %vm444, %v1389, 0
      %v1882 = vsel %vm444, %v1390, 0
      %v1885 = vsel %vm444, %v1391, 0
      %v1888 = vsel %vm444, %v1392, 0
      %v1891 = vsel %vm444, %v1393, 0
      %v1894 = vsel %vm444, %v1394, 0
      %v1897 = vsel %vm444, %v1395, 0
      %v1900 = vsel %vm444, %v1396, 0
      %v1903 = vsel %vm444, %v1397, 0
      %v1906 = vsel %vm444, %v1398, 0
      %v1909 = vsel %vm444, %v1399, 0
      %v1912 = vsel %vm444, %v1400, 0
      %v1915 = vsel %vm444, %v1401, 0
      %v1918 = vsel %vm444, %v1402, 0
      %1920 = vmatpush.xpose.msra.mxu0 %v1870
      %1921 = vmatpush.xpose.msra.mxu0 %v1867
      %1922 = vmatpush.xpose.msra.mxu0 %v1864
      %1923 = vmatpush.xpose.msra.mxu0 %v1861
      %1924 = vmatpush.xpose.msra.mxu0 %v1858
      %1925 = vmatpush.xpose.msra.mxu0 %v1855
      %1926 = vmatpush.xpose.msra.mxu0 %v1852
      %1927 = vmatpush.xpose.msra.mxu0 %v1849
      %1928 = vmatpush.xpose.msra.mxu0 %v1846
      %1929 = vmatpush.xpose.msra.mxu0 %v1843
      %1930 = vmatpush.xpose.msra.mxu0 %v1840
      %1931 = vmatpush.xpose.msra.mxu0 %v1837
      %1932 = vmatpush.xpose.msra.mxu0 %v1834
      %1933 = vmatpush.xpose.msra.mxu0 %v1831
      %1934 = vmatpush.xpose.msra.mxu0 %v1828
      %1935 = vmatpush.xpose.msra.mxu0 %v1825
      %1936 = vmatmul.f32.gmra.mxu0 %v1633
      %v1937 = vpop.f32.mrf.mxu0
      %v1938 = vadd.f32 %v1504, %v1937
      %1939 = vmatmul.f32.gmra.mxu0 %v1636
      %v1940 = vpop.f32.mrf.mxu0
      %v1941 = vadd.f32 %v1506, %v1940
      %1942 = vmatmul.f32.gmra.mxu0 %v1639
      %v1943 = vpop.f32.mrf.mxu0
      %v1944 = vadd.f32 %v1508, %v1943
      %1945 = vmatmul.f32.gmra.mxu0 %v1642
      %v1946 = vpop.f32.mrf.mxu0
      %v1947 = vadd.f32 %v1510, %v1946
      %1948 = vmatmul.f32.gmra.mxu0 %v1645
      %v1949 = vpop.f32.mrf.mxu0
      %v1950 = vadd.f32 %v1512, %v1949
      %1951 = vmatmul.f32.gmra.mxu0 %v1648
      %v1952 = vpop.f32.mrf.mxu0
      %v1953 = vadd.f32 %v1514, %v1952
      %1954 = vmatmul.f32.gmra.mxu0 %v1651
      %v1955 = vpop.f32.mrf.mxu0
      %v1956 = vadd.f32 %v1516, %v1955
      %1957 = vmatmul.f32.gmra.mxu0 %v1654
      %v1958 = vpop.f32.mrf.mxu0
      %v1959 = vadd.f32 %v1518, %v1958
      %1960 = vmatmul.f32.gmra.mxu0 %v1657
      %v1961 = vpop.f32.mrf.mxu0
      %v1962 = vadd.f32 %v1520, %v1961
      %1963 = vmatmul.f32.gmra.mxu0 %v1660
      %v1964 = vpop.f32.mrf.mxu0
      %v1965 = vadd.f32 %v1522, %v1964
      %1966 = vmatmul.f32.gmra.mxu0 %v1663
      %v1967 = vpop.f32.mrf.mxu0
      %v1968 = vadd.f32 %v1524, %v1967
      %1969 = vmatmul.f32.gmra.mxu0 %v1666
      %v1970 = vpop.f32.mrf.mxu0
      %v1971 = vadd.f32 %v1526, %v1970
      %1972 = vmatmul.f32.gmra.mxu0 %v1669
      %v1973 = vpop.f32.mrf.mxu0
      %v1974 = vadd.f32 %v1528, %v1973
      %1975 = vmatmul.f32.gmra.mxu0 %v1672
      %v1976 = vpop.f32.mrf.mxu0
      %v1977 = vadd.f32 %v1530, %v1976
      %1978 = vmatmul.f32.gmra.mxu0 %v1675
      %v1979 = vpop.f32.mrf.mxu0
      %v1980 = vadd.f32 %v1532, %v1979
      %1981 = vmatmul.f32.gmra.mxu0 %v1678
      %v1982 = vpop.f32.mrf.mxu0
      %v1983 = vadd.f32 %v1534, %v1982
      %1984 = vmatmul.f32.gmra.mxu0 %v1681
      %v1985 = vpop.f32.mrf.mxu0
      %v1986 = vadd.f32 %v1536, %v1985
      %1987 = vmatmul.f32.gmra.mxu0 %v1684
      %v1988 = vpop.f32.mrf.mxu0
      %v1989 = vadd.f32 %v1538, %v1988
      %1990 = vmatmul.f32.gmra.mxu0 %v1687
      %v1991 = vpop.f32.mrf.mxu0
      %v1992 = vadd.f32 %v1540, %v1991
      %1993 = vmatmul.f32.gmra.mxu0 %v1690
      %v1994 = vpop.f32.mrf.mxu0
      %v1995 = vadd.f32 %v1542, %v1994
      %1996 = vmatmul.f32.gmra.mxu0 %v1693
      %v1997 = vpop.f32.mrf.mxu0
      %v1998 = vadd.f32 %v1544, %v1997
      %1999 = vmatmul.f32.gmra.mxu0 %v1696
      %v2000 = vpop.f32.mrf.mxu0
      %v2001 = vadd.f32 %v1546, %v2000
      %2002 = vmatmul.f32.gmra.mxu0 %v1699
      %v2003 = vpop.f32.mrf.mxu0
      %v2004 = vadd.f32 %v1548, %v2003
      %2005 = vmatmul.f32.gmra.mxu0 %v1702
      %v2006 = vpop.f32.mrf.mxu0
      %v2007 = vadd.f32 %v1550, %v2006
      %2008 = vmatmul.f32.gmra.mxu0 %v1705
      %v2009 = vpop.f32.mrf.mxu0
      %v2010 = vadd.f32 %v1552, %v2009
      %2011 = vmatmul.f32.gmra.mxu0 %v1708
      %v2012 = vpop.f32.mrf.mxu0
      %v2013 = vadd.f32 %v1554, %v2012
      %2014 = vmatmul.f32.gmra.mxu0 %v1711
      %v2015 = vpop.f32.mrf.mxu0
      %v2016 = vadd.f32 %v1556, %v2015
      %2017 = vmatmul.f32.gmra.mxu0 %v1714
      %v2018 = vpop.f32.mrf.mxu0
      %v2019 = vadd.f32 %v1558, %v2018
      %2020 = vmatmul.f32.gmra.mxu0 %v1717
      %v2021 = vpop.f32.mrf.mxu0
      %v2022 = vadd.f32 %v1560, %v2021
      %2023 = vmatmul.f32.gmra.mxu0 %v1720
      %v2024 = vpop.f32.mrf.mxu0
      %v2025 = vadd.f32 %v1562, %v2024
      %2026 = vmatmul.f32.gmra.mxu0 %v1723
      %v2027 = vpop.f32.mrf.mxu0
      %v2028 = vadd.f32 %v1564, %v2027
      %2029 = vmatmul.f32.gmra.mxu0 %v1726
      %v2030 = vpop.f32.mrf.mxu0
      %v2031 = vadd.f32 %v1566, %v2030
      %2032 = vmatmul.f32.gmra.mxu0 %v1729
      %v2033 = vpop.f32.mrf.mxu0
      %v2034 = vadd.f32 %v1568, %v2033
      %2035 = vmatmul.f32.gmra.mxu0 %v1732
      %v2036 = vpop.f32.mrf.mxu0
      %v2037 = vadd.f32 %v1570, %v2036
      %2038 = vmatmul.f32.gmra.mxu0 %v1735
      %v2039 = vpop.f32.mrf.mxu0
      %v2040 = vadd.f32 %v1572, %v2039
      %2041 = vmatmul.f32.gmra.mxu0 %v1738
      %v2042 = vpop.f32.mrf.mxu0
      %v2043 = vadd.f32 %v1574, %v2042
      %2044 = vmatmul.f32.gmra.mxu0 %v1741
      %v2045 = vpop.f32.mrf.mxu0
      %v2046 = vadd.f32 %v1576, %v2045
      %2047 = vmatmul.f32.gmra.mxu0 %v1744
      %v2048 = vpop.f32.mrf.mxu0
      %v2049 = vadd.f32 %v1578, %v2048
      %2050 = vmatmul.f32.gmra.mxu0 %v1747
      %v2051 = vpop.f32.mrf.mxu0
      %v2052 = vadd.f32 %v1580, %v2051
      %2053 = vmatmul.f32.gmra.mxu0 %v1750
      %v2054 = vpop.f32.mrf.mxu0
      %v2055 = vadd.f32 %v1582, %v2054
      %2056 = vmatmul.f32.gmra.mxu0 %v1753
      %v2057 = vpop.f32.mrf.mxu0
      %v2058 = vadd.f32 %v1584, %v2057
      %2059 = vmatmul.f32.gmra.mxu0 %v1756
      %v2060 = vpop.f32.mrf.mxu0
      %v2061 = vadd.f32 %v1586, %v2060
      %2062 = vmatmul.f32.gmra.mxu0 %v1759
      %v2063 = vpop.f32.mrf.mxu0
      %v2064 = vadd.f32 %v1588, %v2063
      %2065 = vmatmul.f32.gmra.mxu0 %v1762
      %v2066 = vpop.f32.mrf.mxu0
      %v2067 = vadd.f32 %v1590, %v2066
      %2068 = vmatmul.f32.gmra.mxu0 %v1765
      %v2069 = vpop.f32.mrf.mxu0
      %v2070 = vadd.f32 %v1592, %v2069
      %2071 = vmatmul.f32.gmra.mxu0 %v1768
      %v2072 = vpop.f32.mrf.mxu0
      %v2073 = vadd.f32 %v1594, %v2072
      %2074 = vmatmul.f32.gmra.mxu0 %v1771
      %v2075 = vpop.f32.mrf.mxu0
      %v2076 = vadd.f32 %v1596, %v2075
      %2077 = vmatmul.f32.gmra.mxu0 %v1774
      %v2078 = vpop.f32.mrf.mxu0
      %v2079 = vadd.f32 %v1598, %v2078
      %2080 = vmatmul.f32.gmra.mxu0 %v1777
      %v2081 = vpop.f32.mrf.mxu0
      %v2082 = vadd.f32 %v1600, %v2081
      %2083 = vmatmul.f32.gmra.mxu0 %v1780
      %v2084 = vpop.f32.mrf.mxu0
      %v2085 = vadd.f32 %v1602, %v2084
      %2086 = vmatmul.f32.gmra.mxu0 %v1783
      %v2087 = vpop.f32.mrf.mxu0
      %v2088 = vadd.f32 %v1604, %v2087
      %2089 = vmatmul.f32.gmra.mxu0 %v1786
      %v2090 = vpop.f32.mrf.mxu0
      %v2091 = vadd.f32 %v1606, %v2090
      %2092 = vmatmul.f32.gmra.mxu0 %v1789
      %v2093 = vpop.f32.mrf.mxu0
      %v2094 = vadd.f32 %v1608, %v2093
      %2095 = vmatmul.f32.gmra.mxu0 %v1792
      %v2096 = vpop.f32.mrf.mxu0
      %v2097 = vadd.f32 %v1610, %v2096
      %2098 = vmatmul.f32.gmra.mxu0 %v1795
      %v2099 = vpop.f32.mrf.mxu0
      %v2100 = vadd.f32 %v1612, %v2099
      %2101 = vmatmul.f32.gmra.mxu0 %v1798
      %v2102 = vpop.f32.mrf.mxu0
      %v2103 = vadd.f32 %v1614, %v2102
      %2104 = vmatmul.f32.gmra.mxu0 %v1801
      %v2105 = vpop.f32.mrf.mxu0
      %v2106 = vadd.f32 %v1616, %v2105
      %2107 = vmatmul.f32.gmra.mxu0 %v1804
      %v2108 = vpop.f32.mrf.mxu0
      %v2109 = vadd.f32 %v1618, %v2108
      %2110 = vmatmul.f32.gmra.mxu0 %v1807
      %v2111 = vpop.f32.mrf.mxu0
      %v2112 = vadd.f32 %v1620, %v2111
      %2113 = vmatmul.f32.gmra.mxu0 %v1810
      %v2114 = vpop.f32.mrf.mxu0
      %v2115 = vadd.f32 %v1622, %v2114
      %2116 = vmatmul.f32.gmra.mxu0 %v1813
      %v2117 = vpop.f32.mrf.mxu0
      %v2118 = vadd.f32 %v1624, %v2117
      %2119 = vmatmul.f32.gmra.mxu0 %v1816
      %v2120 = vpop.f32.mrf.mxu0
      %v2121 = vadd.f32 %v1626, %v2120
      %2122 = vmatmul.f32.gmra.mxu0 %v1819
      %v2123 = vpop.f32.mrf.mxu0
      %v2124 = vadd.f32 %v1628, %v2123
      %2125 = vmatmul.f32.gmra.mxu0 %v1822
      %v2126 = vpop.f32.mrf.mxu0
      %v2127 = vadd.f32 %v1630, %v2126
      %2128 = vdwg.mxu0
      %2129 = vmatpush.xpose.msra.mxu0 %v1918
      %2130 = vmatpush.xpose.msra.mxu0 %v1915
      %2131 = vmatpush.xpose.msra.mxu0 %v1912
      %2132 = vmatpush.xpose.msra.mxu0 %v1909
      %2133 = vmatpush.xpose.msra.mxu0 %v1906
      %2134 = vmatpush.xpose.msra.mxu0 %v1903
      %2135 = vmatpush.xpose.msra.mxu0 %v1900
      %2136 = vmatpush.xpose.msra.mxu0 %v1897
      %2137 = vmatpush.xpose.msra.mxu0 %v1894
      %2138 = vmatpush.xpose.msra.mxu0 %v1891
      %2139 = vmatpush.xpose.msra.mxu0 %v1888
      %2140 = vmatpush.xpose.msra.mxu0 %v1885
      %2141 = vmatpush.xpose.msra.mxu0 %v1882
      %2142 = vmatpush.xpose.msra.mxu0 %v1879
      %2143 = vmatpush.xpose.msra.mxu0 %v1876
      %2144 = vmatpush.xpose.msra.mxu0 %v1873
      %2145 = vmatmul.f32.gmra.mxu0 %v1633
      %v2146 = vpop.f32.mrf.mxu0
      %v2147 = vadd.f32 %v1505, %v2146
      %2148 = vmatmul.f32.gmra.mxu0 %v1636
      %v2149 = vpop.f32.mrf.mxu0
      %v2150 = vadd.f32 %v1507, %v2149
      %2151 = vmatmul.f32.gmra.mxu0 %v1639
      %v2152 = vpop.f32.mrf.mxu0
      %v2153 = vadd.f32 %v1509, %v2152
      %2154 = vmatmul.f32.gmra.mxu0 %v1642
      %v2155 = vpop.f32.mrf.mxu0
      %v2156 = vadd.f32 %v1511, %v2155
      %2157 = vmatmul.f32.gmra.mxu0 %v1645
      %v2158 = vpop.f32.mrf.mxu0
      %v2159 = vadd.f32 %v1513, %v2158
      %2160 = vmatmul.f32.gmra.mxu0 %v1648
      %v2161 = vpop.f32.mrf.mxu0
      %v2162 = vadd.f32 %v1515, %v2161
      %2163 = vmatmul.f32.gmra.mxu0 %v1651
      %v2164 = vpop.f32.mrf.mxu0
      %v2165 = vadd.f32 %v1517, %v2164
      %2166 = vmatmul.f32.gmra.mxu0 %v1654
      %v2167 = vpop.f32.mrf.mxu0
      %v2168 = vadd.f32 %v1519, %v2167
      %2169 = vmatmul.f32.gmra.mxu0 %v1657
      %v2170 = vpop.f32.mrf.mxu0
      %v2171 = vadd.f32 %v1521, %v2170
      %2172 = vmatmul.f32.gmra.mxu0 %v1660
      %v2173 = vpop.f32.mrf.mxu0
      %v2174 = vadd.f32 %v1523, %v2173
      %2175 = vmatmul.f32.gmra.mxu0 %v1663
      %v2176 = vpop.f32.mrf.mxu0
      %v2177 = vadd.f32 %v1525, %v2176
      %2178 = vmatmul.f32.gmra.mxu0 %v1666
      %v2179 = vpop.f32.mrf.mxu0
      %v2180 = vadd.f32 %v1527, %v2179
      %2181 = vmatmul.f32.gmra.mxu0 %v1669
      %v2182 = vpop.f32.mrf.mxu0
      %v2183 = vadd.f32 %v1529, %v2182
      %2184 = vmatmul.f32.gmra.mxu0 %v1672
      %v2185 = vpop.f32.mrf.mxu0
      %v2186 = vadd.f32 %v1531, %v2185
      %2187 = vmatmul.f32.gmra.mxu0 %v1675
      %v2188 = vpop.f32.mrf.mxu0
      %v2189 = vadd.f32 %v1533, %v2188
      %2190 = vmatmul.f32.gmra.mxu0 %v1678
      %v2191 = vpop.f32.mrf.mxu0
      %v2192 = vadd.f32 %v1535, %v2191
      %2193 = vmatmul.f32.gmra.mxu0 %v1681
      %v2194 = vpop.f32.mrf.mxu0
      %v2195 = vadd.f32 %v1537, %v2194
      %2196 = vmatmul.f32.gmra.mxu0 %v1684
      %v2197 = vpop.f32.mrf.mxu0
      %v2198 = vadd.f32 %v1539, %v2197
      %2199 = vmatmul.f32.gmra.mxu0 %v1687
      %v2200 = vpop.f32.mrf.mxu0
      %v2201 = vadd.f32 %v1541, %v2200
      %2202 = vmatmul.f32.gmra.mxu0 %v1690
      %v2203 = vpop.f32.mrf.mxu0
      %v2204 = vadd.f32 %v1543, %v2203
      %2205 = vmatmul.f32.gmra.mxu0 %v1693
      %v2206 = vpop.f32.mrf.mxu0
      %v2207 = vadd.f32 %v1545, %v2206
      %2208 = vmatmul.f32.gmra.mxu0 %v1696
      %v2209 = vpop.f32.mrf.mxu0
      %v2210 = vadd.f32 %v1547, %v2209
      %2211 = vmatmul.f32.gmra.mxu0 %v1699
      %v2212 = vpop.f32.mrf.mxu0
      %v2213 = vadd.f32 %v1549, %v2212
      %2214 = vmatmul.f32.gmra.mxu0 %v1702
      %v2215 = vpop.f32.mrf.mxu0
      %v2216 = vadd.f32 %v1551, %v2215
      %2217 = vmatmul.f32.gmra.mxu0 %v1705
      %v2218 = vpop.f32.mrf.mxu0
      %v2219 = vadd.f32 %v1553, %v2218
      %2220 = vmatmul.f32.gmra.mxu0 %v1708
      %v2221 = vpop.f32.mrf.mxu0
      %v2222 = vadd.f32 %v1555, %v2221
      %2223 = vmatmul.f32.gmra.mxu0 %v1711
      %v2224 = vpop.f32.mrf.mxu0
      %v2225 = vadd.f32 %v1557, %v2224
      %2226 = vmatmul.f32.gmra.mxu0 %v1714
      %v2227 = vpop.f32.mrf.mxu0
      %v2228 = vadd.f32 %v1559, %v2227
      %2229 = vmatmul.f32.gmra.mxu0 %v1717
      %v2230 = vpop.f32.mrf.mxu0
      %v2231 = vadd.f32 %v1561, %v2230
      %2232 = vmatmul.f32.gmra.mxu0 %v1720
      %v2233 = vpop.f32.mrf.mxu0
      %v2234 = vadd.f32 %v1563, %v2233
      %2235 = vmatmul.f32.gmra.mxu0 %v1723
      %v2236 = vpop.f32.mrf.mxu0
      %v2237 = vadd.f32 %v1565, %v2236
      %2238 = vmatmul.f32.gmra.mxu0 %v1726
      %v2239 = vpop.f32.mrf.mxu0
      %v2240 = vadd.f32 %v1567, %v2239
      %2241 = vmatmul.f32.gmra.mxu0 %v1729
      %v2242 = vpop.f32.mrf.mxu0
      %v2243 = vadd.f32 %v1569, %v2242
      %2244 = vmatmul.f32.gmra.mxu0 %v1732
      %v2245 = vpop.f32.mrf.mxu0
      %v2246 = vadd.f32 %v1571, %v2245
      %2247 = vmatmul.f32.gmra.mxu0 %v1735
      %v2248 = vpop.f32.mrf.mxu0
      %v2249 = vadd.f32 %v1573, %v2248
      %2250 = vmatmul.f32.gmra.mxu0 %v1738
      %v2251 = vpop.f32.mrf.mxu0
      %v2252 = vadd.f32 %v1575, %v2251
      %2253 = vmatmul.f32.gmra.mxu0 %v1741
      %v2254 = vpop.f32.mrf.mxu0
      %v2255 = vadd.f32 %v1577, %v2254
      %2256 = vmatmul.f32.gmra.mxu0 %v1744
      %v2257 = vpop.f32.mrf.mxu0
      %v2258 = vadd.f32 %v1579, %v2257
      %2259 = vmatmul.f32.gmra.mxu0 %v1747
      %v2260 = vpop.f32.mrf.mxu0
      %v2261 = vadd.f32 %v1581, %v2260
      %2262 = vmatmul.f32.gmra.mxu0 %v1750
      %v2263 = vpop.f32.mrf.mxu0
      %v2264 = vadd.f32 %v1583, %v2263
      %2265 = vmatmul.f32.gmra.mxu0 %v1753
      %v2266 = vpop.f32.mrf.mxu0
      %v2267 = vadd.f32 %v1585, %v2266
      %2268 = vmatmul.f32.gmra.mxu0 %v1756
      %v2269 = vpop.f32.mrf.mxu0
      %v2270 = vadd.f32 %v1587, %v2269
      %2271 = vmatmul.f32.gmra.mxu0 %v1759
      %v2272 = vpop.f32.mrf.mxu0
      %v2273 = vadd.f32 %v1589, %v2272
      %2274 = vmatmul.f32.gmra.mxu0 %v1762
      %v2275 = vpop.f32.mrf.mxu0
      %v2276 = vadd.f32 %v1591, %v2275
      %2277 = vmatmul.f32.gmra.mxu0 %v1765
      %v2278 = vpop.f32.mrf.mxu0
      %v2279 = vadd.f32 %v1593, %v2278
      %2280 = vmatmul.f32.gmra.mxu0 %v1768
      %v2281 = vpop.f32.mrf.mxu0
      %v2282 = vadd.f32 %v1595, %v2281
      %2283 = vmatmul.f32.gmra.mxu0 %v1771
      %v2284 = vpop.f32.mrf.mxu0
      %v2285 = vadd.f32 %v1597, %v2284
      %2286 = vmatmul.f32.gmra.mxu0 %v1774
      %v2287 = vpop.f32.mrf.mxu0
      %v2288 = vadd.f32 %v1599, %v2287
      %2289 = vmatmul.f32.gmra.mxu0 %v1777
      %v2290 = vpop.f32.mrf.mxu0
      %v2291 = vadd.f32 %v1601, %v2290
      %2292 = vmatmul.f32.gmra.mxu0 %v1780
      %v2293 = vpop.f32.mrf.mxu0
      %v2294 = vadd.f32 %v1603, %v2293
      %2295 = vmatmul.f32.gmra.mxu0 %v1783
      %v2296 = vpop.f32.mrf.mxu0
      %v2297 = vadd.f32 %v1605, %v2296
      %2298 = vmatmul.f32.gmra.mxu0 %v1786
      %v2299 = vpop.f32.mrf.mxu0
      %v2300 = vadd.f32 %v1607, %v2299
      %2301 = vmatmul.f32.gmra.mxu0 %v1789
      %v2302 = vpop.f32.mrf.mxu0
      %v2303 = vadd.f32 %v1609, %v2302
      %2304 = vmatmul.f32.gmra.mxu0 %v1792
      %v2305 = vpop.f32.mrf.mxu0
      %v2306 = vadd.f32 %v1611, %v2305
      %2307 = vmatmul.f32.gmra.mxu0 %v1795
      %v2308 = vpop.f32.mrf.mxu0
      %v2309 = vadd.f32 %v1613, %v2308
      %2310 = vmatmul.f32.gmra.mxu0 %v1798
      %v2311 = vpop.f32.mrf.mxu0
      %v2312 = vadd.f32 %v1615, %v2311
      %2313 = vmatmul.f32.gmra.mxu0 %v1801
      %v2314 = vpop.f32.mrf.mxu0
      %v2315 = vadd.f32 %v1617, %v2314
      %2316 = vmatmul.f32.gmra.mxu0 %v1804
      %v2317 = vpop.f32.mrf.mxu0
      %v2318 = vadd.f32 %v1619, %v2317
      %2319 = vmatmul.f32.gmra.mxu0 %v1807
      %v2320 = vpop.f32.mrf.mxu0
      %v2321 = vadd.f32 %v1621, %v2320
      %2322 = vmatmul.f32.gmra.mxu0 %v1810
      %v2323 = vpop.f32.mrf.mxu0
      %v2324 = vadd.f32 %v1623, %v2323
      %2325 = vmatmul.f32.gmra.mxu0 %v1813
      %v2326 = vpop.f32.mrf.mxu0
      %v2327 = vadd.f32 %v1625, %v2326
      %2328 = vmatmul.f32.gmra.mxu0 %v1816
      %v2329 = vpop.f32.mrf.mxu0
      %v2330 = vadd.f32 %v1627, %v2329
      %2331 = vmatmul.f32.gmra.mxu0 %v1819
      %v2332 = vpop.f32.mrf.mxu0
      %v2333 = vadd.f32 %v1629, %v2332
      %2334 = vmatmul.f32.gmra.mxu0 %v1822
      %v2335 = vpop.f32.mrf.mxu0
      %v2336 = vadd.f32 %v1631, %v2335
      %2337 = vdwg.mxu0
      %v2338 = vld [vmem:[%s404] sm:$0xff]
      %v2339 = vld [vmem:[%s404 + $0x8] sm:$0xff]
      %v2340 = vld [vmem:[%s404 + $0x10] sm:$0xff]
      %v2341 = vld [vmem:[%s404 + $0x18] sm:$0xff]
      %v2342 = vld [vmem:[%s404 + $0x20] sm:$0xff]
      %v2343 = vld [vmem:[%s404 + $0x28] sm:$0xff]
      %v2344 = vld [vmem:[%s404 + $0x30] sm:$0xff]
      %v2345 = vld [vmem:[%s404 + $0x38] sm:$0xff]
      %v2346 = vld [vmem:[%s404 + $0x40] sm:$0xff]
      %v2347 = vld [vmem:[%s404 + $0x48] sm:$0xff]
      %v2348 = vld [vmem:[%s404 + $0x50] sm:$0xff]
      %v2349 = vld [vmem:[%s404 + $0x58] sm:$0xff]
      %v2350 = vld [vmem:[%s404 + $0x60] sm:$0xff]
      %v2351 = vld [vmem:[%s404 + $0x68] sm:$0xff]
      %v2352 = vld [vmem:[%s404 + $0x70] sm:$0xff]
      %v2353 = vld [vmem:[%s404 + $0x78] sm:$0xff]
      %v2354 = vld [vmem:[%s404 + $0x80] sm:$0xff]
      %v2355 = vld [vmem:[%s404 + $0x88] sm:$0xff]
      %v2356 = vld [vmem:[%s404 + $0x90] sm:$0xff]
      %v2357 = vld [vmem:[%s404 + $0x98] sm:$0xff]
      %v2358 = vld [vmem:[%s404 + $0xa0] sm:$0xff]
      %v2359 = vld [vmem:[%s404 + $0xa8] sm:$0xff]
      %v2360 = vld [vmem:[%s404 + $0xb0] sm:$0xff]
      %v2361 = vld [vmem:[%s404 + $0xb8] sm:$0xff]
      %v2362 = vld [vmem:[%s404 + $0xc0] sm:$0xff]
      %v2363 = vld [vmem:[%s404 + $0xc8] sm:$0xff]
      %v2364 = vld [vmem:[%s404 + $0xd0] sm:$0xff]
      %v2365 = vld [vmem:[%s404 + $0xd8] sm:$0xff]
      %v2366 = vld [vmem:[%s404 + $0xe0] sm:$0xff]
      %v2367 = vld [vmem:[%s404 + $0xe8] sm:$0xff]
      %v2368 = vld [vmem:[%s404 + $0xf0] sm:$0xff]
      %v2369 = vld [vmem:[%s404 + $0xf8] sm:$0xff]
      %v2370 = vld [vmem:[%s404 + $0x100] sm:$0xff]
      %v2371 = vld [vmem:[%s404 + $0x108] sm:$0xff]
      %v2372 = vld [vmem:[%s404 + $0x110] sm:$0xff]
      %v2373 = vld [vmem:[%s404 + $0x118] sm:$0xff]
      %v2374 = vld [vmem:[%s404 + $0x120] sm:$0xff]
      %v2375 = vld [vmem:[%s404 + $0x128] sm:$0xff]
      %v2376 = vld [vmem:[%s404 + $0x130] sm:$0xff]
      %v2377 = vld [vmem:[%s404 + $0x138] sm:$0xff]
      %v2378 = vld [vmem:[%s404 + $0x140] sm:$0xff]
      %v2379 = vld [vmem:[%s404 + $0x148] sm:$0xff]
      %v2380 = vld [vmem:[%s404 + $0x150] sm:$0xff]
      %v2381 = vld [vmem:[%s404 + $0x158] sm:$0xff]
      %v2382 = vld [vmem:[%s404 + $0x160] sm:$0xff]
      %v2383 = vld [vmem:[%s404 + $0x168] sm:$0xff]
      %v2384 = vld [vmem:[%s404 + $0x170] sm:$0xff]
      %v2385 = vld [vmem:[%s404 + $0x178] sm:$0xff]
      %v2386 = vld [vmem:[%s404 + $0x180] sm:$0xff]
      %v2387 = vld [vmem:[%s404 + $0x188] sm:$0xff]
      %v2388 = vld [vmem:[%s404 + $0x190] sm:$0xff]
      %v2389 = vld [vmem:[%s404 + $0x198] sm:$0xff]
      %v2390 = vld [vmem:[%s404 + $0x1a0] sm:$0xff]
      %v2391 = vld [vmem:[%s404 + $0x1a8] sm:$0xff]
      %v2392 = vld [vmem:[%s404 + $0x1b0] sm:$0xff]
      %v2393 = vld [vmem:[%s404 + $0x1b8] sm:$0xff]
      %v2394 = vld [vmem:[%s404 + $0x1c0] sm:$0xff]
      %v2395 = vld [vmem:[%s404 + $0x1c8] sm:$0xff]
      %v2396 = vld [vmem:[%s404 + $0x1d0] sm:$0xff]
      %v2397 = vld [vmem:[%s404 + $0x1d8] sm:$0xff]
      %v2398 = vld [vmem:[%s404 + $0x1e0] sm:$0xff]
      %v2399 = vld [vmem:[%s404 + $0x1e8] sm:$0xff]
      %v2400 = vld [vmem:[%s404 + $0x1f0] sm:$0xff]
      %v2401 = vld [vmem:[%s404 + $0x1f8] sm:$0xff]
      %v2402 = vld [vmem:[%s9] sm:$0xff]
      %v2403 = vld [vmem:[%s9 + $0x8] sm:$0xff]
      %v2404 = vld [vmem:[%s9 + $0x10] sm:$0xff]
      %v2405 = vld [vmem:[%s9 + $0x18] sm:$0xff]
      %vm2406 = vcmask 130048
      %v2408 = vsel %vm2406, %v2338, 0
      %v2411 = vsel %vm2406, %v2339, 0
      %v2414 = vsel %vm2406, %v2340, 0
      %v2417 = vsel %vm2406, %v2341, 0
      %v2420 = vsel %vm2406, %v2342, 0
      %v2423 = vsel %vm2406, %v2343, 0
      %v2426 = vsel %vm2406, %v2344, 0
      %v2429 = vsel %vm2406, %v2345, 0
      %v2432 = vsel %vm2406, %v2346, 0
      %v2435 = vsel %vm2406, %v2347, 0
      %v2438 = vsel %vm2406, %v2348, 0
      %v2441 = vsel %vm2406, %v2349, 0
      %v2444 = vsel %vm2406, %v2350, 0
      %v2447 = vsel %vm2406, %v2351, 0
      %v2450 = vsel %vm2406, %v2352, 0
      %v2453 = vsel %vm2406, %v2353, 0
      %v2456 = vsel %vm2406, %v2354, 0
      %v2459 = vsel %vm2406, %v2355, 0
      %v2462 = vsel %vm2406, %v2356, 0
      %v2465 = vsel %vm2406, %v2357, 0
      %v2468 = vsel %vm2406, %v2358, 0
      %v2471 = vsel %vm2406, %v2359, 0
      %v2474 = vsel %vm2406, %v2360, 0
      %v2477 = vsel %vm2406, %v2361, 0
      %v2480 = vsel %vm2406, %v2362, 0
      %v2483 = vsel %vm2406, %v2363, 0
      %v2486 = vsel %vm2406, %v2364, 0
      %v2489 = vsel %vm2406, %v2365, 0
      %v2492 = vsel %vm2406, %v2366, 0
      %v2495 = vsel %vm2406, %v2367, 0
      %v2498 = vsel %vm2406, %v2368, 0
      %v2501 = vsel %vm2406, %v2369, 0
      %v2504 = vsel %vm2406, %v2370, 0
      %v2507 = vsel %vm2406, %v2371, 0
      %v2510 = vsel %vm2406, %v2372, 0
      %v2513 = vsel %vm2406, %v2373, 0
      %v2516 = vsel %vm2406, %v2374, 0
      %v2519 = vsel %vm2406, %v2375, 0
      %v2522 = vsel %vm2406, %v2376, 0
      %v2525 = vsel %vm2406, %v2377, 0
      %v2528 = vsel %vm2406, %v2378, 0
      %v2531 = vsel %vm2406, %v2379, 0
      %v2534 = vsel %vm2406, %v2380, 0
      %v2537 = vsel %vm2406, %v2381, 0
      %v2540 = vsel %vm2406, %v2382, 0
      %v2543 = vsel %vm2406, %v2383, 0
      %v2546 = vsel %vm2406, %v2384, 0
      %v2549 = vsel %vm2406, %v2385, 0
      %v2552 = vsel %vm2406, %v2386, 0
      %v2555 = vsel %vm2406, %v2387, 0
      %v2558 = vsel %vm2406, %v2388, 0
      %v2561 = vsel %vm2406, %v2389, 0
      %v2564 = vsel %vm2406, %v2390, 0
      %v2567 = vsel %vm2406, %v2391, 0
      %v2570 = vsel %vm2406, %v2392, 0
      %v2573 = vsel %vm2406, %v2393, 0
      %v2576 = vsel %vm2406, %v2394, 0
      %v2579 = vsel %vm2406, %v2395, 0
      %v2582 = vsel %vm2406, %v2396, 0
      %v2585 = vsel %vm2406, %v2397, 0
      %v2588 = vsel %vm2406, %v2398, 0
      %v2591 = vsel %vm2406, %v2399, 0
      %v2594 = vsel %vm2406, %v2400, 0
      %v2597 = vsel %vm2406, %v2401, 0
      %2599 = vmatpush.msra.mxu0 0.0
      %2600 = vmatpush.msra.mxu0 0.0
      %2601 = vmatpush.msra.mxu0 0.0
      %2602 = vmatpush.msra.mxu0 0.0
      %2603 = vmatpush.msra.mxu0 0.0
      %2604 = vmatpush.msra.mxu0 0.0
      %2605 = vmatpush.msra.mxu0 0.0
      %2606 = vmatpush.msra.mxu0 0.0
      %2607 = vmatpush.msra.mxu0 0.0
      %2608 = vmatpush.msra.mxu0 0.0
      %2609 = vmatpush.msra.mxu0 0.0
      %2610 = vmatpush.msra.mxu0 0.0
      %2611 = vmatpush.msra.mxu0 0.0
      %2612 = vmatpush.msra.mxu0 0.0
      %2613 = vmatpush.msra.mxu0 %v2404
      %2614 = vmatpush.msra.mxu0 %v2402
      %2615 = vmatmul.f32.gmra.mxu0 %v2408
      %v2616 = vpop.f32.mrf.mxu0
      %v2617 = vadd.f32 0.0, %v2616
      %2618 = vmatmul.f32.gmra.mxu0 %v2411
      %v2619 = vpop.f32.mrf.mxu0
      %v2620 = vadd.f32 0.0, %v2619
      %2621 = vmatmul.f32.gmra.mxu0 %v2414
      %v2622 = vpop.f32.mrf.mxu0
      %v2623 = vadd.f32 0.0, %v2622
      %2624 = vmatmul.f32.gmra.mxu0 %v2417
      %v2625 = vpop.f32.mrf.mxu0
      %v2626 = vadd.f32 0.0, %v2625
      %2627 = vmatmul.f32.gmra.mxu0 %v2420
      %v2628 = vpop.f32.mrf.mxu0
      %v2629 = vadd.f32 0.0, %v2628
      %2630 = vmatmul.f32.gmra.mxu0 %v2423
      %v2631 = vpop.f32.mrf.mxu0
      %v2632 = vadd.f32 0.0, %v2631
      %2633 = vmatmul.f32.gmra.mxu0 %v2426
      %v2634 = vpop.f32.mrf.mxu0
      %v2635 = vadd.f32 0.0, %v2634
      %2636 = vmatmul.f32.gmra.mxu0 %v2429
      %v2637 = vpop.f32.mrf.mxu0
      %v2638 = vadd.f32 0.0, %v2637
      %2639 = vmatmul.f32.gmra.mxu0 %v2432
      %v2640 = vpop.f32.mrf.mxu0
      %v2641 = vadd.f32 0.0, %v2640
      %2642 = vmatmul.f32.gmra.mxu0 %v2435
      %v2643 = vpop.f32.mrf.mxu0
      %v2644 = vadd.f32 0.0, %v2643
      %2645 = vmatmul.f32.gmra.mxu0 %v2438
      %v2646 = vpop.f32.mrf.mxu0
      %v2647 = vadd.f32 0.0, %v2646
      %2648 = vmatmul.f32.gmra.mxu0 %v2441
      %v2649 = vpop.f32.mrf.mxu0
      %v2650 = vadd.f32 0.0, %v2649
      %2651 = vmatmul.f32.gmra.mxu0 %v2444
      %v2652 = vpop.f32.mrf.mxu0
      %v2653 = vadd.f32 0.0, %v2652
      %2654 = vmatmul.f32.gmra.mxu0 %v2447
      %v2655 = vpop.f32.mrf.mxu0
      %v2656 = vadd.f32 0.0, %v2655
      %2657 = vmatmul.f32.gmra.mxu0 %v2450
      %v2658 = vpop.f32.mrf.mxu0
      %v2659 = vadd.f32 0.0, %v2658
      %2660 = vmatmul.f32.gmra.mxu0 %v2453
      %v2661 = vpop.f32.mrf.mxu0
      %v2662 = vadd.f32 0.0, %v2661
      %2663 = vmatmul.f32.gmra.mxu0 %v2456
      %v2664 = vpop.f32.mrf.mxu0
      %v2665 = vadd.f32 0.0, %v2664
      %2666 = vmatmul.f32.gmra.mxu0 %v2459
      %v2667 = vpop.f32.mrf.mxu0
      %v2668 = vadd.f32 0.0, %v2667
      %2669 = vmatmul.f32.gmra.mxu0 %v2462
      %v2670 = vpop.f32.mrf.mxu0
      %v2671 = vadd.f32 0.0, %v2670
      %2672 = vmatmul.f32.gmra.mxu0 %v2465
      %v2673 = vpop.f32.mrf.mxu0
      %v2674 = vadd.f32 0.0, %v2673
      %2675 = vmatmul.f32.gmra.mxu0 %v2468
      %v2676 = vpop.f32.mrf.mxu0
      %v2677 = vadd.f32 0.0, %v2676
      %2678 = vmatmul.f32.gmra.mxu0 %v2471
      %v2679 = vpop.f32.mrf.mxu0
      %v2680 = vadd.f32 0.0, %v2679
      %2681 = vmatmul.f32.gmra.mxu0 %v2474
      %v2682 = vpop.f32.mrf.mxu0
      %v2683 = vadd.f32 0.0, %v2682
      %2684 = vmatmul.f32.gmra.mxu0 %v2477
      %v2685 = vpop.f32.mrf.mxu0
      %v2686 = vadd.f32 0.0, %v2685
      %2687 = vmatmul.f32.gmra.mxu0 %v2480
      %v2688 = vpop.f32.mrf.mxu0
      %v2689 = vadd.f32 0.0, %v2688
      %2690 = vmatmul.f32.gmra.mxu0 %v2483
      %v2691 = vpop.f32.mrf.mxu0
      %v2692 = vadd.f32 0.0, %v2691
      %2693 = vmatmul.f32.gmra.mxu0 %v2486
      %v2694 = vpop.f32.mrf.mxu0
      %v2695 = vadd.f32 0.0, %v2694
      %2696 = vmatmul.f32.gmra.mxu0 %v2489
      %v2697 = vpop.f32.mrf.mxu0
      %v2698 = vadd.f32 0.0, %v2697
      %2699 = vmatmul.f32.gmra.mxu0 %v2492
      %v2700 = vpop.f32.mrf.mxu0
      %v2701 = vadd.f32 0.0, %v2700
      %2702 = vmatmul.f32.gmra.mxu0 %v2495
      %v2703 = vpop.f32.mrf.mxu0
      %v2704 = vadd.f32 0.0, %v2703
      %2705 = vmatmul.f32.gmra.mxu0 %v2498
      %v2706 = vpop.f32.mrf.mxu0
      %v2707 = vadd.f32 0.0, %v2706
      %2708 = vmatmul.f32.gmra.mxu0 %v2501
      %v2709 = vpop.f32.mrf.mxu0
      %v2710 = vadd.f32 0.0, %v2709
      %2711 = vmatmul.f32.gmra.mxu0 %v2504
      %v2712 = vpop.f32.mrf.mxu0
      %v2713 = vadd.f32 0.0, %v2712
      %2714 = vmatmul.f32.gmra.mxu0 %v2507
      %v2715 = vpop.f32.mrf.mxu0
      %v2716 = vadd.f32 0.0, %v2715
      %2717 = vmatmul.f32.gmra.mxu0 %v2510
      %v2718 = vpop.f32.mrf.mxu0
      %v2719 = vadd.f32 0.0, %v2718
      %2720 = vmatmul.f32.gmra.mxu0 %v2513
      %v2721 = vpop.f32.mrf.mxu0
      %v2722 = vadd.f32 0.0, %v2721
      %2723 = vmatmul.f32.gmra.mxu0 %v2516
      %v2724 = vpop.f32.mrf.mxu0
      %v2725 = vadd.f32 0.0, %v2724
      %2726 = vmatmul.f32.gmra.mxu0 %v2519
      %v2727 = vpop.f32.mrf.mxu0
      %v2728 = vadd.f32 0.0, %v2727
      %2729 = vmatmul.f32.gmra.mxu0 %v2522
      %v2730 = vpop.f32.mrf.mxu0
      %v2731 = vadd.f32 0.0, %v2730
      %2732 = vmatmul.f32.gmra.mxu0 %v2525
      %v2733 = vpop.f32.mrf.mxu0
      %v2734 = vadd.f32 0.0, %v2733
      %2735 = vmatmul.f32.gmra.mxu0 %v2528
      %v2736 = vpop.f32.mrf.mxu0
      %v2737 = vadd.f32 0.0, %v2736
      %2738 = vmatmul.f32.gmra.mxu0 %v2531
      %v2739 = vpop.f32.mrf.mxu0
      %v2740 = vadd.f32 0.0, %v2739
      %2741 = vmatmul.f32.gmra.mxu0 %v2534
      %v2742 = vpop.f32.mrf.mxu0
      %v2743 = vadd.f32 0.0, %v2742
      %2744 = vmatmul.f32.gmra.mxu0 %v2537
      %v2745 = vpop.f32.mrf.mxu0
      %v2746 = vadd.f32 0.0, %v2745
      %2747 = vmatmul.f32.gmra.mxu0 %v2540
      %v2748 = vpop.f32.mrf.mxu0
      %v2749 = vadd.f32 0.0, %v2748
      %2750 = vmatmul.f32.gmra.mxu0 %v2543
      %v2751 = vpop.f32.mrf.mxu0
      %v2752 = vadd.f32 0.0, %v2751
      %2753 = vmatmul.f32.gmra.mxu0 %v2546
      %v2754 = vpop.f32.mrf.mxu0
      %v2755 = vadd.f32 0.0, %v2754
      %2756 = vmatmul.f32.gmra.mxu0 %v2549
      %v2757 = vpop.f32.mrf.mxu0
      %v2758 = vadd.f32 0.0, %v2757
      %2759 = vmatmul.f32.gmra.mxu0 %v2552
      %v2760 = vpop.f32.mrf.mxu0
      %v2761 = vadd.f32 0.0, %v2760
      %2762 = vmatmul.f32.gmra.mxu0 %v2555
      %v2763 = vpop.f32.mrf.mxu0
      %v2764 = vadd.f32 0.0, %v2763
      %2765 = vmatmul.f32.gmra.mxu0 %v2558
      %v2766 = vpop.f32.mrf.mxu0
      %v2767 = vadd.f32 0.0, %v2766
      %2768 = vmatmul.f32.gmra.mxu0 %v2561
      %v2769 = vpop.f32.mrf.mxu0
      %v2770 = vadd.f32 0.0, %v2769
      %2771 = vmatmul.f32.gmra.mxu0 %v2564
      %v2772 = vpop.f32.mrf.mxu0
      %v2773 = vadd.f32 0.0, %v2772
      %2774 = vmatmul.f32.gmra.mxu0 %v2567
      %v2775 = vpop.f32.mrf.mxu0
      %v2776 = vadd.f32 0.0, %v2775
      %2777 = vmatmul.f32.gmra.mxu0 %v2570
      %v2778 = vpop.f32.mrf.mxu0
      %v2779 = vadd.f32 0.0, %v2778
      %2780 = vmatmul.f32.gmra.mxu0 %v2573
      %v2781 = vpop.f32.mrf.mxu0
      %v2782 = vadd.f32 0.0, %v2781
      %2783 = vmatmul.f32.gmra.mxu0 %v2576
      %v2784 = vpop.f32.mrf.mxu0
      %v2785 = vadd.f32 0.0, %v2784
      %2786 = vmatmul.f32.gmra.mxu0 %v2579
      %v2787 = vpop.f32.mrf.mxu0
      %v2788 = vadd.f32 0.0, %v2787
      %2789 = vmatmul.f32.gmra.mxu0 %v2582
      %v2790 = vpop.f32.mrf.mxu0
      %v2791 = vadd.f32 0.0, %v2790
      %2792 = vmatmul.f32.gmra.mxu0 %v2585
      %v2793 = vpop.f32.mrf.mxu0
      %v2794 = vadd.f32 0.0, %v2793
      %2795 = vmatmul.f32.gmra.mxu0 %v2588
      %v2796 = vpop.f32.mrf.mxu0
      %v2797 = vadd.f32 0.0, %v2796
      %2798 = vmatmul.f32.gmra.mxu0 %v2591
      %v2799 = vpop.f32.mrf.mxu0
      %v2800 = vadd.f32 0.0, %v2799
      %2801 = vmatmul.f32.gmra.mxu0 %v2594
      %v2802 = vpop.f32.mrf.mxu0
      %v2803 = vadd.f32 0.0, %v2802
      %2804 = vmatmul.f32.gmra.mxu0 %v2597
      %v2805 = vpop.f32.mrf.mxu0
      %v2806 = vadd.f32 0.0, %v2805
      %2807 = vdwg.mxu0
      %2808 = vmatpush.msra.mxu0 0.0
      %2809 = vmatpush.msra.mxu0 0.0
      %2810 = vmatpush.msra.mxu0 0.0
      %2811 = vmatpush.msra.mxu0 0.0
      %2812 = vmatpush.msra.mxu0 0.0
      %2813 = vmatpush.msra.mxu0 0.0
      %2814 = vmatpush.msra.mxu0 0.0
      %2815 = vmatpush.msra.mxu0 0.0
      %2816 = vmatpush.msra.mxu0 0.0
      %2817 = vmatpush.msra.mxu0 0.0
      %2818 = vmatpush.msra.mxu0 0.0
      %2819 = vmatpush.msra.mxu0 0.0
      %2820 = vmatpush.msra.mxu0 0.0
      %2821 = vmatpush.msra.mxu0 0.0
      %2822 = vmatpush.msra.mxu0 %v2405
      %2823 = vmatpush.msra.mxu0 %v2403
      %2824 = vmatmul.f32.gmra.mxu0 %v2408
      %v2825 = vpop.f32.mrf.mxu0
      %v2826 = vadd.f32 0.0, %v2825
      %2827 = vmatmul.f32.gmra.mxu0 %v2411
      %v2828 = vpop.f32.mrf.mxu0
      %v2829 = vadd.f32 0.0, %v2828
      %2830 = vmatmul.f32.gmra.mxu0 %v2414
      %v2831 = vpop.f32.mrf.mxu0
      %v2832 = vadd.f32 0.0, %v2831
      %2833 = vmatmul.f32.gmra.mxu0 %v2417
      %v2834 = vpop.f32.mrf.mxu0
      %v2835 = vadd.f32 0.0, %v2834
      %2836 = vmatmul.f32.gmra.mxu0 %v2420
      %v2837 = vpop.f32.mrf.mxu0
      %v2838 = vadd.f32 0.0, %v2837
      %2839 = vmatmul.f32.gmra.mxu0 %v2423
      %v2840 = vpop.f32.mrf.mxu0
      %v2841 = vadd.f32 0.0, %v2840
      %2842 = vmatmul.f32.gmra.mxu0 %v2426
      %v2843 = vpop.f32.mrf.mxu0
      %v2844 = vadd.f32 0.0, %v2843
      %2845 = vmatmul.f32.gmra.mxu0 %v2429
      %v2846 = vpop.f32.mrf.mxu0
      %v2847 = vadd.f32 0.0, %v2846
      %2848 = vmatmul.f32.gmra.mxu0 %v2432
      %v2849 = vpop.f32.mrf.mxu0
      %v2850 = vadd.f32 0.0, %v2849
      %2851 = vmatmul.f32.gmra.mxu0 %v2435
      %v2852 = vpop.f32.mrf.mxu0
      %v2853 = vadd.f32 0.0, %v2852
      %2854 = vmatmul.f32.gmra.mxu0 %v2438
      %v2855 = vpop.f32.mrf.mxu0
      %v2856 = vadd.f32 0.0, %v2855
      %2857 = vmatmul.f32.gmra.mxu0 %v2441
      %v2858 = vpop.f32.mrf.mxu0
      %v2859 = vadd.f32 0.0, %v2858
      %2860 = vmatmul.f32.gmra.mxu0 %v2444
      %v2861 = vpop.f32.mrf.mxu0
      %v2862 = vadd.f32 0.0, %v2861
      %2863 = vmatmul.f32.gmra.mxu0 %v2447
      %v2864 = vpop.f32.mrf.mxu0
      %v2865 = vadd.f32 0.0, %v2864
      %2866 = vmatmul.f32.gmra.mxu0 %v2450
      %v2867 = vpop.f32.mrf.mxu0
      %v2868 = vadd.f32 0.0, %v2867
      %2869 = vmatmul.f32.gmra.mxu0 %v2453
      %v2870 = vpop.f32.mrf.mxu0
      %v2871 = vadd.f32 0.0, %v2870
      %2872 = vmatmul.f32.gmra.mxu0 %v2456
      %v2873 = vpop.f32.mrf.mxu0
      %v2874 = vadd.f32 0.0, %v2873
      %2875 = vmatmul.f32.gmra.mxu0 %v2459
      %v2876 = vpop.f32.mrf.mxu0
      %v2877 = vadd.f32 0.0, %v2876
      %2878 = vmatmul.f32.gmra.mxu0 %v2462
      %v2879 = vpop.f32.mrf.mxu0
      %v2880 = vadd.f32 0.0, %v2879
      %2881 = vmatmul.f32.gmra.mxu0 %v2465
      %v2882 = vpop.f32.mrf.mxu0
      %v2883 = vadd.f32 0.0, %v2882
      %2884 = vmatmul.f32.gmra.mxu0 %v2468
      %v2885 = vpop.f32.mrf.mxu0
      %v2886 = vadd.f32 0.0, %v2885
      %2887 = vmatmul.f32.gmra.mxu0 %v2471
      %v2888 = vpop.f32.mrf.mxu0
      %v2889 = vadd.f32 0.0, %v2888
      %2890 = vmatmul.f32.gmra.mxu0 %v2474
      %v2891 = vpop.f32.mrf.mxu0
      %v2892 = vadd.f32 0.0, %v2891
      %2893 = vmatmul.f32.gmra.mxu0 %v2477
      %v2894 = vpop.f32.mrf.mxu0
      %v2895 = vadd.f32 0.0, %v2894
      %2896 = vmatmul.f32.gmra.mxu0 %v2480
      %v2897 = vpop.f32.mrf.mxu0
      %v2898 = vadd.f32 0.0, %v2897
      %2899 = vmatmul.f32.gmra.mxu0 %v2483
      %v2900 = vpop.f32.mrf.mxu0
      %v2901 = vadd.f32 0.0, %v2900
      %2902 = vmatmul.f32.gmra.mxu0 %v2486
      %v2903 = vpop.f32.mrf.mxu0
      %v2904 = vadd.f32 0.0, %v2903
      %2905 = vmatmul.f32.gmra.mxu0 %v2489
      %v2906 = vpop.f32.mrf.mxu0
      %v2907 = vadd.f32 0.0, %v2906
      %2908 = vmatmul.f32.gmra.mxu0 %v2492
      %v2909 = vpop.f32.mrf.mxu0
      %v2910 = vadd.f32 0.0, %v2909
      %2911 = vmatmul.f32.gmra.mxu0 %v2495
      %v2912 = vpop.f32.mrf.mxu0
      %v2913 = vadd.f32 0.0, %v2912
      %2914 = vmatmul.f32.gmra.mxu0 %v2498
      %v2915 = vpop.f32.mrf.mxu0
      %v2916 = vadd.f32 0.0, %v2915
      %2917 = vmatmul.f32.gmra.mxu0 %v2501
      %v2918 = vpop.f32.mrf.mxu0
      %v2919 = vadd.f32 0.0, %v2918
      %2920 = vmatmul.f32.gmra.mxu0 %v2504
      %v2921 = vpop.f32.mrf.mxu0
      %v2922 = vadd.f32 0.0, %v2921
      %2923 = vmatmul.f32.gmra.mxu0 %v2507
      %v2924 = vpop.f32.mrf.mxu0
      %v2925 = vadd.f32 0.0, %v2924
      %2926 = vmatmul.f32.gmra.mxu0 %v2510
      %v2927 = vpop.f32.mrf.mxu0
      %v2928 = vadd.f32 0.0, %v2927
      %2929 = vmatmul.f32.gmra.mxu0 %v2513
      %v2930 = vpop.f32.mrf.mxu0
      %v2931 = vadd.f32 0.0, %v2930
      %2932 = vmatmul.f32.gmra.mxu0 %v2516
      %v2933 = vpop.f32.mrf.mxu0
      %v2934 = vadd.f32 0.0, %v2933
      %2935 = vmatmul.f32.gmra.mxu0 %v2519
      %v2936 = vpop.f32.mrf.mxu0
      %v2937 = vadd.f32 0.0, %v2936
      %2938 = vmatmul.f32.gmra.mxu0 %v2522
      %v2939 = vpop.f32.mrf.mxu0
      %v2940 = vadd.f32 0.0, %v2939
      %2941 = vmatmul.f32.gmra.mxu0 %v2525
      %v2942 = vpop.f32.mrf.mxu0
      %v2943 = vadd.f32 0.0, %v2942
      %2944 = vmatmul.f32.gmra.mxu0 %v2528
      %v2945 = vpop.f32.mrf.mxu0
      %v2946 = vadd.f32 0.0, %v2945
      %2947 = vmatmul.f32.gmra.mxu0 %v2531
      %v2948 = vpop.f32.mrf.mxu0
      %v2949 = vadd.f32 0.0, %v2948
      %2950 = vmatmul.f32.gmra.mxu0 %v2534
      %v2951 = vpop.f32.mrf.mxu0
      %v2952 = vadd.f32 0.0, %v2951
      %2953 = vmatmul.f32.gmra.mxu0 %v2537
      %v2954 = vpop.f32.mrf.mxu0
      %v2955 = vadd.f32 0.0, %v2954
      %2956 = vmatmul.f32.gmra.mxu0 %v2540
      %v2957 = vpop.f32.mrf.mxu0
      %v2958 = vadd.f32 0.0, %v2957
      %2959 = vmatmul.f32.gmra.mxu0 %v2543
      %v2960 = vpop.f32.mrf.mxu0
      %v2961 = vadd.f32 0.0, %v2960
      %2962 = vmatmul.f32.gmra.mxu0 %v2546
      %v2963 = vpop.f32.mrf.mxu0
      %v2964 = vadd.f32 0.0, %v2963
      %2965 = vmatmul.f32.gmra.mxu0 %v2549
      %v2966 = vpop.f32.mrf.mxu0
      %v2967 = vadd.f32 0.0, %v2966
      %2968 = vmatmul.f32.gmra.mxu0 %v2552
      %v2969 = vpop.f32.mrf.mxu0
      %v2970 = vadd.f32 0.0, %v2969
      %2971 = vmatmul.f32.gmra.mxu0 %v2555
      %v2972 = vpop.f32.mrf.mxu0
      %v2973 = vadd.f32 0.0, %v2972
      %2974 = vmatmul.f32.gmra.mxu0 %v2558
      %v2975 = vpop.f32.mrf.mxu0
      %v2976 = vadd.f32 0.0, %v2975
      %2977 = vmatmul.f32.gmra.mxu0 %v2561
      %v2978 = vpop.f32.mrf.mxu0
      %v2979 = vadd.f32 0.0, %v2978
      %2980 = vmatmul.f32.gmra.mxu0 %v2564
      %v2981 = vpop.f32.mrf.mxu0
      %v2982 = vadd.f32 0.0, %v2981
      %2983 = vmatmul.f32.gmra.mxu0 %v2567
      %v2984 = vpop.f32.mrf.mxu0
      %v2985 = vadd.f32 0.0, %v2984
      %2986 = vmatmul.f32.gmra.mxu0 %v2570
      %v2987 = vpop.f32.mrf.mxu0
      %v2988 = vadd.f32 0.0, %v2987
      %2989 = vmatmul.f32.gmra.mxu0 %v2573
      %v2990 = vpop.f32.mrf.mxu0
      %v2991 = vadd.f32 0.0, %v2990
      %2992 = vmatmul.f32.gmra.mxu0 %v2576
      %v2993 = vpop.f32.mrf.mxu0
      %v2994 = vadd.f32 0.0, %v2993
      %2995 = vmatmul.f32.gmra.mxu0 %v2579
      %v2996 = vpop.f32.mrf.mxu0
      %v2997 = vadd.f32 0.0, %v2996
      %2998 = vmatmul.f32.gmra.mxu0 %v2582
      %v2999 = vpop.f32.mrf.mxu0
      %v3000 = vadd.f32 0.0, %v2999
      %3001 = vmatmul.f32.gmra.mxu0 %v2585
      %v3002 = vpop.f32.mrf.mxu0
      %v3003 = vadd.f32 0.0, %v3002
      %3004 = vmatmul.f32.gmra.mxu0 %v2588
      %v3005 = vpop.f32.mrf.mxu0
      %v3006 = vadd.f32 0.0, %v3005
      %3007 = vmatmul.f32.gmra.mxu0 %v2591
      %v3008 = vpop.f32.mrf.mxu0
      %v3009 = vadd.f32 0.0, %v3008
      %3010 = vmatmul.f32.gmra.mxu0 %v2594
      %v3011 = vpop.f32.mrf.mxu0
      %v3012 = vadd.f32 0.0, %v3011
      %3013 = vmatmul.f32.gmra.mxu0 %v2597
      %v3014 = vpop.f32.mrf.mxu0
      %v3015 = vadd.f32 0.0, %v3014
      %3016 = vdwg.mxu0
      %v3017 = vadd.f32 %v1938, %v2617
      %v3018 = vadd.f32 %v2147, %v2826
      %v3019 = vadd.f32 %v1941, %v2620
      %v3020 = vadd.f32 %v2150, %v2829
      %v3021 = vadd.f32 %v1944, %v2623
      %v3022 = vadd.f32 %v2153, %v2832
      %v3023 = vadd.f32 %v1947, %v2626
      %v3024 = vadd.f32 %v2156, %v2835
      %v3025 = vadd.f32 %v1950, %v2629
      %v3026 = vadd.f32 %v2159, %v2838
      %v3027 = vadd.f32 %v1953, %v2632
      %v3028 = vadd.f32 %v2162, %v2841
      %v3029 = vadd.f32 %v1956, %v2635
      %v3030 = vadd.f32 %v2165, %v2844
      %v3031 = vadd.f32 %v1959, %v2638
      %v3032 = vadd.f32 %v2168, %v2847
      %v3033 = vadd.f32 %v1962, %v2641
      %v3034 = vadd.f32 %v2171, %v2850
      %v3035 = vadd.f32 %v1965, %v2644
      %v3036 = vadd.f32 %v2174, %v2853
      %v3037 = vadd.f32 %v1968, %v2647
      %v3038 = vadd.f32 %v2177, %v2856
      %v3039 = vadd.f32 %v1971, %v2650
      %v3040 = vadd.f32 %v2180, %v2859
      %v3041 = vadd.f32 %v1974, %v2653
      %v3042 = vadd.f32 %v2183, %v2862
      %v3043 = vadd.f32 %v1977, %v2656
      %v3044 = vadd.f32 %v2186, %v2865
      %v3045 = vadd.f32 %v1980, %v2659
      %v3046 = vadd.f32 %v2189, %v2868
      %v3047 = vadd.f32 %v1983, %v2662
      %v3048 = vadd.f32 %v2192, %v2871
      %v3049 = vadd.f32 %v1986, %v2665
      %v3050 = vadd.f32 %v2195, %v2874
      %v3051 = vadd.f32 %v1989, %v2668
      %v3052 = vadd.f32 %v2198, %v2877
      %v3053 = vadd.f32 %v1992, %v2671
      %v3054 = vadd.f32 %v2201, %v2880
      %v3055 = vadd.f32 %v1995, %v2674
      %v3056 = vadd.f32 %v2204, %v2883
      %v3057 = vadd.f32 %v1998, %v2677
      %v3058 = vadd.f32 %v2207, %v2886
      %v3059 = vadd.f32 %v2001, %v2680
      %v3060 = vadd.f32 %v2210, %v2889
      %v3061 = vadd.f32 %v2004, %v2683
      %v3062 = vadd.f32 %v2213, %v2892
      %v3063 = vadd.f32 %v2007, %v2686
      %v3064 = vadd.f32 %v2216, %v2895
      %v3065 = vadd.f32 %v2010, %v2689
      %v3066 = vadd.f32 %v2219, %v2898
      %v3067 = vadd.f32 %v2013, %v2692
      %v3068 = vadd.f32 %v2222, %v2901
      %v3069 = vadd.f32 %v2016, %v2695
      %v3070 = vadd.f32 %v2225, %v2904
      %v3071 = vadd.f32 %v2019, %v2698
      %v3072 = vadd.f32 %v2228, %v2907
      %v3073 = vadd.f32 %v2022, %v2701
      %v3074 = vadd.f32 %v2231, %v2910
      %v3075 = vadd.f32 %v2025, %v2704
      %v3076 = vadd.f32 %v2234, %v2913
      %v3077 = vadd.f32 %v2028, %v2707
      %v3078 = vadd.f32 %v2237, %v2916
      %v3079 = vadd.f32 %v2031, %v2710
      %v3080 = vadd.f32 %v2240, %v2919
      %v3081 = vadd.f32 %v2034, %v2713
      %v3082 = vadd.f32 %v2243, %v2922
      %v3083 = vadd.f32 %v2037, %v2716
      %v3084 = vadd.f32 %v2246, %v2925
      %v3085 = vadd.f32 %v2040, %v2719
      %v3086 = vadd.f32 %v2249, %v2928
      %v3087 = vadd.f32 %v2043, %v2722
      %v3088 = vadd.f32 %v2252, %v2931
      %v3089 = vadd.f32 %v2046, %v2725
      %v3090 = vadd.f32 %v2255, %v2934
      %v3091 = vadd.f32 %v2049, %v2728
      %v3092 = vadd.f32 %v2258, %v2937
      %v3093 = vadd.f32 %v2052, %v2731
      %v3094 = vadd.f32 %v2261, %v2940
      %v3095 = vadd.f32 %v2055, %v2734
      %v3096 = vadd.f32 %v2264, %v2943
      %v3097 = vadd.f32 %v2058, %v2737
      %v3098 = vadd.f32 %v2267, %v2946
      %v3099 = vadd.f32 %v2061, %v2740
      %v3100 = vadd.f32 %v2270, %v2949
      %v3101 = vadd.f32 %v2064, %v2743
      %v3102 = vadd.f32 %v2273, %v2952
      %v3103 = vadd.f32 %v2067, %v2746
      %v3104 = vadd.f32 %v2276, %v2955
      %v3105 = vadd.f32 %v2070, %v2749
      %v3106 = vadd.f32 %v2279, %v2958
      %v3107 = vadd.f32 %v2073, %v2752
      %v3108 = vadd.f32 %v2282, %v2961
      %v3109 = vadd.f32 %v2076, %v2755
      %v3110 = vadd.f32 %v2285, %v2964
      %v3111 = vadd.f32 %v2079, %v2758
      %v3112 = vadd.f32 %v2288, %v2967
      %v3113 = vadd.f32 %v2082, %v2761
      %v3114 = vadd.f32 %v2291, %v2970
      %v3115 = vadd.f32 %v2085, %v2764
      %v3116 = vadd.f32 %v2294, %v2973
      %v3117 = vadd.f32 %v2088, %v2767
      %v3118 = vadd.f32 %v2297, %v2976
      %v3119 = vadd.f32 %v2091, %v2770
      %v3120 = vadd.f32 %v2300, %v2979
      %v3121 = vadd.f32 %v2094, %v2773
      %v3122 = vadd.f32 %v2303, %v2982
      %v3123 = vadd.f32 %v2097, %v2776
      %v3124 = vadd.f32 %v2306, %v2985
      %v3125 = vadd.f32 %v2100, %v2779
      %v3126 = vadd.f32 %v2309, %v2988
      %v3127 = vadd.f32 %v2103, %v2782
      %v3128 = vadd.f32 %v2312, %v2991
      %v3129 = vadd.f32 %v2106, %v2785
      %v3130 = vadd.f32 %v2315, %v2994
      %v3131 = vadd.f32 %v2109, %v2788
      %v3132 = vadd.f32 %v2318, %v2997
      %v3133 = vadd.f32 %v2112, %v2791
      %v3134 = vadd.f32 %v2321, %v3000
      %v3135 = vadd.f32 %v2115, %v2794
      %v3136 = vadd.f32 %v2324, %v3003
      %v3137 = vadd.f32 %v2118, %v2797
      %v3138 = vadd.f32 %v2327, %v3006
      %v3139 = vadd.f32 %v2121, %v2800
      %v3140 = vadd.f32 %v2330, %v3009
      %v3141 = vadd.f32 %v2124, %v2803
      %v3142 = vadd.f32 %v2333, %v3012
      %v3143 = vadd.f32 %v2127, %v2806
      %v3144 = vadd.f32 %v2336, %v3015
      %v3145 = vld [vmem:[%s4] sm:$0xff]
      %v3146 = vld [vmem:[%s4 + $0x8] sm:$0xff]
      %v3147 = vld [vmem:[%s4 + $0x10] sm:$0xff]
      %v3148 = vld [vmem:[%s4 + $0x18] sm:$0xff]
      %v3149 = vld [vmem:[%s4 + $0x20] sm:$0xff]
      %v3150 = vld [vmem:[%s4 + $0x28] sm:$0xff]
      %v3151 = vld [vmem:[%s4 + $0x30] sm:$0xff]
      %v3152 = vld [vmem:[%s4 + $0x38] sm:$0xff]
      %v3153 = vld [vmem:[%s4 + $0x40] sm:$0xff]
      %v3154 = vld [vmem:[%s4 + $0x48] sm:$0xff]
      %v3155 = vld [vmem:[%s4 + $0x50] sm:$0xff]
      %v3156 = vld [vmem:[%s4 + $0x58] sm:$0xff]
      %v3157 = vld [vmem:[%s4 + $0x60] sm:$0xff]
      %v3158 = vld [vmem:[%s4 + $0x68] sm:$0xff]
      %v3159 = vld [vmem:[%s4 + $0x70] sm:$0xff]
      %v3160 = vld [vmem:[%s4 + $0x78] sm:$0xff]
      %v3161 = vld [vmem:[%s4 + $0x80] sm:$0xff]
      %v3162 = vld [vmem:[%s4 + $0x88] sm:$0xff]
      %v3163 = vld [vmem:[%s4 + $0x90] sm:$0xff]
      %v3164 = vld [vmem:[%s4 + $0x98] sm:$0xff]
      %v3165 = vld [vmem:[%s4 + $0xa0] sm:$0xff]
      %v3166 = vld [vmem:[%s4 + $0xa8] sm:$0xff]
      %v3167 = vld [vmem:[%s4 + $0xb0] sm:$0xff]
      %v3168 = vld [vmem:[%s4 + $0xb8] sm:$0xff]
      %v3169 = vld [vmem:[%s4 + $0xc0] sm:$0xff]
      %v3170 = vld [vmem:[%s4 + $0xc8] sm:$0xff]
      %v3171 = vld [vmem:[%s4 + $0xd0] sm:$0xff]
      %v3172 = vld [vmem:[%s4 + $0xd8] sm:$0xff]
      %v3173 = vld [vmem:[%s4 + $0xe0] sm:$0xff]
      %v3174 = vld [vmem:[%s4 + $0xe8] sm:$0xff]
      %v3175 = vld [vmem:[%s4 + $0xf0] sm:$0xff]
      %v3176 = vld [vmem:[%s4 + $0xf8] sm:$0xff]
      %v3177 = vld [vmem:[%s4 + $0x100] sm:$0xff]
      %v3178 = vld [vmem:[%s4 + $0x108] sm:$0xff]
      %v3179 = vld [vmem:[%s4 + $0x110] sm:$0xff]
      %v3180 = vld [vmem:[%s4 + $0x118] sm:$0xff]
      %v3181 = vld [vmem:[%s4 + $0x120] sm:$0xff]
      %v3182 = vld [vmem:[%s4 + $0x128] sm:$0xff]
      %v3183 = vld [vmem:[%s4 + $0x130] sm:$0xff]
      %v3184 = vld [vmem:[%s4 + $0x138] sm:$0xff]
      %v3185 = vld [vmem:[%s4 + $0x140] sm:$0xff]
      %v3186 = vld [vmem:[%s4 + $0x148] sm:$0xff]
      %v3187 = vld [vmem:[%s4 + $0x150] sm:$0xff]
      %v3188 = vld [vmem:[%s4 + $0x158] sm:$0xff]
      %v3189 = vld [vmem:[%s4 + $0x160] sm:$0xff]
      %v3190 = vld [vmem:[%s4 + $0x168] sm:$0xff]
      %v3191 = vld [vmem:[%s4 + $0x170] sm:$0xff]
      %v3192 = vld [vmem:[%s4 + $0x178] sm:$0xff]
      %v3193 = vld [vmem:[%s4 + $0x180] sm:$0xff]
      %v3194 = vld [vmem:[%s4 + $0x188] sm:$0xff]
      %v3195 = vld [vmem:[%s4 + $0x190] sm:$0xff]
      %v3196 = vld [vmem:[%s4 + $0x198] sm:$0xff]
      %v3197 = vld [vmem:[%s4 + $0x1a0] sm:$0xff]
      %v3198 = vld [vmem:[%s4 + $0x1a8] sm:$0xff]
      %v3199 = vld [vmem:[%s4 + $0x1b0] sm:$0xff]
      %v3200 = vld [vmem:[%s4 + $0x1b8] sm:$0xff]
      %v3201 = vld [vmem:[%s4 + $0x1c0] sm:$0xff]
      %v3202 = vld [vmem:[%s4 + $0x1c8] sm:$0xff]
      %v3203 = vld [vmem:[%s4 + $0x1d0] sm:$0xff]
      %v3204 = vld [vmem:[%s4 + $0x1d8] sm:$0xff]
      %v3205 = vld [vmem:[%s4 + $0x1e0] sm:$0xff]
      %v3206 = vld [vmem:[%s4 + $0x1e8] sm:$0xff]
      %v3207 = vld [vmem:[%s4 + $0x1f0] sm:$0xff]
      %v3208 = vld [vmem:[%s4 + $0x1f8] sm:$0xff]
      %v3209 = vmax.f32 %v3017, %v3018
      %3210 = vmax.xlane.f32.xlu0 %v3209
      %v3211 = vpop.xlane.xlu0 %3210
      %v3212 = vmax.f32 %v3019, %v3020
      %3213 = vmax.xlane.f32.xlu0 %v3212
      %v3214 = vpop.xlane.xlu0 %3213
      %v3215 = vmax.f32 %v3021, %v3022
      %3216 = vmax.xlane.f32.xlu0 %v3215
      %v3217 = vpop.xlane.xlu0 %3216
      %v3218 = vmax.f32 %v3023, %v3024
      %3219 = vmax.xlane.f32.xlu0 %v3218
      %v3220 = vpop.xlane.xlu0 %3219
      %v3221 = vmax.f32 %v3025, %v3026
      %3222 = vmax.xlane.f32.xlu0 %v3221
      %v3223 = vpop.xlane.xlu0 %3222
      %v3224 = vmax.f32 %v3027, %v3028
      %3225 = vmax.xlane.f32.xlu0 %v3224
      %v3226 = vpop.xlane.xlu0 %3225
      %v3227 = vmax.f32 %v3029, %v3030
      %3228 = vmax.xlane.f32.xlu0 %v3227
      %v3229 = vpop.xlane.xlu0 %3228
      %v3230 = vmax.f32 %v3031, %v3032
      %3231 = vmax.xlane.f32.xlu0 %v3230
      %v3232 = vpop.xlane.xlu0 %3231
      %v3233 = vmax.f32 %v3033, %v3034
      %3234 = vmax.xlane.f32.xlu0 %v3233
      %v3235 = vpop.xlane.xlu0 %3234
      %v3236 = vmax.f32 %v3035, %v3036
      %3237 = vmax.xlane.f32.xlu0 %v3236
      %v3238 = vpop.xlane.xlu0 %3237
      %v3239 = vmax.f32 %v3037, %v3038
      %3240 = vmax.xlane.f32.xlu0 %v3239
      %v3241 = vpop.xlane.xlu0 %3240
      %v3242 = vmax.f32 %v3039, %v3040
      %3243 = vmax.xlane.f32.xlu0 %v3242
      %v3244 = vpop.xlane.xlu0 %3243
      %v3245 = vmax.f32 %v3041, %v3042
      %3246 = vmax.xlane.f32.xlu0 %v3245
      %v3247 = vpop.xlane.xlu0 %3246
      %v3248 = vmax.f32 %v3043, %v3044
      %3249 = vmax.xlane.f32.xlu0 %v3248
      %v3250 = vpop.xlane.xlu0 %3249
      %v3251 = vmax.f32 %v3045, %v3046
      %3252 = vmax.xlane.f32.xlu0 %v3251
      %v3253 = vpop.xlane.xlu0 %3252
      %v3254 = vmax.f32 %v3047, %v3048
      %3255 = vmax.xlane.f32.xlu0 %v3254
      %v3256 = vpop.xlane.xlu0 %3255
      %v3257 = vmax.f32 %v3049, %v3050
      %3258 = vmax.xlane.f32.xlu0 %v3257
      %v3259 = vpop.xlane.xlu0 %3258
      %v3260 = vmax.f32 %v3051, %v3052
      %3261 = vmax.xlane.f32.xlu0 %v3260
      %v3262 = vpop.xlane.xlu0 %3261
      %v3263 = vmax.f32 %v3053, %v3054
      %3264 = vmax.xlane.f32.xlu0 %v3263
      %v3265 = vpop.xlane.xlu0 %3264
      %v3266 = vmax.f32 %v3055, %v3056
      %3267 = vmax.xlane.f32.xlu0 %v3266
      %v3268 = vpop.xlane.xlu0 %3267
      %v3269 = vmax.f32 %v3057, %v3058
      %3270 = vmax.xlane.f32.xlu0 %v3269
      %v3271 = vpop.xlane.xlu0 %3270
      %v3272 = vmax.f32 %v3059, %v3060
      %3273 = vmax.xlane.f32.xlu0 %v3272
      %v3274 = vpop.xlane.xlu0 %3273
      %v3275 = vmax.f32 %v3061, %v3062
      %3276 = vmax.xlane.f32.xlu0 %v3275
      %v3277 = vpop.xlane.xlu0 %3276
      %v3278 = vmax.f32 %v3063, %v3064
      %3279 = vmax.xlane.f32.xlu0 %v3278
      %v3280 = vpop.xlane.xlu0 %3279
      %v3281 = vmax.f32 %v3065, %v3066
      %3282 = vmax.xlane.f32.xlu0 %v3281
      %v3283 = vpop.xlane.xlu0 %3282
      %v3284 = vmax.f32 %v3067, %v3068
      %3285 = vmax.xlane.f32.xlu0 %v3284
      %v3286 = vpop.xlane.xlu0 %3285
      %v3287 = vmax.f32 %v3069, %v3070
      %3288 = vmax.xlane.f32.xlu0 %v3287
      %v3289 = vpop.xlane.xlu0 %3288
      %v3290 = vmax.f32 %v3071, %v3072
      %3291 = vmax.xlane.f32.xlu0 %v3290
      %v3292 = vpop.xlane.xlu0 %3291
      %v3293 = vmax.f32 %v3073, %v3074
      %3294 = vmax.xlane.f32.xlu0 %v3293
      %v3295 = vpop.xlane.xlu0 %3294
      %v3296 = vmax.f32 %v3075, %v3076
      %3297 = vmax.xlane.f32.xlu0 %v3296
      %v3298 = vpop.xlane.xlu0 %3297
      %v3299 = vmax.f32 %v3077, %v3078
      %3300 = vmax.xlane.f32.xlu0 %v3299
      %v3301 = vpop.xlane.xlu0 %3300
      %v3302 = vmax.f32 %v3079, %v3080
      %3303 = vmax.xlane.f32.xlu0 %v3302
      %v3304 = vpop.xlane.xlu0 %3303
      %v3305 = vmax.f32 %v3081, %v3082
      %3306 = vmax.xlane.f32.xlu0 %v3305
      %v3307 = vpop.xlane.xlu0 %3306
      %v3308 = vmax.f32 %v3083, %v3084
      %3309 = vmax.xlane.f32.xlu0 %v3308
      %v3310 = vpop.xlane.xlu0 %3309
      %v3311 = vmax.f32 %v3085, %v3086
      %3312 = vmax.xlane.f32.xlu0 %v3311
      %v3313 = vpop.xlane.xlu0 %3312
      %v3314 = vmax.f32 %v3087, %v3088
      %3315 = vmax.xlane.f32.xlu0 %v3314
      %v3316 = vpop.xlane.xlu0 %3315
      %v3317 = vmax.f32 %v3089, %v3090
      %3318 = vmax.xlane.f32.xlu0 %v3317
      %v3319 = vpop.xlane.xlu0 %3318
      %v3320 = vmax.f32 %v3091, %v3092
      %3321 = vmax.xlane.f32.xlu0 %v3320
      %v3322 = vpop.xlane.xlu0 %3321
      %v3323 = vmax.f32 %v3093, %v3094
      %3324 = vmax.xlane.f32.xlu0 %v3323
      %v3325 = vpop.xlane.xlu0 %3324
      %v3326 = vmax.f32 %v3095, %v3096
      %3327 = vmax.xlane.f32.xlu0 %v3326
      %v3328 = vpop.xlane.xlu0 %3327
      %v3329 = vmax.f32 %v3097, %v3098
      %3330 = vmax.xlane.f32.xlu0 %v3329
      %v3331 = vpop.xlane.xlu0 %3330
      %v3332 = vmax.f32 %v3099, %v3100
      %3333 = vmax.xlane.f32.xlu0 %v3332
      %v3334 = vpop.xlane.xlu0 %3333
      %v3335 = vmax.f32 %v3101, %v3102
      %3336 = vmax.xlane.f32.xlu0 %v3335
      %v3337 = vpop.xlane.xlu0 %3336
      %v3338 = vmax.f32 %v3103, %v3104
      %3339 = vmax.xlane.f32.xlu0 %v3338
      %v3340 = vpop.xlane.xlu0 %3339
      %v3341 = vmax.f32 %v3105, %v3106
      %3342 = vmax.xlane.f32.xlu0 %v3341
      %v3343 = vpop.xlane.xlu0 %3342
      %v3344 = vmax.f32 %v3107, %v3108
      %3345 = vmax.xlane.f32.xlu0 %v3344
      %v3346 = vpop.xlane.xlu0 %3345
      %v3347 = vmax.f32 %v3109, %v3110
      %3348 = vmax.xlane.f32.xlu0 %v3347
      %v3349 = vpop.xlane.xlu0 %3348
      %v3350 = vmax.f32 %v3111, %v3112
      %3351 = vmax.xlane.f32.xlu0 %v3350
      %v3352 = vpop.xlane.xlu0 %3351
      %v3353 = vmax.f32 %v3113, %v3114
      %3354 = vmax.xlane.f32.xlu0 %v3353
      %v3355 = vpop.xlane.xlu0 %3354
      %v3356 = vmax.f32 %v3115, %v3116
      %3357 = vmax.xlane.f32.xlu0 %v3356
      %v3358 = vpop.xlane.xlu0 %3357
      %v3359 = vmax.f32 %v3117, %v3118
      %3360 = vmax.xlane.f32.xlu0 %v3359
      %v3361 = vpop.xlane.xlu0 %3360
      %v3362 = vmax.f32 %v3119, %v3120
      %3363 = vmax.xlane.f32.xlu0 %v3362
      %v3364 = vpop.xlane.xlu0 %3363
      %v3365 = vmax.f32 %v3121, %v3122
      %3366 = vmax.xlane.f32.xlu0 %v3365
      %v3367 = vpop.xlane.xlu0 %3366
      %v3368 = vmax.f32 %v3123, %v3124
      %3369 = vmax.xlane.f32.xlu0 %v3368
      %v3370 = vpop.xlane.xlu0 %3369
      %v3371 = vmax.f32 %v3125, %v3126
      %3372 = vmax.xlane.f32.xlu0 %v3371
      %v3373 = vpop.xlane.xlu0 %3372
      %v3374 = vmax.f32 %v3127, %v3128
      %3375 = vmax.xlane.f32.xlu0 %v3374
      %v3376 = vpop.xlane.xlu0 %3375
      %v3377 = vmax.f32 %v3129, %v3130
      %3378 = vmax.xlane.f32.xlu0 %v3377
      %v3379 = vpop.xlane.xlu0 %3378
      %v3380 = vmax.f32 %v3131, %v3132
      %3381 = vmax.xlane.f32.xlu0 %v3380
      %v3382 = vpop.xlane.xlu0 %3381
      %v3383 = vmax.f32 %v3133, %v3134
      %3384 = vmax.xlane.f32.xlu0 %v3383
      %v3385 = vpop.xlane.xlu0 %3384
      %v3386 = vmax.f32 %v3135, %v3136
      %3387 = vmax.xlane.f32.xlu0 %v3386
      %v3388 = vpop.xlane.xlu0 %3387
      %v3389 = vmax.f32 %v3137, %v3138
      %3390 = vmax.xlane.f32.xlu0 %v3389
      %v3391 = vpop.xlane.xlu0 %3390
      %v3392 = vmax.f32 %v3139, %v3140
      %3393 = vmax.xlane.f32.xlu0 %v3392
      %v3394 = vpop.xlane.xlu0 %3393
      %v3395 = vmax.f32 %v3141, %v3142
      %3396 = vmax.xlane.f32.xlu0 %v3395
      %v3397 = vpop.xlane.xlu0 %3396
      %v3398 = vmax.f32 %v3143, %v3144
      %3399 = vmax.xlane.f32.xlu0 %v3398
      %v3400 = vpop.xlane.xlu0 %3399
      %v3401 = vmax.f32 %v3211, %v3145
      %v3402 = vmax.f32 %v3214, %v3146
      %v3403 = vmax.f32 %v3217, %v3147
      %v3404 = vmax.f32 %v3220, %v3148
      %v3405 = vmax.f32 %v3223, %v3149
      %v3406 = vmax.f32 %v3226, %v3150
      %v3407 = vmax.f32 %v3229, %v3151
      %v3408 = vmax.f32 %v3232, %v3152
      %v3409 = vmax.f32 %v3235, %v3153
      %v3410 = vmax.f32 %v3238, %v3154
      %v3411 = vmax.f32 %v3241, %v3155
      %v3412 = vmax.f32 %v3244, %v3156
      %v3413 = vmax.f32 %v3247, %v3157
      %v3414 = vmax.f32 %v3250, %v3158
      %v3415 = vmax.f32 %v3253, %v3159
      %v3416 = vmax.f32 %v3256, %v3160
      %v3417 = vmax.f32 %v3259, %v3161
      %v3418 = vmax.f32 %v3262, %v3162
      %v3419 = vmax.f32 %v3265, %v3163
      %v3420 = vmax.f32 %v3268, %v3164
      %v3421 = vmax.f32 %v3271, %v3165
      %v3422 = vmax.f32 %v3274, %v3166
      %v3423 = vmax.f32 %v3277, %v3167
      %v3424 = vmax.f32 %v3280, %v3168
      %v3425 = vmax.f32 %v3283, %v3169
      %v3426 = vmax.f32 %v3286, %v3170
      %v3427 = vmax.f32 %v3289, %v3171
      %v3428 = vmax.f32 %v3292, %v3172
      %v3429 = vmax.f32 %v3295, %v3173
      %v3430 = vmax.f32 %v3298, %v3174
      %v3431 = vmax.f32 %v3301, %v3175
      %v3432 = vmax.f32 %v3304, %v3176
      %v3433 = vmax.f32 %v3307, %v3177
      %v3434 = vmax.f32 %v3310, %v3178
      %v3435 = vmax.f32 %v3313, %v3179
      %v3436 = vmax.f32 %v3316, %v3180
      %v3437 = vmax.f32 %v3319, %v3181
      %v3438 = vmax.f32 %v3322, %v3182
      %v3439 = vmax.f32 %v3325, %v3183
      %v3440 = vmax.f32 %v3328, %v3184
      %v3441 = vmax.f32 %v3331, %v3185
      %v3442 = vmax.f32 %v3334, %v3186
      %v3443 = vmax.f32 %v3337, %v3187
      %v3444 = vmax.f32 %v3340, %v3188
      %v3445 = vmax.f32 %v3343, %v3189
      %v3446 = vmax.f32 %v3346, %v3190
      %v3447 = vmax.f32 %v3349, %v3191
      %v3448 = vmax.f32 %v3352, %v3192
      %v3449 = vmax.f32 %v3355, %v3193
      %v3450 = vmax.f32 %v3358, %v3194
      %v3451 = vmax.f32 %v3361, %v3195
      %v3452 = vmax.f32 %v3364, %v3196
      %v3453 = vmax.f32 %v3367, %v3197
      %v3454 = vmax.f32 %v3370, %v3198
      %v3455 = vmax.f32 %v3373, %v3199
      %v3456 = vmax.f32 %v3376, %v3200
      %v3457 = vmax.f32 %v3379, %v3201
      %v3458 = vmax.f32 %v3382, %v3202
      %v3459 = vmax.f32 %v3385, %v3203
      %v3460 = vmax.f32 %v3388, %v3204
      %v3461 = vmax.f32 %v3391, %v3205
      %v3462 = vmax.f32 %v3394, %v3206
      %v3463 = vmax.f32 %v3397, %v3207
      %v3464 = vmax.f32 %v3400, %v3208
      %3466 = vset.pattern.permute.xlu0 0
      %3467 = vperm.xlu0 %3466, %v3401
      %v3468 = vpop.permute.xlu0 %3467
      %3471 = vset.pattern.permute.xlu0 0
      %3472 = vperm.xlu0 %3471, %v3402
      %v3473 = vpop.permute.xlu0 %3472
      %3476 = vset.pattern.permute.xlu0 0
      %3477 = vperm.xlu0 %3476, %v3403
      %v3478 = vpop.permute.xlu0 %3477
      %3481 = vset.pattern.permute.xlu0 0
      %3482 = vperm.xlu0 %3481, %v3404
      %v3483 = vpop.permute.xlu0 %3482
      %3486 = vset.pattern.permute.xlu0 0
      %3487 = vperm.xlu0 %3486, %v3405
      %v3488 = vpop.permute.xlu0 %3487
      %3491 = vset.pattern.permute.xlu0 0
      %3492 = vperm.xlu0 %3491, %v3406
      %v3493 = vpop.permute.xlu0 %3492
      %3496 = vset.pattern.permute.xlu0 0
      %3497 = vperm.xlu0 %3496, %v3407
      %v3498 = vpop.permute.xlu0 %3497
      %3501 = vset.pattern.permute.xlu0 0
      %3502 = vperm.xlu0 %3501, %v3408
      %v3503 = vpop.permute.xlu0 %3502
      %3506 = vset.pattern.permute.xlu0 0
      %3507 = vperm.xlu0 %3506, %v3409
      %v3508 = vpop.permute.xlu0 %3507
      %3511 = vset.pattern.permute.xlu0 0
      %3512 = vperm.xlu0 %3511, %v3410
      %v3513 = vpop.permute.xlu0 %3512
      %3516 = vset.pattern.permute.xlu0 0
      %3517 = vperm.xlu0 %3516, %v3411
      %v3518 = vpop.permute.xlu0 %3517
      %3521 = vset.pattern.permute.xlu0 0
      %3522 = vperm.xlu0 %3521, %v3412
      %v3523 = vpop.permute.xlu0 %3522
      %3526 = vset.pattern.permute.xlu0 0
      %3527 = vperm.xlu0 %3526, %v3413
      %v3528 = vpop.permute.xlu0 %3527
      %3531 = vset.pattern.permute.xlu0 0
      %3532 = vperm.xlu0 %3531, %v3414
      %v3533 = vpop.permute.xlu0 %3532
      %3536 = vset.pattern.permute.xlu0 0
      %3537 = vperm.xlu0 %3536, %v3415
      %v3538 = vpop.permute.xlu0 %3537
      %3541 = vset.pattern.permute.xlu0 0
      %3542 = vperm.xlu0 %3541, %v3416
      %v3543 = vpop.permute.xlu0 %3542
      %3546 = vset.pattern.permute.xlu0 0
      %3547 = vperm.xlu0 %3546, %v3417
      %v3548 = vpop.permute.xlu0 %3547
      %3551 = vset.pattern.permute.xlu0 0
      %3552 = vperm.xlu0 %3551, %v3418
      %v3553 = vpop.permute.xlu0 %3552
      %3556 = vset.pattern.permute.xlu0 0
      %3557 = vperm.xlu0 %3556, %v3419
      %v3558 = vpop.permute.xlu0 %3557
      %3561 = vset.pattern.permute.xlu0 0
      %3562 = vperm.xlu0 %3561, %v3420
      %v3563 = vpop.permute.xlu0 %3562
      %3566 = vset.pattern.permute.xlu0 0
      %3567 = vperm.xlu0 %3566, %v3421
      %v3568 = vpop.permute.xlu0 %3567
      %3571 = vset.pattern.permute.xlu0 0
      %3572 = vperm.xlu0 %3571, %v3422
      %v3573 = vpop.permute.xlu0 %3572
      %3576 = vset.pattern.permute.xlu0 0
      %3577 = vperm.xlu0 %3576, %v3423
      %v3578 = vpop.permute.xlu0 %3577
      %3581 = vset.pattern.permute.xlu0 0
      %3582 = vperm.xlu0 %3581, %v3424
      %v3583 = vpop.permute.xlu0 %3582
      %3586 = vset.pattern.permute.xlu0 0
      %3587 = vperm.xlu0 %3586, %v3425
      %v3588 = vpop.permute.xlu0 %3587
      %3591 = vset.pattern.permute.xlu0 0
      %3592 = vperm.xlu0 %3591, %v3426
      %v3593 = vpop.permute.xlu0 %3592
      %3596 = vset.pattern.permute.xlu0 0
      %3597 = vperm.xlu0 %3596, %v3427
      %v3598 = vpop.permute.xlu0 %3597
      %3601 = vset.pattern.permute.xlu0 0
      %3602 = vperm.xlu0 %3601, %v3428
      %v3603 = vpop.permute.xlu0 %3602
      %3606 = vset.pattern.permute.xlu0 0
      %3607 = vperm.xlu0 %3606, %v3429
      %v3608 = vpop.permute.xlu0 %3607
      %3611 = vset.pattern.permute.xlu0 0
      %3612 = vperm.xlu0 %3611, %v3430
      %v3613 = vpop.permute.xlu0 %3612
      %3616 = vset.pattern.permute.xlu0 0
      %3617 = vperm.xlu0 %3616, %v3431
      %v3618 = vpop.permute.xlu0 %3617
      %3621 = vset.pattern.permute.xlu0 0
      %3622 = vperm.xlu0 %3621, %v3432
      %v3623 = vpop.permute.xlu0 %3622
      %3626 = vset.pattern.permute.xlu0 0
      %3627 = vperm.xlu0 %3626, %v3433
      %v3628 = vpop.permute.xlu0 %3627
      %3631 = vset.pattern.permute.xlu0 0
      %3632 = vperm.xlu0 %3631, %v3434
      %v3633 = vpop.permute.xlu0 %3632
      %3636 = vset.pattern.permute.xlu0 0
      %3637 = vperm.xlu0 %3636, %v3435
      %v3638 = vpop.permute.xlu0 %3637
      %3641 = vset.pattern.permute.xlu0 0
      %3642 = vperm.xlu0 %3641, %v3436
      %v3643 = vpop.permute.xlu0 %3642
      %3646 = vset.pattern.permute.xlu0 0
      %3647 = vperm.xlu0 %3646, %v3437
      %v3648 = vpop.permute.xlu0 %3647
      %3651 = vset.pattern.permute.xlu0 0
      %3652 = vperm.xlu0 %3651, %v3438
      %v3653 = vpop.permute.xlu0 %3652
      %3656 = vset.pattern.permute.xlu0 0
      %3657 = vperm.xlu0 %3656, %v3439
      %v3658 = vpop.permute.xlu0 %3657
      %3661 = vset.pattern.permute.xlu0 0
      %3662 = vperm.xlu0 %3661, %v3440
      %v3663 = vpop.permute.xlu0 %3662
      %3666 = vset.pattern.permute.xlu0 0
      %3667 = vperm.xlu0 %3666, %v3441
      %v3668 = vpop.permute.xlu0 %3667
      %3671 = vset.pattern.permute.xlu0 0
      %3672 = vperm.xlu0 %3671, %v3442
      %v3673 = vpop.permute.xlu0 %3672
      %3676 = vset.pattern.permute.xlu0 0
      %3677 = vperm.xlu0 %3676, %v3443
      %v3678 = vpop.permute.xlu0 %3677
      %3681 = vset.pattern.permute.xlu0 0
      %3682 = vperm.xlu0 %3681, %v3444
      %v3683 = vpop.permute.xlu0 %3682
      %3686 = vset.pattern.permute.xlu0 0
      %3687 = vperm.xlu0 %3686, %v3445
      %v3688 = vpop.permute.xlu0 %3687
      %3691 = vset.pattern.permute.xlu0 0
      %3692 = vperm.xlu0 %3691, %v3446
      %v3693 = vpop.permute.xlu0 %3692
      %3696 = vset.pattern.permute.xlu0 0
      %3697 = vperm.xlu0 %3696, %v3447
      %v3698 = vpop.permute.xlu0 %3697
      %3701 = vset.pattern.permute.xlu0 0
      %3702 = vperm.xlu0 %3701, %v3448
      %v3703 = vpop.permute.xlu0 %3702
      %3706 = vset.pattern.permute.xlu0 0
      %3707 = vperm.xlu0 %3706, %v3449
      %v3708 = vpop.permute.xlu0 %3707
      %3711 = vset.pattern.permute.xlu0 0
      %3712 = vperm.xlu0 %3711, %v3450
      %v3713 = vpop.permute.xlu0 %3712
      %3716 = vset.pattern.permute.xlu0 0
      %3717 = vperm.xlu0 %3716, %v3451
      %v3718 = vpop.permute.xlu0 %3717
      %3721 = vset.pattern.permute.xlu0 0
      %3722 = vperm.xlu0 %3721, %v3452
      %v3723 = vpop.permute.xlu0 %3722
      %3726 = vset.pattern.permute.xlu0 0
      %3727 = vperm.xlu0 %3726, %v3453
      %v3728 = vpop.permute.xlu0 %3727
      %3731 = vset.pattern.permute.xlu0 0
      %3732 = vperm.xlu0 %3731, %v3454
      %v3733 = vpop.permute.xlu0 %3732
      %3736 = vset.pattern.permute.xlu0 0
      %3737 = vperm.xlu0 %3736, %v3455
      %v3738 = vpop.permute.xlu0 %3737
      %3741 = vset.pattern.permute.xlu0 0
      %3742 = vperm.xlu0 %3741, %v3456
      %v3743 = vpop.permute.xlu0 %3742
      %3746 = vset.pattern.permute.xlu0 0
      %3747 = vperm.xlu0 %3746, %v3457
      %v3748 = vpop.permute.xlu0 %3747
      %3751 = vset.pattern.permute.xlu0 0
      %3752 = vperm.xlu0 %3751, %v3458
      %v3753 = vpop.permute.xlu0 %3752
      %3756 = vset.pattern.permute.xlu0 0
      %3757 = vperm.xlu0 %3756, %v3459
      %v3758 = vpop.permute.xlu0 %3757
      %3761 = vset.pattern.permute.xlu0 0
      %3762 = vperm.xlu0 %3761, %v3460
      %v3763 = vpop.permute.xlu0 %3762
      %3766 = vset.pattern.permute.xlu0 0
      %3767 = vperm.xlu0 %3766, %v3461
      %v3768 = vpop.permute.xlu0 %3767
      %3771 = vset.pattern.permute.xlu0 0
      %3772 = vperm.xlu0 %3771, %v3462
      %v3773 = vpop.permute.xlu0 %3772
      %3776 = vset.pattern.permute.xlu0 0
      %3777 = vperm.xlu0 %3776, %v3463
      %v3778 = vpop.permute.xlu0 %3777
      %3781 = vset.pattern.permute.xlu0 0
      %3782 = vperm.xlu0 %3781, %v3464
      %v3783 = vpop.permute.xlu0 %3782
      %v3785 = vsub.f32 %v3017, %v3468
      %v3786 = vsub.f32 %v3018, %v3468
      %v3787 = vsub.f32 %v3019, %v3473
      %v3788 = vsub.f32 %v3020, %v3473
      %v3789 = vsub.f32 %v3021, %v3478
      %v3790 = vsub.f32 %v3022, %v3478
      %v3791 = vsub.f32 %v3023, %v3483
      %v3792 = vsub.f32 %v3024, %v3483
      %v3793 = vsub.f32 %v3025, %v3488
      %v3794 = vsub.f32 %v3026, %v3488
      %v3795 = vsub.f32 %v3027, %v3493
      %v3796 = vsub.f32 %v3028, %v3493
      %v3797 = vsub.f32 %v3029, %v3498
      %v3798 = vsub.f32 %v3030, %v3498
      %v3799 = vsub.f32 %v3031, %v3503
      %v3800 = vsub.f32 %v3032, %v3503
      %v3801 = vsub.f32 %v3033, %v3508
      %v3802 = vsub.f32 %v3034, %v3508
      %v3803 = vsub.f32 %v3035, %v3513
      %v3804 = vsub.f32 %v3036, %v3513
      %v3805 = vsub.f32 %v3037, %v3518
      %v3806 = vsub.f32 %v3038, %v3518
      %v3807 = vsub.f32 %v3039, %v3523
      %v3808 = vsub.f32 %v3040, %v3523
      %v3809 = vsub.f32 %v3041, %v3528
      %v3810 = vsub.f32 %v3042, %v3528
      %v3811 = vsub.f32 %v3043, %v3533
      %v3812 = vsub.f32 %v3044, %v3533
      %v3813 = vsub.f32 %v3045, %v3538
      %v3814 = vsub.f32 %v3046, %v3538
      %v3815 = vsub.f32 %v3047, %v3543
      %v3816 = vsub.f32 %v3048, %v3543
      %v3817 = vsub.f32 %v3049, %v3548
      %v3818 = vsub.f32 %v3050, %v3548
      %v3819 = vsub.f32 %v3051, %v3553
      %v3820 = vsub.f32 %v3052, %v3553
      %v3821 = vsub.f32 %v3053, %v3558
      %v3822 = vsub.f32 %v3054, %v3558
      %v3823 = vsub.f32 %v3055, %v3563
      %v3824 = vsub.f32 %v3056, %v3563
      %v3825 = vsub.f32 %v3057, %v3568
      %v3826 = vsub.f32 %v3058, %v3568
      %v3827 = vsub.f32 %v3059, %v3573
      %v3828 = vsub.f32 %v3060, %v3573
      %v3829 = vsub.f32 %v3061, %v3578
      %v3830 = vsub.f32 %v3062, %v3578
      %v3831 = vsub.f32 %v3063, %v3583
      %v3832 = vsub.f32 %v3064, %v3583
      %v3833 = vsub.f32 %v3065, %v3588
      %v3834 = vsub.f32 %v3066, %v3588
      %v3835 = vsub.f32 %v3067, %v3593
      %v3836 = vsub.f32 %v3068, %v3593
      %v3837 = vsub.f32 %v3069, %v3598
      %v3838 = vsub.f32 %v3070, %v3598
      %v3839 = vsub.f32 %v3071, %v3603
      %v3840 = vsub.f32 %v3072, %v3603
      %v3841 = vsub.f32 %v3073, %v3608
      %v3842 = vsub.f32 %v3074, %v3608
      %v3843 = vsub.f32 %v3075, %v3613
      %v3844 = vsub.f32 %v3076, %v3613
      %v3845 = vsub.f32 %v3077, %v3618
      %v3846 = vsub.f32 %v3078, %v3618
      %v3847 = vsub.f32 %v3079, %v3623
      %v3848 = vsub.f32 %v3080, %v3623
      %v3849 = vsub.f32 %v3081, %v3628
      %v3850 = vsub.f32 %v3082, %v3628
      %v3851 = vsub.f32 %v3083, %v3633
      %v3852 = vsub.f32 %v3084, %v3633
      %v3853 = vsub.f32 %v3085, %v3638
      %v3854 = vsub.f32 %v3086, %v3638
      %v3855 = vsub.f32 %v3087, %v3643
      %v3856 = vsub.f32 %v3088, %v3643
      %v3857 = vsub.f32 %v3089, %v3648
      %v3858 = vsub.f32 %v3090, %v3648
      %v3859 = vsub.f32 %v3091, %v3653
      %v3860 = vsub.f32 %v3092, %v3653
      %v3861 = vsub.f32 %v3093, %v3658
      %v3862 = vsub.f32 %v3094, %v3658
      %v3863 = vsub.f32 %v3095, %v3663
      %v3864 = vsub.f32 %v3096, %v3663
      %v3865 = vsub.f32 %v3097, %v3668
      %v3866 = vsub.f32 %v3098, %v3668
      %v3867 = vsub.f32 %v3099, %v3673
      %v3868 = vsub.f32 %v3100, %v3673
      %v3869 = vsub.f32 %v3101, %v3678
      %v3870 = vsub.f32 %v3102, %v3678
      %v3871 = vsub.f32 %v3103, %v3683
      %v3872 = vsub.f32 %v3104, %v3683
      %v3873 = vsub.f32 %v3105, %v3688
      %v3874 = vsub.f32 %v3106, %v3688
      %v3875 = vsub.f32 %v3107, %v3693
      %v3876 = vsub.f32 %v3108, %v3693
      %v3877 = vsub.f32 %v3109, %v3698
      %v3878 = vsub.f32 %v3110, %v3698
      %v3879 = vsub.f32 %v3111, %v3703
      %v3880 = vsub.f32 %v3112, %v3703
      %v3881 = vsub.f32 %v3113, %v3708
      %v3882 = vsub.f32 %v3114, %v3708
      %v3883 = vsub.f32 %v3115, %v3713
      %v3884 = vsub.f32 %v3116, %v3713
      %v3885 = vsub.f32 %v3117, %v3718
      %v3886 = vsub.f32 %v3118, %v3718
      %v3887 = vsub.f32 %v3119, %v3723
      %v3888 = vsub.f32 %v3120, %v3723
      %v3889 = vsub.f32 %v3121, %v3728
      %v3890 = vsub.f32 %v3122, %v3728
      %v3891 = vsub.f32 %v3123, %v3733
      %v3892 = vsub.f32 %v3124, %v3733
      %v3893 = vsub.f32 %v3125, %v3738
      %v3894 = vsub.f32 %v3126, %v3738
      %v3895 = vsub.f32 %v3127, %v3743
      %v3896 = vsub.f32 %v3128, %v3743
      %v3897 = vsub.f32 %v3129, %v3748
      %v3898 = vsub.f32 %v3130, %v3748
      %v3899 = vsub.f32 %v3131, %v3753
      %v3900 = vsub.f32 %v3132, %v3753
      %v3901 = vsub.f32 %v3133, %v3758
      %v3902 = vsub.f32 %v3134, %v3758
      %v3903 = vsub.f32 %v3135, %v3763
      %v3904 = vsub.f32 %v3136, %v3763
      %v3905 = vsub.f32 %v3137, %v3768
      %v3906 = vsub.f32 %v3138, %v3768
      %v3907 = vsub.f32 %v3139, %v3773
      %v3908 = vsub.f32 %v3140, %v3773
      %v3909 = vsub.f32 %v3141, %v3778
      %v3910 = vsub.f32 %v3142, %v3778
      %v3911 = vsub.f32 %v3143, %v3783
      %v3912 = vsub.f32 %v3144, %v3783
      %v3913 = vmul.f32 %v3785, 1.442695
      %v3914 = vpow.pop %v3913
      %v3915 = vmul.f32 %v3786, 1.442695
      %v3916 = vpow.pop %v3915
      %v3917 = vmul.f32 %v3787, 1.442695
      %v3918 = vpow.pop %v3917
      %v3919 = vmul.f32 %v3788, 1.442695
      %v3920 = vpow.pop %v3919
      %v3921 = vmul.f32 %v3789, 1.442695
      %v3922 = vpow.pop %v3921
      %v3923 = vmul.f32 %v3790, 1.442695
      %v3924 = vpow.pop %v3923
      %v3925 = vmul.f32 %v3791, 1.442695
      %v3926 = vpow.pop %v3925
      %v3927 = vmul.f32 %v3792, 1.442695
      %v3928 = vpow.pop %v3927
      %v3929 = vmul.f32 %v3793, 1.442695
      %v3930 = vpow.pop %v3929
      %v3931 = vmul.f32 %v3794, 1.442695
      %v3932 = vpow.pop %v3931
      %v3933 = vmul.f32 %v3795, 1.442695
      %v3934 = vpow.pop %v3933
      %v3935 = vmul.f32 %v3796, 1.442695
      %v3936 = vpow.pop %v3935
      %v3937 = vmul.f32 %v3797, 1.442695
      %v3938 = vpow.pop %v3937
      %v3939 = vmul.f32 %v3798, 1.442695
      %v3940 = vpow.pop %v3939
      %v3941 = vmul.f32 %v3799, 1.442695
      %v3942 = vpow.pop %v3941
      %v3943 = vmul.f32 %v3800, 1.442695
      %v3944 = vpow.pop %v3943
      %v3945 = vmul.f32 %v3801, 1.442695
      %v3946 = vpow.pop %v3945
      %v3947 = vmul.f32 %v3802, 1.442695
      %v3948 = vpow.pop %v3947
      %v3949 = vmul.f32 %v3803, 1.442695
      %v3950 = vpow.pop %v3949
      %v3951 = vmul.f32 %v3804, 1.442695
      %v3952 = vpow.pop %v3951
      %v3953 = vmul.f32 %v3805, 1.442695
      %v3954 = vpow.pop %v3953
      %v3955 = vmul.f32 %v3806, 1.442695
      %v3956 = vpow.pop %v3955
      %v3957 = vmul.f32 %v3807, 1.442695
      %v3958 = vpow.pop %v3957
      %v3959 = vmul.f32 %v3808, 1.442695
      %v3960 = vpow.pop %v3959
      %v3961 = vmul.f32 %v3809, 1.442695
      %v3962 = vpow.pop %v3961
      %v3963 = vmul.f32 %v3810, 1.442695
      %v3964 = vpow.pop %v3963
      %v3965 = vmul.f32 %v3811, 1.442695
      %v3966 = vpow.pop %v3965
      %v3967 = vmul.f32 %v3812, 1.442695
      %v3968 = vpow.pop %v3967
      %v3969 = vmul.f32 %v3813, 1.442695
      %v3970 = vpow.pop %v3969
      %v3971 = vmul.f32 %v3814, 1.442695
      %v3972 = vpow.pop %v3971
      %v3973 = vmul.f32 %v3815, 1.442695
      %v3974 = vpow.pop %v3973
      %v3975 = vmul.f32 %v3816, 1.442695
      %v3976 = vpow.pop %v3975
      %v3977 = vmul.f32 %v3817, 1.442695
      %v3978 = vpow.pop %v3977
      %v3979 = vmul.f32 %v3818, 1.442695
      %v3980 = vpow.pop %v3979
      %v3981 = vmul.f32 %v3819, 1.442695
      %v3982 = vpow.pop %v3981
      %v3983 = vmul.f32 %v3820, 1.442695
      %v3984 = vpow.pop %v3983
      %v3985 = vmul.f32 %v3821, 1.442695
      %v3986 = vpow.pop %v3985
      %v3987 = vmul.f32 %v3822, 1.442695
      %v3988 = vpow.pop %v3987
      %v3989 = vmul.f32 %v3823, 1.442695
      %v3990 = vpow.pop %v3989
      %v3991 = vmul.f32 %v3824, 1.442695
      %v3992 = vpow.pop %v3991
      %v3993 = vmul.f32 %v3825, 1.442695
      %v3994 = vpow.pop %v3993
      %v3995 = vmul.f32 %v3826, 1.442695
      %v3996 = vpow.pop %v3995
      %v3997 = vmul.f32 %v3827, 1.442695
      %v3998 = vpow.pop %v3997
      %v3999 = vmul.f32 %v3828, 1.442695
      %v4000 = vpow.pop %v3999
      %v4001 = vmul.f32 %v3829, 1.442695
      %v4002 = vpow.pop %v4001
      %v4003 = vmul.f32 %v3830, 1.442695
      %v4004 = vpow.pop %v4003
      %v4005 = vmul.f32 %v3831, 1.442695
      %v4006 = vpow.pop %v4005
      %v4007 = vmul.f32 %v3832, 1.442695
      %v4008 = vpow.pop %v4007
      %v4009 = vmul.f32 %v3833, 1.442695
      %v4010 = vpow.pop %v4009
      %v4011 = vmul.f32 %v3834, 1.442695
      %v4012 = vpow.pop %v4011
      %v4013 = vmul.f32 %v3835, 1.442695
      %v4014 = vpow.pop %v4013
      %v4015 = vmul.f32 %v3836, 1.442695
      %v4016 = vpow.pop %v4015
      %v4017 = vmul.f32 %v3837, 1.442695
      %v4018 = vpow.pop %v4017
      %v4019 = vmul.f32 %v3838, 1.442695
      %v4020 = vpow.pop %v4019
      %v4021 = vmul.f32 %v3839, 1.442695
      %v4022 = vpow.pop %v4021
      %v4023 = vmul.f32 %v3840, 1.442695
      %v4024 = vpow.pop %v4023
      %v4025 = vmul.f32 %v3841, 1.442695
      %v4026 = vpow.pop %v4025
      %v4027 = vmul.f32 %v3842, 1.442695
      %v4028 = vpow.pop %v4027
      %v4029 = vmul.f32 %v3843, 1.442695
      %v4030 = vpow.pop %v4029
      %v4031 = vmul.f32 %v3844, 1.442695
      %v4032 = vpow.pop %v4031
      %v4033 = vmul.f32 %v3845, 1.442695
      %v4034 = vpow.pop %v4033
      %v4035 = vmul.f32 %v3846, 1.442695
      %v4036 = vpow.pop %v4035
      %v4037 = vmul.f32 %v3847, 1.442695
      %v4038 = vpow.pop %v4037
      %v4039 = vmul.f32 %v3848, 1.442695
      %v4040 = vpow.pop %v4039
      %v4041 = vmul.f32 %v3849, 1.442695
      %v4042 = vpow.pop %v4041
      %v4043 = vmul.f32 %v3850, 1.442695
      %v4044 = vpow.pop %v4043
      %v4045 = vmul.f32 %v3851, 1.442695
      %v4046 = vpow.pop %v4045
      %v4047 = vmul.f32 %v3852, 1.442695
      %v4048 = vpow.pop %v4047
      %v4049 = vmul.f32 %v3853, 1.442695
      %v4050 = vpow.pop %v4049
      %v4051 = vmul.f32 %v3854, 1.442695
      %v4052 = vpow.pop %v4051
      %v4053 = vmul.f32 %v3855, 1.442695
      %v4054 = vpow.pop %v4053
      %v4055 = vmul.f32 %v3856, 1.442695
      %v4056 = vpow.pop %v4055
      %v4057 = vmul.f32 %v3857, 1.442695
      %v4058 = vpow.pop %v4057
      %v4059 = vmul.f32 %v3858, 1.442695
      %v4060 = vpow.pop %v4059
      %v4061 = vmul.f32 %v3859, 1.442695
      %v4062 = vpow.pop %v4061
      %v4063 = vmul.f32 %v3860, 1.442695
      %v4064 = vpow.pop %v4063
      %v4065 = vmul.f32 %v3861, 1.442695
      %v4066 = vpow.pop %v4065
      %v4067 = vmul.f32 %v3862, 1.442695
      %v4068 = vpow.pop %v4067
      %v4069 = vmul.f32 %v3863, 1.442695
      %v4070 = vpow.pop %v4069
      %v4071 = vmul.f32 %v3864, 1.442695
      %v4072 = vpow.pop %v4071
      %v4073 = vmul.f32 %v3865, 1.442695
      %v4074 = vpow.pop %v4073
      %v4075 = vmul.f32 %v3866, 1.442695
      %v4076 = vpow.pop %v4075
      %v4077 = vmul.f32 %v3867, 1.442695
      %v4078 = vpow.pop %v4077
      %v4079 = vmul.f32 %v3868, 1.442695
      %v4080 = vpow.pop %v4079
      %v4081 = vmul.f32 %v3869, 1.442695
      %v4082 = vpow.pop %v4081
      %v4083 = vmul.f32 %v3870, 1.442695
      %v4084 = vpow.pop %v4083
      %v4085 = vmul.f32 %v3871, 1.442695
      %v4086 = vpow.pop %v4085
      %v4087 = vmul.f32 %v3872, 1.442695
      %v4088 = vpow.pop %v4087
      %v4089 = vmul.f32 %v3873, 1.442695
      %v4090 = vpow.pop %v4089
      %v4091 = vmul.f32 %v3874, 1.442695
      %v4092 = vpow.pop %v4091
      %v4093 = vmul.f32 %v3875, 1.442695
      %v4094 = vpow.pop %v4093
      %v4095 = vmul.f32 %v3876, 1.442695
      %v4096 = vpow.pop %v4095
      %v4097 = vmul.f32 %v3877, 1.442695
      %v4098 = vpow.pop %v4097
      %v4099 = vmul.f32 %v3878, 1.442695
      %v4100 = vpow.pop %v4099
      %v4101 = vmul.f32 %v3879, 1.442695
      %v4102 = vpow.pop %v4101
      %v4103 = vmul.f32 %v3880, 1.442695
      %v4104 = vpow.pop %v4103
      %v4105 = vmul.f32 %v3881, 1.442695
      %v4106 = vpow.pop %v4105
      %v4107 = vmul.f32 %v3882, 1.442695
      %v4108 = vpow.pop %v4107
      %v4109 = vmul.f32 %v3883, 1.442695
      %v4110 = vpow.pop %v4109
      %v4111 = vmul.f32 %v3884, 1.442695
      %v4112 = vpow.pop %v4111
      %v4113 = vmul.f32 %v3885, 1.442695
      %v4114 = vpow.pop %v4113
      %v4115 = vmul.f32 %v3886, 1.442695
      %v4116 = vpow.pop %v4115
      %v4117 = vmul.f32 %v3887, 1.442695
      %v4118 = vpow.pop %v4117
      %v4119 = vmul.f32 %v3888, 1.442695
      %v4120 = vpow.pop %v4119
      %v4121 = vmul.f32 %v3889, 1.442695
      %v4122 = vpow.pop %v4121
      %v4123 = vmul.f32 %v3890, 1.442695
      %v4124 = vpow.pop %v4123
      %v4125 = vmul.f32 %v3891, 1.442695
      %v4126 = vpow.pop %v4125
      %v4127 = vmul.f32 %v3892, 1.442695
      %v4128 = vpow.pop %v4127
      %v4129 = vmul.f32 %v3893, 1.442695
      %v4130 = vpow.pop %v4129
      %v4131 = vmul.f32 %v3894, 1.442695
      %v4132 = vpow.pop %v4131
      %v4133 = vmul.f32 %v3895, 1.442695
      %v4134 = vpow.pop %v4133
      %v4135 = vmul.f32 %v3896, 1.442695
      %v4136 = vpow.pop %v4135
      %v4137 = vmul.f32 %v3897, 1.442695
      %v4138 = vpow.pop %v4137
      %v4139 = vmul.f32 %v3898, 1.442695
      %v4140 = vpow.pop %v4139
      %v4141 = vmul.f32 %v3899, 1.442695
      %v4142 = vpow.pop %v4141
      %v4143 = vmul.f32 %v3900, 1.442695
      %v4144 = vpow.pop %v4143
      %v4145 = vmul.f32 %v3901, 1.442695
      %v4146 = vpow.pop %v4145
      %v4147 = vmul.f32 %v3902, 1.442695
      %v4148 = vpow.pop %v4147
      %v4149 = vmul.f32 %v3903, 1.442695
      %v4150 = vpow.pop %v4149
      %v4151 = vmul.f32 %v3904, 1.442695
      %v4152 = vpow.pop %v4151
      %v4153 = vmul.f32 %v3905, 1.442695
      %v4154 = vpow.pop %v4153
      %v4155 = vmul.f32 %v3906, 1.442695
      %v4156 = vpow.pop %v4155
      %v4157 = vmul.f32 %v3907, 1.442695
      %v4158 = vpow.pop %v4157
      %v4159 = vmul.f32 %v3908, 1.442695
      %v4160 = vpow.pop %v4159
      %v4161 = vmul.f32 %v3909, 1.442695
      %v4162 = vpow.pop %v4161
      %v4163 = vmul.f32 %v3910, 1.442695
      %v4164 = vpow.pop %v4163
      %v4165 = vmul.f32 %v3911, 1.442695
      %v4166 = vpow.pop %v4165
      %v4167 = vmul.f32 %v3912, 1.442695
      %v4168 = vpow.pop %v4167
      %v4169 = vsub.f32 %v3145, %v3401
      %v4170 = vsub.f32 %v3146, %v3402
      %v4171 = vsub.f32 %v3147, %v3403
      %v4172 = vsub.f32 %v3148, %v3404
      %v4173 = vsub.f32 %v3149, %v3405
      %v4174 = vsub.f32 %v3150, %v3406
      %v4175 = vsub.f32 %v3151, %v3407
      %v4176 = vsub.f32 %v3152, %v3408
      %v4177 = vsub.f32 %v3153, %v3409
      %v4178 = vsub.f32 %v3154, %v3410
      %v4179 = vsub.f32 %v3155, %v3411
      %v4180 = vsub.f32 %v3156, %v3412
      %v4181 = vsub.f32 %v3157, %v3413
      %v4182 = vsub.f32 %v3158, %v3414
      %v4183 = vsub.f32 %v3159, %v3415
      %v4184 = vsub.f32 %v3160, %v3416
      %v4185 = vsub.f32 %v3161, %v3417
      %v4186 = vsub.f32 %v3162, %v3418
      %v4187 = vsub.f32 %v3163, %v3419
      %v4188 = vsub.f32 %v3164, %v3420
      %v4189 = vsub.f32 %v3165, %v3421
      %v4190 = vsub.f32 %v3166, %v3422
      %v4191 = vsub.f32 %v3167, %v3423
      %v4192 = vsub.f32 %v3168, %v3424
      %v4193 = vsub.f32 %v3169, %v3425
      %v4194 = vsub.f32 %v3170, %v3426
      %v4195 = vsub.f32 %v3171, %v3427
      %v4196 = vsub.f32 %v3172, %v3428
      %v4197 = vsub.f32 %v3173, %v3429
      %v4198 = vsub.f32 %v3174, %v3430
      %v4199 = vsub.f32 %v3175, %v3431
      %v4200 = vsub.f32 %v3176, %v3432
      %v4201 = vsub.f32 %v3177, %v3433
      %v4202 = vsub.f32 %v3178, %v3434
      %v4203 = vsub.f32 %v3179, %v3435
      %v4204 = vsub.f32 %v3180, %v3436
      %v4205 = vsub.f32 %v3181, %v3437
      %v4206 = vsub.f32 %v3182, %v3438
      %v4207 = vsub.f32 %v3183, %v3439
      %v4208 = vsub.f32 %v3184, %v3440
      %v4209 = vsub.f32 %v3185, %v3441
      %v4210 = vsub.f32 %v3186, %v3442
      %v4211 = vsub.f32 %v3187, %v3443
      %v4212 = vsub.f32 %v3188, %v3444
      %v4213 = vsub.f32 %v3189, %v3445
      %v4214 = vsub.f32 %v3190, %v3446
      %v4215 = vsub.f32 %v3191, %v3447
      %v4216 = vsub.f32 %v3192, %v3448
      %v4217 = vsub.f32 %v3193, %v3449
      %v4218 = vsub.f32 %v3194, %v3450
      %v4219 = vsub.f32 %v3195, %v3451
      %v4220 = vsub.f32 %v3196, %v3452
      %v4221 = vsub.f32 %v3197, %v3453
      %v4222 = vsub.f32 %v3198, %v3454
      %v4223 = vsub.f32 %v3199, %v3455
      %v4224 = vsub.f32 %v3200, %v3456
      %v4225 = vsub.f32 %v3201, %v3457
      %v4226 = vsub.f32 %v3202, %v3458
      %v4227 = vsub.f32 %v3203, %v3459
      %v4228 = vsub.f32 %v3204, %v3460
      %v4229 = vsub.f32 %v3205, %v3461
      %v4230 = vsub.f32 %v3206, %v3462
      %v4231 = vsub.f32 %v3207, %v3463
      %v4232 = vsub.f32 %v3208, %v3464
      %v4233 = vmul.f32 %v4169, 1.442695
      %v4234 = vpow.pop %v4233
      %v4235 = vmul.f32 %v4170, 1.442695
      %v4236 = vpow.pop %v4235
      %v4237 = vmul.f32 %v4171, 1.442695
      %v4238 = vpow.pop %v4237
      %v4239 = vmul.f32 %v4172, 1.442695
      %v4240 = vpow.pop %v4239
      %v4241 = vmul.f32 %v4173, 1.442695
      %v4242 = vpow.pop %v4241
      %v4243 = vmul.f32 %v4174, 1.442695
      %v4244 = vpow.pop %v4243
      %v4245 = vmul.f32 %v4175, 1.442695
      %v4246 = vpow.pop %v4245
      %v4247 = vmul.f32 %v4176, 1.442695
      %v4248 = vpow.pop %v4247
      %v4249 = vmul.f32 %v4177, 1.442695
      %v4250 = vpow.pop %v4249
      %v4251 = vmul.f32 %v4178, 1.442695
      %v4252 = vpow.pop %v4251
      %v4253 = vmul.f32 %v4179, 1.442695
      %v4254 = vpow.pop %v4253
      %v4255 = vmul.f32 %v4180, 1.442695
      %v4256 = vpow.pop %v4255
      %v4257 = vmul.f32 %v4181, 1.442695
      %v4258 = vpow.pop %v4257
      %v4259 = vmul.f32 %v4182, 1.442695
      %v4260 = vpow.pop %v4259
      %v4261 = vmul.f32 %v4183, 1.442695
      %v4262 = vpow.pop %v4261
      %v4263 = vmul.f32 %v4184, 1.442695
      %v4264 = vpow.pop %v4263
      %v4265 = vmul.f32 %v4185, 1.442695
      %v4266 = vpow.pop %v4265
      %v4267 = vmul.f32 %v4186, 1.442695
      %v4268 = vpow.pop %v4267
      %v4269 = vmul.f32 %v4187, 1.442695
      %v4270 = vpow.pop %v4269
      %v4271 = vmul.f32 %v4188, 1.442695
      %v4272 = vpow.pop %v4271
      %v4273 = vmul.f32 %v4189, 1.442695
      %v4274 = vpow.pop %v4273
      %v4275 = vmul.f32 %v4190, 1.442695
      %v4276 = vpow.pop %v4275
      %v4277 = vmul.f32 %v4191, 1.442695
      %v4278 = vpow.pop %v4277
      %v4279 = vmul.f32 %v4192, 1.442695
      %v4280 = vpow.pop %v4279
      %v4281 = vmul.f32 %v4193, 1.442695
      %v4282 = vpow.pop %v4281
      %v4283 = vmul.f32 %v4194, 1.442695
      %v4284 = vpow.pop %v4283
      %v4285 = vmul.f32 %v4195, 1.442695
      %v4286 = vpow.pop %v4285
      %v4287 = vmul.f32 %v4196, 1.442695
      %v4288 = vpow.pop %v4287
      %v4289 = vmul.f32 %v4197, 1.442695
      %v4290 = vpow.pop %v4289
      %v4291 = vmul.f32 %v4198, 1.442695
      %v4292 = vpow.pop %v4291
      %v4293 = vmul.f32 %v4199, 1.442695
      %v4294 = vpow.pop %v4293
      %v4295 = vmul.f32 %v4200, 1.442695
      %v4296 = vpow.pop %v4295
      %v4297 = vmul.f32 %v4201, 1.442695
      %v4298 = vpow.pop %v4297
      %v4299 = vmul.f32 %v4202, 1.442695
      %v4300 = vpow.pop %v4299
      %v4301 = vmul.f32 %v4203, 1.442695
      %v4302 = vpow.pop %v4301
      %v4303 = vmul.f32 %v4204, 1.442695
      %v4304 = vpow.pop %v4303
      %v4305 = vmul.f32 %v4205, 1.442695
      %v4306 = vpow.pop %v4305
      %v4307 = vmul.f32 %v4206, 1.442695
      %v4308 = vpow.pop %v4307
      %v4309 = vmul.f32 %v4207, 1.442695
      %v4310 = vpow.pop %v4309
      %v4311 = vmul.f32 %v4208, 1.442695
      %v4312 = vpow.pop %v4311
      %v4313 = vmul.f32 %v4209, 1.442695
      %v4314 = vpow.pop %v4313
      %v4315 = vmul.f32 %v4210, 1.442695
      %v4316 = vpow.pop %v4315
      %v4317 = vmul.f32 %v4211, 1.442695
      %v4318 = vpow.pop %v4317
      %v4319 = vmul.f32 %v4212, 1.442695
      %v4320 = vpow.pop %v4319
      %v4321 = vmul.f32 %v4213, 1.442695
      %v4322 = vpow.pop %v4321
      %v4323 = vmul.f32 %v4214, 1.442695
      %v4324 = vpow.pop %v4323
      %v4325 = vmul.f32 %v4215, 1.442695
      %v4326 = vpow.pop %v4325
      %v4327 = vmul.f32 %v4216, 1.442695
      %v4328 = vpow.pop %v4327
      %v4329 = vmul.f32 %v4217, 1.442695
      %v4330 = vpow.pop %v4329
      %v4331 = vmul.f32 %v4218, 1.442695
      %v4332 = vpow.pop %v4331
      %v4333 = vmul.f32 %v4219, 1.442695
      %v4334 = vpow.pop %v4333
      %v4335 = vmul.f32 %v4220, 1.442695
      %v4336 = vpow.pop %v4335
      %v4337 = vmul.f32 %v4221, 1.442695
      %v4338 = vpow.pop %v4337
      %v4339 = vmul.f32 %v4222, 1.442695
      %v4340 = vpow.pop %v4339
      %v4341 = vmul.f32 %v4223, 1.442695
      %v4342 = vpow.pop %v4341
      %v4343 = vmul.f32 %v4224, 1.442695
      %v4344 = vpow.pop %v4343
      %v4345 = vmul.f32 %v4225, 1.442695
      %v4346 = vpow.pop %v4345
      %v4347 = vmul.f32 %v4226, 1.442695
      %v4348 = vpow.pop %v4347
      %v4349 = vmul.f32 %v4227, 1.442695
      %v4350 = vpow.pop %v4349
      %v4351 = vmul.f32 %v4228, 1.442695
      %v4352 = vpow.pop %v4351
      %v4353 = vmul.f32 %v4229, 1.442695
      %v4354 = vpow.pop %v4353
      %v4355 = vmul.f32 %v4230, 1.442695
      %v4356 = vpow.pop %v4355
      %v4357 = vmul.f32 %v4231, 1.442695
      %v4358 = vpow.pop %v4357
      %v4359 = vmul.f32 %v4232, 1.442695
      %v4360 = vpow.pop %v4359
      %v4361 = vadd.f32 %v3914, %v3916
      %4362 = vadd.xlane.f32.xlu0 %v4361
      %v4363 = vpop.xlane.xlu0 %4362
      %v4364 = vadd.f32 %v3918, %v3920
      %4365 = vadd.xlane.f32.xlu0 %v4364
      %v4366 = vpop.xlane.xlu0 %4365
      %v4367 = vadd.f32 %v3922, %v3924
      %4368 = vadd.xlane.f32.xlu0 %v4367
      %v4369 = vpop.xlane.xlu0 %4368
      %v4370 = vadd.f32 %v3926, %v3928
      %4371 = vadd.xlane.f32.xlu0 %v4370
      %v4372 = vpop.xlane.xlu0 %4371
      %v4373 = vadd.f32 %v3930, %v3932
      %4374 = vadd.xlane.f32.xlu0 %v4373
      %v4375 = vpop.xlane.xlu0 %4374
      %v4376 = vadd.f32 %v3934, %v3936
      %4377 = vadd.xlane.f32.xlu0 %v4376
      %v4378 = vpop.xlane.xlu0 %4377
      %v4379 = vadd.f32 %v3938, %v3940
      %4380 = vadd.xlane.f32.xlu0 %v4379
      %v4381 = vpop.xlane.xlu0 %4380
      %v4382 = vadd.f32 %v3942, %v3944
      %4383 = vadd.xlane.f32.xlu0 %v4382
      %v4384 = vpop.xlane.xlu0 %4383
      %v4385 = vadd.f32 %v3946, %v3948
      %4386 = vadd.xlane.f32.xlu0 %v4385
      %v4387 = vpop.xlane.xlu0 %4386
      %v4388 = vadd.f32 %v3950, %v3952
      %4389 = vadd.xlane.f32.xlu0 %v4388
      %v4390 = vpop.xlane.xlu0 %4389
      %v4391 = vadd.f32 %v3954, %v3956
      %4392 = vadd.xlane.f32.xlu0 %v4391
      %v4393 = vpop.xlane.xlu0 %4392
      %v4394 = vadd.f32 %v3958, %v3960
      %4395 = vadd.xlane.f32.xlu0 %v4394
      %v4396 = vpop.xlane.xlu0 %4395
      %v4397 = vadd.f32 %v3962, %v3964
      %4398 = vadd.xlane.f32.xlu0 %v4397
      %v4399 = vpop.xlane.xlu0 %4398
      %v4400 = vadd.f32 %v3966, %v3968
      %4401 = vadd.xlane.f32.xlu0 %v4400
      %v4402 = vpop.xlane.xlu0 %4401
      %v4403 = vadd.f32 %v3970, %v3972
      %4404 = vadd.xlane.f32.xlu0 %v4403
      %v4405 = vpop.xlane.xlu0 %4404
      %v4406 = vadd.f32 %v3974, %v3976
      %4407 = vadd.xlane.f32.xlu0 %v4406
      %v4408 = vpop.xlane.xlu0 %4407
      %v4409 = vadd.f32 %v3978, %v3980
      %4410 = vadd.xlane.f32.xlu0 %v4409
      %v4411 = vpop.xlane.xlu0 %4410
      %v4412 = vadd.f32 %v3982, %v3984
      %4413 = vadd.xlane.f32.xlu0 %v4412
      %v4414 = vpop.xlane.xlu0 %4413
      %v4415 = vadd.f32 %v3986, %v3988
      %4416 = vadd.xlane.f32.xlu0 %v4415
      %v4417 = vpop.xlane.xlu0 %4416
      %v4418 = vadd.f32 %v3990, %v3992
      %4419 = vadd.xlane.f32.xlu0 %v4418
      %v4420 = vpop.xlane.xlu0 %4419
      %v4421 = vadd.f32 %v3994, %v3996
      %4422 = vadd.xlane.f32.xlu0 %v4421
      %v4423 = vpop.xlane.xlu0 %4422
      %v4424 = vadd.f32 %v3998, %v4000
      %4425 = vadd.xlane.f32.xlu0 %v4424
      %v4426 = vpop.xlane.xlu0 %4425
      %v4427 = vadd.f32 %v4002, %v4004
      %4428 = vadd.xlane.f32.xlu0 %v4427
      %v4429 = vpop.xlane.xlu0 %4428
      %v4430 = vadd.f32 %v4006, %v4008
      %4431 = vadd.xlane.f32.xlu0 %v4430
      %v4432 = vpop.xlane.xlu0 %4431
      %v4433 = vadd.f32 %v4010, %v4012
      %4434 = vadd.xlane.f32.xlu0 %v4433
      %v4435 = vpop.xlane.xlu0 %4434
      %v4436 = vadd.f32 %v4014, %v4016
      %4437 = vadd.xlane.f32.xlu0 %v4436
      %v4438 = vpop.xlane.xlu0 %4437
      %v4439 = vadd.f32 %v4018, %v4020
      %4440 = vadd.xlane.f32.xlu0 %v4439
      %v4441 = vpop.xlane.xlu0 %4440
      %v4442 = vadd.f32 %v4022, %v4024
      %4443 = vadd.xlane.f32.xlu0 %v4442
      %v4444 = vpop.xlane.xlu0 %4443
      %v4445 = vadd.f32 %v4026, %v4028
      %4446 = vadd.xlane.f32.xlu0 %v4445
      %v4447 = vpop.xlane.xlu0 %4446
      %v4448 = vadd.f32 %v4030, %v4032
      %4449 = vadd.xlane.f32.xlu0 %v4448
      %v4450 = vpop.xlane.xlu0 %4449
      %v4451 = vadd.f32 %v4034, %v4036
      %4452 = vadd.xlane.f32.xlu0 %v4451
      %v4453 = vpop.xlane.xlu0 %4452
      %v4454 = vadd.f32 %v4038, %v4040
      %4455 = vadd.xlane.f32.xlu0 %v4454
      %v4456 = vpop.xlane.xlu0 %4455
      %v4457 = vadd.f32 %v4042, %v4044
      %4458 = vadd.xlane.f32.xlu0 %v4457
      %v4459 = vpop.xlane.xlu0 %4458
      %v4460 = vadd.f32 %v4046, %v4048
      %4461 = vadd.xlane.f32.xlu0 %v4460
      %v4462 = vpop.xlane.xlu0 %4461
      %v4463 = vadd.f32 %v4050, %v4052
      %4464 = vadd.xlane.f32.xlu0 %v4463
      %v4465 = vpop.xlane.xlu0 %4464
      %v4466 = vadd.f32 %v4054, %v4056
      %4467 = vadd.xlane.f32.xlu0 %v4466
      %v4468 = vpop.xlane.xlu0 %4467
      %v4469 = vadd.f32 %v4058, %v4060
      %4470 = vadd.xlane.f32.xlu0 %v4469
      %v4471 = vpop.xlane.xlu0 %4470
      %v4472 = vadd.f32 %v4062, %v4064
      %4473 = vadd.xlane.f32.xlu0 %v4472
      %v4474 = vpop.xlane.xlu0 %4473
      %v4475 = vadd.f32 %v4066, %v4068
      %4476 = vadd.xlane.f32.xlu0 %v4475
      %v4477 = vpop.xlane.xlu0 %4476
      %v4478 = vadd.f32 %v4070, %v4072
      %4479 = vadd.xlane.f32.xlu0 %v4478
      %v4480 = vpop.xlane.xlu0 %4479
      %v4481 = vadd.f32 %v4074, %v4076
      %4482 = vadd.xlane.f32.xlu0 %v4481
      %v4483 = vpop.xlane.xlu0 %4482
      %v4484 = vadd.f32 %v4078, %v4080
      %4485 = vadd.xlane.f32.xlu0 %v4484
      %v4486 = vpop.xlane.xlu0 %4485
      %v4487 = vadd.f32 %v4082, %v4084
      %4488 = vadd.xlane.f32.xlu0 %v4487
      %v4489 = vpop.xlane.xlu0 %4488
      %v4490 = vadd.f32 %v4086, %v4088
      %4491 = vadd.xlane.f32.xlu0 %v4490
      %v4492 = vpop.xlane.xlu0 %4491
      %v4493 = vadd.f32 %v4090, %v4092
      %4494 = vadd.xlane.f32.xlu0 %v4493
      %v4495 = vpop.xlane.xlu0 %4494
      %v4496 = vadd.f32 %v4094, %v4096
      %4497 = vadd.xlane.f32.xlu0 %v4496
      %v4498 = vpop.xlane.xlu0 %4497
      %v4499 = vadd.f32 %v4098, %v4100
      %4500 = vadd.xlane.f32.xlu0 %v4499
      %v4501 = vpop.xlane.xlu0 %4500
      %v4502 = vadd.f32 %v4102, %v4104
      %4503 = vadd.xlane.f32.xlu0 %v4502
      %v4504 = vpop.xlane.xlu0 %4503
      %v4505 = vadd.f32 %v4106, %v4108
      %4506 = vadd.xlane.f32.xlu0 %v4505
      %v4507 = vpop.xlane.xlu0 %4506
      %v4508 = vadd.f32 %v4110, %v4112
      %4509 = vadd.xlane.f32.xlu0 %v4508
      %v4510 = vpop.xlane.xlu0 %4509
      %v4511 = vadd.f32 %v4114, %v4116
      %4512 = vadd.xlane.f32.xlu0 %v4511
      %v4513 = vpop.xlane.xlu0 %4512
      %v4514 = vadd.f32 %v4118, %v4120
      %4515 = vadd.xlane.f32.xlu0 %v4514
      %v4516 = vpop.xlane.xlu0 %4515
      %v4517 = vadd.f32 %v4122, %v4124
      %4518 = vadd.xlane.f32.xlu0 %v4517
      %v4519 = vpop.xlane.xlu0 %4518
      %v4520 = vadd.f32 %v4126, %v4128
      %4521 = vadd.xlane.f32.xlu0 %v4520
      %v4522 = vpop.xlane.xlu0 %4521
      %v4523 = vadd.f32 %v4130, %v4132
      %4524 = vadd.xlane.f32.xlu0 %v4523
      %v4525 = vpop.xlane.xlu0 %4524
      %v4526 = vadd.f32 %v4134, %v4136
      %4527 = vadd.xlane.f32.xlu0 %v4526
      %v4528 = vpop.xlane.xlu0 %4527
      %v4529 = vadd.f32 %v4138, %v4140
      %4530 = vadd.xlane.f32.xlu0 %v4529
      %v4531 = vpop.xlane.xlu0 %4530
      %v4532 = vadd.f32 %v4142, %v4144
      %4533 = vadd.xlane.f32.xlu0 %v4532
      %v4534 = vpop.xlane.xlu0 %4533
      %v4535 = vadd.f32 %v4146, %v4148
      %4536 = vadd.xlane.f32.xlu0 %v4535
      %v4537 = vpop.xlane.xlu0 %4536
      %v4538 = vadd.f32 %v4150, %v4152
      %4539 = vadd.xlane.f32.xlu0 %v4538
      %v4540 = vpop.xlane.xlu0 %4539
      %v4541 = vadd.f32 %v4154, %v4156
      %4542 = vadd.xlane.f32.xlu0 %v4541
      %v4543 = vpop.xlane.xlu0 %4542
      %v4544 = vadd.f32 %v4158, %v4160
      %4545 = vadd.xlane.f32.xlu0 %v4544
      %v4546 = vpop.xlane.xlu0 %4545
      %v4547 = vadd.f32 %v4162, %v4164
      %4548 = vadd.xlane.f32.xlu0 %v4547
      %v4549 = vpop.xlane.xlu0 %4548
      %v4550 = vadd.f32 %v4166, %v4168
      %4551 = vadd.xlane.f32.xlu0 %v4550
      %v4552 = vpop.xlane.xlu0 %4551
      %v4553 = vadd.f32 %v4363, %v4234
      %v4554 = vadd.f32 %v4366, %v4236
      %v4555 = vadd.f32 %v4369, %v4238
      %v4556 = vadd.f32 %v4372, %v4240
      %v4557 = vadd.f32 %v4375, %v4242
      %v4558 = vadd.f32 %v4378, %v4244
      %v4559 = vadd.f32 %v4381, %v4246
      %v4560 = vadd.f32 %v4384, %v4248
      %v4561 = vadd.f32 %v4387, %v4250
      %v4562 = vadd.f32 %v4390, %v4252
      %v4563 = vadd.f32 %v4393, %v4254
      %v4564 = vadd.f32 %v4396, %v4256
      %v4565 = vadd.f32 %v4399, %v4258
      %v4566 = vadd.f32 %v4402, %v4260
      %v4567 = vadd.f32 %v4405, %v4262
      %v4568 = vadd.f32 %v4408, %v4264
      %v4569 = vadd.f32 %v4411, %v4266
      %v4570 = vadd.f32 %v4414, %v4268
      %v4571 = vadd.f32 %v4417, %v4270
      %v4572 = vadd.f32 %v4420, %v4272
      %v4573 = vadd.f32 %v4423, %v4274
      %v4574 = vadd.f32 %v4426, %v4276
      %v4575 = vadd.f32 %v4429, %v4278
      %v4576 = vadd.f32 %v4432, %v4280
      %v4577 = vadd.f32 %v4435, %v4282
      %v4578 = vadd.f32 %v4438, %v4284
      %v4579 = vadd.f32 %v4441, %v4286
      %v4580 = vadd.f32 %v4444, %v4288
      %v4581 = vadd.f32 %v4447, %v4290
      %v4582 = vadd.f32 %v4450, %v4292
      %v4583 = vadd.f32 %v4453, %v4294
      %v4584 = vadd.f32 %v4456, %v4296
      %v4585 = vadd.f32 %v4459, %v4298
      %v4586 = vadd.f32 %v4462, %v4300
      %v4587 = vadd.f32 %v4465, %v4302
      %v4588 = vadd.f32 %v4468, %v4304
      %v4589 = vadd.f32 %v4471, %v4306
      %v4590 = vadd.f32 %v4474, %v4308
      %v4591 = vadd.f32 %v4477, %v4310
      %v4592 = vadd.f32 %v4480, %v4312
      %v4593 = vadd.f32 %v4483, %v4314
      %v4594 = vadd.f32 %v4486, %v4316
      %v4595 = vadd.f32 %v4489, %v4318
      %v4596 = vadd.f32 %v4492, %v4320
      %v4597 = vadd.f32 %v4495, %v4322
      %v4598 = vadd.f32 %v4498, %v4324
      %v4599 = vadd.f32 %v4501, %v4326
      %v4600 = vadd.f32 %v4504, %v4328
      %v4601 = vadd.f32 %v4507, %v4330
      %v4602 = vadd.f32 %v4510, %v4332
      %v4603 = vadd.f32 %v4513, %v4334
      %v4604 = vadd.f32 %v4516, %v4336
      %v4605 = vadd.f32 %v4519, %v4338
      %v4606 = vadd.f32 %v4522, %v4340
      %v4607 = vadd.f32 %v4525, %v4342
      %v4608 = vadd.f32 %v4528, %v4344
      %v4609 = vadd.f32 %v4531, %v4346
      %v4610 = vadd.f32 %v4534, %v4348
      %v4611 = vadd.f32 %v4537, %v4350
      %v4612 = vadd.f32 %v4540, %v4352
      %v4613 = vadd.f32 %v4543, %v4354
      %v4614 = vadd.f32 %v4546, %v4356
      %v4615 = vadd.f32 %v4549, %v4358
      %v4616 = vadd.f32 %v4552, %v4360
      %v4617 = vrcp.pop %v4553
      %v4618 = vmul.f32 %v4553, %v4617
      %v4619 = vsub.f32 1.0, %v4618
      %v4620 = vmul.f32 %v4617, %v4619
      %v4621 = vadd.f32 %v4617, %v4620
      %vm4622 = vweird.f32 %v4553
      %vm4623 = vweird.f32 %v4617
      %vm4624 = vmor %vm4622, %vm4623
      %v4625 = vsel %vm4624, %v4617, %v4621
      %v4626 = vand.u32 2147483647, %v4553
      %vm4627 = vcmp.eq.f32.partialorder %v4626, 8.507059e+37
      %v4628 = vand.u32 %v4553, 2147483648
      %v4629 = vor.u32 1.1754944e-38, %v4628
      %v4630 = vsel %vm4627, %v4629, %v4625
      %v4631 = vrcp.pop %v4554
      %v4632 = vmul.f32 %v4554, %v4631
      %v4633 = vsub.f32 1.0, %v4632
      %v4634 = vmul.f32 %v4631, %v4633
      %v4635 = vadd.f32 %v4631, %v4634
      %vm4636 = vweird.f32 %v4554
      %vm4637 = vweird.f32 %v4631
      %vm4638 = vmor %vm4636, %vm4637
      %v4639 = vsel %vm4638, %v4631, %v4635
      %v4640 = vand.u32 2147483647, %v4554
      %vm4641 = vcmp.eq.f32.partialorder %v4640, 8.507059e+37
      %v4642 = vand.u32 %v4554, 2147483648
      %v4643 = vor.u32 1.1754944e-38, %v4642
      %v4644 = vsel %vm4641, %v4643, %v4639
      %v4645 = vrcp.pop %v4555
      %v4646 = vmul.f32 %v4555, %v4645
      %v4647 = vsub.f32 1.0, %v4646
      %v4648 = vmul.f32 %v4645, %v4647
      %v4649 = vadd.f32 %v4645, %v4648
      %vm4650 = vweird.f32 %v4555
      %vm4651 = vweird.f32 %v4645
      %vm4652 = vmor %vm4650, %vm4651
      %v4653 = vsel %vm4652, %v4645, %v4649
      %v4654 = vand.u32 2147483647, %v4555
      %vm4655 = vcmp.eq.f32.partialorder %v4654, 8.507059e+37
      %v4656 = vand.u32 %v4555, 2147483648
      %v4657 = vor.u32 1.1754944e-38, %v4656
      %v4658 = vsel %vm4655, %v4657, %v4653
      %v4659 = vrcp.pop %v4556
      %v4660 = vmul.f32 %v4556, %v4659
      %v4661 = vsub.f32 1.0, %v4660
      %v4662 = vmul.f32 %v4659, %v4661
      %v4663 = vadd.f32 %v4659, %v4662
      %vm4664 = vweird.f32 %v4556
      %vm4665 = vweird.f32 %v4659
      %vm4666 = vmor %vm4664, %vm4665
      %v4667 = vsel %vm4666, %v4659, %v4663
      %v4668 = vand.u32 2147483647, %v4556
      %vm4669 = vcmp.eq.f32.partialorder %v4668, 8.507059e+37
      %v4670 = vand.u32 %v4556, 2147483648
      %v4671 = vor.u32 1.1754944e-38, %v4670
      %v4672 = vsel %vm4669, %v4671, %v4667
      %v4673 = vrcp.pop %v4557
      %v4674 = vmul.f32 %v4557, %v4673
      %v4675 = vsub.f32 1.0, %v4674
      %v4676 = vmul.f32 %v4673, %v4675
      %v4677 = vadd.f32 %v4673, %v4676
      %vm4678 = vweird.f32 %v4557
      %vm4679 = vweird.f32 %v4673
      %vm4680 = vmor %vm4678, %vm4679
      %v4681 = vsel %vm4680, %v4673, %v4677
      %v4682 = vand.u32 2147483647, %v4557
      %vm4683 = vcmp.eq.f32.partialorder %v4682, 8.507059e+37
      %v4684 = vand.u32 %v4557, 2147483648
      %v4685 = vor.u32 1.1754944e-38, %v4684
      %v4686 = vsel %vm4683, %v4685, %v4681
      %v4687 = vrcp.pop %v4558
      %v4688 = vmul.f32 %v4558, %v4687
      %v4689 = vsub.f32 1.0, %v4688
      %v4690 = vmul.f32 %v4687, %v4689
      %v4691 = vadd.f32 %v4687, %v4690
      %vm4692 = vweird.f32 %v4558
      %vm4693 = vweird.f32 %v4687
      %vm4694 = vmor %vm4692, %vm4693
      %v4695 = vsel %vm4694, %v4687, %v4691
      %v4696 = vand.u32 2147483647, %v4558
      %vm4697 = vcmp.eq.f32.partialorder %v4696, 8.507059e+37
      %v4698 = vand.u32 %v4558, 2147483648
      %v4699 = vor.u32 1.1754944e-38, %v4698
      %v4700 = vsel %vm4697, %v4699, %v4695
      %v4701 = vrcp.pop %v4559
      %v4702 = vmul.f32 %v4559, %v4701
      %v4703 = vsub.f32 1.0, %v4702
      %v4704 = vmul.f32 %v4701, %v4703
      %v4705 = vadd.f32 %v4701, %v4704
      %vm4706 = vweird.f32 %v4559
      %vm4707 = vweird.f32 %v4701
      %vm4708 = vmor %vm4706, %vm4707
      %v4709 = vsel %vm4708, %v4701, %v4705
      %v4710 = vand.u32 2147483647, %v4559
      %vm4711 = vcmp.eq.f32.partialorder %v4710, 8.507059e+37
      %v4712 = vand.u32 %v4559, 2147483648
      %v4713 = vor.u32 1.1754944e-38, %v4712
      %v4714 = vsel %vm4711, %v4713, %v4709
      %v4715 = vrcp.pop %v4560
      %v4716 = vmul.f32 %v4560, %v4715
      %v4717 = vsub.f32 1.0, %v4716
      %v4718 = vmul.f32 %v4715, %v4717
      %v4719 = vadd.f32 %v4715, %v4718
      %vm4720 = vweird.f32 %v4560
      %vm4721 = vweird.f32 %v4715
      %vm4722 = vmor %vm4720, %vm4721
      %v4723 = vsel %vm4722, %v4715, %v4719
      %v4724 = vand.u32 2147483647, %v4560
      %vm4725 = vcmp.eq.f32.partialorder %v4724, 8.507059e+37
      %v4726 = vand.u32 %v4560, 2147483648
      %v4727 = vor.u32 1.1754944e-38, %v4726
      %v4728 = vsel %vm4725, %v4727, %v4723
      %v4729 = vrcp.pop %v4561
      %v4730 = vmul.f32 %v4561, %v4729
      %v4731 = vsub.f32 1.0, %v4730
      %v4732 = vmul.f32 %v4729, %v4731
      %v4733 = vadd.f32 %v4729, %v4732
      %vm4734 = vweird.f32 %v4561
      %vm4735 = vweird.f32 %v4729
      %vm4736 = vmor %vm4734, %vm4735
      %v4737 = vsel %vm4736, %v4729, %v4733
      %v4738 = vand.u32 2147483647, %v4561
      %vm4739 = vcmp.eq.f32.partialorder %v4738, 8.507059e+37
      %v4740 = vand.u32 %v4561, 2147483648
      %v4741 = vor.u32 1.1754944e-38, %v4740
      %v4742 = vsel %vm4739, %v4741, %v4737
      %v4743 = vrcp.pop %v4562
      %v4744 = vmul.f32 %v4562, %v4743
      %v4745 = vsub.f32 1.0, %v4744
      %v4746 = vmul.f32 %v4743, %v4745
      %v4747 = vadd.f32 %v4743, %v4746
      %vm4748 = vweird.f32 %v4562
      %vm4749 = vweird.f32 %v4743
      %vm4750 = vmor %vm4748, %vm4749
      %v4751 = vsel %vm4750, %v4743, %v4747
      %v4752 = vand.u32 2147483647, %v4562
      %vm4753 = vcmp.eq.f32.partialorder %v4752, 8.507059e+37
      %v4754 = vand.u32 %v4562, 2147483648
      %v4755 = vor.u32 1.1754944e-38, %v4754
      %v4756 = vsel %vm4753, %v4755, %v4751
      %v4757 = vrcp.pop %v4563
      %v4758 = vmul.f32 %v4563, %v4757
      %v4759 = vsub.f32 1.0, %v4758
      %v4760 = vmul.f32 %v4757, %v4759
      %v4761 = vadd.f32 %v4757, %v4760
      %vm4762 = vweird.f32 %v4563
      %vm4763 = vweird.f32 %v4757
      %vm4764 = vmor %vm4762, %vm4763
      %v4765 = vsel %vm4764, %v4757, %v4761
      %v4766 = vand.u32 2147483647, %v4563
      %vm4767 = vcmp.eq.f32.partialorder %v4766, 8.507059e+37
      %v4768 = vand.u32 %v4563, 2147483648
      %v4769 = vor.u32 1.1754944e-38, %v4768
      %v4770 = vsel %vm4767, %v4769, %v4765
      %v4771 = vrcp.pop %v4564
      %v4772 = vmul.f32 %v4564, %v4771
      %v4773 = vsub.f32 1.0, %v4772
      %v4774 = vmul.f32 %v4771, %v4773
      %v4775 = vadd.f32 %v4771, %v4774
      %vm4776 = vweird.f32 %v4564
      %vm4777 = vweird.f32 %v4771
      %vm4778 = vmor %vm4776, %vm4777
      %v4779 = vsel %vm4778, %v4771, %v4775
      %v4780 = vand.u32 2147483647, %v4564
      %vm4781 = vcmp.eq.f32.partialorder %v4780, 8.507059e+37
      %v4782 = vand.u32 %v4564, 2147483648
      %v4783 = vor.u32 1.1754944e-38, %v4782
      %v4784 = vsel %vm4781, %v4783, %v4779
      %v4785 = vrcp.pop %v4565
      %v4786 = vmul.f32 %v4565, %v4785
      %v4787 = vsub.f32 1.0, %v4786
      %v4788 = vmul.f32 %v4785, %v4787
      %v4789 = vadd.f32 %v4785, %v4788
      %vm4790 = vweird.f32 %v4565
      %vm4791 = vweird.f32 %v4785
      %vm4792 = vmor %vm4790, %vm4791
      %v4793 = vsel %vm4792, %v4785, %v4789
      %v4794 = vand.u32 2147483647, %v4565
      %vm4795 = vcmp.eq.f32.partialorder %v4794, 8.507059e+37
      %v4796 = vand.u32 %v4565, 2147483648
      %v4797 = vor.u32 1.1754944e-38, %v4796
      %v4798 = vsel %vm4795, %v4797, %v4793
      %v4799 = vrcp.pop %v4566
      %v4800 = vmul.f32 %v4566, %v4799
      %v4801 = vsub.f32 1.0, %v4800
      %v4802 = vmul.f32 %v4799, %v4801
      %v4803 = vadd.f32 %v4799, %v4802
      %vm4804 = vweird.f32 %v4566
      %vm4805 = vweird.f32 %v4799
      %vm4806 = vmor %vm4804, %vm4805
      %v4807 = vsel %vm4806, %v4799, %v4803
      %v4808 = vand.u32 2147483647, %v4566
      %vm4809 = vcmp.eq.f32.partialorder %v4808, 8.507059e+37
      %v4810 = vand.u32 %v4566, 2147483648
      %v4811 = vor.u32 1.1754944e-38, %v4810
      %v4812 = vsel %vm4809, %v4811, %v4807
      %v4813 = vrcp.pop %v4567
      %v4814 = vmul.f32 %v4567, %v4813
      %v4815 = vsub.f32 1.0, %v4814
      %v4816 = vmul.f32 %v4813, %v4815
      %v4817 = vadd.f32 %v4813, %v4816
      %vm4818 = vweird.f32 %v4567
      %vm4819 = vweird.f32 %v4813
      %vm4820 = vmor %vm4818, %vm4819
      %v4821 = vsel %vm4820, %v4813, %v4817
      %v4822 = vand.u32 2147483647, %v4567
      %vm4823 = vcmp.eq.f32.partialorder %v4822, 8.507059e+37
      %v4824 = vand.u32 %v4567, 2147483648
      %v4825 = vor.u32 1.1754944e-38, %v4824
      %v4826 = vsel %vm4823, %v4825, %v4821
      %v4827 = vrcp.pop %v4568
      %v4828 = vmul.f32 %v4568, %v4827
      %v4829 = vsub.f32 1.0, %v4828
      %v4830 = vmul.f32 %v4827, %v4829
      %v4831 = vadd.f32 %v4827, %v4830
      %vm4832 = vweird.f32 %v4568
      %vm4833 = vweird.f32 %v4827
      %vm4834 = vmor %vm4832, %vm4833
      %v4835 = vsel %vm4834, %v4827, %v4831
      %v4836 = vand.u32 2147483647, %v4568
      %vm4837 = vcmp.eq.f32.partialorder %v4836, 8.507059e+37
      %v4838 = vand.u32 %v4568, 2147483648
      %v4839 = vor.u32 1.1754944e-38, %v4838
      %v4840 = vsel %vm4837, %v4839, %v4835
      %v4841 = vrcp.pop %v4569
      %v4842 = vmul.f32 %v4569, %v4841
      %v4843 = vsub.f32 1.0, %v4842
      %v4844 = vmul.f32 %v4841, %v4843
      %v4845 = vadd.f32 %v4841, %v4844
      %vm4846 = vweird.f32 %v4569
      %vm4847 = vweird.f32 %v4841
      %vm4848 = vmor %vm4846, %vm4847
      %v4849 = vsel %vm4848, %v4841, %v4845
      %v4850 = vand.u32 2147483647, %v4569
      %vm4851 = vcmp.eq.f32.partialorder %v4850, 8.507059e+37
      %v4852 = vand.u32 %v4569, 2147483648
      %v4853 = vor.u32 1.1754944e-38, %v4852
      %v4854 = vsel %vm4851, %v4853, %v4849
      %v4855 = vrcp.pop %v4570
      %v4856 = vmul.f32 %v4570, %v4855
      %v4857 = vsub.f32 1.0, %v4856
      %v4858 = vmul.f32 %v4855, %v4857
      %v4859 = vadd.f32 %v4855, %v4858
      %vm4860 = vweird.f32 %v4570
      %vm4861 = vweird.f32 %v4855
      %vm4862 = vmor %vm4860, %vm4861
      %v4863 = vsel %vm4862, %v4855, %v4859
      %v4864 = vand.u32 2147483647, %v4570
      %vm4865 = vcmp.eq.f32.partialorder %v4864, 8.507059e+37
      %v4866 = vand.u32 %v4570, 2147483648
      %v4867 = vor.u32 1.1754944e-38, %v4866
      %v4868 = vsel %vm4865, %v4867, %v4863
      %v4869 = vrcp.pop %v4571
      %v4870 = vmul.f32 %v4571, %v4869
      %v4871 = vsub.f32 1.0, %v4870
      %v4872 = vmul.f32 %v4869, %v4871
      %v4873 = vadd.f32 %v4869, %v4872
      %vm4874 = vweird.f32 %v4571
      %vm4875 = vweird.f32 %v4869
      %vm4876 = vmor %vm4874, %vm4875
      %v4877 = vsel %vm4876, %v4869, %v4873
      %v4878 = vand.u32 2147483647, %v4571
      %vm4879 = vcmp.eq.f32.partialorder %v4878, 8.507059e+37
      %v4880 = vand.u32 %v4571, 2147483648
      %v4881 = vor.u32 1.1754944e-38, %v4880
      %v4882 = vsel %vm4879, %v4881, %v4877
      %v4883 = vrcp.pop %v4572
      %v4884 = vmul.f32 %v4572, %v4883
      %v4885 = vsub.f32 1.0, %v4884
      %v4886 = vmul.f32 %v4883, %v4885
      %v4887 = vadd.f32 %v4883, %v4886
      %vm4888 = vweird.f32 %v4572
      %vm4889 = vweird.f32 %v4883
      %vm4890 = vmor %vm4888, %vm4889
      %v4891 = vsel %vm4890, %v4883, %v4887
      %v4892 = vand.u32 2147483647, %v4572
      %vm4893 = vcmp.eq.f32.partialorder %v4892, 8.507059e+37
      %v4894 = vand.u32 %v4572, 2147483648
      %v4895 = vor.u32 1.1754944e-38, %v4894
      %v4896 = vsel %vm4893, %v4895, %v4891
      %v4897 = vrcp.pop %v4573
      %v4898 = vmul.f32 %v4573, %v4897
      %v4899 = vsub.f32 1.0, %v4898
      %v4900 = vmul.f32 %v4897, %v4899
      %v4901 = vadd.f32 %v4897, %v4900
      %vm4902 = vweird.f32 %v4573
      %vm4903 = vweird.f32 %v4897
      %vm4904 = vmor %vm4902, %vm4903
      %v4905 = vsel %vm4904, %v4897, %v4901
      %v4906 = vand.u32 2147483647, %v4573
      %vm4907 = vcmp.eq.f32.partialorder %v4906, 8.507059e+37
      %v4908 = vand.u32 %v4573, 2147483648
      %v4909 = vor.u32 1.1754944e-38, %v4908
      %v4910 = vsel %vm4907, %v4909, %v4905
      %v4911 = vrcp.pop %v4574
      %v4912 = vmul.f32 %v4574, %v4911
      %v4913 = vsub.f32 1.0, %v4912
      %v4914 = vmul.f32 %v4911, %v4913
      %v4915 = vadd.f32 %v4911, %v4914
      %vm4916 = vweird.f32 %v4574
      %vm4917 = vweird.f32 %v4911
      %vm4918 = vmor %vm4916, %vm4917
      %v4919 = vsel %vm4918, %v4911, %v4915
      %v4920 = vand.u32 2147483647, %v4574
      %vm4921 = vcmp.eq.f32.partialorder %v4920, 8.507059e+37
      %v4922 = vand.u32 %v4574, 2147483648
      %v4923 = vor.u32 1.1754944e-38, %v4922
      %v4924 = vsel %vm4921, %v4923, %v4919
      %v4925 = vrcp.pop %v4575
      %v4926 = vmul.f32 %v4575, %v4925
      %v4927 = vsub.f32 1.0, %v4926
      %v4928 = vmul.f32 %v4925, %v4927
      %v4929 = vadd.f32 %v4925, %v4928
      %vm4930 = vweird.f32 %v4575
      %vm4931 = vweird.f32 %v4925
      %vm4932 = vmor %vm4930, %vm4931
      %v4933 = vsel %vm4932, %v4925, %v4929
      %v4934 = vand.u32 2147483647, %v4575
      %vm4935 = vcmp.eq.f32.partialorder %v4934, 8.507059e+37
      %v4936 = vand.u32 %v4575, 2147483648
      %v4937 = vor.u32 1.1754944e-38, %v4936
      %v4938 = vsel %vm4935, %v4937, %v4933
      %v4939 = vrcp.pop %v4576
      %v4940 = vmul.f32 %v4576, %v4939
      %v4941 = vsub.f32 1.0, %v4940
      %v4942 = vmul.f32 %v4939, %v4941
      %v4943 = vadd.f32 %v4939, %v4942
      %vm4944 = vweird.f32 %v4576
      %vm4945 = vweird.f32 %v4939
      %vm4946 = vmor %vm4944, %vm4945
      %v4947 = vsel %vm4946, %v4939, %v4943
      %v4948 = vand.u32 2147483647, %v4576
      %vm4949 = vcmp.eq.f32.partialorder %v4948, 8.507059e+37
      %v4950 = vand.u32 %v4576, 2147483648
      %v4951 = vor.u32 1.1754944e-38, %v4950
      %v4952 = vsel %vm4949, %v4951, %v4947
      %v4953 = vrcp.pop %v4577
      %v4954 = vmul.f32 %v4577, %v4953
      %v4955 = vsub.f32 1.0, %v4954
      %v4956 = vmul.f32 %v4953, %v4955
      %v4957 = vadd.f32 %v4953, %v4956
      %vm4958 = vweird.f32 %v4577
      %vm4959 = vweird.f32 %v4953
      %vm4960 = vmor %vm4958, %vm4959
      %v4961 = vsel %vm4960, %v4953, %v4957
      %v4962 = vand.u32 2147483647, %v4577
      %vm4963 = vcmp.eq.f32.partialorder %v4962, 8.507059e+37
      %v4964 = vand.u32 %v4577, 2147483648
      %v4965 = vor.u32 1.1754944e-38, %v4964
      %v4966 = vsel %vm4963, %v4965, %v4961
      %v4967 = vrcp.pop %v4578
      %v4968 = vmul.f32 %v4578, %v4967
      %v4969 = vsub.f32 1.0, %v4968
      %v4970 = vmul.f32 %v4967, %v4969
      %v4971 = vadd.f32 %v4967, %v4970
      %vm4972 = vweird.f32 %v4578
      %vm4973 = vweird.f32 %v4967
      %vm4974 = vmor %vm4972, %vm4973
      %v4975 = vsel %vm4974, %v4967, %v4971
      %v4976 = vand.u32 2147483647, %v4578
      %vm4977 = vcmp.eq.f32.partialorder %v4976, 8.507059e+37
      %v4978 = vand.u32 %v4578, 2147483648
      %v4979 = vor.u32 1.1754944e-38, %v4978
      %v4980 = vsel %vm4977, %v4979, %v4975
      %v4981 = vrcp.pop %v4579
      %v4982 = vmul.f32 %v4579, %v4981
      %v4983 = vsub.f32 1.0, %v4982
      %v4984 = vmul.f32 %v4981, %v4983
      %v4985 = vadd.f32 %v4981, %v4984
      %vm4986 = vweird.f32 %v4579
      %vm4987 = vweird.f32 %v4981
      %vm4988 = vmor %vm4986, %vm4987
      %v4989 = vsel %vm4988, %v4981, %v4985
      %v4990 = vand.u32 2147483647, %v4579
      %vm4991 = vcmp.eq.f32.partialorder %v4990, 8.507059e+37
      %v4992 = vand.u32 %v4579, 2147483648
      %v4993 = vor.u32 1.1754944e-38, %v4992
      %v4994 = vsel %vm4991, %v4993, %v4989
      %v4995 = vrcp.pop %v4580
      %v4996 = vmul.f32 %v4580, %v4995
      %v4997 = vsub.f32 1.0, %v4996
      %v4998 = vmul.f32 %v4995, %v4997
      %v4999 = vadd.f32 %v4995, %v4998
      %vm5000 = vweird.f32 %v4580
      %vm5001 = vweird.f32 %v4995
      %vm5002 = vmor %vm5000, %vm5001
      %v5003 = vsel %vm5002, %v4995, %v4999
      %v5004 = vand.u32 2147483647, %v4580
      %vm5005 = vcmp.eq.f32.partialorder %v5004, 8.507059e+37
      %v5006 = vand.u32 %v4580, 2147483648
      %v5007 = vor.u32 1.1754944e-38, %v5006
      %v5008 = vsel %vm5005, %v5007, %v5003
      %v5009 = vrcp.pop %v4581
      %v5010 = vmul.f32 %v4581, %v5009
      %v5011 = vsub.f32 1.0, %v5010
      %v5012 = vmul.f32 %v5009, %v5011
      %v5013 = vadd.f32 %v5009, %v5012
      %vm5014 = vweird.f32 %v4581
      %vm5015 = vweird.f32 %v5009
      %vm5016 = vmor %vm5014, %vm5015
      %v5017 = vsel %vm5016, %v5009, %v5013
      %v5018 = vand.u32 2147483647, %v4581
      %vm5019 = vcmp.eq.f32.partialorder %v5018, 8.507059e+37
      %v5020 = vand.u32 %v4581, 2147483648
      %v5021 = vor.u32 1.1754944e-38, %v5020
      %v5022 = vsel %vm5019, %v5021, %v5017
      %v5023 = vrcp.pop %v4582
      %v5024 = vmul.f32 %v4582, %v5023
      %v5025 = vsub.f32 1.0, %v5024
      %v5026 = vmul.f32 %v5023, %v5025
      %v5027 = vadd.f32 %v5023, %v5026
      %vm5028 = vweird.f32 %v4582
      %vm5029 = vweird.f32 %v5023
      %vm5030 = vmor %vm5028, %vm5029
      %v5031 = vsel %vm5030, %v5023, %v5027
      %v5032 = vand.u32 2147483647, %v4582
      %vm5033 = vcmp.eq.f32.partialorder %v5032, 8.507059e+37
      %v5034 = vand.u32 %v4582, 2147483648
      %v5035 = vor.u32 1.1754944e-38, %v5034
      %v5036 = vsel %vm5033, %v5035, %v5031
      %v5037 = vrcp.pop %v4583
      %v5038 = vmul.f32 %v4583, %v5037
      %v5039 = vsub.f32 1.0, %v5038
      %v5040 = vmul.f32 %v5037, %v5039
      %v5041 = vadd.f32 %v5037, %v5040
      %vm5042 = vweird.f32 %v4583
      %vm5043 = vweird.f32 %v5037
      %vm5044 = vmor %vm5042, %vm5043
      %v5045 = vsel %vm5044, %v5037, %v5041
      %v5046 = vand.u32 2147483647, %v4583
      %vm5047 = vcmp.eq.f32.partialorder %v5046, 8.507059e+37
      %v5048 = vand.u32 %v4583, 2147483648
      %v5049 = vor.u32 1.1754944e-38, %v5048
      %v5050 = vsel %vm5047, %v5049, %v5045
      %v5051 = vrcp.pop %v4584
      %v5052 = vmul.f32 %v4584, %v5051
      %v5053 = vsub.f32 1.0, %v5052
      %v5054 = vmul.f32 %v5051, %v5053
      %v5055 = vadd.f32 %v5051, %v5054
      %vm5056 = vweird.f32 %v4584
      %vm5057 = vweird.f32 %v5051
      %vm5058 = vmor %vm5056, %vm5057
      %v5059 = vsel %vm5058, %v5051, %v5055
      %v5060 = vand.u32 2147483647, %v4584
      %vm5061 = vcmp.eq.f32.partialorder %v5060, 8.507059e+37
      %v5062 = vand.u32 %v4584, 2147483648
      %v5063 = vor.u32 1.1754944e-38, %v5062
      %v5064 = vsel %vm5061, %v5063, %v5059
      %v5065 = vrcp.pop %v4585
      %v5066 = vmul.f32 %v4585, %v5065
      %v5067 = vsub.f32 1.0, %v5066
      %v5068 = vmul.f32 %v5065, %v5067
      %v5069 = vadd.f32 %v5065, %v5068
      %vm5070 = vweird.f32 %v4585
      %vm5071 = vweird.f32 %v5065
      %vm5072 = vmor %vm5070, %vm5071
      %v5073 = vsel %vm5072, %v5065, %v5069
      %v5074 = vand.u32 2147483647, %v4585
      %vm5075 = vcmp.eq.f32.partialorder %v5074, 8.507059e+37
      %v5076 = vand.u32 %v4585, 2147483648
      %v5077 = vor.u32 1.1754944e-38, %v5076
      %v5078 = vsel %vm5075, %v5077, %v5073
      %v5079 = vrcp.pop %v4586
      %v5080 = vmul.f32 %v4586, %v5079
      %v5081 = vsub.f32 1.0, %v5080
      %v5082 = vmul.f32 %v5079, %v5081
      %v5083 = vadd.f32 %v5079, %v5082
      %vm5084 = vweird.f32 %v4586
      %vm5085 = vweird.f32 %v5079
      %vm5086 = vmor %vm5084, %vm5085
      %v5087 = vsel %vm5086, %v5079, %v5083
      %v5088 = vand.u32 2147483647, %v4586
      %vm5089 = vcmp.eq.f32.partialorder %v5088, 8.507059e+37
      %v5090 = vand.u32 %v4586, 2147483648
      %v5091 = vor.u32 1.1754944e-38, %v5090
      %v5092 = vsel %vm5089, %v5091, %v5087
      %v5093 = vrcp.pop %v4587
      %v5094 = vmul.f32 %v4587, %v5093
      %v5095 = vsub.f32 1.0, %v5094
      %v5096 = vmul.f32 %v5093, %v5095
      %v5097 = vadd.f32 %v5093, %v5096
      %vm5098 = vweird.f32 %v4587
      %vm5099 = vweird.f32 %v5093
      %vm5100 = vmor %vm5098, %vm5099
      %v5101 = vsel %vm5100, %v5093, %v5097
      %v5102 = vand.u32 2147483647, %v4587
      %vm5103 = vcmp.eq.f32.partialorder %v5102, 8.507059e+37
      %v5104 = vand.u32 %v4587, 2147483648
      %v5105 = vor.u32 1.1754944e-38, %v5104
      %v5106 = vsel %vm5103, %v5105, %v5101
      %v5107 = vrcp.pop %v4588
      %v5108 = vmul.f32 %v4588, %v5107
      %v5109 = vsub.f32 1.0, %v5108
      %v5110 = vmul.f32 %v5107, %v5109
      %v5111 = vadd.f32 %v5107, %v5110
      %vm5112 = vweird.f32 %v4588
      %vm5113 = vweird.f32 %v5107
      %vm5114 = vmor %vm5112, %vm5113
      %v5115 = vsel %vm5114, %v5107, %v5111
      %v5116 = vand.u32 2147483647, %v4588
      %vm5117 = vcmp.eq.f32.partialorder %v5116, 8.507059e+37
      %v5118 = vand.u32 %v4588, 2147483648
      %v5119 = vor.u32 1.1754944e-38, %v5118
      %v5120 = vsel %vm5117, %v5119, %v5115
      %v5121 = vrcp.pop %v4589
      %v5122 = vmul.f32 %v4589, %v5121
      %v5123 = vsub.f32 1.0, %v5122
      %v5124 = vmul.f32 %v5121, %v5123
      %v5125 = vadd.f32 %v5121, %v5124
      %vm5126 = vweird.f32 %v4589
      %vm5127 = vweird.f32 %v5121
      %vm5128 = vmor %vm5126, %vm5127
      %v5129 = vsel %vm5128, %v5121, %v5125
      %v5130 = vand.u32 2147483647, %v4589
      %vm5131 = vcmp.eq.f32.partialorder %v5130, 8.507059e+37
      %v5132 = vand.u32 %v4589, 2147483648
      %v5133 = vor.u32 1.1754944e-38, %v5132
      %v5134 = vsel %vm5131, %v5133, %v5129
      %v5135 = vrcp.pop %v4590
      %v5136 = vmul.f32 %v4590, %v5135
      %v5137 = vsub.f32 1.0, %v5136
      %v5138 = vmul.f32 %v5135, %v5137
      %v5139 = vadd.f32 %v5135, %v5138
      %vm5140 = vweird.f32 %v4590
      %vm5141 = vweird.f32 %v5135
      %vm5142 = vmor %vm5140, %vm5141
      %v5143 = vsel %vm5142, %v5135, %v5139
      %v5144 = vand.u32 2147483647, %v4590
      %vm5145 = vcmp.eq.f32.partialorder %v5144, 8.507059e+37
      %v5146 = vand.u32 %v4590, 2147483648
      %v5147 = vor.u32 1.1754944e-38, %v5146
      %v5148 = vsel %vm5145, %v5147, %v5143
      %v5149 = vrcp.pop %v4591
      %v5150 = vmul.f32 %v4591, %v5149
      %v5151 = vsub.f32 1.0, %v5150
      %v5152 = vmul.f32 %v5149, %v5151
      %v5153 = vadd.f32 %v5149, %v5152
      %vm5154 = vweird.f32 %v4591
      %vm5155 = vweird.f32 %v5149
      %vm5156 = vmor %vm5154, %vm5155
      %v5157 = vsel %vm5156, %v5149, %v5153
      %v5158 = vand.u32 2147483647, %v4591
      %vm5159 = vcmp.eq.f32.partialorder %v5158, 8.507059e+37
      %v5160 = vand.u32 %v4591, 2147483648
      %v5161 = vor.u32 1.1754944e-38, %v5160
      %v5162 = vsel %vm5159, %v5161, %v5157
      %v5163 = vrcp.pop %v4592
      %v5164 = vmul.f32 %v4592, %v5163
      %v5165 = vsub.f32 1.0, %v5164
      %v5166 = vmul.f32 %v5163, %v5165
      %v5167 = vadd.f32 %v5163, %v5166
      %vm5168 = vweird.f32 %v4592
      %vm5169 = vweird.f32 %v5163
      %vm5170 = vmor %vm5168, %vm5169
      %v5171 = vsel %vm5170, %v5163, %v5167
      %v5172 = vand.u32 2147483647, %v4592
      %vm5173 = vcmp.eq.f32.partialorder %v5172, 8.507059e+37
      %v5174 = vand.u32 %v4592, 2147483648
      %v5175 = vor.u32 1.1754944e-38, %v5174
      %v5176 = vsel %vm5173, %v5175, %v5171
      %v5177 = vrcp.pop %v4593
      %v5178 = vmul.f32 %v4593, %v5177
      %v5179 = vsub.f32 1.0, %v5178
      %v5180 = vmul.f32 %v5177, %v5179
      %v5181 = vadd.f32 %v5177, %v5180
      %vm5182 = vweird.f32 %v4593
      %vm5183 = vweird.f32 %v5177
      %vm5184 = vmor %vm5182, %vm5183
      %v5185 = vsel %vm5184, %v5177, %v5181
      %v5186 = vand.u32 2147483647, %v4593
      %vm5187 = vcmp.eq.f32.partialorder %v5186, 8.507059e+37
      %v5188 = vand.u32 %v4593, 2147483648
      %v5189 = vor.u32 1.1754944e-38, %v5188
      %v5190 = vsel %vm5187, %v5189, %v5185
      %v5191 = vrcp.pop %v4594
      %v5192 = vmul.f32 %v4594, %v5191
      %v5193 = vsub.f32 1.0, %v5192
      %v5194 = vmul.f32 %v5191, %v5193
      %v5195 = vadd.f32 %v5191, %v5194
      %vm5196 = vweird.f32 %v4594
      %vm5197 = vweird.f32 %v5191
      %vm5198 = vmor %vm5196, %vm5197
      %v5199 = vsel %vm5198, %v5191, %v5195
      %v5200 = vand.u32 2147483647, %v4594
      %vm5201 = vcmp.eq.f32.partialorder %v5200, 8.507059e+37
      %v5202 = vand.u32 %v4594, 2147483648
      %v5203 = vor.u32 1.1754944e-38, %v5202
      %v5204 = vsel %vm5201, %v5203, %v5199
      %v5205 = vrcp.pop %v4595
      %v5206 = vmul.f32 %v4595, %v5205
      %v5207 = vsub.f32 1.0, %v5206
      %v5208 = vmul.f32 %v5205, %v5207
      %v5209 = vadd.f32 %v5205, %v5208
      %vm5210 = vweird.f32 %v4595
      %vm5211 = vweird.f32 %v5205
      %vm5212 = vmor %vm5210, %vm5211
      %v5213 = vsel %vm5212, %v5205, %v5209
      %v5214 = vand.u32 2147483647, %v4595
      %vm5215 = vcmp.eq.f32.partialorder %v5214, 8.507059e+37
      %v5216 = vand.u32 %v4595, 2147483648
      %v5217 = vor.u32 1.1754944e-38, %v5216
      %v5218 = vsel %vm5215, %v5217, %v5213
      %v5219 = vrcp.pop %v4596
      %v5220 = vmul.f32 %v4596, %v5219
      %v5221 = vsub.f32 1.0, %v5220
      %v5222 = vmul.f32 %v5219, %v5221
      %v5223 = vadd.f32 %v5219, %v5222
      %vm5224 = vweird.f32 %v4596
      %vm5225 = vweird.f32 %v5219
      %vm5226 = vmor %vm5224, %vm5225
      %v5227 = vsel %vm5226, %v5219, %v5223
      %v5228 = vand.u32 2147483647, %v4596
      %vm5229 = vcmp.eq.f32.partialorder %v5228, 8.507059e+37
      %v5230 = vand.u32 %v4596, 2147483648
      %v5231 = vor.u32 1.1754944e-38, %v5230
      %v5232 = vsel %vm5229, %v5231, %v5227
      %v5233 = vrcp.pop %v4597
      %v5234 = vmul.f32 %v4597, %v5233
      %v5235 = vsub.f32 1.0, %v5234
      %v5236 = vmul.f32 %v5233, %v5235
      %v5237 = vadd.f32 %v5233, %v5236
      %vm5238 = vweird.f32 %v4597
      %vm5239 = vweird.f32 %v5233
      %vm5240 = vmor %vm5238, %vm5239
      %v5241 = vsel %vm5240, %v5233, %v5237
      %v5242 = vand.u32 2147483647, %v4597
      %vm5243 = vcmp.eq.f32.partialorder %v5242, 8.507059e+37
      %v5244 = vand.u32 %v4597, 2147483648
      %v5245 = vor.u32 1.1754944e-38, %v5244
      %v5246 = vsel %vm5243, %v5245, %v5241
      %v5247 = vrcp.pop %v4598
      %v5248 = vmul.f32 %v4598, %v5247
      %v5249 = vsub.f32 1.0, %v5248
      %v5250 = vmul.f32 %v5247, %v5249
      %v5251 = vadd.f32 %v5247, %v5250
      %vm5252 = vweird.f32 %v4598
      %vm5253 = vweird.f32 %v5247
      %vm5254 = vmor %vm5252, %vm5253
      %v5255 = vsel %vm5254, %v5247, %v5251
      %v5256 = vand.u32 2147483647, %v4598
      %vm5257 = vcmp.eq.f32.partialorder %v5256, 8.507059e+37
      %v5258 = vand.u32 %v4598, 2147483648
      %v5259 = vor.u32 1.1754944e-38, %v5258
      %v5260 = vsel %vm5257, %v5259, %v5255
      %v5261 = vrcp.pop %v4599
      %v5262 = vmul.f32 %v4599, %v5261
      %v5263 = vsub.f32 1.0, %v5262
      %v5264 = vmul.f32 %v5261, %v5263
      %v5265 = vadd.f32 %v5261, %v5264
      %vm5266 = vweird.f32 %v4599
      %vm5267 = vweird.f32 %v5261
      %vm5268 = vmor %vm5266, %vm5267
      %v5269 = vsel %vm5268, %v5261, %v5265
      %v5270 = vand.u32 2147483647, %v4599
      %vm5271 = vcmp.eq.f32.partialorder %v5270, 8.507059e+37
      %v5272 = vand.u32 %v4599, 2147483648
      %v5273 = vor.u32 1.1754944e-38, %v5272
      %v5274 = vsel %vm5271, %v5273, %v5269
      %v5275 = vrcp.pop %v4600
      %v5276 = vmul.f32 %v4600, %v5275
      %v5277 = vsub.f32 1.0, %v5276
      %v5278 = vmul.f32 %v5275, %v5277
      %v5279 = vadd.f32 %v5275, %v5278
      %vm5280 = vweird.f32 %v4600
      %vm5281 = vweird.f32 %v5275
      %vm5282 = vmor %vm5280, %vm5281
      %v5283 = vsel %vm5282, %v5275, %v5279
      %v5284 = vand.u32 2147483647, %v4600
      %vm5285 = vcmp.eq.f32.partialorder %v5284, 8.507059e+37
      %v5286 = vand.u32 %v4600, 2147483648
      %v5287 = vor.u32 1.1754944e-38, %v5286
      %v5288 = vsel %vm5285, %v5287, %v5283
      %v5289 = vrcp.pop %v4601
      %v5290 = vmul.f32 %v4601, %v5289
      %v5291 = vsub.f32 1.0, %v5290
      %v5292 = vmul.f32 %v5289, %v5291
      %v5293 = vadd.f32 %v5289, %v5292
      %vm5294 = vweird.f32 %v4601
      %vm5295 = vweird.f32 %v5289
      %vm5296 = vmor %vm5294, %vm5295
      %v5297 = vsel %vm5296, %v5289, %v5293
      %v5298 = vand.u32 2147483647, %v4601
      %vm5299 = vcmp.eq.f32.partialorder %v5298, 8.507059e+37
      %v5300 = vand.u32 %v4601, 2147483648
      %v5301 = vor.u32 1.1754944e-38, %v5300
      %v5302 = vsel %vm5299, %v5301, %v5297
      %v5303 = vrcp.pop %v4602
      %v5304 = vmul.f32 %v4602, %v5303
      %v5305 = vsub.f32 1.0, %v5304
      %v5306 = vmul.f32 %v5303, %v5305
      %v5307 = vadd.f32 %v5303, %v5306
      %vm5308 = vweird.f32 %v4602
      %vm5309 = vweird.f32 %v5303
      %vm5310 = vmor %vm5308, %vm5309
      %v5311 = vsel %vm5310, %v5303, %v5307
      %v5312 = vand.u32 2147483647, %v4602
      %vm5313 = vcmp.eq.f32.partialorder %v5312, 8.507059e+37
      %v5314 = vand.u32 %v4602, 2147483648
      %v5315 = vor.u32 1.1754944e-38, %v5314
      %v5316 = vsel %vm5313, %v5315, %v5311
      %v5317 = vrcp.pop %v4603
      %v5318 = vmul.f32 %v4603, %v5317
      %v5319 = vsub.f32 1.0, %v5318
      %v5320 = vmul.f32 %v5317, %v5319
      %v5321 = vadd.f32 %v5317, %v5320
      %vm5322 = vweird.f32 %v4603
      %vm5323 = vweird.f32 %v5317
      %vm5324 = vmor %vm5322, %vm5323
      %v5325 = vsel %vm5324, %v5317, %v5321
      %v5326 = vand.u32 2147483647, %v4603
      %vm5327 = vcmp.eq.f32.partialorder %v5326, 8.507059e+37
      %v5328 = vand.u32 %v4603, 2147483648
      %v5329 = vor.u32 1.1754944e-38, %v5328
      %v5330 = vsel %vm5327, %v5329, %v5325
      %v5331 = vrcp.pop %v4604
      %v5332 = vmul.f32 %v4604, %v5331
      %v5333 = vsub.f32 1.0, %v5332
      %v5334 = vmul.f32 %v5331, %v5333
      %v5335 = vadd.f32 %v5331, %v5334
      %vm5336 = vweird.f32 %v4604
      %vm5337 = vweird.f32 %v5331
      %vm5338 = vmor %vm5336, %vm5337
      %v5339 = vsel %vm5338, %v5331, %v5335
      %v5340 = vand.u32 2147483647, %v4604
      %vm5341 = vcmp.eq.f32.partialorder %v5340, 8.507059e+37
      %v5342 = vand.u32 %v4604, 2147483648
      %v5343 = vor.u32 1.1754944e-38, %v5342
      %v5344 = vsel %vm5341, %v5343, %v5339
      %v5345 = vrcp.pop %v4605
      %v5346 = vmul.f32 %v4605, %v5345
      %v5347 = vsub.f32 1.0, %v5346
      %v5348 = vmul.f32 %v5345, %v5347
      %v5349 = vadd.f32 %v5345, %v5348
      %vm5350 = vweird.f32 %v4605
      %vm5351 = vweird.f32 %v5345
      %vm5352 = vmor %vm5350, %vm5351
      %v5353 = vsel %vm5352, %v5345, %v5349
      %v5354 = vand.u32 2147483647, %v4605
      %vm5355 = vcmp.eq.f32.partialorder %v5354, 8.507059e+37
      %v5356 = vand.u32 %v4605, 2147483648
      %v5357 = vor.u32 1.1754944e-38, %v5356
      %v5358 = vsel %vm5355, %v5357, %v5353
      %v5359 = vrcp.pop %v4606
      %v5360 = vmul.f32 %v4606, %v5359
      %v5361 = vsub.f32 1.0, %v5360
      %v5362 = vmul.f32 %v5359, %v5361
      %v5363 = vadd.f32 %v5359, %v5362
      %vm5364 = vweird.f32 %v4606
      %vm5365 = vweird.f32 %v5359
      %vm5366 = vmor %vm5364, %vm5365
      %v5367 = vsel %vm5366, %v5359, %v5363
      %v5368 = vand.u32 2147483647, %v4606
      %vm5369 = vcmp.eq.f32.partialorder %v5368, 8.507059e+37
      %v5370 = vand.u32 %v4606, 2147483648
      %v5371 = vor.u32 1.1754944e-38, %v5370
      %v5372 = vsel %vm5369, %v5371, %v5367
      %v5373 = vrcp.pop %v4607
      %v5374 = vmul.f32 %v4607, %v5373
      %v5375 = vsub.f32 1.0, %v5374
      %v5376 = vmul.f32 %v5373, %v5375
      %v5377 = vadd.f32 %v5373, %v5376
      %vm5378 = vweird.f32 %v4607
      %vm5379 = vweird.f32 %v5373
      %vm5380 = vmor %vm5378, %vm5379
      %v5381 = vsel %vm5380, %v5373, %v5377
      %v5382 = vand.u32 2147483647, %v4607
      %vm5383 = vcmp.eq.f32.partialorder %v5382, 8.507059e+37
      %v5384 = vand.u32 %v4607, 2147483648
      %v5385 = vor.u32 1.1754944e-38, %v5384
      %v5386 = vsel %vm5383, %v5385, %v5381
      %v5387 = vrcp.pop %v4608
      %v5388 = vmul.f32 %v4608, %v5387
      %v5389 = vsub.f32 1.0, %v5388
      %v5390 = vmul.f32 %v5387, %v5389
      %v5391 = vadd.f32 %v5387, %v5390
      %vm5392 = vweird.f32 %v4608
      %vm5393 = vweird.f32 %v5387
      %vm5394 = vmor %vm5392, %vm5393
      %v5395 = vsel %vm5394, %v5387, %v5391
      %v5396 = vand.u32 2147483647, %v4608
      %vm5397 = vcmp.eq.f32.partialorder %v5396, 8.507059e+37
      %v5398 = vand.u32 %v4608, 2147483648
      %v5399 = vor.u32 1.1754944e-38, %v5398
      %v5400 = vsel %vm5397, %v5399, %v5395
      %v5401 = vrcp.pop %v4609
      %v5402 = vmul.f32 %v4609, %v5401
      %v5403 = vsub.f32 1.0, %v5402
      %v5404 = vmul.f32 %v5401, %v5403
      %v5405 = vadd.f32 %v5401, %v5404
      %vm5406 = vweird.f32 %v4609
      %vm5407 = vweird.f32 %v5401
      %vm5408 = vmor %vm5406, %vm5407
      %v5409 = vsel %vm5408, %v5401, %v5405
      %v5410 = vand.u32 2147483647, %v4609
      %vm5411 = vcmp.eq.f32.partialorder %v5410, 8.507059e+37
      %v5412 = vand.u32 %v4609, 2147483648
      %v5413 = vor.u32 1.1754944e-38, %v5412
      %v5414 = vsel %vm5411, %v5413, %v5409
      %v5415 = vrcp.pop %v4610
      %v5416 = vmul.f32 %v4610, %v5415
      %v5417 = vsub.f32 1.0, %v5416
      %v5418 = vmul.f32 %v5415, %v5417
      %v5419 = vadd.f32 %v5415, %v5418
      %vm5420 = vweird.f32 %v4610
      %vm5421 = vweird.f32 %v5415
      %vm5422 = vmor %vm5420, %vm5421
      %v5423 = vsel %vm5422, %v5415, %v5419
      %v5424 = vand.u32 2147483647, %v4610
      %vm5425 = vcmp.eq.f32.partialorder %v5424, 8.507059e+37
      %v5426 = vand.u32 %v4610, 2147483648
      %v5427 = vor.u32 1.1754944e-38, %v5426
      %v5428 = vsel %vm5425, %v5427, %v5423
      %v5429 = vrcp.pop %v4611
      %v5430 = vmul.f32 %v4611, %v5429
      %v5431 = vsub.f32 1.0, %v5430
      %v5432 = vmul.f32 %v5429, %v5431
      %v5433 = vadd.f32 %v5429, %v5432
      %vm5434 = vweird.f32 %v4611
      %vm5435 = vweird.f32 %v5429
      %vm5436 = vmor %vm5434, %vm5435
      %v5437 = vsel %vm5436, %v5429, %v5433
      %v5438 = vand.u32 2147483647, %v4611
      %vm5439 = vcmp.eq.f32.partialorder %v5438, 8.507059e+37
      %v5440 = vand.u32 %v4611, 2147483648
      %v5441 = vor.u32 1.1754944e-38, %v5440
      %v5442 = vsel %vm5439, %v5441, %v5437
      %v5443 = vrcp.pop %v4612
      %v5444 = vmul.f32 %v4612, %v5443
      %v5445 = vsub.f32 1.0, %v5444
      %v5446 = vmul.f32 %v5443, %v5445
      %v5447 = vadd.f32 %v5443, %v5446
      %vm5448 = vweird.f32 %v4612
      %vm5449 = vweird.f32 %v5443
      %vm5450 = vmor %vm5448, %vm5449
      %v5451 = vsel %vm5450, %v5443, %v5447
      %v5452 = vand.u32 2147483647, %v4612
      %vm5453 = vcmp.eq.f32.partialorder %v5452, 8.507059e+37
      %v5454 = vand.u32 %v4612, 2147483648
      %v5455 = vor.u32 1.1754944e-38, %v5454
      %v5456 = vsel %vm5453, %v5455, %v5451
      %v5457 = vrcp.pop %v4613
      %v5458 = vmul.f32 %v4613, %v5457
      %v5459 = vsub.f32 1.0, %v5458
      %v5460 = vmul.f32 %v5457, %v5459
      %v5461 = vadd.f32 %v5457, %v5460
      %vm5462 = vweird.f32 %v4613
      %vm5463 = vweird.f32 %v5457
      %vm5464 = vmor %vm5462, %vm5463
      %v5465 = vsel %vm5464, %v5457, %v5461
      %v5466 = vand.u32 2147483647, %v4613
      %vm5467 = vcmp.eq.f32.partialorder %v5466, 8.507059e+37
      %v5468 = vand.u32 %v4613, 2147483648
      %v5469 = vor.u32 1.1754944e-38, %v5468
      %v5470 = vsel %vm5467, %v5469, %v5465
      %v5471 = vrcp.pop %v4614
      %v5472 = vmul.f32 %v4614, %v5471
      %v5473 = vsub.f32 1.0, %v5472
      %v5474 = vmul.f32 %v5471, %v5473
      %v5475 = vadd.f32 %v5471, %v5474
      %vm5476 = vweird.f32 %v4614
      %vm5477 = vweird.f32 %v5471
      %vm5478 = vmor %vm5476, %vm5477
      %v5479 = vsel %vm5478, %v5471, %v5475
      %v5480 = vand.u32 2147483647, %v4614
      %vm5481 = vcmp.eq.f32.partialorder %v5480, 8.507059e+37
      %v5482 = vand.u32 %v4614, 2147483648
      %v5483 = vor.u32 1.1754944e-38, %v5482
      %v5484 = vsel %vm5481, %v5483, %v5479
      %v5485 = vrcp.pop %v4615
      %v5486 = vmul.f32 %v4615, %v5485
      %v5487 = vsub.f32 1.0, %v5486
      %v5488 = vmul.f32 %v5485, %v5487
      %v5489 = vadd.f32 %v5485, %v5488
      %vm5490 = vweird.f32 %v4615
      %vm5491 = vweird.f32 %v5485
      %vm5492 = vmor %vm5490, %vm5491
      %v5493 = vsel %vm5492, %v5485, %v5489
      %v5494 = vand.u32 2147483647, %v4615
      %vm5495 = vcmp.eq.f32.partialorder %v5494, 8.507059e+37
      %v5496 = vand.u32 %v4615, 2147483648
      %v5497 = vor.u32 1.1754944e-38, %v5496
      %v5498 = vsel %vm5495, %v5497, %v5493
      %v5499 = vrcp.pop %v4616
      %v5500 = vmul.f32 %v4616, %v5499
      %v5501 = vsub.f32 1.0, %v5500
      %v5502 = vmul.f32 %v5499, %v5501
      %v5503 = vadd.f32 %v5499, %v5502
      %vm5504 = vweird.f32 %v4616
      %vm5505 = vweird.f32 %v5499
      %vm5506 = vmor %vm5504, %vm5505
      %v5507 = vsel %vm5506, %v5499, %v5503
      %v5508 = vand.u32 2147483647, %v4616
      %vm5509 = vcmp.eq.f32.partialorder %v5508, 8.507059e+37
      %v5510 = vand.u32 %v4616, 2147483648
      %v5511 = vor.u32 1.1754944e-38, %v5510
      %v5512 = vsel %vm5509, %v5511, %v5507
      %5514 = vset.pattern.permute.xlu0 0
      %5515 = vperm.xlu0 %5514, %v4234
      %v5516 = vpop.permute.xlu0 %5515
      %5519 = vset.pattern.permute.xlu0 0
      %5520 = vperm.xlu0 %5519, %v4236
      %v5521 = vpop.permute.xlu0 %5520
      %5524 = vset.pattern.permute.xlu0 0
      %5525 = vperm.xlu0 %5524, %v4238
      %v5526 = vpop.permute.xlu0 %5525
      %5529 = vset.pattern.permute.xlu0 0
      %5530 = vperm.xlu0 %5529, %v4240
      %v5531 = vpop.permute.xlu0 %5530
      %5534 = vset.pattern.permute.xlu0 0
      %5535 = vperm.xlu0 %5534, %v4242
      %v5536 = vpop.permute.xlu0 %5535
      %5539 = vset.pattern.permute.xlu0 0
      %5540 = vperm.xlu0 %5539, %v4244
      %v5541 = vpop.permute.xlu0 %5540
      %5544 = vset.pattern.permute.xlu0 0
      %5545 = vperm.xlu0 %5544, %v4246
      %v5546 = vpop.permute.xlu0 %5545
      %5549 = vset.pattern.permute.xlu0 0
      %5550 = vperm.xlu0 %5549, %v4248
      %v5551 = vpop.permute.xlu0 %5550
      %5554 = vset.pattern.permute.xlu0 0
      %5555 = vperm.xlu0 %5554, %v4250
      %v5556 = vpop.permute.xlu0 %5555
      %5559 = vset.pattern.permute.xlu0 0
      %5560 = vperm.xlu0 %5559, %v4252
      %v5561 = vpop.permute.xlu0 %5560
      %5564 = vset.pattern.permute.xlu0 0
      %5565 = vperm.xlu0 %5564, %v4254
      %v5566 = vpop.permute.xlu0 %5565
      %5569 = vset.pattern.permute.xlu0 0
      %5570 = vperm.xlu0 %5569, %v4256
      %v5571 = vpop.permute.xlu0 %5570
      %5574 = vset.pattern.permute.xlu0 0
      %5575 = vperm.xlu0 %5574, %v4258
      %v5576 = vpop.permute.xlu0 %5575
      %5579 = vset.pattern.permute.xlu0 0
      %5580 = vperm.xlu0 %5579, %v4260
      %v5581 = vpop.permute.xlu0 %5580
      %5584 = vset.pattern.permute.xlu0 0
      %5585 = vperm.xlu0 %5584, %v4262
      %v5586 = vpop.permute.xlu0 %5585
      %5589 = vset.pattern.permute.xlu0 0
      %5590 = vperm.xlu0 %5589, %v4264
      %v5591 = vpop.permute.xlu0 %5590
      %5594 = vset.pattern.permute.xlu0 0
      %5595 = vperm.xlu0 %5594, %v4266
      %v5596 = vpop.permute.xlu0 %5595
      %5599 = vset.pattern.permute.xlu0 0
      %5600 = vperm.xlu0 %5599, %v4268
      %v5601 = vpop.permute.xlu0 %5600
      %5604 = vset.pattern.permute.xlu0 0
      %5605 = vperm.xlu0 %5604, %v4270
      %v5606 = vpop.permute.xlu0 %5605
      %5609 = vset.pattern.permute.xlu0 0
      %5610 = vperm.xlu0 %5609, %v4272
      %v5611 = vpop.permute.xlu0 %5610
      %5614 = vset.pattern.permute.xlu0 0
      %5615 = vperm.xlu0 %5614, %v4274
      %v5616 = vpop.permute.xlu0 %5615
      %5619 = vset.pattern.permute.xlu0 0
      %5620 = vperm.xlu0 %5619, %v4276
      %v5621 = vpop.permute.xlu0 %5620
      %5624 = vset.pattern.permute.xlu0 0
      %5625 = vperm.xlu0 %5624, %v4278
      %v5626 = vpop.permute.xlu0 %5625
      %5629 = vset.pattern.permute.xlu0 0
      %5630 = vperm.xlu0 %5629, %v4280
      %v5631 = vpop.permute.xlu0 %5630
      %5634 = vset.pattern.permute.xlu0 0
      %5635 = vperm.xlu0 %5634, %v4282
      %v5636 = vpop.permute.xlu0 %5635
      %5639 = vset.pattern.permute.xlu0 0
      %5640 = vperm.xlu0 %5639, %v4284
      %v5641 = vpop.permute.xlu0 %5640
      %5644 = vset.pattern.permute.xlu0 0
      %5645 = vperm.xlu0 %5644, %v4286
      %v5646 = vpop.permute.xlu0 %5645
      %5649 = vset.pattern.permute.xlu0 0
      %5650 = vperm.xlu0 %5649, %v4288
      %v5651 = vpop.permute.xlu0 %5650
      %5654 = vset.pattern.permute.xlu0 0
      %5655 = vperm.xlu0 %5654, %v4290
      %v5656 = vpop.permute.xlu0 %5655
      %5659 = vset.pattern.permute.xlu0 0
      %5660 = vperm.xlu0 %5659, %v4292
      %v5661 = vpop.permute.xlu0 %5660
      %5664 = vset.pattern.permute.xlu0 0
      %5665 = vperm.xlu0 %5664, %v4294
      %v5666 = vpop.permute.xlu0 %5665
      %5669 = vset.pattern.permute.xlu0 0
      %5670 = vperm.xlu0 %5669, %v4296
      %v5671 = vpop.permute.xlu0 %5670
      %5674 = vset.pattern.permute.xlu0 0
      %5675 = vperm.xlu0 %5674, %v4298
      %v5676 = vpop.permute.xlu0 %5675
      %5679 = vset.pattern.permute.xlu0 0
      %5680 = vperm.xlu0 %5679, %v4300
      %v5681 = vpop.permute.xlu0 %5680
      %5684 = vset.pattern.permute.xlu0 0
      %5685 = vperm.xlu0 %5684, %v4302
      %v5686 = vpop.permute.xlu0 %5685
      %5689 = vset.pattern.permute.xlu0 0
      %5690 = vperm.xlu0 %5689, %v4304
      %v5691 = vpop.permute.xlu0 %5690
      %5694 = vset.pattern.permute.xlu0 0
      %5695 = vperm.xlu0 %5694, %v4306
      %v5696 = vpop.permute.xlu0 %5695
      %5699 = vset.pattern.permute.xlu0 0
      %5700 = vperm.xlu0 %5699, %v4308
      %v5701 = vpop.permute.xlu0 %5700
      %5704 = vset.pattern.permute.xlu0 0
      %5705 = vperm.xlu0 %5704, %v4310
      %v5706 = vpop.permute.xlu0 %5705
      %5709 = vset.pattern.permute.xlu0 0
      %5710 = vperm.xlu0 %5709, %v4312
      %v5711 = vpop.permute.xlu0 %5710
      %5714 = vset.pattern.permute.xlu0 0
      %5715 = vperm.xlu0 %5714, %v4314
      %v5716 = vpop.permute.xlu0 %5715
      %5719 = vset.pattern.permute.xlu0 0
      %5720 = vperm.xlu0 %5719, %v4316
      %v5721 = vpop.permute.xlu0 %5720
      %5724 = vset.pattern.permute.xlu0 0
      %5725 = vperm.xlu0 %5724, %v4318
      %v5726 = vpop.permute.xlu0 %5725
      %5729 = vset.pattern.permute.xlu0 0
      %5730 = vperm.xlu0 %5729, %v4320
      %v5731 = vpop.permute.xlu0 %5730
      %5734 = vset.pattern.permute.xlu0 0
      %5735 = vperm.xlu0 %5734, %v4322
      %v5736 = vpop.permute.xlu0 %5735
      %5739 = vset.pattern.permute.xlu0 0
      %5740 = vperm.xlu0 %5739, %v4324
      %v5741 = vpop.permute.xlu0 %5740
      %5744 = vset.pattern.permute.xlu0 0
      %5745 = vperm.xlu0 %5744, %v4326
      %v5746 = vpop.permute.xlu0 %5745
      %5749 = vset.pattern.permute.xlu0 0
      %5750 = vperm.xlu0 %5749, %v4328
      %v5751 = vpop.permute.xlu0 %5750
      %5754 = vset.pattern.permute.xlu0 0
      %5755 = vperm.xlu0 %5754, %v4330
      %v5756 = vpop.permute.xlu0 %5755
      %5759 = vset.pattern.permute.xlu0 0
      %5760 = vperm.xlu0 %5759, %v4332
      %v5761 = vpop.permute.xlu0 %5760
      %5764 = vset.pattern.permute.xlu0 0
      %5765 = vperm.xlu0 %5764, %v4334
      %v5766 = vpop.permute.xlu0 %5765
      %5769 = vset.pattern.permute.xlu0 0
      %5770 = vperm.xlu0 %5769, %v4336
      %v5771 = vpop.permute.xlu0 %5770
      %5774 = vset.pattern.permute.xlu0 0
      %5775 = vperm.xlu0 %5774, %v4338
      %v5776 = vpop.permute.xlu0 %5775
      %5779 = vset.pattern.permute.xlu0 0
      %5780 = vperm.xlu0 %5779, %v4340
      %v5781 = vpop.permute.xlu0 %5780
      %5784 = vset.pattern.permute.xlu0 0
      %5785 = vperm.xlu0 %5784, %v4342
      %v5786 = vpop.permute.xlu0 %5785
      %5789 = vset.pattern.permute.xlu0 0
      %5790 = vperm.xlu0 %5789, %v4344
      %v5791 = vpop.permute.xlu0 %5790
      %5794 = vset.pattern.permute.xlu0 0
      %5795 = vperm.xlu0 %5794, %v4346
      %v5796 = vpop.permute.xlu0 %5795
      %5799 = vset.pattern.permute.xlu0 0
      %5800 = vperm.xlu0 %5799, %v4348
      %v5801 = vpop.permute.xlu0 %5800
      %5804 = vset.pattern.permute.xlu0 0
      %5805 = vperm.xlu0 %5804, %v4350
      %v5806 = vpop.permute.xlu0 %5805
      %5809 = vset.pattern.permute.xlu0 0
      %5810 = vperm.xlu0 %5809, %v4352
      %v5811 = vpop.permute.xlu0 %5810
      %5814 = vset.pattern.permute.xlu0 0
      %5815 = vperm.xlu0 %5814, %v4354
      %v5816 = vpop.permute.xlu0 %5815
      %5819 = vset.pattern.permute.xlu0 0
      %5820 = vperm.xlu0 %5819, %v4356
      %v5821 = vpop.permute.xlu0 %5820
      %5824 = vset.pattern.permute.xlu0 0
      %5825 = vperm.xlu0 %5824, %v4358
      %v5826 = vpop.permute.xlu0 %5825
      %5829 = vset.pattern.permute.xlu0 0
      %5830 = vperm.xlu0 %5829, %v4360
      %v5831 = vpop.permute.xlu0 %5830
      %v5833 = vperm.slane %v1369, 2
      %v5834 = vmul.f32 %v5516, %v5833
      %v5835 = vmul.f32 %v5521, %v5833
      %v5836 = vmul.f32 %v5526, %v5833
      %v5837 = vmul.f32 %v5531, %v5833
      %v5838 = vmul.f32 %v5536, %v5833
      %v5839 = vmul.f32 %v5541, %v5833
      %v5840 = vmul.f32 %v5546, %v5833
      %v5841 = vmul.f32 %v5551, %v5833
      %v5842 = vmul.f32 %v5556, %v5833
      %v5843 = vmul.f32 %v5561, %v5833
      %v5844 = vmul.f32 %v5566, %v5833
      %v5845 = vmul.f32 %v5571, %v5833
      %v5846 = vmul.f32 %v5576, %v5833
      %v5847 = vmul.f32 %v5581, %v5833
      %v5848 = vmul.f32 %v5586, %v5833
      %v5849 = vmul.f32 %v5591, %v5833
      %v5850 = vmul.f32 %v5596, %v5833
      %v5851 = vmul.f32 %v5601, %v5833
      %v5852 = vmul.f32 %v5606, %v5833
      %v5853 = vmul.f32 %v5611, %v5833
      %v5854 = vmul.f32 %v5616, %v5833
      %v5855 = vmul.f32 %v5621, %v5833
      %v5856 = vmul.f32 %v5626, %v5833
      %v5857 = vmul.f32 %v5631, %v5833
      %v5858 = vmul.f32 %v5636, %v5833
      %v5859 = vmul.f32 %v5641, %v5833
      %v5860 = vmul.f32 %v5646, %v5833
      %v5861 = vmul.f32 %v5651, %v5833
      %v5862 = vmul.f32 %v5656, %v5833
      %v5863 = vmul.f32 %v5661, %v5833
      %v5864 = vmul.f32 %v5666, %v5833
      %v5865 = vmul.f32 %v5671, %v5833
      %v5866 = vmul.f32 %v5676, %v5833
      %v5867 = vmul.f32 %v5681, %v5833
      %v5868 = vmul.f32 %v5686, %v5833
      %v5869 = vmul.f32 %v5691, %v5833
      %v5870 = vmul.f32 %v5696, %v5833
      %v5871 = vmul.f32 %v5701, %v5833
      %v5872 = vmul.f32 %v5706, %v5833
      %v5873 = vmul.f32 %v5711, %v5833
      %v5874 = vmul.f32 %v5716, %v5833
      %v5875 = vmul.f32 %v5721, %v5833
      %v5876 = vmul.f32 %v5726, %v5833
      %v5877 = vmul.f32 %v5731, %v5833
      %v5878 = vmul.f32 %v5736, %v5833
      %v5879 = vmul.f32 %v5741, %v5833
      %v5880 = vmul.f32 %v5746, %v5833
      %v5881 = vmul.f32 %v5751, %v5833
      %v5882 = vmul.f32 %v5756, %v5833
      %v5883 = vmul.f32 %v5761, %v5833
      %v5884 = vmul.f32 %v5766, %v5833
      %v5885 = vmul.f32 %v5771, %v5833
      %v5886 = vmul.f32 %v5776, %v5833
      %v5887 = vmul.f32 %v5781, %v5833
      %v5888 = vmul.f32 %v5786, %v5833
      %v5889 = vmul.f32 %v5791, %v5833
      %v5890 = vmul.f32 %v5796, %v5833
      %v5891 = vmul.f32 %v5801, %v5833
      %v5892 = vmul.f32 %v5806, %v5833
      %v5893 = vmul.f32 %v5811, %v5833
      %v5894 = vmul.f32 %v5816, %v5833
      %v5895 = vmul.f32 %v5821, %v5833
      %v5896 = vmul.f32 %v5826, %v5833
      %v5897 = vmul.f32 %v5831, %v5833
      %5930 = vrot.lane.b32.xlu0 %v1408, 96
      %v5931 = vpop.permute.xlu0 %5930
      %5932 = vrot.lane.b32.xlu0 %v1409, 96
      %v5933 = vpop.permute.xlu0 %5932
      %5934 = vrot.lane.b32.xlu0 %v1410, 96
      %v5935 = vpop.permute.xlu0 %5934
      %5936 = vrot.lane.b32.xlu0 %v1411, 96
      %v5937 = vpop.permute.xlu0 %5936
      %5938 = vrot.lane.b32.xlu0 %v1412, 96
      %v5939 = vpop.permute.xlu0 %5938
      %5940 = vrot.lane.b32.xlu0 %v1413, 96
      %v5941 = vpop.permute.xlu0 %5940
      %5942 = vrot.lane.b32.xlu0 %v1414, 96
      %v5943 = vpop.permute.xlu0 %5942
      %5944 = vrot.lane.b32.xlu0 %v1415, 96
      %v5945 = vpop.permute.xlu0 %5944
      %5946 = vrot.lane.b32.xlu0 %v1416, 96
      %v5947 = vpop.permute.xlu0 %5946
      %5948 = vrot.lane.b32.xlu0 %v1417, 96
      %v5949 = vpop.permute.xlu0 %5948
      %5950 = vrot.lane.b32.xlu0 %v1418, 96
      %v5951 = vpop.permute.xlu0 %5950
      %5952 = vrot.lane.b32.xlu0 %v1419, 96
      %v5953 = vpop.permute.xlu0 %5952
      %5954 = vrot.lane.b32.xlu0 %v1420, 96
      %v5955 = vpop.permute.xlu0 %5954
      %5956 = vrot.lane.b32.xlu0 %v1421, 96
      %v5957 = vpop.permute.xlu0 %5956
      %5958 = vrot.lane.b32.xlu0 %v1422, 96
      %v5959 = vpop.permute.xlu0 %5958
      %5960 = vrot.lane.b32.xlu0 %v1423, 96
      %v5961 = vpop.permute.xlu0 %5960
      %5962 = vrot.lane.b32.xlu0 %v1424, 96
      %v5963 = vpop.permute.xlu0 %5962
      %5964 = vrot.lane.b32.xlu0 %v1425, 96
      %v5965 = vpop.permute.xlu0 %5964
      %5966 = vrot.lane.b32.xlu0 %v1426, 96
      %v5967 = vpop.permute.xlu0 %5966
      %5968 = vrot.lane.b32.xlu0 %v1427, 96
      %v5969 = vpop.permute.xlu0 %5968
      %5970 = vrot.lane.b32.xlu0 %v1428, 96
      %v5971 = vpop.permute.xlu0 %5970
      %5972 = vrot.lane.b32.xlu0 %v1429, 96
      %v5973 = vpop.permute.xlu0 %5972
      %5974 = vrot.lane.b32.xlu0 %v1430, 96
      %v5975 = vpop.permute.xlu0 %5974
      %5976 = vrot.lane.b32.xlu0 %v1431, 96
      %v5977 = vpop.permute.xlu0 %5976
      %5978 = vrot.lane.b32.xlu0 %v1432, 96
      %v5979 = vpop.permute.xlu0 %5978
      %5980 = vrot.lane.b32.xlu0 %v1433, 96
      %v5981 = vpop.permute.xlu0 %5980
      %5982 = vrot.lane.b32.xlu0 %v1434, 96
      %v5983 = vpop.permute.xlu0 %5982
      %5984 = vrot.lane.b32.xlu0 %v1435, 96
      %v5985 = vpop.permute.xlu0 %5984
      %5986 = vrot.lane.b32.xlu0 %v1436, 96
      %v5987 = vpop.permute.xlu0 %5986
      %5988 = vrot.lane.b32.xlu0 %v1437, 96
      %v5989 = vpop.permute.xlu0 %5988
      %5990 = vrot.lane.b32.xlu0 %v1438, 96
      %v5991 = vpop.permute.xlu0 %5990
      %5992 = vrot.lane.b32.xlu0 %v1439, 96
      %v5993 = vpop.permute.xlu0 %5992
      %6026 = vmatpush.msra.mxu0 %v5961
      %6027 = vmatpush.msra.mxu0 %v5959
      %6028 = vmatpush.msra.mxu0 %v5957
      %6029 = vmatpush.msra.mxu0 %v5955
      %6030 = vmatpush.msra.mxu0 %v5953
      %6031 = vmatpush.msra.mxu0 %v5951
      %6032 = vmatpush.msra.mxu0 %v5949
      %6033 = vmatpush.msra.mxu0 %v5947
      %6034 = vmatpush.msra.mxu0 %v5945
      %6035 = vmatpush.msra.mxu0 %v5943
      %6036 = vmatpush.msra.mxu0 %v5941
      %6037 = vmatpush.msra.mxu0 %v5939
      %6038 = vmatpush.msra.mxu0 %v5937
      %6039 = vmatpush.msra.mxu0 %v5935
      %6040 = vmatpush.msra.mxu0 %v5933
      %6041 = vmatpush.msra.mxu0 %v5931
      %6042 = vmatmul.f32.gmra.mxu0 %v3914
      %v6043 = vpop.f32.mrf.mxu0
      %v6044 = vadd.f32 %v5834, %v6043
      %6045 = vmatmul.f32.gmra.mxu0 %v3918
      %v6046 = vpop.f32.mrf.mxu0
      %v6047 = vadd.f32 %v5835, %v6046
      %6048 = vmatmul.f32.gmra.mxu0 %v3922
      %v6049 = vpop.f32.mrf.mxu0
      %v6050 = vadd.f32 %v5836, %v6049
      %6051 = vmatmul.f32.gmra.mxu0 %v3926
      %v6052 = vpop.f32.mrf.mxu0
      %v6053 = vadd.f32 %v5837, %v6052
      %6054 = vmatmul.f32.gmra.mxu0 %v3930
      %v6055 = vpop.f32.mrf.mxu0
      %v6056 = vadd.f32 %v5838, %v6055
      %6057 = vmatmul.f32.gmra.mxu0 %v3934
      %v6058 = vpop.f32.mrf.mxu0
      %v6059 = vadd.f32 %v5839, %v6058
      %6060 = vmatmul.f32.gmra.mxu0 %v3938
      %v6061 = vpop.f32.mrf.mxu0
      %v6062 = vadd.f32 %v5840, %v6061
      %6063 = vmatmul.f32.gmra.mxu0 %v3942
      %v6064 = vpop.f32.mrf.mxu0
      %v6065 = vadd.f32 %v5841, %v6064
      %6066 = vmatmul.f32.gmra.mxu0 %v3946
      %v6067 = vpop.f32.mrf.mxu0
      %v6068 = vadd.f32 %v5842, %v6067
      %6069 = vmatmul.f32.gmra.mxu0 %v3950
      %v6070 = vpop.f32.mrf.mxu0
      %v6071 = vadd.f32 %v5843, %v6070
      %6072 = vmatmul.f32.gmra.mxu0 %v3954
      %v6073 = vpop.f32.mrf.mxu0
      %v6074 = vadd.f32 %v5844, %v6073
      %6075 = vmatmul.f32.gmra.mxu0 %v3958
      %v6076 = vpop.f32.mrf.mxu0
      %v6077 = vadd.f32 %v5845, %v6076
      %6078 = vmatmul.f32.gmra.mxu0 %v3962
      %v6079 = vpop.f32.mrf.mxu0
      %v6080 = vadd.f32 %v5846, %v6079
      %6081 = vmatmul.f32.gmra.mxu0 %v3966
      %v6082 = vpop.f32.mrf.mxu0
      %v6083 = vadd.f32 %v5847, %v6082
      %6084 = vmatmul.f32.gmra.mxu0 %v3970
      %v6085 = vpop.f32.mrf.mxu0
      %v6086 = vadd.f32 %v5848, %v6085
      %6087 = vmatmul.f32.gmra.mxu0 %v3974
      %v6088 = vpop.f32.mrf.mxu0
      %v6089 = vadd.f32 %v5849, %v6088
      %6090 = vmatmul.f32.gmra.mxu0 %v3978
      %v6091 = vpop.f32.mrf.mxu0
      %v6092 = vadd.f32 %v5850, %v6091
      %6093 = vmatmul.f32.gmra.mxu0 %v3982
      %v6094 = vpop.f32.mrf.mxu0
      %v6095 = vadd.f32 %v5851, %v6094
      %6096 = vmatmul.f32.gmra.mxu0 %v3986
      %v6097 = vpop.f32.mrf.mxu0
      %v6098 = vadd.f32 %v5852, %v6097
      %6099 = vmatmul.f32.gmra.mxu0 %v3990
      %v6100 = vpop.f32.mrf.mxu0
      %v6101 = vadd.f32 %v5853, %v6100
      %6102 = vmatmul.f32.gmra.mxu0 %v3994
      %v6103 = vpop.f32.mrf.mxu0
      %v6104 = vadd.f32 %v5854, %v6103
      %6105 = vmatmul.f32.gmra.mxu0 %v3998
      %v6106 = vpop.f32.mrf.mxu0
      %v6107 = vadd.f32 %v5855, %v6106
      %6108 = vmatmul.f32.gmra.mxu0 %v4002
      %v6109 = vpop.f32.mrf.mxu0
      %v6110 = vadd.f32 %v5856, %v6109
      %6111 = vmatmul.f32.gmra.mxu0 %v4006
      %v6112 = vpop.f32.mrf.mxu0
      %v6113 = vadd.f32 %v5857, %v6112
      %6114 = vmatmul.f32.gmra.mxu0 %v4010
      %v6115 = vpop.f32.mrf.mxu0
      %v6116 = vadd.f32 %v5858, %v6115
      %6117 = vmatmul.f32.gmra.mxu0 %v4014
      %v6118 = vpop.f32.mrf.mxu0
      %v6119 = vadd.f32 %v5859, %v6118
      %6120 = vmatmul.f32.gmra.mxu0 %v4018
      %v6121 = vpop.f32.mrf.mxu0
      %v6122 = vadd.f32 %v5860, %v6121
      %6123 = vmatmul.f32.gmra.mxu0 %v4022
      %v6124 = vpop.f32.mrf.mxu0
      %v6125 = vadd.f32 %v5861, %v6124
      %6126 = vmatmul.f32.gmra.mxu0 %v4026
      %v6127 = vpop.f32.mrf.mxu0
      %v6128 = vadd.f32 %v5862, %v6127
      %6129 = vmatmul.f32.gmra.mxu0 %v4030
      %v6130 = vpop.f32.mrf.mxu0
      %v6131 = vadd.f32 %v5863, %v6130
      %6132 = vmatmul.f32.gmra.mxu0 %v4034
      %v6133 = vpop.f32.mrf.mxu0
      %v6134 = vadd.f32 %v5864, %v6133
      %6135 = vmatmul.f32.gmra.mxu0 %v4038
      %v6136 = vpop.f32.mrf.mxu0
      %v6137 = vadd.f32 %v5865, %v6136
      %6138 = vmatmul.f32.gmra.mxu0 %v4042
      %v6139 = vpop.f32.mrf.mxu0
      %v6140 = vadd.f32 %v5866, %v6139
      %6141 = vmatmul.f32.gmra.mxu0 %v4046
      %v6142 = vpop.f32.mrf.mxu0
      %v6143 = vadd.f32 %v5867, %v6142
      %6144 = vmatmul.f32.gmra.mxu0 %v4050
      %v6145 = vpop.f32.mrf.mxu0
      %v6146 = vadd.f32 %v5868, %v6145
      %6147 = vmatmul.f32.gmra.mxu0 %v4054
      %v6148 = vpop.f32.mrf.mxu0
      %v6149 = vadd.f32 %v5869, %v6148
      %6150 = vmatmul.f32.gmra.mxu0 %v4058
      %v6151 = vpop.f32.mrf.mxu0
      %v6152 = vadd.f32 %v5870, %v6151
      %6153 = vmatmul.f32.gmra.mxu0 %v4062
      %v6154 = vpop.f32.mrf.mxu0
      %v6155 = vadd.f32 %v5871, %v6154
      %6156 = vmatmul.f32.gmra.mxu0 %v4066
      %v6157 = vpop.f32.mrf.mxu0
      %v6158 = vadd.f32 %v5872, %v6157
      %6159 = vmatmul.f32.gmra.mxu0 %v4070
      %v6160 = vpop.f32.mrf.mxu0
      %v6161 = vadd.f32 %v5873, %v6160
      %6162 = vmatmul.f32.gmra.mxu0 %v4074
      %v6163 = vpop.f32.mrf.mxu0
      %v6164 = vadd.f32 %v5874, %v6163
      %6165 = vmatmul.f32.gmra.mxu0 %v4078
      %v6166 = vpop.f32.mrf.mxu0
      %v6167 = vadd.f32 %v5875, %v6166
      %6168 = vmatmul.f32.gmra.mxu0 %v4082
      %v6169 = vpop.f32.mrf.mxu0
      %v6170 = vadd.f32 %v5876, %v6169
      %6171 = vmatmul.f32.gmra.mxu0 %v4086
      %v6172 = vpop.f32.mrf.mxu0
      %v6173 = vadd.f32 %v5877, %v6172
      %6174 = vmatmul.f32.gmra.mxu0 %v4090
      %v6175 = vpop.f32.mrf.mxu0
      %v6176 = vadd.f32 %v5878, %v6175
      %6177 = vmatmul.f32.gmra.mxu0 %v4094
      %v6178 = vpop.f32.mrf.mxu0
      %v6179 = vadd.f32 %v5879, %v6178
      %6180 = vmatmul.f32.gmra.mxu0 %v4098
      %v6181 = vpop.f32.mrf.mxu0
      %v6182 = vadd.f32 %v5880, %v6181
      %6183 = vmatmul.f32.gmra.mxu0 %v4102
      %v6184 = vpop.f32.mrf.mxu0
      %v6185 = vadd.f32 %v5881, %v6184
      %6186 = vmatmul.f32.gmra.mxu0 %v4106
      %v6187 = vpop.f32.mrf.mxu0
      %v6188 = vadd.f32 %v5882, %v6187
      %6189 = vmatmul.f32.gmra.mxu0 %v4110
      %v6190 = vpop.f32.mrf.mxu0
      %v6191 = vadd.f32 %v5883, %v6190
      %6192 = vmatmul.f32.gmra.mxu0 %v4114
      %v6193 = vpop.f32.mrf.mxu0
      %v6194 = vadd.f32 %v5884, %v6193
      %6195 = vmatmul.f32.gmra.mxu0 %v4118
      %v6196 = vpop.f32.mrf.mxu0
      %v6197 = vadd.f32 %v5885, %v6196
      %6198 = vmatmul.f32.gmra.mxu0 %v4122
      %v6199 = vpop.f32.mrf.mxu0
      %v6200 = vadd.f32 %v5886, %v6199
      %6201 = vmatmul.f32.gmra.mxu0 %v4126
      %v6202 = vpop.f32.mrf.mxu0
      %v6203 = vadd.f32 %v5887, %v6202
      %6204 = vmatmul.f32.gmra.mxu0 %v4130
      %v6205 = vpop.f32.mrf.mxu0
      %v6206 = vadd.f32 %v5888, %v6205
      %6207 = vmatmul.f32.gmra.mxu0 %v4134
      %v6208 = vpop.f32.mrf.mxu0
      %v6209 = vadd.f32 %v5889, %v6208
      %6210 = vmatmul.f32.gmra.mxu0 %v4138
      %v6211 = vpop.f32.mrf.mxu0
      %v6212 = vadd.f32 %v5890, %v6211
      %6213 = vmatmul.f32.gmra.mxu0 %v4142
      %v6214 = vpop.f32.mrf.mxu0
      %v6215 = vadd.f32 %v5891, %v6214
      %6216 = vmatmul.f32.gmra.mxu0 %v4146
      %v6217 = vpop.f32.mrf.mxu0
      %v6218 = vadd.f32 %v5892, %v6217
      %6219 = vmatmul.f32.gmra.mxu0 %v4150
      %v6220 = vpop.f32.mrf.mxu0
      %v6221 = vadd.f32 %v5893, %v6220
      %6222 = vmatmul.f32.gmra.mxu0 %v4154
      %v6223 = vpop.f32.mrf.mxu0
      %v6224 = vadd.f32 %v5894, %v6223
      %6225 = vmatmul.f32.gmra.mxu0 %v4158
      %v6226 = vpop.f32.mrf.mxu0
      %v6227 = vadd.f32 %v5895, %v6226
      %6228 = vmatmul.f32.gmra.mxu0 %v4162
      %v6229 = vpop.f32.mrf.mxu0
      %v6230 = vadd.f32 %v5896, %v6229
      %6231 = vmatmul.f32.gmra.mxu0 %v4166
      %v6232 = vpop.f32.mrf.mxu0
      %v6233 = vadd.f32 %v5897, %v6232
      %6234 = vdwg.mxu0
      %6235 = vmatpush.msra.mxu0 %v5993
      %6236 = vmatpush.msra.mxu0 %v5991
      %6237 = vmatpush.msra.mxu0 %v5989
      %6238 = vmatpush.msra.mxu0 %v5987
      %6239 = vmatpush.msra.mxu0 %v5985
      %6240 = vmatpush.msra.mxu0 %v5983
      %6241 = vmatpush.msra.mxu0 %v5981
      %6242 = vmatpush.msra.mxu0 %v5979
      %6243 = vmatpush.msra.mxu0 %v5977
      %6244 = vmatpush.msra.mxu0 %v5975
      %6245 = vmatpush.msra.mxu0 %v5973
      %6246 = vmatpush.msra.mxu0 %v5971
      %6247 = vmatpush.msra.mxu0 %v5969
      %6248 = vmatpush.msra.mxu0 %v5967
      %6249 = vmatpush.msra.mxu0 %v5965
      %6250 = vmatpush.msra.mxu0 %v5963
      %6251 = vmatmul.f32.gmra.mxu0 %v3916
      %v6252 = vpop.f32.mrf.mxu0
      %v6253 = vadd.f32 %v6044, %v6252
      %6254 = vmatmul.f32.gmra.mxu0 %v3920
      %v6255 = vpop.f32.mrf.mxu0
      %v6256 = vadd.f32 %v6047, %v6255
      %6257 = vmatmul.f32.gmra.mxu0 %v3924
      %v6258 = vpop.f32.mrf.mxu0
      %v6259 = vadd.f32 %v6050, %v6258
      %6260 = vmatmul.f32.gmra.mxu0 %v3928
      %v6261 = vpop.f32.mrf.mxu0
      %v6262 = vadd.f32 %v6053, %v6261
      %6263 = vmatmul.f32.gmra.mxu0 %v3932
      %v6264 = vpop.f32.mrf.mxu0
      %v6265 = vadd.f32 %v6056, %v6264
      %6266 = vmatmul.f32.gmra.mxu0 %v3936
      %v6267 = vpop.f32.mrf.mxu0
      %v6268 = vadd.f32 %v6059, %v6267
      %6269 = vmatmul.f32.gmra.mxu0 %v3940
      %v6270 = vpop.f32.mrf.mxu0
      %v6271 = vadd.f32 %v6062, %v6270
      %6272 = vmatmul.f32.gmra.mxu0 %v3944
      %v6273 = vpop.f32.mrf.mxu0
      %v6274 = vadd.f32 %v6065, %v6273
      %6275 = vmatmul.f32.gmra.mxu0 %v3948
      %v6276 = vpop.f32.mrf.mxu0
      %v6277 = vadd.f32 %v6068, %v6276
      %6278 = vmatmul.f32.gmra.mxu0 %v3952
      %v6279 = vpop.f32.mrf.mxu0
      %v6280 = vadd.f32 %v6071, %v6279
      %6281 = vmatmul.f32.gmra.mxu0 %v3956
      %v6282 = vpop.f32.mrf.mxu0
      %v6283 = vadd.f32 %v6074, %v6282
      %6284 = vmatmul.f32.gmra.mxu0 %v3960
      %v6285 = vpop.f32.mrf.mxu0
      %v6286 = vadd.f32 %v6077, %v6285
      %6287 = vmatmul.f32.gmra.mxu0 %v3964
      %v6288 = vpop.f32.mrf.mxu0
      %v6289 = vadd.f32 %v6080, %v6288
      %6290 = vmatmul.f32.gmra.mxu0 %v3968
      %v6291 = vpop.f32.mrf.mxu0
      %v6292 = vadd.f32 %v6083, %v6291
      %6293 = vmatmul.f32.gmra.mxu0 %v3972
      %v6294 = vpop.f32.mrf.mxu0
      %v6295 = vadd.f32 %v6086, %v6294
      %6296 = vmatmul.f32.gmra.mxu0 %v3976
      %v6297 = vpop.f32.mrf.mxu0
      %v6298 = vadd.f32 %v6089, %v6297
      %6299 = vmatmul.f32.gmra.mxu0 %v3980
      %v6300 = vpop.f32.mrf.mxu0
      %v6301 = vadd.f32 %v6092, %v6300
      %6302 = vmatmul.f32.gmra.mxu0 %v3984
      %v6303 = vpop.f32.mrf.mxu0
      %v6304 = vadd.f32 %v6095, %v6303
      %6305 = vmatmul.f32.gmra.mxu0 %v3988
      %v6306 = vpop.f32.mrf.mxu0
      %v6307 = vadd.f32 %v6098, %v6306
      %6308 = vmatmul.f32.gmra.mxu0 %v3992
      %v6309 = vpop.f32.mrf.mxu0
      %v6310 = vadd.f32 %v6101, %v6309
      %6311 = vmatmul.f32.gmra.mxu0 %v3996
      %v6312 = vpop.f32.mrf.mxu0
      %v6313 = vadd.f32 %v6104, %v6312
      %6314 = vmatmul.f32.gmra.mxu0 %v4000
      %v6315 = vpop.f32.mrf.mxu0
      %v6316 = vadd.f32 %v6107, %v6315
      %6317 = vmatmul.f32.gmra.mxu0 %v4004
      %v6318 = vpop.f32.mrf.mxu0
      %v6319 = vadd.f32 %v6110, %v6318
      %6320 = vmatmul.f32.gmra.mxu0 %v4008
      %v6321 = vpop.f32.mrf.mxu0
      %v6322 = vadd.f32 %v6113, %v6321
      %6323 = vmatmul.f32.gmra.mxu0 %v4012
      %v6324 = vpop.f32.mrf.mxu0
      %v6325 = vadd.f32 %v6116, %v6324
      %6326 = vmatmul.f32.gmra.mxu0 %v4016
      %v6327 = vpop.f32.mrf.mxu0
      %v6328 = vadd.f32 %v6119, %v6327
      %6329 = vmatmul.f32.gmra.mxu0 %v4020
      %v6330 = vpop.f32.mrf.mxu0
      %v6331 = vadd.f32 %v6122, %v6330
      %6332 = vmatmul.f32.gmra.mxu0 %v4024
      %v6333 = vpop.f32.mrf.mxu0
      %v6334 = vadd.f32 %v6125, %v6333
      %6335 = vmatmul.f32.gmra.mxu0 %v4028
      %v6336 = vpop.f32.mrf.mxu0
      %v6337 = vadd.f32 %v6128, %v6336
      %6338 = vmatmul.f32.gmra.mxu0 %v4032
      %v6339 = vpop.f32.mrf.mxu0
      %v6340 = vadd.f32 %v6131, %v6339
      %6341 = vmatmul.f32.gmra.mxu0 %v4036
      %v6342 = vpop.f32.mrf.mxu0
      %v6343 = vadd.f32 %v6134, %v6342
      %6344 = vmatmul.f32.gmra.mxu0 %v4040
      %v6345 = vpop.f32.mrf.mxu0
      %v6346 = vadd.f32 %v6137, %v6345
      %6347 = vmatmul.f32.gmra.mxu0 %v4044
      %v6348 = vpop.f32.mrf.mxu0
      %v6349 = vadd.f32 %v6140, %v6348
      %6350 = vmatmul.f32.gmra.mxu0 %v4048
      %v6351 = vpop.f32.mrf.mxu0
      %v6352 = vadd.f32 %v6143, %v6351
      %6353 = vmatmul.f32.gmra.mxu0 %v4052
      %v6354 = vpop.f32.mrf.mxu0
      %v6355 = vadd.f32 %v6146, %v6354
      %6356 = vmatmul.f32.gmra.mxu0 %v4056
      %v6357 = vpop.f32.mrf.mxu0
      %v6358 = vadd.f32 %v6149, %v6357
      %6359 = vmatmul.f32.gmra.mxu0 %v4060
      %v6360 = vpop.f32.mrf.mxu0
      %v6361 = vadd.f32 %v6152, %v6360
      %6362 = vmatmul.f32.gmra.mxu0 %v4064
      %v6363 = vpop.f32.mrf.mxu0
      %v6364 = vadd.f32 %v6155, %v6363
      %6365 = vmatmul.f32.gmra.mxu0 %v4068
      %v6366 = vpop.f32.mrf.mxu0
      %v6367 = vadd.f32 %v6158, %v6366
      %6368 = vmatmul.f32.gmra.mxu0 %v4072
      %v6369 = vpop.f32.mrf.mxu0
      %v6370 = vadd.f32 %v6161, %v6369
      %6371 = vmatmul.f32.gmra.mxu0 %v4076
      %v6372 = vpop.f32.mrf.mxu0
      %v6373 = vadd.f32 %v6164, %v6372
      %6374 = vmatmul.f32.gmra.mxu0 %v4080
      %v6375 = vpop.f32.mrf.mxu0
      %v6376 = vadd.f32 %v6167, %v6375
      %6377 = vmatmul.f32.gmra.mxu0 %v4084
      %v6378 = vpop.f32.mrf.mxu0
      %v6379 = vadd.f32 %v6170, %v6378
      %6380 = vmatmul.f32.gmra.mxu0 %v4088
      %v6381 = vpop.f32.mrf.mxu0
      %v6382 = vadd.f32 %v6173, %v6381
      %6383 = vmatmul.f32.gmra.mxu0 %v4092
      %v6384 = vpop.f32.mrf.mxu0
      %v6385 = vadd.f32 %v6176, %v6384
      %6386 = vmatmul.f32.gmra.mxu0 %v4096
      %v6387 = vpop.f32.mrf.mxu0
      %v6388 = vadd.f32 %v6179, %v6387
      %6389 = vmatmul.f32.gmra.mxu0 %v4100
      %v6390 = vpop.f32.mrf.mxu0
      %v6391 = vadd.f32 %v6182, %v6390
      %6392 = vmatmul.f32.gmra.mxu0 %v4104
      %v6393 = vpop.f32.mrf.mxu0
      %v6394 = vadd.f32 %v6185, %v6393
      %6395 = vmatmul.f32.gmra.mxu0 %v4108
      %v6396 = vpop.f32.mrf.mxu0
      %v6397 = vadd.f32 %v6188, %v6396
      %6398 = vmatmul.f32.gmra.mxu0 %v4112
      %v6399 = vpop.f32.mrf.mxu0
      %v6400 = vadd.f32 %v6191, %v6399
      %6401 = vmatmul.f32.gmra.mxu0 %v4116
      %v6402 = vpop.f32.mrf.mxu0
      %v6403 = vadd.f32 %v6194, %v6402
      %6404 = vmatmul.f32.gmra.mxu0 %v4120
      %v6405 = vpop.f32.mrf.mxu0
      %v6406 = vadd.f32 %v6197, %v6405
      %6407 = vmatmul.f32.gmra.mxu0 %v4124
      %v6408 = vpop.f32.mrf.mxu0
      %v6409 = vadd.f32 %v6200, %v6408
      %6410 = vmatmul.f32.gmra.mxu0 %v4128
      %v6411 = vpop.f32.mrf.mxu0
      %v6412 = vadd.f32 %v6203, %v6411
      %6413 = vmatmul.f32.gmra.mxu0 %v4132
      %v6414 = vpop.f32.mrf.mxu0
      %v6415 = vadd.f32 %v6206, %v6414
      %6416 = vmatmul.f32.gmra.mxu0 %v4136
      %v6417 = vpop.f32.mrf.mxu0
      %v6418 = vadd.f32 %v6209, %v6417
      %6419 = vmatmul.f32.gmra.mxu0 %v4140
      %v6420 = vpop.f32.mrf.mxu0
      %v6421 = vadd.f32 %v6212, %v6420
      %6422 = vmatmul.f32.gmra.mxu0 %v4144
      %v6423 = vpop.f32.mrf.mxu0
      %v6424 = vadd.f32 %v6215, %v6423
      %6425 = vmatmul.f32.gmra.mxu0 %v4148
      %v6426 = vpop.f32.mrf.mxu0
      %v6427 = vadd.f32 %v6218, %v6426
      %6428 = vmatmul.f32.gmra.mxu0 %v4152
      %v6429 = vpop.f32.mrf.mxu0
      %v6430 = vadd.f32 %v6221, %v6429
      %6431 = vmatmul.f32.gmra.mxu0 %v4156
      %v6432 = vpop.f32.mrf.mxu0
      %v6433 = vadd.f32 %v6224, %v6432
      %6434 = vmatmul.f32.gmra.mxu0 %v4160
      %v6435 = vpop.f32.mrf.mxu0
      %v6436 = vadd.f32 %v6227, %v6435
      %6437 = vmatmul.f32.gmra.mxu0 %v4164
      %v6438 = vpop.f32.mrf.mxu0
      %v6439 = vadd.f32 %v6230, %v6438
      %6440 = vmatmul.f32.gmra.mxu0 %v4168
      %v6441 = vpop.f32.mrf.mxu0
      %v6442 = vadd.f32 %v6233, %v6441
      %6443 = vdwg.mxu0
      %v6444 = vld [vmem:[%s3] sm:$0xff]
      %v6445 = vld [vmem:[%s3 + $0x8] sm:$0xff]
      %v6446 = vld [vmem:[%s3 + $0x10] sm:$0xff]
      %v6447 = vld [vmem:[%s3 + $0x18] sm:$0xff]
      %v6448 = vld [vmem:[%s3 + $0x20] sm:$0xff]
      %v6449 = vld [vmem:[%s3 + $0x28] sm:$0xff]
      %v6450 = vld [vmem:[%s3 + $0x30] sm:$0xff]
      %v6451 = vld [vmem:[%s3 + $0x38] sm:$0xff]
      %v6452 = vld [vmem:[%s3 + $0x40] sm:$0xff]
      %v6453 = vld [vmem:[%s3 + $0x48] sm:$0xff]
      %v6454 = vld [vmem:[%s3 + $0x50] sm:$0xff]
      %v6455 = vld [vmem:[%s3 + $0x58] sm:$0xff]
      %v6456 = vld [vmem:[%s3 + $0x60] sm:$0xff]
      %v6457 = vld [vmem:[%s3 + $0x68] sm:$0xff]
      %v6458 = vld [vmem:[%s3 + $0x70] sm:$0xff]
      %v6459 = vld [vmem:[%s3 + $0x78] sm:$0xff]
      %v6460 = vld [vmem:[%s3 + $0x80] sm:$0xff]
      %v6461 = vld [vmem:[%s3 + $0x88] sm:$0xff]
      %v6462 = vld [vmem:[%s3 + $0x90] sm:$0xff]
      %v6463 = vld [vmem:[%s3 + $0x98] sm:$0xff]
      %v6464 = vld [vmem:[%s3 + $0xa0] sm:$0xff]
      %v6465 = vld [vmem:[%s3 + $0xa8] sm:$0xff]
      %v6466 = vld [vmem:[%s3 + $0xb0] sm:$0xff]
      %v6467 = vld [vmem:[%s3 + $0xb8] sm:$0xff]
      %v6468 = vld [vmem:[%s3 + $0xc0] sm:$0xff]
      %v6469 = vld [vmem:[%s3 + $0xc8] sm:$0xff]
      %v6470 = vld [vmem:[%s3 + $0xd0] sm:$0xff]
      %v6471 = vld [vmem:[%s3 + $0xd8] sm:$0xff]
      %v6472 = vld [vmem:[%s3 + $0xe0] sm:$0xff]
      %v6473 = vld [vmem:[%s3 + $0xe8] sm:$0xff]
      %v6474 = vld [vmem:[%s3 + $0xf0] sm:$0xff]
      %v6475 = vld [vmem:[%s3 + $0xf8] sm:$0xff]
      %v6476 = vld [vmem:[%s3 + $0x100] sm:$0xff]
      %v6477 = vld [vmem:[%s3 + $0x108] sm:$0xff]
      %v6478 = vld [vmem:[%s3 + $0x110] sm:$0xff]
      %v6479 = vld [vmem:[%s3 + $0x118] sm:$0xff]
      %v6480 = vld [vmem:[%s3 + $0x120] sm:$0xff]
      %v6481 = vld [vmem:[%s3 + $0x128] sm:$0xff]
      %v6482 = vld [vmem:[%s3 + $0x130] sm:$0xff]
      %v6483 = vld [vmem:[%s3 + $0x138] sm:$0xff]
      %v6484 = vld [vmem:[%s3 + $0x140] sm:$0xff]
      %v6485 = vld [vmem:[%s3 + $0x148] sm:$0xff]
      %v6486 = vld [vmem:[%s3 + $0x150] sm:$0xff]
      %v6487 = vld [vmem:[%s3 + $0x158] sm:$0xff]
      %v6488 = vld [vmem:[%s3 + $0x160] sm:$0xff]
      %v6489 = vld [vmem:[%s3 + $0x168] sm:$0xff]
      %v6490 = vld [vmem:[%s3 + $0x170] sm:$0xff]
      %v6491 = vld [vmem:[%s3 + $0x178] sm:$0xff]
      %v6492 = vld [vmem:[%s3 + $0x180] sm:$0xff]
      %v6493 = vld [vmem:[%s3 + $0x188] sm:$0xff]
      %v6494 = vld [vmem:[%s3 + $0x190] sm:$0xff]
      %v6495 = vld [vmem:[%s3 + $0x198] sm:$0xff]
      %v6496 = vld [vmem:[%s3 + $0x1a0] sm:$0xff]
      %v6497 = vld [vmem:[%s3 + $0x1a8] sm:$0xff]
      %v6498 = vld [vmem:[%s3 + $0x1b0] sm:$0xff]
      %v6499 = vld [vmem:[%s3 + $0x1b8] sm:$0xff]
      %v6500 = vld [vmem:[%s3 + $0x1c0] sm:$0xff]
      %v6501 = vld [vmem:[%s3 + $0x1c8] sm:$0xff]
      %v6502 = vld [vmem:[%s3 + $0x1d0] sm:$0xff]
      %v6503 = vld [vmem:[%s3 + $0x1d8] sm:$0xff]
      %v6504 = vld [vmem:[%s3 + $0x1e0] sm:$0xff]
      %v6505 = vld [vmem:[%s3 + $0x1e8] sm:$0xff]
      %v6506 = vld [vmem:[%s3 + $0x1f0] sm:$0xff]
      %v6507 = vld [vmem:[%s3 + $0x1f8] sm:$0xff]
      %v6508 = vmul.f32 %v6253, %v6444
      %v6509 = vmul.f32 %v6256, %v6445
      %v6510 = vmul.f32 %v6259, %v6446
      %v6511 = vmul.f32 %v6262, %v6447
      %v6512 = vmul.f32 %v6265, %v6448
      %v6513 = vmul.f32 %v6268, %v6449
      %v6514 = vmul.f32 %v6271, %v6450
      %v6515 = vmul.f32 %v6274, %v6451
      %v6516 = vmul.f32 %v6277, %v6452
      %v6517 = vmul.f32 %v6280, %v6453
      %v6518 = vmul.f32 %v6283, %v6454
      %v6519 = vmul.f32 %v6286, %v6455
      %v6520 = vmul.f32 %v6289, %v6456
      %v6521 = vmul.f32 %v6292, %v6457
      %v6522 = vmul.f32 %v6295, %v6458
      %v6523 = vmul.f32 %v6298, %v6459
      %v6524 = vmul.f32 %v6301, %v6460
      %v6525 = vmul.f32 %v6304, %v6461
      %v6526 = vmul.f32 %v6307, %v6462
      %v6527 = vmul.f32 %v6310, %v6463
      %v6528 = vmul.f32 %v6313, %v6464
      %v6529 = vmul.f32 %v6316, %v6465
      %v6530 = vmul.f32 %v6319, %v6466
      %v6531 = vmul.f32 %v6322, %v6467
      %v6532 = vmul.f32 %v6325, %v6468
      %v6533 = vmul.f32 %v6328, %v6469
      %v6534 = vmul.f32 %v6331, %v6470
      %v6535 = vmul.f32 %v6334, %v6471
      %v6536 = vmul.f32 %v6337, %v6472
      %v6537 = vmul.f32 %v6340, %v6473
      %v6538 = vmul.f32 %v6343, %v6474
      %v6539 = vmul.f32 %v6346, %v6475
      %v6540 = vmul.f32 %v6349, %v6476
      %v6541 = vmul.f32 %v6352, %v6477
      %v6542 = vmul.f32 %v6355, %v6478
      %v6543 = vmul.f32 %v6358, %v6479
      %v6544 = vmul.f32 %v6361, %v6480
      %v6545 = vmul.f32 %v6364, %v6481
      %v6546 = vmul.f32 %v6367, %v6482
      %v6547 = vmul.f32 %v6370, %v6483
      %v6548 = vmul.f32 %v6373, %v6484
      %v6549 = vmul.f32 %v6376, %v6485
      %v6550 = vmul.f32 %v6379, %v6486
      %v6551 = vmul.f32 %v6382, %v6487
      %v6552 = vmul.f32 %v6385, %v6488
      %v6553 = vmul.f32 %v6388, %v6489
      %v6554 = vmul.f32 %v6391, %v6490
      %v6555 = vmul.f32 %v6394, %v6491
      %v6556 = vmul.f32 %v6397, %v6492
      %v6557 = vmul.f32 %v6400, %v6493
      %v6558 = vmul.f32 %v6403, %v6494
      %v6559 = vmul.f32 %v6406, %v6495
      %v6560 = vmul.f32 %v6409, %v6496
      %v6561 = vmul.f32 %v6412, %v6497
      %v6562 = vmul.f32 %v6415, %v6498
      %v6563 = vmul.f32 %v6418, %v6499
      %v6564 = vmul.f32 %v6421, %v6500
      %v6565 = vmul.f32 %v6424, %v6501
      %v6566 = vmul.f32 %v6427, %v6502
      %v6567 = vmul.f32 %v6430, %v6503
      %v6568 = vmul.f32 %v6433, %v6504
      %v6569 = vmul.f32 %v6436, %v6505
      %v6570 = vmul.f32 %v6439, %v6506
      %v6571 = vmul.f32 %v6442, %v6507
      %6573 = vset.pattern.permute.xlu0 0
      %6574 = vperm.xlu0 %6573, %v4630
      %v6575 = vpop.permute.xlu0 %6574
      %6578 = vset.pattern.permute.xlu0 0
      %6579 = vperm.xlu0 %6578, %v4644
      %v6580 = vpop.permute.xlu0 %6579
      %6583 = vset.pattern.permute.xlu0 0
      %6584 = vperm.xlu0 %6583, %v4658
      %v6585 = vpop.permute.xlu0 %6584
      %6588 = vset.pattern.permute.xlu0 0
      %6589 = vperm.xlu0 %6588, %v4672
      %v6590 = vpop.permute.xlu0 %6589
      %6593 = vset.pattern.permute.xlu0 0
      %6594 = vperm.xlu0 %6593, %v4686
      %v6595 = vpop.permute.xlu0 %6594
      %6598 = vset.pattern.permute.xlu0 0
      %6599 = vperm.xlu0 %6598, %v4700
      %v6600 = vpop.permute.xlu0 %6599
      %6603 = vset.pattern.permute.xlu0 0
      %6604 = vperm.xlu0 %6603, %v4714
      %v6605 = vpop.permute.xlu0 %6604
      %6608 = vset.pattern.permute.xlu0 0
      %6609 = vperm.xlu0 %6608, %v4728
      %v6610 = vpop.permute.xlu0 %6609
      %6613 = vset.pattern.permute.xlu0 0
      %6614 = vperm.xlu0 %6613, %v4742
      %v6615 = vpop.permute.xlu0 %6614
      %6618 = vset.pattern.permute.xlu0 0
      %6619 = vperm.xlu0 %6618, %v4756
      %v6620 = vpop.permute.xlu0 %6619
      %6623 = vset.pattern.permute.xlu0 0
      %6624 = vperm.xlu0 %6623, %v4770
      %v6625 = vpop.permute.xlu0 %6624
      %6628 = vset.pattern.permute.xlu0 0
      %6629 = vperm.xlu0 %6628, %v4784
      %v6630 = vpop.permute.xlu0 %6629
      %6633 = vset.pattern.permute.xlu0 0
      %6634 = vperm.xlu0 %6633, %v4798
      %v6635 = vpop.permute.xlu0 %6634
      %6638 = vset.pattern.permute.xlu0 0
      %6639 = vperm.xlu0 %6638, %v4812
      %v6640 = vpop.permute.xlu0 %6639
      %6643 = vset.pattern.permute.xlu0 0
      %6644 = vperm.xlu0 %6643, %v4826
      %v6645 = vpop.permute.xlu0 %6644
      %6648 = vset.pattern.permute.xlu0 0
      %6649 = vperm.xlu0 %6648, %v4840
      %v6650 = vpop.permute.xlu0 %6649
      %6653 = vset.pattern.permute.xlu0 0
      %6654 = vperm.xlu0 %6653, %v4854
      %v6655 = vpop.permute.xlu0 %6654
      %6658 = vset.pattern.permute.xlu0 0
      %6659 = vperm.xlu0 %6658, %v4868
      %v6660 = vpop.permute.xlu0 %6659
      %6663 = vset.pattern.permute.xlu0 0
      %6664 = vperm.xlu0 %6663, %v4882
      %v6665 = vpop.permute.xlu0 %6664
      %6668 = vset.pattern.permute.xlu0 0
      %6669 = vperm.xlu0 %6668, %v4896
      %v6670 = vpop.permute.xlu0 %6669
      %6673 = vset.pattern.permute.xlu0 0
      %6674 = vperm.xlu0 %6673, %v4910
      %v6675 = vpop.permute.xlu0 %6674
      %6678 = vset.pattern.permute.xlu0 0
      %6679 = vperm.xlu0 %6678, %v4924
      %v6680 = vpop.permute.xlu0 %6679
      %6683 = vset.pattern.permute.xlu0 0
      %6684 = vperm.xlu0 %6683, %v4938
      %v6685 = vpop.permute.xlu0 %6684
      %6688 = vset.pattern.permute.xlu0 0
      %6689 = vperm.xlu0 %6688, %v4952
      %v6690 = vpop.permute.xlu0 %6689
      %6693 = vset.pattern.permute.xlu0 0
      %6694 = vperm.xlu0 %6693, %v4966
      %v6695 = vpop.permute.xlu0 %6694
      %6698 = vset.pattern.permute.xlu0 0
      %6699 = vperm.xlu0 %6698, %v4980
      %v6700 = vpop.permute.xlu0 %6699
      %6703 = vset.pattern.permute.xlu0 0
      %6704 = vperm.xlu0 %6703, %v4994
      %v6705 = vpop.permute.xlu0 %6704
      %6708 = vset.pattern.permute.xlu0 0
      %6709 = vperm.xlu0 %6708, %v5008
      %v6710 = vpop.permute.xlu0 %6709
      %6713 = vset.pattern.permute.xlu0 0
      %6714 = vperm.xlu0 %6713, %v5022
      %v6715 = vpop.permute.xlu0 %6714
      %6718 = vset.pattern.permute.xlu0 0
      %6719 = vperm.xlu0 %6718, %v5036
      %v6720 = vpop.permute.xlu0 %6719
      %6723 = vset.pattern.permute.xlu0 0
      %6724 = vperm.xlu0 %6723, %v5050
      %v6725 = vpop.permute.xlu0 %6724
      %6728 = vset.pattern.permute.xlu0 0
      %6729 = vperm.xlu0 %6728, %v5064
      %v6730 = vpop.permute.xlu0 %6729
      %6733 = vset.pattern.permute.xlu0 0
      %6734 = vperm.xlu0 %6733, %v5078
      %v6735 = vpop.permute.xlu0 %6734
      %6738 = vset.pattern.permute.xlu0 0
      %6739 = vperm.xlu0 %6738, %v5092
      %v6740 = vpop.permute.xlu0 %6739
      %6743 = vset.pattern.permute.xlu0 0
      %6744 = vperm.xlu0 %6743, %v5106
      %v6745 = vpop.permute.xlu0 %6744
      %6748 = vset.pattern.permute.xlu0 0
      %6749 = vperm.xlu0 %6748, %v5120
      %v6750 = vpop.permute.xlu0 %6749
      %6753 = vset.pattern.permute.xlu0 0
      %6754 = vperm.xlu0 %6753, %v5134
      %v6755 = vpop.permute.xlu0 %6754
      %6758 = vset.pattern.permute.xlu0 0
      %6759 = vperm.xlu0 %6758, %v5148
      %v6760 = vpop.permute.xlu0 %6759
      %6763 = vset.pattern.permute.xlu0 0
      %6764 = vperm.xlu0 %6763, %v5162
      %v6765 = vpop.permute.xlu0 %6764
      %6768 = vset.pattern.permute.xlu0 0
      %6769 = vperm.xlu0 %6768, %v5176
      %v6770 = vpop.permute.xlu0 %6769
      %6773 = vset.pattern.permute.xlu0 0
      %6774 = vperm.xlu0 %6773, %v5190
      %v6775 = vpop.permute.xlu0 %6774
      %6778 = vset.pattern.permute.xlu0 0
      %6779 = vperm.xlu0 %6778, %v5204
      %v6780 = vpop.permute.xlu0 %6779
      %6783 = vset.pattern.permute.xlu0 0
      %6784 = vperm.xlu0 %6783, %v5218
      %v6785 = vpop.permute.xlu0 %6784
      %6788 = vset.pattern.permute.xlu0 0
      %6789 = vperm.xlu0 %6788, %v5232
      %v6790 = vpop.permute.xlu0 %6789
      %6793 = vset.pattern.permute.xlu0 0
      %6794 = vperm.xlu0 %6793, %v5246
      %v6795 = vpop.permute.xlu0 %6794
      %6798 = vset.pattern.permute.xlu0 0
      %6799 = vperm.xlu0 %6798, %v5260
      %v6800 = vpop.permute.xlu0 %6799
      %6803 = vset.pattern.permute.xlu0 0
      %6804 = vperm.xlu0 %6803, %v5274
      %v6805 = vpop.permute.xlu0 %6804
      %6808 = vset.pattern.permute.xlu0 0
      %6809 = vperm.xlu0 %6808, %v5288
      %v6810 = vpop.permute.xlu0 %6809
      %6813 = vset.pattern.permute.xlu0 0
      %6814 = vperm.xlu0 %6813, %v5302
      %v6815 = vpop.permute.xlu0 %6814
      %6818 = vset.pattern.permute.xlu0 0
      %6819 = vperm.xlu0 %6818, %v5316
      %v6820 = vpop.permute.xlu0 %6819
      %6823 = vset.pattern.permute.xlu0 0
      %6824 = vperm.xlu0 %6823, %v5330
      %v6825 = vpop.permute.xlu0 %6824
      %6828 = vset.pattern.permute.xlu0 0
      %6829 = vperm.xlu0 %6828, %v5344
      %v6830 = vpop.permute.xlu0 %6829
      %6833 = vset.pattern.permute.xlu0 0
      %6834 = vperm.xlu0 %6833, %v5358
      %v6835 = vpop.permute.xlu0 %6834
      %6838 = vset.pattern.permute.xlu0 0
      %6839 = vperm.xlu0 %6838, %v5372
      %v6840 = vpop.permute.xlu0 %6839
      %6843 = vset.pattern.permute.xlu0 0
      %6844 = vperm.xlu0 %6843, %v5386
      %v6845 = vpop.permute.xlu0 %6844
      %6848 = vset.pattern.permute.xlu0 0
      %6849 = vperm.xlu0 %6848, %v5400
      %v6850 = vpop.permute.xlu0 %6849
      %6853 = vset.pattern.permute.xlu0 0
      %6854 = vperm.xlu0 %6853, %v5414
      %v6855 = vpop.permute.xlu0 %6854
      %6858 = vset.pattern.permute.xlu0 0
      %6859 = vperm.xlu0 %6858, %v5428
      %v6860 = vpop.permute.xlu0 %6859
      %6863 = vset.pattern.permute.xlu0 0
      %6864 = vperm.xlu0 %6863, %v5442
      %v6865 = vpop.permute.xlu0 %6864
      %6868 = vset.pattern.permute.xlu0 0
      %6869 = vperm.xlu0 %6868, %v5456
      %v6870 = vpop.permute.xlu0 %6869
      %6873 = vset.pattern.permute.xlu0 0
      %6874 = vperm.xlu0 %6873, %v5470
      %v6875 = vpop.permute.xlu0 %6874
      %6878 = vset.pattern.permute.xlu0 0
      %6879 = vperm.xlu0 %6878, %v5484
      %v6880 = vpop.permute.xlu0 %6879
      %6883 = vset.pattern.permute.xlu0 0
      %6884 = vperm.xlu0 %6883, %v5498
      %v6885 = vpop.permute.xlu0 %6884
      %6888 = vset.pattern.permute.xlu0 0
      %6889 = vperm.xlu0 %6888, %v5512
      %v6890 = vpop.permute.xlu0 %6889
      %v6892 = vmul.f32 %v6508, %v6575
      %v6893 = vmul.f32 %v6509, %v6580
      %v6894 = vmul.f32 %v6510, %v6585
      %v6895 = vmul.f32 %v6511, %v6590
      %v6896 = vmul.f32 %v6512, %v6595
      %v6897 = vmul.f32 %v6513, %v6600
      %v6898 = vmul.f32 %v6514, %v6605
      %v6899 = vmul.f32 %v6515, %v6610
      %v6900 = vmul.f32 %v6516, %v6615
      %v6901 = vmul.f32 %v6517, %v6620
      %v6902 = vmul.f32 %v6518, %v6625
      %v6903 = vmul.f32 %v6519, %v6630
      %v6904 = vmul.f32 %v6520, %v6635
      %v6905 = vmul.f32 %v6521, %v6640
      %v6906 = vmul.f32 %v6522, %v6645
      %v6907 = vmul.f32 %v6523, %v6650
      %v6908 = vmul.f32 %v6524, %v6655
      %v6909 = vmul.f32 %v6525, %v6660
      %v6910 = vmul.f32 %v6526, %v6665
      %v6911 = vmul.f32 %v6527, %v6670
      %v6912 = vmul.f32 %v6528, %v6675
      %v6913 = vmul.f32 %v6529, %v6680
      %v6914 = vmul.f32 %v6530, %v6685
      %v6915 = vmul.f32 %v6531, %v6690
      %v6916 = vmul.f32 %v6532, %v6695
      %v6917 = vmul.f32 %v6533, %v6700
      %v6918 = vmul.f32 %v6534, %v6705
      %v6919 = vmul.f32 %v6535, %v6710
      %v6920 = vmul.f32 %v6536, %v6715
      %v6921 = vmul.f32 %v6537, %v6720
      %v6922 = vmul.f32 %v6538, %v6725
      %v6923 = vmul.f32 %v6539, %v6730
      %v6924 = vmul.f32 %v6540, %v6735
      %v6925 = vmul.f32 %v6541, %v6740
      %v6926 = vmul.f32 %v6542, %v6745
      %v6927 = vmul.f32 %v6543, %v6750
      %v6928 = vmul.f32 %v6544, %v6755
      %v6929 = vmul.f32 %v6545, %v6760
      %v6930 = vmul.f32 %v6546, %v6765
      %v6931 = vmul.f32 %v6547, %v6770
      %v6932 = vmul.f32 %v6548, %v6775
      %v6933 = vmul.f32 %v6549, %v6780
      %v6934 = vmul.f32 %v6550, %v6785
      %v6935 = vmul.f32 %v6551, %v6790
      %v6936 = vmul.f32 %v6552, %v6795
      %v6937 = vmul.f32 %v6553, %v6800
      %v6938 = vmul.f32 %v6554, %v6805
      %v6939 = vmul.f32 %v6555, %v6810
      %v6940 = vmul.f32 %v6556, %v6815
      %v6941 = vmul.f32 %v6557, %v6820
      %v6942 = vmul.f32 %v6558, %v6825
      %v6943 = vmul.f32 %v6559, %v6830
      %v6944 = vmul.f32 %v6560, %v6835
      %v6945 = vmul.f32 %v6561, %v6840
      %v6946 = vmul.f32 %v6562, %v6845
      %v6947 = vmul.f32 %v6563, %v6850
      %v6948 = vmul.f32 %v6564, %v6855
      %v6949 = vmul.f32 %v6565, %v6860
      %v6950 = vmul.f32 %v6566, %v6865
      %v6951 = vmul.f32 %v6567, %v6870
      %v6952 = vmul.f32 %v6568, %v6875
      %v6953 = vmul.f32 %v6569, %v6880
      %v6954 = vmul.f32 %v6570, %v6885
      %v6955 = vmul.f32 %v6571, %v6890
      %v6956 = vld [vmem:[%s10] sm:$0xff]
      %v6957 = vld [vmem:[%s10 + $0x8] sm:$0xff]
      %v6958 = vld [vmem:[%s10 + $0x10] sm:$0xff]
      %v6959 = vld [vmem:[%s10 + $0x18] sm:$0xff]
      %v6960 = vld [vmem:[%s10 + $0x20] sm:$0xff]
      %v6961 = vld [vmem:[%s10 + $0x28] sm:$0xff]
      %v6962 = vld [vmem:[%s10 + $0x30] sm:$0xff]
      %v6963 = vld [vmem:[%s10 + $0x38] sm:$0xff]
      %v6964 = vld [vmem:[%s10 + $0x40] sm:$0xff]
      %v6965 = vld [vmem:[%s10 + $0x48] sm:$0xff]
      %v6966 = vld [vmem:[%s10 + $0x50] sm:$0xff]
      %v6967 = vld [vmem:[%s10 + $0x58] sm:$0xff]
      %v6968 = vld [vmem:[%s10 + $0x60] sm:$0xff]
      %v6969 = vld [vmem:[%s10 + $0x68] sm:$0xff]
      %v6970 = vld [vmem:[%s10 + $0x70] sm:$0xff]
      %v6971 = vld [vmem:[%s10 + $0x78] sm:$0xff]
      %v6972 = vld [vmem:[%s10 + $0x80] sm:$0xff]
      %v6973 = vld [vmem:[%s10 + $0x88] sm:$0xff]
      %v6974 = vld [vmem:[%s10 + $0x90] sm:$0xff]
      %v6975 = vld [vmem:[%s10 + $0x98] sm:$0xff]
      %v6976 = vld [vmem:[%s10 + $0xa0] sm:$0xff]
      %v6977 = vld [vmem:[%s10 + $0xa8] sm:$0xff]
      %v6978 = vld [vmem:[%s10 + $0xb0] sm:$0xff]
      %v6979 = vld [vmem:[%s10 + $0xb8] sm:$0xff]
      %v6980 = vld [vmem:[%s10 + $0xc0] sm:$0xff]
      %v6981 = vld [vmem:[%s10 + $0xc8] sm:$0xff]
      %v6982 = vld [vmem:[%s10 + $0xd0] sm:$0xff]
      %v6983 = vld [vmem:[%s10 + $0xd8] sm:$0xff]
      %v6984 = vld [vmem:[%s10 + $0xe0] sm:$0xff]
      %v6985 = vld [vmem:[%s10 + $0xe8] sm:$0xff]
      %v6986 = vld [vmem:[%s10 + $0xf0] sm:$0xff]
      %v6987 = vld [vmem:[%s10 + $0xf8] sm:$0xff]
      %v6988 = vld [vmem:[%s10 + $0x100] sm:$0xff]
      %v6989 = vld [vmem:[%s10 + $0x108] sm:$0xff]
      %v6990 = vld [vmem:[%s10 + $0x110] sm:$0xff]
      %v6991 = vld [vmem:[%s10 + $0x118] sm:$0xff]
      %v6992 = vld [vmem:[%s10 + $0x120] sm:$0xff]
      %v6993 = vld [vmem:[%s10 + $0x128] sm:$0xff]
      %v6994 = vld [vmem:[%s10 + $0x130] sm:$0xff]
      %v6995 = vld [vmem:[%s10 + $0x138] sm:$0xff]
      %v6996 = vld [vmem:[%s10 + $0x140] sm:$0xff]
      %v6997 = vld [vmem:[%s10 + $0x148] sm:$0xff]
      %v6998 = vld [vmem:[%s10 + $0x150] sm:$0xff]
      %v6999 = vld [vmem:[%s10 + $0x158] sm:$0xff]
      %v7000 = vld [vmem:[%s10 + $0x160] sm:$0xff]
      %v7001 = vld [vmem:[%s10 + $0x168] sm:$0xff]
      %v7002 = vld [vmem:[%s10 + $0x170] sm:$0xff]
      %v7003 = vld [vmem:[%s10 + $0x178] sm:$0xff]
      %v7004 = vld [vmem:[%s10 + $0x180] sm:$0xff]
      %v7005 = vld [vmem:[%s10 + $0x188] sm:$0xff]
      %v7006 = vld [vmem:[%s10 + $0x190] sm:$0xff]
      %v7007 = vld [vmem:[%s10 + $0x198] sm:$0xff]
      %v7008 = vld [vmem:[%s10 + $0x1a0] sm:$0xff]
      %v7009 = vld [vmem:[%s10 + $0x1a8] sm:$0xff]
      %v7010 = vld [vmem:[%s10 + $0x1b0] sm:$0xff]
      %v7011 = vld [vmem:[%s10 + $0x1b8] sm:$0xff]
      %v7012 = vld [vmem:[%s10 + $0x1c0] sm:$0xff]
      %v7013 = vld [vmem:[%s10 + $0x1c8] sm:$0xff]
      %v7014 = vld [vmem:[%s10 + $0x1d0] sm:$0xff]
      %v7015 = vld [vmem:[%s10 + $0x1d8] sm:$0xff]
      %v7016 = vld [vmem:[%s10 + $0x1e0] sm:$0xff]
      %v7017 = vld [vmem:[%s10 + $0x1e8] sm:$0xff]
      %v7018 = vld [vmem:[%s10 + $0x1f0] sm:$0xff]
      %v7019 = vld [vmem:[%s10 + $0x1f8] sm:$0xff]
      %7020 = vmatpush.msra.mxu0 %v6907
      %7021 = vmatpush.msra.mxu0 %v6906
      %7022 = vmatpush.msra.mxu0 %v6905
      %7023 = vmatpush.msra.mxu0 %v6904
      %7024 = vmatpush.msra.mxu0 %v6903
      %7025 = vmatpush.msra.mxu0 %v6902
      %7026 = vmatpush.msra.mxu0 %v6901
      %7027 = vmatpush.msra.mxu0 %v6900
      %7028 = vmatpush.msra.mxu0 %v6899
      %7029 = vmatpush.msra.mxu0 %v6898
      %7030 = vmatpush.msra.mxu0 %v6897
      %7031 = vmatpush.msra.mxu0 %v6896
      %7032 = vmatpush.msra.mxu0 %v6895
      %7033 = vmatpush.msra.mxu0 %v6894
      %7034 = vmatpush.msra.mxu0 %v6893
      %7035 = vmatpush.msra.mxu0 %v6892
      %7036 = vmatmul.f32.gmra.mxu0 %v6956
      %v7037 = vpop.f32.mrf.mxu0
      %v7038 = vadd.f32 0.0, %v7037
      %7039 = vmatmul.f32.gmra.mxu0 %v6960
      %v7040 = vpop.f32.mrf.mxu0
      %v7041 = vadd.f32 0.0, %v7040
      %7042 = vmatmul.f32.gmra.mxu0 %v6964
      %v7043 = vpop.f32.mrf.mxu0
      %v7044 = vadd.f32 0.0, %v7043
      %7045 = vmatmul.f32.gmra.mxu0 %v6968
      %v7046 = vpop.f32.mrf.mxu0
      %v7047 = vadd.f32 0.0, %v7046
      %7048 = vmatmul.f32.gmra.mxu0 %v6972
      %v7049 = vpop.f32.mrf.mxu0
      %v7050 = vadd.f32 0.0, %v7049
      %7051 = vmatmul.f32.gmra.mxu0 %v6976
      %v7052 = vpop.f32.mrf.mxu0
      %v7053 = vadd.f32 0.0, %v7052
      %7054 = vmatmul.f32.gmra.mxu0 %v6980
      %v7055 = vpop.f32.mrf.mxu0
      %v7056 = vadd.f32 0.0, %v7055
      %7057 = vmatmul.f32.gmra.mxu0 %v6984
      %v7058 = vpop.f32.mrf.mxu0
      %v7059 = vadd.f32 0.0, %v7058
      %7060 = vmatmul.f32.gmra.mxu0 %v6988
      %v7061 = vpop.f32.mrf.mxu0
      %v7062 = vadd.f32 0.0, %v7061
      %7063 = vmatmul.f32.gmra.mxu0 %v6992
      %v7064 = vpop.f32.mrf.mxu0
      %v7065 = vadd.f32 0.0, %v7064
      %7066 = vmatmul.f32.gmra.mxu0 %v6996
      %v7067 = vpop.f32.mrf.mxu0
      %v7068 = vadd.f32 0.0, %v7067
      %7069 = vmatmul.f32.gmra.mxu0 %v7000
      %v7070 = vpop.f32.mrf.mxu0
      %v7071 = vadd.f32 0.0, %v7070
      %7072 = vmatmul.f32.gmra.mxu0 %v7004
      %v7073 = vpop.f32.mrf.mxu0
      %v7074 = vadd.f32 0.0, %v7073
      %7075 = vmatmul.f32.gmra.mxu0 %v7008
      %v7076 = vpop.f32.mrf.mxu0
      %v7077 = vadd.f32 0.0, %v7076
      %7078 = vmatmul.f32.gmra.mxu0 %v7012
      %v7079 = vpop.f32.mrf.mxu0
      %v7080 = vadd.f32 0.0, %v7079
      %7081 = vmatmul.f32.gmra.mxu0 %v7016
      %v7082 = vpop.f32.mrf.mxu0
      %v7083 = vadd.f32 0.0, %v7082
      %7084 = vdwg.mxu0
      %7085 = vmatpush.msra.mxu0 %v6923
      %7086 = vmatpush.msra.mxu0 %v6922
      %7087 = vmatpush.msra.mxu0 %v6921
      %7088 = vmatpush.msra.mxu0 %v6920
      %7089 = vmatpush.msra.mxu0 %v6919
      %7090 = vmatpush.msra.mxu0 %v6918
      %7091 = vmatpush.msra.mxu0 %v6917
      %7092 = vmatpush.msra.mxu0 %v6916
      %7093 = vmatpush.msra.mxu0 %v6915
      %7094 = vmatpush.msra.mxu0 %v6914
      %7095 = vmatpush.msra.mxu0 %v6913
      %7096 = vmatpush.msra.mxu0 %v6912
      %7097 = vmatpush.msra.mxu0 %v6911
      %7098 = vmatpush.msra.mxu0 %v6910
      %7099 = vmatpush.msra.mxu0 %v6909
      %7100 = vmatpush.msra.mxu0 %v6908
      %7101 = vmatmul.f32.gmra.mxu0 %v6957
      %v7102 = vpop.f32.mrf.mxu0
      %v7103 = vadd.f32 %v7038, %v7102
      %7104 = vmatmul.f32.gmra.mxu0 %v6961
      %v7105 = vpop.f32.mrf.mxu0
      %v7106 = vadd.f32 %v7041, %v7105
      %7107 = vmatmul.f32.gmra.mxu0 %v6965
      %v7108 = vpop.f32.mrf.mxu0
      %v7109 = vadd.f32 %v7044, %v7108
      %7110 = vmatmul.f32.gmra.mxu0 %v6969
      %v7111 = vpop.f32.mrf.mxu0
      %v7112 = vadd.f32 %v7047, %v7111
      %7113 = vmatmul.f32.gmra.mxu0 %v6973
      %v7114 = vpop.f32.mrf.mxu0
      %v7115 = vadd.f32 %v7050, %v7114
      %7116 = vmatmul.f32.gmra.mxu0 %v6977
      %v7117 = vpop.f32.mrf.mxu0
      %v7118 = vadd.f32 %v7053, %v7117
      %7119 = vmatmul.f32.gmra.mxu0 %v6981
      %v7120 = vpop.f32.mrf.mxu0
      %v7121 = vadd.f32 %v7056, %v7120
      %7122 = vmatmul.f32.gmra.mxu0 %v6985
      %v7123 = vpop.f32.mrf.mxu0
      %v7124 = vadd.f32 %v7059, %v7123
      %7125 = vmatmul.f32.gmra.mxu0 %v6989
      %v7126 = vpop.f32.mrf.mxu0
      %v7127 = vadd.f32 %v7062, %v7126
      %7128 = vmatmul.f32.gmra.mxu0 %v6993
      %v7129 = vpop.f32.mrf.mxu0
      %v7130 = vadd.f32 %v7065, %v7129
      %7131 = vmatmul.f32.gmra.mxu0 %v6997
      %v7132 = vpop.f32.mrf.mxu0
      %v7133 = vadd.f32 %v7068, %v7132
      %7134 = vmatmul.f32.gmra.mxu0 %v7001
      %v7135 = vpop.f32.mrf.mxu0
      %v7136 = vadd.f32 %v7071, %v7135
      %7137 = vmatmul.f32.gmra.mxu0 %v7005
      %v7138 = vpop.f32.mrf.mxu0
      %v7139 = vadd.f32 %v7074, %v7138
      %7140 = vmatmul.f32.gmra.mxu0 %v7009
      %v7141 = vpop.f32.mrf.mxu0
      %v7142 = vadd.f32 %v7077, %v7141
      %7143 = vmatmul.f32.gmra.mxu0 %v7013
      %v7144 = vpop.f32.mrf.mxu0
      %v7145 = vadd.f32 %v7080, %v7144
      %7146 = vmatmul.f32.gmra.mxu0 %v7017
      %v7147 = vpop.f32.mrf.mxu0
      %v7148 = vadd.f32 %v7083, %v7147
      %7149 = vdwg.mxu0
      %7150 = vmatpush.msra.mxu0 %v6939
      %7151 = vmatpush.msra.mxu0 %v6938
      %7152 = vmatpush.msra.mxu0 %v6937
      %7153 = vmatpush.msra.mxu0 %v6936
      %7154 = vmatpush.msra.mxu0 %v6935
      %7155 = vmatpush.msra.mxu0 %v6934
      %7156 = vmatpush.msra.mxu0 %v6933
      %7157 = vmatpush.msra.mxu0 %v6932
      %7158 = vmatpush.msra.mxu0 %v6931
      %7159 = vmatpush.msra.mxu0 %v6930
      %7160 = vmatpush.msra.mxu0 %v6929
      %7161 = vmatpush.msra.mxu0 %v6928
      %7162 = vmatpush.msra.mxu0 %v6927
      %7163 = vmatpush.msra.mxu0 %v6926
      %7164 = vmatpush.msra.mxu0 %v6925
      %7165 = vmatpush.msra.mxu0 %v6924
      %7166 = vmatmul.f32.gmra.mxu0 %v6958
      %v7167 = vpop.f32.mrf.mxu0
      %v7168 = vadd.f32 %v7103, %v7167
      %7169 = vmatmul.f32.gmra.mxu0 %v6962
      %v7170 = vpop.f32.mrf.mxu0
      %v7171 = vadd.f32 %v7106, %v7170
      %7172 = vmatmul.f32.gmra.mxu0 %v6966
      %v7173 = vpop.f32.mrf.mxu0
      %v7174 = vadd.f32 %v7109, %v7173
      %7175 = vmatmul.f32.gmra.mxu0 %v6970
      %v7176 = vpop.f32.mrf.mxu0
      %v7177 = vadd.f32 %v7112, %v7176
      %7178 = vmatmul.f32.gmra.mxu0 %v6974
      %v7179 = vpop.f32.mrf.mxu0
      %v7180 = vadd.f32 %v7115, %v7179
      %7181 = vmatmul.f32.gmra.mxu0 %v6978
      %v7182 = vpop.f32.mrf.mxu0
      %v7183 = vadd.f32 %v7118, %v7182
      %7184 = vmatmul.f32.gmra.mxu0 %v6982
      %v7185 = vpop.f32.mrf.mxu0
      %v7186 = vadd.f32 %v7121, %v7185
      %7187 = vmatmul.f32.gmra.mxu0 %v6986
      %v7188 = vpop.f32.mrf.mxu0
      %v7189 = vadd.f32 %v7124, %v7188
      %7190 = vmatmul.f32.gmra.mxu0 %v6990
      %v7191 = vpop.f32.mrf.mxu0
      %v7192 = vadd.f32 %v7127, %v7191
      %7193 = vmatmul.f32.gmra.mxu0 %v6994
      %v7194 = vpop.f32.mrf.mxu0
      %v7195 = vadd.f32 %v7130, %v7194
      %7196 = vmatmul.f32.gmra.mxu0 %v6998
      %v7197 = vpop.f32.mrf.mxu0
      %v7198 = vadd.f32 %v7133, %v7197
      %7199 = vmatmul.f32.gmra.mxu0 %v7002
      %v7200 = vpop.f32.mrf.mxu0
      %v7201 = vadd.f32 %v7136, %v7200
      %7202 = vmatmul.f32.gmra.mxu0 %v7006
      %v7203 = vpop.f32.mrf.mxu0
      %v7204 = vadd.f32 %v7139, %v7203
      %7205 = vmatmul.f32.gmra.mxu0 %v7010
      %v7206 = vpop.f32.mrf.mxu0
      %v7207 = vadd.f32 %v7142, %v7206
      %7208 = vmatmul.f32.gmra.mxu0 %v7014
      %v7209 = vpop.f32.mrf.mxu0
      %v7210 = vadd.f32 %v7145, %v7209
      %7211 = vmatmul.f32.gmra.mxu0 %v7018
      %v7212 = vpop.f32.mrf.mxu0
      %v7213 = vadd.f32 %v7148, %v7212
      %7214 = vdwg.mxu0
      %7215 = vmatpush.msra.mxu0 %v6955
      %7216 = vmatpush.msra.mxu0 %v6954
      %7217 = vmatpush.msra.mxu0 %v6953
      %7218 = vmatpush.msra.mxu0 %v6952
      %7219 = vmatpush.msra.mxu0 %v6951
      %7220 = vmatpush.msra.mxu0 %v6950
      %7221 = vmatpush.msra.mxu0 %v6949
      %7222 = vmatpush.msra.mxu0 %v6948
      %7223 = vmatpush.msra.mxu0 %v6947
      %7224 = vmatpush.msra.mxu0 %v6946
      %7225 = vmatpush.msra.mxu0 %v6945
      %7226 = vmatpush.msra.mxu0 %v6944
      %7227 = vmatpush.msra.mxu0 %v6943
      %7228 = vmatpush.msra.mxu0 %v6942
      %7229 = vmatpush.msra.mxu0 %v6941
      %7230 = vmatpush.msra.mxu0 %v6940
      %7231 = vmatmul.f32.gmra.mxu0 %v6959
      %v7232 = vpop.f32.mrf.mxu0
      %v7233 = vadd.f32 %v7168, %v7232
      %7234 = vmatmul.f32.gmra.mxu0 %v6963
      %v7235 = vpop.f32.mrf.mxu0
      %v7236 = vadd.f32 %v7171, %v7235
      %7237 = vmatmul.f32.gmra.mxu0 %v6967
      %v7238 = vpop.f32.mrf.mxu0
      %v7239 = vadd.f32 %v7174, %v7238
      %7240 = vmatmul.f32.gmra.mxu0 %v6971
      %v7241 = vpop.f32.mrf.mxu0
      %v7242 = vadd.f32 %v7177, %v7241
      %7243 = vmatmul.f32.gmra.mxu0 %v6975
      %v7244 = vpop.f32.mrf.mxu0
      %v7245 = vadd.f32 %v7180, %v7244
      %7246 = vmatmul.f32.gmra.mxu0 %v6979
      %v7247 = vpop.f32.mrf.mxu0
      %v7248 = vadd.f32 %v7183, %v7247
      %7249 = vmatmul.f32.gmra.mxu0 %v6983
      %v7250 = vpop.f32.mrf.mxu0
      %v7251 = vadd.f32 %v7186, %v7250
      %7252 = vmatmul.f32.gmra.mxu0 %v6987
      %v7253 = vpop.f32.mrf.mxu0
      %v7254 = vadd.f32 %v7189, %v7253
      %7255 = vmatmul.f32.gmra.mxu0 %v6991
      %v7256 = vpop.f32.mrf.mxu0
      %v7257 = vadd.f32 %v7192, %v7256
      %7258 = vmatmul.f32.gmra.mxu0 %v6995
      %v7259 = vpop.f32.mrf.mxu0
      %v7260 = vadd.f32 %v7195, %v7259
      %7261 = vmatmul.f32.gmra.mxu0 %v6999
      %v7262 = vpop.f32.mrf.mxu0
      %v7263 = vadd.f32 %v7198, %v7262
      %7264 = vmatmul.f32.gmra.mxu0 %v7003
      %v7265 = vpop.f32.mrf.mxu0
      %v7266 = vadd.f32 %v7201, %v7265
      %7267 = vmatmul.f32.gmra.mxu0 %v7007
      %v7268 = vpop.f32.mrf.mxu0
      %v7269 = vadd.f32 %v7204, %v7268
      %7270 = vmatmul.f32.gmra.mxu0 %v7011
      %v7271 = vpop.f32.mrf.mxu0
      %v7272 = vadd.f32 %v7207, %v7271
      %7273 = vmatmul.f32.gmra.mxu0 %v7015
      %v7274 = vpop.f32.mrf.mxu0
      %v7275 = vadd.f32 %v7210, %v7274
      %7276 = vmatmul.f32.gmra.mxu0 %v7019
      %v7277 = vpop.f32.mrf.mxu0
      %v7278 = vadd.f32 %v7213, %v7277
      %7279 = vdwg.mxu0
      %v7280 = vld [vmem:[%s6] sm:$0xff]
      %v7281 = vld [vmem:[%s6 + $0x8] sm:$0xff]
      %v7282 = vld [vmem:[%s6 + $0x10] sm:$0xff]
      %v7283 = vld [vmem:[%s6 + $0x18] sm:$0xff]
      %v7285 = vsel %vm444, %v7233, 0
      %v7288 = vsel %vm444, %v7236, 0
      %v7291 = vsel %vm444, %v7239, 0
      %v7294 = vsel %vm444, %v7242, 0
      %v7297 = vsel %vm444, %v7245, 0
      %v7300 = vsel %vm444, %v7248, 0
      %v7303 = vsel %vm444, %v7251, 0
      %v7306 = vsel %vm444, %v7254, 0
      %v7309 = vsel %vm444, %v7257, 0
      %v7312 = vsel %vm444, %v7260, 0
      %v7315 = vsel %vm444, %v7263, 0
      %v7318 = vsel %vm444, %v7266, 0
      %v7321 = vsel %vm444, %v7269, 0
      %v7324 = vsel %vm444, %v7272, 0
      %v7327 = vsel %vm444, %v7275, 0
      %v7330 = vsel %vm444, %v7278, 0
      %7332 = vmatpush.msra.mxu0 0.0
      %7333 = vmatpush.msra.mxu0 0.0
      %7334 = vmatpush.msra.mxu0 0.0
      %7335 = vmatpush.msra.mxu0 0.0
      %7336 = vmatpush.msra.mxu0 0.0
      %7337 = vmatpush.msra.mxu0 0.0
      %7338 = vmatpush.msra.mxu0 0.0
      %7339 = vmatpush.msra.mxu0 0.0
      %7340 = vmatpush.msra.mxu0 0.0
      %7341 = vmatpush.msra.mxu0 0.0
      %7342 = vmatpush.msra.mxu0 0.0
      %7343 = vmatpush.msra.mxu0 0.0
      %7344 = vmatpush.msra.mxu0 %v7283
      %7345 = vmatpush.msra.mxu0 %v7282
      %7346 = vmatpush.msra.mxu0 %v7281
      %7347 = vmatpush.msra.mxu0 %v7280
      %7348 = vmatmul.f32.gmra.mxu0 %v7285
      %v7349 = vpop.f32.mrf.mxu0
      %v7350 = vadd.f32 0.0, %v7349
      %7351 = vmatmul.f32.gmra.mxu0 %v7288
      %v7352 = vpop.f32.mrf.mxu0
      %v7353 = vadd.f32 0.0, %v7352
      %7354 = vmatmul.f32.gmra.mxu0 %v7291
      %v7355 = vpop.f32.mrf.mxu0
      %v7356 = vadd.f32 0.0, %v7355
      %7357 = vmatmul.f32.gmra.mxu0 %v7294
      %v7358 = vpop.f32.mrf.mxu0
      %v7359 = vadd.f32 0.0, %v7358
      %7360 = vmatmul.f32.gmra.mxu0 %v7297
      %v7361 = vpop.f32.mrf.mxu0
      %v7362 = vadd.f32 0.0, %v7361
      %7363 = vmatmul.f32.gmra.mxu0 %v7300
      %v7364 = vpop.f32.mrf.mxu0
      %v7365 = vadd.f32 0.0, %v7364
      %7366 = vmatmul.f32.gmra.mxu0 %v7303
      %v7367 = vpop.f32.mrf.mxu0
      %v7368 = vadd.f32 0.0, %v7367
      %7369 = vmatmul.f32.gmra.mxu0 %v7306
      %v7370 = vpop.f32.mrf.mxu0
      %v7371 = vadd.f32 0.0, %v7370
      %7372 = vmatmul.f32.gmra.mxu0 %v7309
      %v7373 = vpop.f32.mrf.mxu0
      %v7374 = vadd.f32 0.0, %v7373
      %7375 = vmatmul.f32.gmra.mxu0 %v7312
      %v7376 = vpop.f32.mrf.mxu0
      %v7377 = vadd.f32 0.0, %v7376
      %7378 = vmatmul.f32.gmra.mxu0 %v7315
      %v7379 = vpop.f32.mrf.mxu0
      %v7380 = vadd.f32 0.0, %v7379
      %7381 = vmatmul.f32.gmra.mxu0 %v7318
      %v7382 = vpop.f32.mrf.mxu0
      %v7383 = vadd.f32 0.0, %v7382
      %7384 = vmatmul.f32.gmra.mxu0 %v7321
      %v7385 = vpop.f32.mrf.mxu0
      %v7386 = vadd.f32 0.0, %v7385
      %7387 = vmatmul.f32.gmra.mxu0 %v7324
      %v7388 = vpop.f32.mrf.mxu0
      %v7389 = vadd.f32 0.0, %v7388
      %7390 = vmatmul.f32.gmra.mxu0 %v7327
      %v7391 = vpop.f32.mrf.mxu0
      %v7392 = vadd.f32 0.0, %v7391
      %7393 = vmatmul.f32.gmra.mxu0 %v7330
      %v7394 = vpop.f32.mrf.mxu0
      %v7395 = vadd.f32 0.0, %v7394
      %7396 = vdwg.mxu0
      %v7397 = vsel %vm444, %v7350, 0.0
      %7398 = vadd.xlane.f32.xlu0 %v7397
      %v7399 = vpop.xlane.xlu0 %7398
      %v7400 = vsel %vm444, %v7353, 0.0
      %7401 = vadd.xlane.f32.xlu0 %v7400
      %v7402 = vpop.xlane.xlu0 %7401
      %v7403 = vsel %vm444, %v7356, 0.0
      %7404 = vadd.xlane.f32.xlu0 %v7403
      %v7405 = vpop.xlane.xlu0 %7404
      %v7406 = vsel %vm444, %v7359, 0.0
      %7407 = vadd.xlane.f32.xlu0 %v7406
      %v7408 = vpop.xlane.xlu0 %7407
      %v7409 = vsel %vm444, %v7362, 0.0
      %7410 = vadd.xlane.f32.xlu0 %v7409
      %v7411 = vpop.xlane.xlu0 %7410
      %v7412 = vsel %vm444, %v7365, 0.0
      %7413 = vadd.xlane.f32.xlu0 %v7412
      %v7414 = vpop.xlane.xlu0 %7413
      %v7415 = vsel %vm444, %v7368, 0.0
      %7416 = vadd.xlane.f32.xlu0 %v7415
      %v7417 = vpop.xlane.xlu0 %7416
      %v7418 = vsel %vm444, %v7371, 0.0
      %7419 = vadd.xlane.f32.xlu0 %v7418
      %v7420 = vpop.xlane.xlu0 %7419
      %v7421 = vsel %vm444, %v7374, 0.0
      %7422 = vadd.xlane.f32.xlu0 %v7421
      %v7423 = vpop.xlane.xlu0 %7422
      %v7424 = vsel %vm444, %v7377, 0.0
      %7425 = vadd.xlane.f32.xlu0 %v7424
      %v7426 = vpop.xlane.xlu0 %7425
      %v7427 = vsel %vm444, %v7380, 0.0
      %7428 = vadd.xlane.f32.xlu0 %v7427
      %v7429 = vpop.xlane.xlu0 %7428
      %v7430 = vsel %vm444, %v7383, 0.0
      %7431 = vadd.xlane.f32.xlu0 %v7430
      %v7432 = vpop.xlane.xlu0 %7431
      %v7433 = vsel %vm444, %v7386, 0.0
      %7434 = vadd.xlane.f32.xlu0 %v7433
      %v7435 = vpop.xlane.xlu0 %7434
      %v7436 = vsel %vm444, %v7389, 0.0
      %7437 = vadd.xlane.f32.xlu0 %v7436
      %v7438 = vpop.xlane.xlu0 %7437
      %v7439 = vsel %vm444, %v7392, 0.0
      %7440 = vadd.xlane.f32.xlu0 %v7439
      %v7441 = vpop.xlane.xlu0 %7440
      %v7442 = vsel %vm444, %v7395, 0.0
      %7443 = vadd.xlane.f32.xlu0 %v7442
      %v7444 = vpop.xlane.xlu0 %7443
      %v7445 = vmul.f32 %v7399, %v547
      %v7446 = vmul.f32 %v7402, %v547
      %v7447 = vmul.f32 %v7405, %v547
      %v7448 = vmul.f32 %v7408, %v547
      %v7449 = vmul.f32 %v7411, %v547
      %v7450 = vmul.f32 %v7414, %v547
      %v7451 = vmul.f32 %v7417, %v547
      %v7452 = vmul.f32 %v7420, %v547
      %v7453 = vmul.f32 %v7423, %v547
      %v7454 = vmul.f32 %v7426, %v547
      %v7455 = vmul.f32 %v7429, %v547
      %v7456 = vmul.f32 %v7432, %v547
      %v7457 = vmul.f32 %v7435, %v547
      %v7458 = vmul.f32 %v7438, %v547
      %v7459 = vmul.f32 %v7441, %v547
      %v7460 = vmul.f32 %v7444, %v547
      %v7461 = vsub.f32 %v7350, %v7445
      %v7462 = vsub.f32 %v7353, %v7446
      %v7463 = vsub.f32 %v7356, %v7447
      %v7464 = vsub.f32 %v7359, %v7448
      %v7465 = vsub.f32 %v7362, %v7449
      %v7466 = vsub.f32 %v7365, %v7450
      %v7467 = vsub.f32 %v7368, %v7451
      %v7468 = vsub.f32 %v7371, %v7452
      %v7469 = vsub.f32 %v7374, %v7453
      %v7470 = vsub.f32 %v7377, %v7454
      %v7471 = vsub.f32 %v7380, %v7455
      %v7472 = vsub.f32 %v7383, %v7456
      %v7473 = vsub.f32 %v7386, %v7457
      %v7474 = vsub.f32 %v7389, %v7458
      %v7475 = vsub.f32 %v7392, %v7459
      %v7476 = vsub.f32 %v7395, %v7460
      %v7477 = vmul.f32 %v7461, %v7461
      %v7478 = vmul.f32 %v7462, %v7462
      %v7479 = vmul.f32 %v7463, %v7463
      %v7480 = vmul.f32 %v7464, %v7464
      %v7481 = vmul.f32 %v7465, %v7465
      %v7482 = vmul.f32 %v7466, %v7466
      %v7483 = vmul.f32 %v7467, %v7467
      %v7484 = vmul.f32 %v7468, %v7468
      %v7485 = vmul.f32 %v7469, %v7469
      %v7486 = vmul.f32 %v7470, %v7470
      %v7487 = vmul.f32 %v7471, %v7471
      %v7488 = vmul.f32 %v7472, %v7472
      %v7489 = vmul.f32 %v7473, %v7473
      %v7490 = vmul.f32 %v7474, %v7474
      %v7491 = vmul.f32 %v7475, %v7475
      %v7492 = vmul.f32 %v7476, %v7476
      %v7493 = vsel %vm444, %v7477, 0.0
      %7494 = vadd.xlane.f32.xlu0 %v7493
      %v7495 = vpop.xlane.xlu0 %7494
      %v7496 = vsel %vm444, %v7478, 0.0
      %7497 = vadd.xlane.f32.xlu0 %v7496
      %v7498 = vpop.xlane.xlu0 %7497
      %v7499 = vsel %vm444, %v7479, 0.0
      %7500 = vadd.xlane.f32.xlu0 %v7499
      %v7501 = vpop.xlane.xlu0 %7500
      %v7502 = vsel %vm444, %v7480, 0.0
      %7503 = vadd.xlane.f32.xlu0 %v7502
      %v7504 = vpop.xlane.xlu0 %7503
      %v7505 = vsel %vm444, %v7481, 0.0
      %7506 = vadd.xlane.f32.xlu0 %v7505
      %v7507 = vpop.xlane.xlu0 %7506
      %v7508 = vsel %vm444, %v7482, 0.0
      %7509 = vadd.xlane.f32.xlu0 %v7508
      %v7510 = vpop.xlane.xlu0 %7509
      %v7511 = vsel %vm444, %v7483, 0.0
      %7512 = vadd.xlane.f32.xlu0 %v7511
      %v7513 = vpop.xlane.xlu0 %7512
      %v7514 = vsel %vm444, %v7484, 0.0
      %7515 = vadd.xlane.f32.xlu0 %v7514
      %v7516 = vpop.xlane.xlu0 %7515
      %v7517 = vsel %vm444, %v7485, 0.0
      %7518 = vadd.xlane.f32.xlu0 %v7517
      %v7519 = vpop.xlane.xlu0 %7518
      %v7520 = vsel %vm444, %v7486, 0.0
      %7521 = vadd.xlane.f32.xlu0 %v7520
      %v7522 = vpop.xlane.xlu0 %7521
      %v7523 = vsel %vm444, %v7487, 0.0
      %7524 = vadd.xlane.f32.xlu0 %v7523
      %v7525 = vpop.xlane.xlu0 %7524
      %v7526 = vsel %vm444, %v7488, 0.0
      %7527 = vadd.xlane.f32.xlu0 %v7526
      %v7528 = vpop.xlane.xlu0 %7527
      %v7529 = vsel %vm444, %v7489, 0.0
      %7530 = vadd.xlane.f32.xlu0 %v7529
      %v7531 = vpop.xlane.xlu0 %7530
      %v7532 = vsel %vm444, %v7490, 0.0
      %7533 = vadd.xlane.f32.xlu0 %v7532
      %v7534 = vpop.xlane.xlu0 %7533
      %v7535 = vsel %vm444, %v7491, 0.0
      %7536 = vadd.xlane.f32.xlu0 %v7535
      %v7537 = vpop.xlane.xlu0 %7536
      %v7538 = vsel %vm444, %v7492, 0.0
      %7539 = vadd.xlane.f32.xlu0 %v7538
      %v7540 = vpop.xlane.xlu0 %7539
      %v7541 = vmul.f32 %v7495, %v547
      %v7542 = vmul.f32 %v7498, %v547
      %v7543 = vmul.f32 %v7501, %v547
      %v7544 = vmul.f32 %v7504, %v547
      %v7545 = vmul.f32 %v7507, %v547
      %v7546 = vmul.f32 %v7510, %v547
      %v7547 = vmul.f32 %v7513, %v547
      %v7548 = vmul.f32 %v7516, %v547
      %v7549 = vmul.f32 %v7519, %v547
      %v7550 = vmul.f32 %v7522, %v547
      %v7551 = vmul.f32 %v7525, %v547
      %v7552 = vmul.f32 %v7528, %v547
      %v7553 = vmul.f32 %v7531, %v547
      %v7554 = vmul.f32 %v7534, %v547
      %v7555 = vmul.f32 %v7537, %v547
      %v7556 = vmul.f32 %v7540, %v547
      %v7557 = vadd.f32 %v7541, 1e-05
      %v7558 = vadd.f32 %v7542, 1e-05
      %v7559 = vadd.f32 %v7543, 1e-05
      %v7560 = vadd.f32 %v7544, 1e-05
      %v7561 = vadd.f32 %v7545, 1e-05
      %v7562 = vadd.f32 %v7546, 1e-05
      %v7563 = vadd.f32 %v7547, 1e-05
      %v7564 = vadd.f32 %v7548, 1e-05
      %v7565 = vadd.f32 %v7549, 1e-05
      %v7566 = vadd.f32 %v7550, 1e-05
      %v7567 = vadd.f32 %v7551, 1e-05
      %v7568 = vadd.f32 %v7552, 1e-05
      %v7569 = vadd.f32 %v7553, 1e-05
      %v7570 = vadd.f32 %v7554, 1e-05
      %v7571 = vadd.f32 %v7555, 1e-05
      %v7572 = vadd.f32 %v7556, 1e-05
      %v7573 = vrsqrt.pop %v7557
      %v7574 = vmul.f32 %v7573, %v7557
      %v7575 = vmul.f32 %v7574, %v7573
      %v7576 = vmul.f32 0.5, %v7575
      %v7577 = vsub.f32 1.5, %v7576
      %v7578 = vmul.f32 %v7573, %v7577
      %vm7579 = vweird.f32 %v7557
      %vm7580 = vweird.f32 %v7573
      %vm7581 = vmor %vm7579, %vm7580
      %v7582 = vsel %vm7581, %v7573, %v7578
      %v7583 = vrsqrt.pop %v7558
      %v7584 = vmul.f32 %v7583, %v7558
      %v7585 = vmul.f32 %v7584, %v7583
      %v7586 = vmul.f32 0.5, %v7585
      %v7587 = vsub.f32 1.5, %v7586
      %v7588 = vmul.f32 %v7583, %v7587
      %vm7589 = vweird.f32 %v7558
      %vm7590 = vweird.f32 %v7583
      %vm7591 = vmor %vm7589, %vm7590
      %v7592 = vsel %vm7591, %v7583, %v7588
      %v7593 = vrsqrt.pop %v7559
      %v7594 = vmul.f32 %v7593, %v7559
      %v7595 = vmul.f32 %v7594, %v7593
      %v7596 = vmul.f32 0.5, %v7595
      %v7597 = vsub.f32 1.5, %v7596
      %v7598 = vmul.f32 %v7593, %v7597
      %vm7599 = vweird.f32 %v7559
      %vm7600 = vweird.f32 %v7593
      %vm7601 = vmor %vm7599, %vm7600
      %v7602 = vsel %vm7601, %v7593, %v7598
      %v7603 = vrsqrt.pop %v7560
      %v7604 = vmul.f32 %v7603, %v7560
      %v7605 = vmul.f32 %v7604, %v7603
      %v7606 = vmul.f32 0.5, %v7605
      %v7607 = vsub.f32 1.5, %v7606
      %v7608 = vmul.f32 %v7603, %v7607
      %vm7609 = vweird.f32 %v7560
      %vm7610 = vweird.f32 %v7603
      %vm7611 = vmor %vm7609, %vm7610
      %v7612 = vsel %vm7611, %v7603, %v7608
      %v7613 = vrsqrt.pop %v7561
      %v7614 = vmul.f32 %v7613, %v7561
      %v7615 = vmul.f32 %v7614, %v7613
      %v7616 = vmul.f32 0.5, %v7615
      %v7617 = vsub.f32 1.5, %v7616
      %v7618 = vmul.f32 %v7613, %v7617
      %vm7619 = vweird.f32 %v7561
      %vm7620 = vweird.f32 %v7613
      %vm7621 = vmor %vm7619, %vm7620
      %v7622 = vsel %vm7621, %v7613, %v7618
      %v7623 = vrsqrt.pop %v7562
      %v7624 = vmul.f32 %v7623, %v7562
      %v7625 = vmul.f32 %v7624, %v7623
      %v7626 = vmul.f32 0.5, %v7625
      %v7627 = vsub.f32 1.5, %v7626
      %v7628 = vmul.f32 %v7623, %v7627
      %vm7629 = vweird.f32 %v7562
      %vm7630 = vweird.f32 %v7623
      %vm7631 = vmor %vm7629, %vm7630
      %v7632 = vsel %vm7631, %v7623, %v7628
      %v7633 = vrsqrt.pop %v7563
      %v7634 = vmul.f32 %v7633, %v7563
      %v7635 = vmul.f32 %v7634, %v7633
      %v7636 = vmul.f32 0.5, %v7635
      %v7637 = vsub.f32 1.5, %v7636
      %v7638 = vmul.f32 %v7633, %v7637
      %vm7639 = vweird.f32 %v7563
      %vm7640 = vweird.f32 %v7633
      %vm7641 = vmor %vm7639, %vm7640
      %v7642 = vsel %vm7641, %v7633, %v7638
      %v7643 = vrsqrt.pop %v7564
      %v7644 = vmul.f32 %v7643, %v7564
      %v7645 = vmul.f32 %v7644, %v7643
      %v7646 = vmul.f32 0.5, %v7645
      %v7647 = vsub.f32 1.5, %v7646
      %v7648 = vmul.f32 %v7643, %v7647
      %vm7649 = vweird.f32 %v7564
      %vm7650 = vweird.f32 %v7643
      %vm7651 = vmor %vm7649, %vm7650
      %v7652 = vsel %vm7651, %v7643, %v7648
      %v7653 = vrsqrt.pop %v7565
      %v7654 = vmul.f32 %v7653, %v7565
      %v7655 = vmul.f32 %v7654, %v7653
      %v7656 = vmul.f32 0.5, %v7655
      %v7657 = vsub.f32 1.5, %v7656
      %v7658 = vmul.f32 %v7653, %v7657
      %vm7659 = vweird.f32 %v7565
      %vm7660 = vweird.f32 %v7653
      %vm7661 = vmor %vm7659, %vm7660
      %v7662 = vsel %vm7661, %v7653, %v7658
      %v7663 = vrsqrt.pop %v7566
      %v7664 = vmul.f32 %v7663, %v7566
      %v7665 = vmul.f32 %v7664, %v7663
      %v7666 = vmul.f32 0.5, %v7665
      %v7667 = vsub.f32 1.5, %v7666
      %v7668 = vmul.f32 %v7663, %v7667
      %vm7669 = vweird.f32 %v7566
      %vm7670 = vweird.f32 %v7663
      %vm7671 = vmor %vm7669, %vm7670
      %v7672 = vsel %vm7671, %v7663, %v7668
      %v7673 = vrsqrt.pop %v7567
      %v7674 = vmul.f32 %v7673, %v7567
      %v7675 = vmul.f32 %v7674, %v7673
      %v7676 = vmul.f32 0.5, %v7675
      %v7677 = vsub.f32 1.5, %v7676
      %v7678 = vmul.f32 %v7673, %v7677
      %vm7679 = vweird.f32 %v7567
      %vm7680 = vweird.f32 %v7673
      %vm7681 = vmor %vm7679, %vm7680
      %v7682 = vsel %vm7681, %v7673, %v7678
      %v7683 = vrsqrt.pop %v7568
      %v7684 = vmul.f32 %v7683, %v7568
      %v7685 = vmul.f32 %v7684, %v7683
      %v7686 = vmul.f32 0.5, %v7685
      %v7687 = vsub.f32 1.5, %v7686
      %v7688 = vmul.f32 %v7683, %v7687
      %vm7689 = vweird.f32 %v7568
      %vm7690 = vweird.f32 %v7683
      %vm7691 = vmor %vm7689, %vm7690
      %v7692 = vsel %vm7691, %v7683, %v7688
      %v7693 = vrsqrt.pop %v7569
      %v7694 = vmul.f32 %v7693, %v7569
      %v7695 = vmul.f32 %v7694, %v7693
      %v7696 = vmul.f32 0.5, %v7695
      %v7697 = vsub.f32 1.5, %v7696
      %v7698 = vmul.f32 %v7693, %v7697
      %vm7699 = vweird.f32 %v7569
      %vm7700 = vweird.f32 %v7693
      %vm7701 = vmor %vm7699, %vm7700
      %v7702 = vsel %vm7701, %v7693, %v7698
      %v7703 = vrsqrt.pop %v7570
      %v7704 = vmul.f32 %v7703, %v7570
      %v7705 = vmul.f32 %v7704, %v7703
      %v7706 = vmul.f32 0.5, %v7705
      %v7707 = vsub.f32 1.5, %v7706
      %v7708 = vmul.f32 %v7703, %v7707
      %vm7709 = vweird.f32 %v7570
      %vm7710 = vweird.f32 %v7703
      %vm7711 = vmor %vm7709, %vm7710
      %v7712 = vsel %vm7711, %v7703, %v7708
      %v7713 = vrsqrt.pop %v7571
      %v7714 = vmul.f32 %v7713, %v7571
      %v7715 = vmul.f32 %v7714, %v7713
      %v7716 = vmul.f32 0.5, %v7715
      %v7717 = vsub.f32 1.5, %v7716
      %v7718 = vmul.f32 %v7713, %v7717
      %vm7719 = vweird.f32 %v7571
      %vm7720 = vweird.f32 %v7713
      %vm7721 = vmor %vm7719, %vm7720
      %v7722 = vsel %vm7721, %v7713, %v7718
      %v7723 = vrsqrt.pop %v7572
      %v7724 = vmul.f32 %v7723, %v7572
      %v7725 = vmul.f32 %v7724, %v7723
      %v7726 = vmul.f32 0.5, %v7725
      %v7727 = vsub.f32 1.5, %v7726
      %v7728 = vmul.f32 %v7723, %v7727
      %vm7729 = vweird.f32 %v7572
      %vm7730 = vweird.f32 %v7723
      %vm7731 = vmor %vm7729, %vm7730
      %v7732 = vsel %vm7731, %v7723, %v7728
      %v7733 = vmul.f32 %v7461, %v7582
      %v7734 = vmul.f32 %v7462, %v7592
      %v7735 = vmul.f32 %v7463, %v7602
      %v7736 = vmul.f32 %v7464, %v7612
      %v7737 = vmul.f32 %v7465, %v7622
      %v7738 = vmul.f32 %v7466, %v7632
      %v7739 = vmul.f32 %v7467, %v7642
      %v7740 = vmul.f32 %v7468, %v7652
      %v7741 = vmul.f32 %v7469, %v7662
      %v7742 = vmul.f32 %v7470, %v7672
      %v7743 = vmul.f32 %v7471, %v7682
      %v7744 = vmul.f32 %v7472, %v7692
      %v7745 = vmul.f32 %v7473, %v7702
      %v7746 = vmul.f32 %v7474, %v7712
      %v7747 = vmul.f32 %v7475, %v7722
      %v7748 = vmul.f32 %v7476, %v7732
      %v7749 = vperm.slane %v1369, 3
      %v7750 = vmul.f32 %v7733, %v7749
      %v7751 = vmul.f32 %v7734, %v7749
      %v7752 = vmul.f32 %v7735, %v7749
      %v7753 = vmul.f32 %v7736, %v7749
      %v7754 = vmul.f32 %v7737, %v7749
      %v7755 = vmul.f32 %v7738, %v7749
      %v7756 = vmul.f32 %v7739, %v7749
      %v7757 = vmul.f32 %v7740, %v7749
      %v7758 = vmul.f32 %v7741, %v7749
      %v7759 = vmul.f32 %v7742, %v7749
      %v7760 = vmul.f32 %v7743, %v7749
      %v7761 = vmul.f32 %v7744, %v7749
      %v7762 = vmul.f32 %v7745, %v7749
      %v7763 = vmul.f32 %v7746, %v7749
      %v7764 = vmul.f32 %v7747, %v7749
      %v7765 = vmul.f32 %v7748, %v7749
      %v7766 = vperm.slane %v1369, 4
      %v7767 = vadd.f32 %v7750, %v7766
      %v7768 = vadd.f32 %v7751, %v7766
      %v7769 = vadd.f32 %v7752, %v7766
      %v7770 = vadd.f32 %v7753, %v7766
      %v7771 = vadd.f32 %v7754, %v7766
      %v7772 = vadd.f32 %v7755, %v7766
      %v7773 = vadd.f32 %v7756, %v7766
      %v7774 = vadd.f32 %v7757, %v7766
      %v7775 = vadd.f32 %v7758, %v7766
      %v7776 = vadd.f32 %v7759, %v7766
      %v7777 = vadd.f32 %v7760, %v7766
      %v7778 = vadd.f32 %v7761, %v7766
      %v7779 = vadd.f32 %v7762, %v7766
      %v7780 = vadd.f32 %v7763, %v7766
      %v7781 = vadd.f32 %v7764, %v7766
      %v7782 = vadd.f32 %v7765, %v7766
      %7783 = vst.msk [vmem:[%s410] sm:$0xff] %vm444, %v7767
      %7784 = vst.msk [vmem:[%s410 + $0x8] sm:$0xff] %vm444, %v7768
      %7785 = vst.msk [vmem:[%s410 + $0x10] sm:$0xff] %vm444, %v7769
      %7786 = vst.msk [vmem:[%s410 + $0x18] sm:$0xff] %vm444, %v7770
      %7787 = vst.msk [vmem:[%s410 + $0x20] sm:$0xff] %vm444, %v7771
      %7788 = vst.msk [vmem:[%s410 + $0x28] sm:$0xff] %vm444, %v7772
      %7789 = vst.msk [vmem:[%s410 + $0x30] sm:$0xff] %vm444, %v7773
      %7790 = vst.msk [vmem:[%s410 + $0x38] sm:$0xff] %vm444, %v7774
      %7791 = vst.msk [vmem:[%s410 + $0x40] sm:$0xff] %vm444, %v7775
      %7792 = vst.msk [vmem:[%s410 + $0x48] sm:$0xff] %vm444, %v7776
      %7793 = vst.msk [vmem:[%s410 + $0x50] sm:$0xff] %vm444, %v7777
      %7794 = vst.msk [vmem:[%s410 + $0x58] sm:$0xff] %vm444, %v7778
      %7795 = vst.msk [vmem:[%s410 + $0x60] sm:$0xff] %vm444, %v7779
      %7796 = vst.msk [vmem:[%s410 + $0x68] sm:$0xff] %vm444, %v7780
      %7797 = vst.msk [vmem:[%s410 + $0x70] sm:$0xff] %vm444, %v7781
      %7798 = vst.msk [vmem:[%s410 + $0x78] sm:$0xff] %vm444, %v7782
      %s7799 = smul.u32 16, %s22
      %p7800 = scmp.lt.s32.totalorder %s7799, 63
      %s7801 = scalar_select %p7800, %s7799, 63
      %s7802 = smul.addr %s7801, 8
      %s7803 = scalar_lea.vmem %s11, %s7802
      // Predicated region
      $region65: #{attn_pool_batched.1} parent=63 // pred_check
        %p7804 = pneg %p281
      $region66: #{attn_pool_batched.1} parent=63 // pred_check_branch
        %7806 = sbr.rel (%p7804) target = $region68
      $region67: #{attn_pool_batched.1} parent=63 // pred_region
        %s7807 = smul.u32 16, %s22
      $region68: #{attn_pool_batched.1} parent=63 // pred_fallthru
        _
    $region64: #{attn_pool_batched.1} parent=5 // pred_fallthru
      _
    %p7808 = scmp.le.s32.totalorder 2, %s17
    // Predicated region
    $region69: #{attn_pool_batched.1} parent=5 // pred_check
      %p7809 = pneg %p7808
    $region70: #{attn_pool_batched.1} parent=5 // pred_check_branch
      %7811 = sbr.rel (%p7809) target = $region72
    $region71: #{attn_pool_batched.1} parent=5 // pred_region
      %s7812 = ssub.s32 %s17, 2
      // Predicated region
      $region73: #{attn_pool_batched.1} parent=71 // pred_check
        %p7813 = pneg %p287
      $region74: #{attn_pool_batched.1} parent=71 // pred_check_branch
        %7815 = sbr.rel (%p7813) target = $region76
      $region75: #{attn_pool_batched.1} parent=71 // pred_region
        %s7816 = smul.u32 16, %s23
        %p7817 = scmp.lt.s32.totalorder %s7816, 63
        %s7818 = scalar_select %p7817, %s7816, 63
        %s7819 = smul.addr %s7818, 8
        %s7820 = scalar_lea.vmem %s11, %s7819
      $region76: #{attn_pool_batched.1} parent=71 // pred_fallthru
        _
    $region72: #{attn_pool_batched.1} parent=5 // pred_fallthru
      _
  $region6: #{attn_pool_batched.1} parent=0 // loop_footer
    %s21 = sadd.s32 1, %s17
  $region7: #{attn_pool_batched.1} parent=0 // loop_footer_branch
    %16 = sbr.rel target = $region3
  $region8: #{attn_pool_batched.1} parent=0 // loop_exit
    _

</llo_original>
